<compile_context>
chip_gen: v6e
topology: v6e:2x2x1
jax: 0.10.0
libtpu: 0.0.40
codegen_flags: <defaults>
</compile_context>

<pallas_src>
import numpy as np
import jax
import jax.numpy as jnp
from jax import lax
from jax.experimental import pallas as pl
from jax.experimental.pallas import tpu as pltpu


_VMEM = pl.BlockSpec(memory_space=pltpu.MemorySpace.VMEM)


# ----------------------------- Pallas kernels ------------------------------

def linear_kernel(x_ref, w_ref, b_ref, o_ref):
    """o = x @ w + b  (single lane-dense MXU matmul)."""
    o_ref[...] = (jnp.dot(x_ref[...], w_ref[...],
                          preferred_element_type=jnp.float32) + b_ref[...])


def classifier_kernel(ctx_ref, h_ref, wcc_ref, wch_ref, bc_ref, o_ref):
    """Batched classifier epilogue: logits = [ctx|h] @ Wc + bc (split matmuls)."""
    o_ref[...] = (jnp.dot(ctx_ref[...], wcc_ref[...],
                          preferred_element_type=jnp.float32)
                  + jnp.dot(h_ref[...], wch_ref[...],
                            preferred_element_type=jnp.float32)
                  + bc_ref[...])


def bigru_encoder_kernel(len_ref, gif_ref, gib_ref,
                         whh_f_ref, bhh_f_ref, whh_b_ref, bhh_b_ref,
                         out_f_ref, out_b_ref, hfin_f_ref, hfin_b_ref):
    """Bidirectional GRU recurrence.

    gif/gib are the *precomputed* fused-gate input projections
    (x_t @ W_ih + b_ih, gate order r|z|n) for the forward / backward
    directions, shape (S, B, 3H).  Only the recurrent (B,H)@(H,3H) matmul
    stays in the loop.
    """
    S, B, _ = gif_ref.shape
    H = whh_f_ref.shape[0]
    lengths = len_ref[...]                                 # (B, 1) int32

    whh_f = whh_f_ref[...]
    whh_b = whh_b_ref[...]
    # hoist bias broadcasts out of the time loops
    bhh_f = jnp.broadcast_to(bhh_f_ref[...], (B, 3 * H))
    bhh_b = jnp.broadcast_to(bhh_b_ref[...], (B, 3 * H))

    def gru_step(gi, h, whh, bhh):
        gh = jnp.dot(h, whh, preferred_element_type=jnp.float32) + bhh  # (B,3H)
        r = jax.nn.sigmoid(gi[:, :H] + gh[:, :H])
        z = jax.nn.sigmoid(gi[:, H:2 * H] + gh[:, H:2 * H])
        n = jnp.tanh(gi[:, 2 * H:] + r * gh[:, 2 * H:])
        return (1.0 - z) * n + z * h

    h_init = jnp.zeros((B, H), jnp.float32)

    # ---- forward direction -------------------------------------------------
    def fwd_body(t, h):
        h_new = gru_step(gif_ref[t], h, whh_f, bhh_f)
        valid = t < lengths                                # (B, 1)
        out_f_ref[t] = jnp.where(valid, h_new, 0.0)
        return jnp.where(valid, h_new, h)

    hf = lax.fori_loop(0, S, fwd_body, h_init, unroll=True)
    hfin_f_ref[...] = hf

    # ---- backward direction (each example's valid reversed prefix) ---------
    def bwd_body(j, h):
        t = (S - 1) - j
        h_new = gru_step(gib_ref[t], h, whh_b, bhh_b)
        valid = t < lengths
        out_b_ref[t] = jnp.where(valid, h_new, 0.0)
        return jnp.where(valid, h_new, h)

    hb = lax.fori_loop(0, S, bwd_body, h_init, unroll=True)
    hfin_b_ref[...] = hb


def attn_decoder_kernel(giy_ref, enc_ref, h0_ref,
                        wm_ref, bm_ref, wihc_ref, whh_ref, bhh_ref,
                        ht_ref, ctx_ref):
    """Single-call attention-GRU decoder recurrence (all T steps in-kernel).

    giy = y_t @ W_ih_y + b_ih precomputed for all steps.  Emits per-step
    hidden states and context vectors; the classifier runs in a batched
    epilogue kernel.
    """
    T = giy_ref.shape[0]
    B, S, D = enc_ref.shape

    enc = enc_ref[...]                                     # (B,S,D), invariant
    wihc = wihc_ref[...]
    whh = whh_ref[...]
    bhh = jnp.broadcast_to(bhh_ref[...], (B, 3 * D))       # hoisted broadcast

    # hidden_map(initial_hidden_state) once, outside the decode loop
    h0 = (jnp.dot(h0_ref[...], wm_ref[...],
                  preferred_element_type=jnp.float32) + bm_ref[...])
    ctx0 = jnp.zeros((B, D), jnp.float32)

    def body(t, carry):
        h, ctx = carry

        # GRUCell on concat([y_t, ctx]) as split, fused-gate matmuls
        gi = giy_ref[t] + jnp.dot(ctx, wihc,
                                  preferred_element_type=jnp.float32)   # (B,3D)
        gh = jnp.dot(h, whh, preferred_element_type=jnp.float32) + bhh  # (B,3D)
        r = jax.nn.sigmoid(gi[:, :D] + gh[:, :D])
        z = jax.nn.sigmoid(gi[:, D:2 * D] + gh[:, D:2 * D])
        n = jnp.tanh(gi[:, 2 * D:] + r * gh[:, 2 * D:])
        h_new = (1.0 - z) * n + z * h

        # dot-product attention on the MXU (batched einsums, flash-style)
        q = h_new[:, None, :]                                           # (B,1,D)
        s = jnp.einsum('bqd,bsd->bqs', q, enc,
                       preferred_element_type=jnp.float32)              # (B,1,S)
        m = jnp.max(s, axis=-1, keepdims=True)
        e = jnp.exp(s - m)
        denom = jnp.sum(e, axis=-1, keepdims=True)
        p_attn = e * pl.reciprocal(denom, approx=True)                  # (B,1,S)
        c3 = jnp.einsum('bqs,bsd->bqd', p_attn, enc,
                        preferred_element_type=jnp.float32)             # (B,1,D)
        ctx_new = jnp.sum(c3, axis=1)                                   # (B,D)

        ht_ref[t] = h_new
        ctx_ref[t] = ctx_new
        return (h_new, ctx_new)

    lax.fori_loop(0, T, body, (h0, ctx0), unroll=True)


# ------------------------------ wrappers ------------------------------------

def linear_pallas(x2d, w, b):
    n = x2d.shape[0]
    m = w.shape[1]
    return pl.pallas_call(
        linear_kernel,
        out_shape=jax.ShapeDtypeStruct((n, m), jnp.float32),
        in_specs=[_VMEM, _VMEM, _VMEM],
        out_specs=_VMEM,
    )(x2d, w, b)


def classifier_pallas(ctx2d, h2d, wcc, wch, bc):
    n = ctx2d.shape[0]
    v = wcc.shape[1]
    return pl.pallas_call(
        classifier_kernel,
        out_shape=jax.ShapeDtypeStruct((n, v), jnp.float32),
        in_specs=[_VMEM] * 5,
        out_specs=_VMEM,
    )(ctx2d, h2d, wcc, wch, bc)


def encoder_pallas(gif, gib, lengths, p):
    S, B, _ = gif.shape
    H = p['whh_f'].shape[0]
    out_f, out_b, hf, hb = pl.pallas_call(
        bigru_encoder_kernel,
        out_shape=(jax.ShapeDtypeStruct((S, B, H), jnp.float32),
                   jax.ShapeDtypeStruct((S, B, H), jnp.float32),
                   jax.ShapeDtypeStruct((B, H), jnp.float32),
                   jax.ShapeDtypeStruct((B, H), jnp.float32)),
        in_specs=[_VMEM] * 7,
        out_specs=(_VMEM,) * 4,
    )(lengths.astype(jnp.int32).reshape(B, 1), gif, gib,
      p['whh_f'], p['bhh_f'], p['whh_b'], p['bhh_b'])
    # TODO(synk): emit (B,S,2H) directly from the kernel once unaligned
    # minor-dim concat / strided stores are exercised; concat+transpose glue
    # stays in XLA here.
    enc_state = jnp.transpose(jnp.concatenate([out_f, out_b], axis=-1),
                              (1, 0, 2))                   # (B, S, 2H)
    h0 = jnp.concatenate([hf, hb], axis=-1)                # (B, 2H)
    return enc_state, h0


def decoder_pallas(giy, enc_state, h0, p):
    T, B, _ = giy.shape
    D = enc_state.shape[-1]
    return pl.pallas_call(
        attn_decoder_kernel,
        out_shape=(jax.ShapeDtypeStruct((T, B, D), jnp.float32),
                   jax.ShapeDtypeStruct((T, B, D), jnp.float32)),
        in_specs=[_VMEM] * 8,
        out_specs=(_VMEM, _VMEM),
    )(giy, enc_state, h0,
      p['wm'], p['bm'], p['wih_c'], p['whh_d'], p['bhh_d'])


def attention_model_forward(x_source, x_lengths, target_sequence, p):
    B, S = x_source.shape
    T = target_sequence.shape[1]
    H = p['whh_f'].shape[0]
    D = 2 * H
    V = p['wc_ctx'].shape[1]

    # ---- encoder -----------------------------------------------------------
    # Embedding lookups (gathers) are glue, done in plain JAX.
    x_emb = p['src_emb'][x_source]                         # (B, S, E)
    x_tb = jnp.transpose(x_emb, (1, 0, 2))                 # (S, B, E) time-major
    # Hoisted fused-gate input projection for BOTH directions in ONE matmul:
    #   (S*B, E) @ (E, 6H), gate order (r|z|n) fwd then bwd, bias folded in.
    wih_enc = jnp.concatenate([p['wih_f'], p['wih_b']], axis=1)   # (E, 6H)
    bih_enc = jnp.concatenate([p['bih_f'], p['bih_b']], axis=1)   # (1, 6H)
    gi_enc = linear_pallas(x_tb.reshape(S * B, -1), wih_enc, bih_enc)
    gi_enc = gi_enc.reshape(S, B, 6 * H)
    gif, gib = gi_enc[..., :3 * H], gi_enc[..., 3 * H:]
    enc_state, h0 = encoder_pallas(gif, gib, x_lengths, p)

    # ---- decoder (teacher forcing) -----------------------------------------
    y_emb = p['tgt_emb'][target_sequence.T]                # (T, B, Et)
    giy = linear_pallas(y_emb.reshape(T * B, -1), p['wih_y'], p['bih_d'])
    giy = giy.reshape(T, B, 3 * D)
    ht_all, ctx_all = decoder_pallas(giy, enc_state, h0, p)

    # ---- classifier epilogue: one batched matmul over all decode steps -----
    logits = classifier_pallas(ctx_all.reshape(T * B, D), ht_all.reshape(T * B, D),
                               p['wc_ctx'], p['wc_h'], p['bc'])
    return logits.reshape(T, B, V)


# ------------------------- parameters / reference ---------------------------

def init_params(key, src_vocab, src_emb_size, tgt_vocab, tgt_emb_size, enc_size):
    H = enc_size
    D = 2 * enc_size
    E = src_emb_size
    Et = tgt_emb_size
    ks = jax.random.split(key, 20)

    def u(k, shape):
        return jax.random.uniform(k, shape, jnp.float32, -0.1, 0.1)

    p = {}
    p['src_emb'] = u(ks[0], (src_vocab, E)).at[0].set(0.0)       # padding_idx=0
    p['tgt_emb'] = u(ks[1], (tgt_vocab, Et)).at[0].set(0.0)      # padding_idx=0
    # encoder bidirectional GRU, fused gates (r|z|n) along the output dim
    p['wih_f'] = u(ks[2], (E, 3 * H)); p['whh_f'] = u(ks[3], (H, 3 * H))
    p['bih_f'] = u(ks[4], (1, 3 * H)); p['bhh_f'] = u(ks[5], (1, 3 * H))
    p['wih_b'] = u(ks[6], (E, 3 * H)); p['whh_b'] = u(ks[7], (H, 3 * H))
    p['bih_b'] = u(ks[8], (1, 3 * H)); p['bhh_b'] = u(ks[9], (1, 3 * H))
    # decoder
    p['wm'] = u(ks[10], (D, D)); p['bm'] = u(ks[11], (1, D))     # hidden_map
    p['wih_y'] = u(ks[12], (Et, 3 * D))                          # GRUCell W_ih (embedding cols)
    p['wih_c'] = u(ks[13], (D, 3 * D))                           # GRUCell W_ih (context cols)
    p['whh_d'] = u(ks[14], (D, 3 * D))
    p['bih_d'] = u(ks[15], (1, 3 * D)); p['bhh_d'] = u(ks[16], (1, 3 * D))
    p['wc_ctx'] = u(ks[17], (D, tgt_vocab))                      # classifier (context part)
    p['wc_h'] = u(ks[18], (D, tgt_vocab))                        # classifier (h_t part)
    p['bc'] = u(ks[19], (1, tgt_vocab))
    return p


def reference_forward(x_source, x_lengths, target_sequence, p):
    """Pure-JAX reference with identical math (for correctness check)."""
    x_emb = p['src_emb'][x_source]
    B, S, _ = x_emb.shape
    H = p['whh_f'].shape[0]
    D = 2 * H

    def gru(gi, h, whh, bhh, hs):
        gh = h @ whh + bhh
        r = jax.nn.sigmoid(gi[:, :hs] + gh[:, :hs])
        z = jax.nn.sigmoid(gi[:, hs:2 * hs] + gh[:, hs:2 * hs])
        n = jnp.tanh(gi[:, 2 * hs:] + r * gh[:, 2 * hs:])
        return (1.0 - z) * n + z * h

    lens = x_lengths[:, None]
    gif = x_emb @ p['wih_f'] + p['bih_f']                  # (B,S,3H)
    gib = x_emb @ p['wih_b'] + p['bih_b']
    hf = jnp.zeros((B, H), jnp.float32)
    out_f = []
    for t in range(S):
        hn = gru(gif[:, t], hf, p['whh_f'], p['bhh_f'], H)
        valid = t < lens
        hf = jnp.where(valid, hn, hf)
        out_f.append(jnp.where(valid, hn, 0.0))
    hb = jnp.zeros((B, H), jnp.float32)
    out_b = [None] * S
    for t in range(S - 1, -1, -1):
        hn = gru(gib[:, t], hb, p['whh_b'], p['bhh_b'], H)
        valid = t < lens
        hb = jnp.where(valid, hn, hb)
        out_b[t] = jnp.where(valid, hn, 0.0)
    enc = jnp.concatenate([jnp.stack(out_f, 1), jnp.stack(out_b, 1)], -1)  # (B,S,2H)
    h0 = jnp.concatenate([hf, hb], -1)                                      # (B,2H)

    h_t = h0 @ p['wm'] + p['bm']
    ctx = jnp.zeros((B, D), jnp.float32)
    outs = []
    for i in range(target_sequence.shape[1]):
        y = p['tgt_emb'][target_sequence[:, i]]
        gi = y @ p['wih_y'] + ctx @ p['wih_c'] + p['bih_d']
        h_t = gru(gi, h_t, p['whh_d'], p['bhh_d'], D)
        scores = jnp.sum(enc * h_t[:, None, :], axis=2)
        p_attn = jax.nn.softmax(scores, axis=1)
        ctx = jnp.sum(enc * p_attn[:, :, None], axis=1)
        outs.append(ctx @ p['wc_ctx'] + h_t @ p['wc_h'] + p['bc'])
    return jnp.stack(outs)


# --------------------------------- main --------------------------------------

if __name__ == "__main__":
    # small, self-consistent shapes
    B, S_src, T_tgt = 2, 8, 6
    src_vocab, tgt_vocab = 20, 24
    src_emb_size, tgt_emb_size = 16, 16
    enc_size = 16                      # encoder H; decoder hidden D = 32
    target_sos_index = 1               # unused in training-mode forward

    key = jax.random.PRNGKey(0)
    kp, kx, kt = jax.random.split(key, 3)
    params = init_params(kp, src_vocab, src_emb_size, tgt_vocab, tgt_emb_size, enc_size)

    x_lengths = jnp.array([S_src, S_src - 2], dtype=jnp.int32)   # sorted descending
    x_source = jax.random.randint(kx, (B, S_src), 1, src_vocab)
    pos = jnp.arange(S_src)[None, :]
    x_source = jnp.where(pos < x_lengths[:, None], x_source, 0)  # 0 = pad token
    target_sequence = jax.random.randint(kt, (B, T_tgt), 1, tgt_vocab)

    fwd = jax.jit(attention_model_forward)
    out = fwd(x_source, x_lengths, target_sequence, params)
    out = jax.block_until_ready(out)

    ref = reference_forward(x_source, x_lengths, target_sequence, params)
    assert out.shape == (T_tgt, B, tgt_vocab), out.shape
    np.testing.assert_allclose(np.asarray(out), np.asarray(ref), rtol=5e-2, atol=5e-3)

    # TODO(synk): the PyTorch module's host-side debug caches (_cached_p_attn,
    # _cached_ht, _cached_decoder_state) are not reproduced.
    print("KERNEL_OK")
</pallas_src>

<mosaic_0001>
module attributes {stable_mosaic.version = 11 : i64} {
  func.func @linear_kernel(%arg0: memref<16x16xf32, #tpu.memory_space<vmem>>, %arg1: memref<16x96xf32, #tpu.memory_space<vmem>>, %arg2: memref<1x96xf32, #tpu.memory_space<vmem>>, %arg3: memref<16x96xf32, #tpu.memory_space<vmem>>) attributes {dimension_semantics = [], scalar_prefetch = 0 : i64, scratch_operands = 0 : i64, tpu.core_type = #tpu.core_type<tc>} {
    %c0 = arith.constant 0 : index
    %c0_0 = arith.constant 0 : index
    %0 = vector.load %arg0[%c0, %c0_0] : memref<16x16xf32, #tpu.memory_space<vmem>>, vector<16x16xf32>
    %c0_1 = arith.constant 0 : index
    %c0_2 = arith.constant 0 : index
    %1 = vector.load %arg1[%c0_1, %c0_2] : memref<16x96xf32, #tpu.memory_space<vmem>>, vector<16x96xf32>
    %cst = arith.constant dense<0.000000e+00> : vector<16x96xf32>
    %2 = tpu.matmul %0, %1, %cst {dimension_numbers = #tpu.dot_dimension_numbers<[1], [0], [0], [1], [0, 0, 1, 1], [], []>} : vector<16x16xf32>, vector<16x96xf32>, vector<16x96xf32> -> vector<16x96xf32>
    %c0_3 = arith.constant 0 : index
    %c0_4 = arith.constant 0 : index
    %3 = vector.load %arg2[%c0_3, %c0_4] : memref<1x96xf32, #tpu.memory_space<vmem>>, vector<1x96xf32>
    %4 = vector.broadcast %3 : vector<1x96xf32> to vector<16x96xf32>
    %5 = arith.addf %2, %4 : vector<16x96xf32>
    %c0_5 = arith.constant 0 : index
    %c0_6 = arith.constant 0 : index
    %6 = vector.load %arg3[%c0_5, %c0_6] : memref<16x96xf32, #tpu.memory_space<vmem>>, vector<16x96xf32>
    tpu.vector_store %arg3[%c0_5, %c0_6], %5 {strides = array<i32>} : memref<16x96xf32, #tpu.memory_space<vmem>>, vector<16x96xf32>,
    return
  }
}

module attributes {stable_mosaic.version = 11 : i64} {
  func.func @linear_kernel(%arg0: memref<12x16xf32, #tpu.memory_space<vmem>>, %arg1: memref<16x96xf32, #tpu.memory_space<vmem>>, %arg2: memref<1x96xf32, #tpu.memory_space<vmem>>, %arg3: memref<12x96xf32, #tpu.memory_space<vmem>>) attributes {dimension_semantics = [], scalar_prefetch = 0 : i64, scratch_operands = 0 : i64, tpu.core_type = #tpu.core_type<tc>} {
    %c0 = arith.constant 0 : index
    %c0_0 = arith.constant 0 : index
    %0 = vector.load %arg0[%c0, %c0_0] : memref<12x16xf32, #tpu.memory_space<vmem>>, vector<12x16xf32>
    %c0_1 = arith.constant 0 : index
    %c0_2 = arith.constant 0 : index
    %1 = vector.load %arg1[%c0_1, %c0_2] : memref<16x96xf32, #tpu.memory_space<vmem>>, vector<16x96xf32>
    %cst = arith.constant dense<0.000000e+00> : vector<12x96xf32>
    %2 = tpu.matmul %0, %1, %cst {dimension_numbers = #tpu.dot_dimension_numbers<[1], [0], [0], [1], [0, 0, 1, 1], [], []>} : vector<12x16xf32>, vector<16x96xf32>, vector<12x96xf32> -> vector<12x96xf32>
    %c0_3 = arith.constant 0 : index
    %c0_4 = arith.constant 0 : index
    %3 = vector.load %arg2[%c0_3, %c0_4] : memref<1x96xf32, #tpu.memory_space<vmem>>, vector<1x96xf32>
    %4 = vector.broadcast %3 : vector<1x96xf32> to vector<12x96xf32>
    %5 = arith.addf %2, %4 : vector<12x96xf32>
    %c0_5 = arith.constant 0 : index
    %c0_6 = arith.constant 0 : index
    %6 = vector.load %arg3[%c0_5, %c0_6] : memref<12x96xf32, #tpu.memory_space<vmem>>, vector<12x96xf32>
    tpu.vector_store %arg3[%c0_5, %c0_6], %5 {strides = array<i32>} : memref<12x96xf32, #tpu.memory_space<vmem>>, vector<12x96xf32>,
    return
  }
}

module attributes {stable_mosaic.version = 11 : i64} {
  func.func @bigru_encoder_kernel(%arg0: memref<2x1xi32, #tpu.memory_space<vmem>>, %arg1: memref<8x2x48xf32, #tpu.memory_space<vmem>>, %arg2: memref<8x2x48xf32, #tpu.memory_space<vmem>>, %arg3: memref<16x48xf32, #tpu.memory_space<vmem>>, %arg4: memref<1x48xf32, #tpu.memory_space<vmem>>, %arg5: memref<16x48xf32, #tpu.memory_space<vmem>>, %arg6: memref<1x48xf32, #tpu.memory_space<vmem>>, %arg7: memref<8x2x16xf32, #tpu.memory_space<vmem>>, %arg8: memref<8x2x16xf32, #tpu.memory_space<vmem>>, %arg9: memref<2x16xf32, #tpu.memory_space<vmem>>, %arg10: memref<2x16xf32, #tpu.memory_space<vmem>>) attributes {dimension_semantics = [], scalar_prefetch = 0 : i64, scratch_operands = 0 : i64, tpu.core_type = #tpu.core_type<tc>} {
    %c0 = arith.constant 0 : index
    %c0_0 = arith.constant 0 : index
    %0 = vector.load %arg0[%c0, %c0_0] : memref<2x1xi32, #tpu.memory_space<vmem>>, vector<2x1xi32>
    %c0_1 = arith.constant 0 : index
    %c0_2 = arith.constant 0 : index
    %1 = vector.load %arg3[%c0_1, %c0_2] : memref<16x48xf32, #tpu.memory_space<vmem>>, vector<16x48xf32>
    %c0_3 = arith.constant 0 : index
    %c0_4 = arith.constant 0 : index
    %2 = vector.load %arg5[%c0_3, %c0_4] : memref<16x48xf32, #tpu.memory_space<vmem>>, vector<16x48xf32>
    %c0_5 = arith.constant 0 : index
    %c0_6 = arith.constant 0 : index
    %3 = vector.load %arg4[%c0_5, %c0_6] : memref<1x48xf32, #tpu.memory_space<vmem>>, vector<1x48xf32>
    %4 = vector.shape_cast %3 : vector<1x48xf32> to vector<1x48xf32>
    %5 = vector.broadcast %4 : vector<1x48xf32> to vector<2x48xf32>
    %c0_7 = arith.constant 0 : index
    %c0_8 = arith.constant 0 : index
    %6 = vector.load %arg6[%c0_7, %c0_8] : memref<1x48xf32, #tpu.memory_space<vmem>>, vector<1x48xf32>
    %7 = vector.shape_cast %6 : vector<1x48xf32> to vector<1x48xf32>
    %8 = vector.broadcast %7 : vector<1x48xf32> to vector<2x48xf32>
    %cst = arith.constant 0.000000e+00 : f32
    %9 = vector.broadcast %cst : f32 to vector<2x16xf32>
    %c0_i32 = arith.constant 0 : i32
    %10 = arith.index_cast %c0_i32 : i32 to index
    %c0_9 = arith.constant 0 : index
    %c0_10 = arith.constant 0 : index
    %11 = vector.load %arg1[%10, %c0_9, %c0_10] : memref<8x2x48xf32, #tpu.memory_space<vmem>>, vector<1x2x48xf32>
    %12 = vector.shape_cast %11 : vector<1x2x48xf32> to vector<2x48xf32>
    %cst_11 = arith.constant dense<0.000000e+00> : vector<2x48xf32>
    %13 = tpu.matmul %9, %1, %cst_11 {dimension_numbers = #tpu.dot_dimension_numbers<[1], [0], [0], [1], [0, 0, 1, 1], [], []>} : vector<2x16xf32>, vector<16x48xf32>, vector<2x48xf32> -> vector<2x48xf32>
    %14 = arith.addf %13, %5 : vector<2x48xf32>
    %15 = vector.extract_strided_slice %12 {offsets = [0, 0], sizes = [2, 16], strides = [1, 1]} : vector<2x48xf32> to vector<2x16xf32>
    %16 = vector.extract_strided_slice %14 {offsets = [0, 0], sizes = [2, 16], strides = [1, 1]} : vector<2x48xf32> to vector<2x16xf32>
    %17 = arith.addf %15, %16 : vector<2x16xf32>
    %18 = arith.negf %17 : vector<2x16xf32>
    %19 = math.exp %18 : vector<2x16xf32>
    %cst_12 = arith.constant 1.000000e+00 : f32
    %20 = vector.broadcast %cst_12 : f32 to vector<2x16xf32>
    %21 = arith.addf %20, %19 : vector<2x16xf32>
    %22 = arith.divf %20, %21 : vector<2x16xf32>
    %23 = vector.extract_strided_slice %12 {offsets = [0, 16], sizes = [2, 16], strides = [1, 1]} : vector<2x48xf32> to vector<2x16xf32>
    %24 = vector.extract_strided_slice %14 {offsets = [0, 16], sizes = [2, 16], strides = [1, 1]} : vector<2x48xf32> to vector<2x16xf32>
    %25 = arith.addf %23, %24 : vector<2x16xf32>
    %26 = arith.negf %25 : vector<2x16xf32>
    %27 = math.exp %26 : vector<2x16xf32>
    %cst_13 = arith.constant 1.000000e+00 : f32
    %28 = vector.broadcast %cst_13 : f32 to vector<2x16xf32>
    %29 = arith.addf %28, %27 : vector<2x16xf32>
    %30 = arith.divf %28, %29 : vector<2x16xf32>
    %31 = vector.extract_strided_slice %12 {offsets = [0, 32], sizes = [2, 16], strides = [1, 1]} : vector<2x48xf32> to vector<2x16xf32>
    %32 = vector.extract_strided_slice %14 {offsets = [0, 32], sizes = [2, 16], strides = [1, 1]} : vector<2x48xf32> to vector<2x16xf32>
    %33 = arith.mulf %22, %32 : vector<2x16xf32>
    %34 = arith.addf %31, %33 : vector<2x16xf32>
    %35 = math.tanh %34 : vector<2x16xf32>
    %cst_14 = arith.constant 1.000000e+00 : f32
    %36 = vector.broadcast %cst_14 : f32 to vector<2x16xf32>
    %37 = arith.subf %36, %30 : vector<2x16xf32>
    %38 = arith.mulf %37, %35 : vector<2x16xf32>
    %39 = arith.mulf %30, %9 : vector<2x16xf32>
    %40 = arith.addf %38, %39 : vector<2x16xf32>
    %41 = vector.broadcast %c0_i32 : i32 to vector<2x1xi32>
    %42 = arith.cmpi slt, %41, %0 : vector<2x1xi32>
    %cst_15 = arith.constant 0.000000e+00 : f32
    %43 = vector.shape_cast %42 : vector<2x1xi1> to vector<2x1xi1>
    %44 = vector.broadcast %43 : vector<2x1xi1> to vector<2x16xi1>
    %45 = vector.broadcast %cst_15 : f32 to vector<2x16xf32>
    %46 = arith.select %44, %40, %45 : vector<2x16xi1>, vector<2x16xf32>
    %47 = arith.index_cast %c0_i32 : i32 to index
    %c0_16 = arith.constant 0 : index
    %c0_17 = arith.constant 0 : index
    %48 = vector.load %arg7[%47, %c0_16, %c0_17] : memref<8x2x16xf32, #tpu.memory_space<vmem>>, vector<1x2x16xf32>
    %49 = vector.shape_cast %48 : vector<1x2x16xf32> to vector<2x16xf32>
    %50 = vector.shape_cast %46 : vector<2x16xf32> to vector<1x2x16xf32>
    tpu.vector_store %arg7[%47, %c0_16, %c0_17], %50 {strides = array<i32>} : memref<8x2x16xf32, #tpu.memory_space<vmem>>, vector<1x2x16xf32>,
    %51 = vector.shape_cast %42 : vector<2x1xi1> to vector<2x1xi1>
    %52 = vector.broadcast %51 : vector<2x1xi1> to vector<2x16xi1>
    %53 = arith.select %52, %40, %9 : vector<2x16xi1>, vector<2x16xf32>
    %c1_i32 = arith.constant 1 : i32
    %54 = arith.index_cast %c1_i32 : i32 to index
    %c0_18 = arith.constant 0 : index
    %c0_19 = arith.constant 0 : index
    %55 = vector.load %arg1[%54, %c0_18, %c0_19] : memref<8x2x48xf32, #tpu.memory_space<vmem>>, vector<1x2x48xf32>
    %56 = vector.shape_cast %55 : vector<1x2x48xf32> to vector<2x48xf32>
    %cst_20 = arith.constant dense<0.000000e+00> : vector<2x48xf32>
    %57 = tpu.matmul %53, %1, %cst_20 {dimension_numbers = #tpu.dot_dimension_numbers<[1], [0], [0], [1], [0, 0, 1, 1], [], []>} : vector<2x16xf32>, vector<16x48xf32>, vector<2x48xf32> -> vector<2x48xf32>
    %58 = arith.addf %57, %5 : vector<2x48xf32>
    %59 = vector.extract_strided_slice %56 {offsets = [0, 0], sizes = [2, 16], strides = [1, 1]} : vector<2x48xf32> to vector<2x16xf32>
    %60 = vector.extract_strided_slice %58 {offsets = [0, 0], sizes = [2, 16], strides = [1, 1]} : vector<2x48xf32> to vector<2x16xf32>
    %61 = arith.addf %59, %60 : vector<2x16xf32>
    %62 = arith.negf %61 : vector<2x16xf32>
    %63 = math.exp %62 : vector<2x16xf32>
    %cst_21 = arith.constant 1.000000e+00 : f32
    %64 = vector.broadcast %cst_21 : f32 to vector<2x16xf32>
    %65 = arith.addf %64, %63 : vector<2x16xf32>
    %66 = arith.divf %64, %65 : vector<2x16xf32>
    %67 = vector.extract_strided_slice %56 {offsets = [0, 16], sizes = [2, 16], strides = [1, 1]} : vector<2x48xf32> to vector<2x16xf32>
    %68 = vector.extract_strided_slice %58 {offsets = [0, 16], sizes = [2, 16], strides = [1, 1]} : vector<2x48xf32> to vector<2x16xf32>
    %69 = arith.addf %67, %68 : vector<2x16xf32>
    %70 = arith.negf %69 : vector<2x16xf32>
    %71 = math.exp %70 : vector<2x16xf32>
    %cst_22 = arith.constant 1.000000e+00 : f32
    %72 = vector.broadcast %cst_22 : f32 to vector<2x16xf32>
    %73 = arith.addf %72, %71 : vector<2x16xf32>
    %74 = arith.divf %72, %73 : vector<2x16xf32>
    %75 = vector.extract_strided_slice %56 {offsets = [0, 32], sizes = [2, 16], strides = [1, 1]} : vector<2x48xf32> to vector<2x16xf32>
    %76 = vector.extract_strided_slice %58 {offsets = [0, 32], sizes = [2, 16], strides = [1, 1]} : vector<2x48xf32> to vector<2x16xf32>
    %77 = arith.mulf %66, %76 : vector<2x16xf32>
    %78 = arith.addf %75, %77 : vector<2x16xf32>
    %79 = math.tanh %78 : vector<2x16xf32>
    %cst_23 = arith.constant 1.000000e+00 : f32
    %80 = vector.broadcast %cst_23 : f32 to vector<2x16xf32>
    %81 = arith.subf %80, %74 : vector<2x16xf32>
    %82 = arith.mulf %81, %79 : vector<2x16xf32>
    %83 = arith.mulf %74, %53 : vector<2x16xf32>
    %84 = arith.addf %82, %83 : vector<2x16xf32>
    %85 = vector.broadcast %c1_i32 : i32 to vector<2x1xi32>
    %86 = arith.cmpi slt, %85, %0 : vector<2x1xi32>
    %cst_24 = arith.constant 0.000000e+00 : f32
    %87 = vector.shape_cast %86 : vector<2x1xi1> to vector<2x1xi1>
    %88 = vector.broadcast %87 : vector<2x1xi1> to vector<2x16xi1>
    %89 = vector.broadcast %cst_24 : f32 to vector<2x16xf32>
    %90 = arith.select %88, %84, %89 : vector<2x16xi1>, vector<2x16xf32>
    %91 = arith.index_cast %c1_i32 : i32 to index
    %c0_25 = arith.constant 0 : index
    %c0_26 = arith.constant 0 : index
    %92 = vector.load %arg7[%91, %c0_25, %c0_26] : memref<8x2x16xf32, #tpu.memory_space<vmem>>, vector<1x2x16xf32>
    %93 = vector.shape_cast %92 : vector<1x2x16xf32> to vector<2x16xf32>
    %94 = vector.shape_cast %90 : vector<2x16xf32> to vector<1x2x16xf32>
    tpu.vector_store %arg7[%91, %c0_25, %c0_26], %94 {strides = array<i32>} : memref<8x2x16xf32, #tpu.memory_space<vmem>>, vector<1x2x16xf32>,
    %95 = vector.shape_cast %86 : vector<2x1xi1> to vector<2x1xi1>
    %96 = vector.broadcast %95 : vector<2x1xi1> to vector<2x16xi1>
    %97 = arith.select %96, %84, %53 : vector<2x16xi1>, vector<2x16xf32>
    %c2_i32 = arith.constant 2 : i32
    %98 = arith.index_cast %c2_i32 : i32 to index
    %c0_27 = arith.constant 0 : index
    %c0_28 = arith.constant 0 : index
    %99 = vector.load %arg1[%98, %c0_27, %c0_28] : memref<8x2x48xf32, #tpu.memory_space<vmem>>, vector<1x2x48xf32>
    %100 = vector.shape_cast %99 : vector<1x2x48xf32> to vector<2x48xf32>
    %cst_29 = arith.constant dense<0.000000e+00> : vector<2x48xf32>
    %101 = tpu.matmul %97, %1, %cst_29 {dimension_numbers = #tpu.dot_dimension_numbers<[1], [0], [0], [1], [0, 0, 1, 1], [], []>} : vector<2x16xf32>, vector<16x48xf32>, vector<2x48xf32> -> vector<2x48xf32>
    %102 = arith.addf %101, %5 : vector<2x48xf32>
    %103 = vector.extract_strided_slice %100 {offsets = [0, 0], sizes = [2, 16], strides = [1, 1]} : vector<2x48xf32> to vector<2x16xf32>
    %104 = vector.extract_strided_slice %102 {offsets = [0, 0], sizes = [2, 16], strides = [1, 1]} : vector<2x48xf32> to vector<2x16xf32>
    %105 = arith.addf %103, %104 : vector<2x16xf32>
    %106 = arith.negf %105 : vector<2x16xf32>
    %107 = math.exp %106 : vector<2x16xf32>
    %cst_30 = arith.constant 1.000000e+00 : f32
    %108 = vector.broadcast %cst_30 : f32 to vector<2x16xf32>
    %109 = arith.addf %108, %107 : vector<2x16xf32>
    %110 = arith.divf %108, %109 : vector<2x16xf32>
    %111 = vector.extract_strided_slice %100 {offsets = [0, 16], sizes = [2, 16], strides = [1, 1]} : vector<2x48xf32> to vector<2x16xf32>
    %112 = vector.extract_strided_slice %102 {offsets = [0, 16], sizes = [2, 16], strides = [1, 1]} : vector<2x48xf32> to vector<2x16xf32>
    %113 = arith.addf %111, %112 : vector<2x16xf32>
    %114 = arith.negf %113 : vector<2x16xf32>
    %115 = math.exp %114 : vector<2x16xf32>
    %cst_31 = arith.constant 1.000000e+00 : f32
    %116 = vector.broadcast %cst_31 : f32 to vector<2x16xf32>
    %117 = arith.addf %116, %115 : vector<2x16xf32>
    %118 = arith.divf %116, %117 : vector<2x16xf32>
    %119 = vector.extract_strided_slice %100 {offsets = [0, 32], sizes = [2, 16], strides = [1, 1]} : vector<2x48xf32> to vector<2x16xf32>
    %120 = vector.extract_strided_slice %102 {offsets = [0, 32], sizes = [2, 16], strides = [1, 1]} : vector<2x48xf32> to vector<2x16xf32>
    %121 = arith.mulf %110, %120 : vector<2x16xf32>
    %122 = arith.addf %119, %121 : vector<2x16xf32>
    %123 = math.tanh %122 : vector<2x16xf32>
    %cst_32 = arith.constant 1.000000e+00 : f32
    %124 = vector.broadcast %cst_32 : f32 to vector<2x16xf32>
    %125 = arith.subf %124, %118 : vector<2x16xf32>
    %126 = arith.mulf %125, %123 : vector<2x16xf32>
    %127 = arith.mulf %118, %97 : vector<2x16xf32>
    %128 = arith.addf %126, %127 : vector<2x16xf32>
    %129 = vector.broadcast %c2_i32 : i32 to vector<2x1xi32>
    %130 = arith.cmpi slt, %129, %0 : vector<2x1xi32>
    %cst_33 = arith.constant 0.000000e+00 : f32
    %131 = vector.shape_cast %130 : vector<2x1xi1> to vector<2x1xi1>
    %132 = vector.broadcast %131 : vector<2x1xi1> to vector<2x16xi1>
    %133 = vector.broadcast %cst_33 : f32 to vector<2x16xf32>
    %134 = arith.select %132, %128, %133 : vector<2x16xi1>, vector<2x16xf32>
    %135 = arith.index_cast %c2_i32 : i32 to index
    %c0_34 = arith.constant 0 : index
    %c0_35 = arith.constant 0 : index
    %136 = vector.load %arg7[%135, %c0_34, %c0_35] : memref<8x2x16xf32, #tpu.memory_space<vmem>>, vector<1x2x16xf32>
    %137 = vector.shape_cast %136 : vector<1x2x16xf32> to vector<2x16xf32>
    %138 = vector.shape_cast %134 : vector<2x16xf32> to vector<1x2x16xf32>
    tpu.vector_store %arg7[%135, %c0_34, %c0_35], %138 {strides = array<i32>} : memref<8x2x16xf32, #tpu.memory_space<vmem>>, vector<1x2x16xf32>,
    %139 = vector.shape_cast %130 : vector<2x1xi1> to vector<2x1xi1>
    %140 = vector.broadcast %139 : vector<2x1xi1> to vector<2x16xi1>
    %141 = arith.select %140, %128, %97 : vector<2x16xi1>, vector<2x16xf32>
    %c3_i32 = arith.constant 3 : i32
    %142 = arith.index_cast %c3_i32 : i32 to index
    %c0_36 = arith.constant 0 : index
    %c0_37 = arith.constant 0 : index
    %143 = vector.load %arg1[%142, %c0_36, %c0_37] : memref<8x2x48xf32, #tpu.memory_space<vmem>>, vector<1x2x48xf32>
    %144 = vector.shape_cast %143 : vector<1x2x48xf32> to vector<2x48xf32>
    %cst_38 = arith.constant dense<0.000000e+00> : vector<2x48xf32>
    %145 = tpu.matmul %141, %1, %cst_38 {dimension_numbers = #tpu.dot_dimension_numbers<[1], [0], [0], [1], [0, 0, 1, 1], [], []>} : vector<2x16xf32>, vector<16x48xf32>, vector<2x48xf32> -> vector<2x48xf32>
    %146 = arith.addf %145, %5 : vector<2x48xf32>
    %147 = vector.extract_strided_slice %144 {offsets = [0, 0], sizes = [2, 16], strides = [1, 1]} : vector<2x48xf32> to vector<2x16xf32>
    %148 = vector.extract_strided_slice %146 {offsets = [0, 0], sizes = [2, 16], strides = [1, 1]} : vector<2x48xf32> to vector<2x16xf32>
    %149 = arith.addf %147, %148 : vector<2x16xf32>
    %150 = arith.negf %149 : vector<2x16xf32>
    %151 = math.exp %150 : vector<2x16xf32>
    %cst_39 = arith.constant 1.000000e+00 : f32
    %152 = vector.broadcast %cst_39 : f32 to vector<2x16xf32>
    %153 = arith.addf %152, %151 : vector<2x16xf32>
    %154 = arith.divf %152, %153 : vector<2x16xf32>
    %155 = vector.extract_strided_slice %144 {offsets = [0, 16], sizes = [2, 16], strides = [1, 1]} : vector<2x48xf32> to vector<2x16xf32>
    %156 = vector.extract_strided_slice %146 {offsets = [0, 16], sizes = [2, 16], strides = [1, 1]} : vector<2x48xf32> to vector<2x16xf32>
    %157 = arith.addf %155, %156 : vector<2x16xf32>
    %158 = arith.negf %157 : vector<2x16xf32>
    %159 = math.exp %158 : vector<2x16xf32>
    %cst_40 = arith.constant 1.000000e+00 : f32
    %160 = vector.broadcast %cst_40 : f32 to vector<2x16xf32>
    %161 = arith.addf %160, %159 : vector<2x16xf32>
    %162 = arith.divf %160, %161 : vector<2x16xf32>
    %163 = vector.extract_strided_slice %144 {offsets = [0, 32], sizes = [2, 16], strides = [1, 1]} : vector<2x48xf32> to vector<2x16xf32>
    %164 = vector.extract_strided_slice %146 {offsets = [0, 32], sizes = [2, 16], strides = [1, 1]} : vector<2x48xf32> to vector<2x16xf32>
    %165 = arith.mulf %154, %164 : vector<2x16xf32>
    %166 = arith.addf %163, %165 : vector<2x16xf32>
    %167 = math.tanh %166 : vector<2x16xf32>
    %cst_41 = arith.constant 1.000000e+00 : f32
    %168 = vector.broadcast %cst_41 : f32 to vector<2x16xf32>
    %169 = arith.subf %168, %162 : vector<2x16xf32>
    %170 = arith.mulf %169, %167 : vector<2x16xf32>
    %171 = arith.mulf %162, %141 : vector<2x16xf32>
    %172 = arith.addf %170, %171 : vector<2x16xf32>
    %173 = vector.broadcast %c3_i32 : i32 to vector<2x1xi32>
    %174 = arith.cmpi slt, %173, %0 : vector<2x1xi32>
    %cst_42 = arith.constant 0.000000e+00 : f32
    %175 = vector.shape_cast %174 : vector<2x1xi1> to vector<2x1xi1>
    %176 = vector.broadcast %175 : vector<2x1xi1> to vector<2x16xi1>
    %177 = vector.broadcast %cst_42 : f32 to vector<2x16xf32>
    %178 = arith.select %176, %172, %177 : vector<2x16xi1>, vector<2x16xf32>
    %179 = arith.index_cast %c3_i32 : i32 to index
    %c0_43 = arith.constant 0 : index
    %c0_44 = arith.constant 0 : index
    %180 = vector.load %arg7[%179, %c0_43, %c0_44] : memref<8x2x16xf32, #tpu.memory_space<vmem>>, vector<1x2x16xf32>
    %181 = vector.shape_cast %180 : vector<1x2x16xf32> to vector<2x16xf32>
    %182 = vector.shape_cast %178 : vector<2x16xf32> to vector<1x2x16xf32>
    tpu.vector_store %arg7[%179, %c0_43, %c0_44], %182 {strides = array<i32>} : memref<8x2x16xf32, #tpu.memory_space<vmem>>, vector<1x2x16xf32>,
    %183 = vector.shape_cast %174 : vector<2x1xi1> to vector<2x1xi1>
    %184 = vector.broadcast %183 : vector<2x1xi1> to vector<2x16xi1>
    %185 = arith.select %184, %172, %141 : vector<2x16xi1>, vector<2x16xf32>
    %c4_i32 = arith.constant 4 : i32
    %186 = arith.index_cast %c4_i32 : i32 to index
    %c0_45 = arith.constant 0 : index
    %c0_46 = arith.constant 0 : index
    %187 = vector.load %arg1[%186, %c0_45, %c0_46] : memref<8x2x48xf32, #tpu.memory_space<vmem>>, vector<1x2x48xf32>
    %188 = vector.shape_cast %187 : vector<1x2x48xf32> to vector<2x48xf32>
    %cst_47 = arith.constant dense<0.000000e+00> : vector<2x48xf32>
    %189 = tpu.matmul %185, %1, %cst_47 {dimension_numbers = #tpu.dot_dimension_numbers<[1], [0], [0], [1], [0, 0, 1, 1], [], []>} : vector<2x16xf32>, vector<16x48xf32>, vector<2x48xf32> -> vector<2x48xf32>
    %190 = arith.addf %189, %5 : vector<2x48xf32>
    %191 = vector.extract_strided_slice %188 {offsets = [0, 0], sizes = [2, 16], strides = [1, 1]} : vector<2x48xf32> to vector<2x16xf32>
    %192 = vector.extract_strided_slice %190 {offsets = [0, 0], sizes = [2, 16], strides = [1, 1]} : vector<2x48xf32> to vector<2x16xf32>
    %193 = arith.addf %191, %192 : vector<2x16xf32>
    %194 = arith.negf %193 : vector<2x16xf32>
    %195 = math.exp %194 : vector<2x16xf32>
    %cst_48 = arith.constant 1.000000e+00 : f32
    %196 = vector.broadcast %cst_48 : f32 to vector<2x16xf32>
    %197 = arith.addf %196, %195 : vector<2x16xf32>
    %198 = arith.divf %196, %197 : vector<2x16xf32>
    %199 = vector.extract_strided_slice %188 {offsets = [0, 16], sizes = [2, 16], strides = [1, 1]} : vector<2x48xf32> to vector<2x16xf32>
    %200 = vector.extract_strided_slice %190 {offsets = [0, 16], sizes = [2, 16], strides = [1, 1]} : vector<2x48xf32> to vector<2x16xf32>
    %201 = arith.addf %199, %200 : vector<2x16xf32>
    %202 = arith.negf %201 : vector<2x16xf32>
    %203 = math.exp %202 : vector<2x16xf32>
    %cst_49 = arith.constant 1.000000e+00 : f32
    %204 = vector.broadcast %cst_49 : f32 to vector<2x16xf32>
    %205 = arith.addf %204, %203 : vector<2x16xf32>
    %206 = arith.divf %204, %205 : vector<2x16xf32>
    %207 = vector.extract_strided_slice %188 {offsets = [0, 32], sizes = [2, 16], strides = [1, 1]} : vector<2x48xf32> to vector<2x16xf32>
    %208 = vector.extract_strided_slice %190 {offsets = [0, 32], sizes = [2, 16], strides = [1, 1]} : vector<2x48xf32> to vector<2x16xf32>
    %209 = arith.mulf %198, %208 : vector<2x16xf32>
    %210 = arith.addf %207, %209 : vector<2x16xf32>
    %211 = math.tanh %210 : vector<2x16xf32>
    %cst_50 = arith.constant 1.000000e+00 : f32
    %212 = vector.broadcast %cst_50 : f32 to vector<2x16xf32>
    %213 = arith.subf %212, %206 : vector<2x16xf32>
    %214 = arith.mulf %213, %211 : vector<2x16xf32>
    %215 = arith.mulf %206, %185 : vector<2x16xf32>
    %216 = arith.addf %214, %215 : vector<2x16xf32>
    %217 = vector.broadcast %c4_i32 : i32 to vector<2x1xi32>
    %218 = arith.cmpi slt, %217, %0 : vector<2x1xi32>
    %cst_51 = arith.constant 0.000000e+00 : f32
    %219 = vector.shape_cast %218 : vector<2x1xi1> to vector<2x1xi1>
    %220 = vector.broadcast %219 : vector<2x1xi1> to vector<2x16xi1>
    %221 = vector.broadcast %cst_51 : f32 to vector<2x16xf32>
    %222 = arith.select %220, %216, %221 : vector<2x16xi1>, vector<2x16xf32>
    %223 = arith.index_cast %c4_i32 : i32 to index
    %c0_52 = arith.constant 0 : index
    %c0_53 = arith.constant 0 : index
    %224 = vector.load %arg7[%223, %c0_52, %c0_53] : memref<8x2x16xf32, #tpu.memory_space<vmem>>, vector<1x2x16xf32>
    %225 = vector.shape_cast %224 : vector<1x2x16xf32> to vector<2x16xf32>
    %226 = vector.shape_cast %222 : vector<2x16xf32> to vector<1x2x16xf32>
    tpu.vector_store %arg7[%223, %c0_52, %c0_53], %226 {strides = array<i32>} : memref<8x2x16xf32, #tpu.memory_space<vmem>>, vector<1x2x16xf32>,
    %227 = vector.shape_cast %218 : vector<2x1xi1> to vector<2x1xi1>
    %228 = vector.broadcast %227 : vector<2x1xi1> to vector<2x16xi1>
    %229 = arith.select %228, %216, %185 : vector<2x16xi1>, vector<2x16xf32>
    %c5_i32 = arith.constant 5 : i32
    %230 = arith.index_cast %c5_i32 : i32 to index
    %c0_54 = arith.constant 0 : index
    %c0_55 = arith.constant 0 : index
    %231 = vector.load %arg1[%230, %c0_54, %c0_55] : memref<8x2x48xf32, #tpu.memory_space<vmem>>, vector<1x2x48xf32>
    %232 = vector.shape_cast %231 : vector<1x2x48xf32> to vector<2x48xf32>
    %cst_56 = arith.constant dense<0.000000e+00> : vector<2x48xf32>
    %233 = tpu.matmul %229, %1, %cst_56 {dimension_numbers = #tpu.dot_dimension_numbers<[1], [0], [0], [1], [0, 0, 1, 1], [], []>} : vector<2x16xf32>, vector<16x48xf32>, vector<2x48xf32> -> vector<2x48xf32>
    %234 = arith.addf %233, %5 : vector<2x48xf32>
    %235 = vector.extract_strided_slice %232 {offsets = [0, 0], sizes = [2, 16], strides = [1, 1]} : vector<2x48xf32> to vector<2x16xf32>
    %236 = vector.extract_strided_slice %234 {offsets = [0, 0], sizes = [2, 16], strides = [1, 1]} : vector<2x48xf32> to vector<2x16xf32>
    %237 = arith.addf %235, %236 : vector<2x16xf32>
    %238 = arith.negf %237 : vector<2x16xf32>
    %239 = math.exp %238 : vector<2x16xf32>
    %cst_57 = arith.constant 1.000000e+00 : f32
    %240 = vector.broadcast %cst_57 : f32 to vector<2x16xf32>
    %241 = arith.addf %240, %239 : vector<2x16xf32>
    %242 = arith.divf %240, %241 : vector<2x16xf32>
    %243 = vector.extract_strided_slice %232 {offsets = [0, 16], sizes = [2, 16], strides = [1, 1]} : vector<2x48xf32> to vector<2x16xf32>
    %244 = vector.extract_strided_slice %234 {offsets = [0, 16], sizes = [2, 16], strides = [1, 1]} : vector<2x48xf32> to vector<2x16xf32>
    %245 = arith.addf %243, %244 : vector<2x16xf32>
    %246 = arith.negf %245 : vector<2x16xf32>
    %247 = math.exp %246 : vector<2x16xf32>
    %cst_58 = arith.constant 1.000000e+00 : f32
    %248 = vector.broadcast %cst_58 : f32 to vector<2x16xf32>
    %249 = arith.addf %248, %247 : vector<2x16xf32>
    %250 = arith.divf %248, %249 : vector<2x16xf32>
    %251 = vector.extract_strided_slice %232 {offsets = [0, 32], sizes = [2, 16], strides = [1, 1]} : vector<2x48xf32> to vector<2x16xf32>
    %252 = vector.extract_strided_slice %234 {offsets = [0, 32], sizes = [2, 16], strides = [1, 1]} : vector<2x48xf32> to vector<2x16xf32>
    %253 = arith.mulf %242, %252 : vector<2x16xf32>
    %254 = arith.addf %251, %253 : vector<2x16xf32>
    %255 = math.tanh %254 : vector<2x16xf32>
    %cst_59 = arith.constant 1.000000e+00 : f32
    %256 = vector.broadcast %cst_59 : f32 to vector<2x16xf32>
    %257 = arith.subf %256, %250 : vector<2x16xf32>
    %258 = arith.mulf %257, %255 : vector<2x16xf32>
    %259 = arith.mulf %250, %229 : vector<2x16xf32>
    %260 = arith.addf %258, %259 : vector<2x16xf32>
    %261 = vector.broadcast %c5_i32 : i32 to vector<2x1xi32>
    %262 = arith.cmpi slt, %261, %0 : vector<2x1xi32>
    %cst_60 = arith.constant 0.000000e+00 : f32
    %263 = vector.shape_cast %262 : vector<2x1xi1> to vector<2x1xi1>
    %264 = vector.broadcast %263 : vector<2x1xi1> to vector<2x16xi1>
    %265 = vector.broadcast %cst_60 : f32 to vector<2x16xf32>
    %266 = arith.select %264, %260, %265 : vector<2x16xi1>, vector<2x16xf32>
    %267 = arith.index_cast %c5_i32 : i32 to index
    %c0_61 = arith.constant 0 : index
    %c0_62 = arith.constant 0 : index
    %268 = vector.load %arg7[%267, %c0_61, %c0_62] : memref<8x2x16xf32, #tpu.memory_space<vmem>>, vector<1x2x16xf32>
    %269 = vector.shape_cast %268 : vector<1x2x16xf32> to vector<2x16xf32>
    %270 = vector.shape_cast %266 : vector<2x16xf32> to vector<1x2x16xf32>
    tpu.vector_store %arg7[%267, %c0_61, %c0_62], %270 {strides = array<i32>} : memref<8x2x16xf32, #tpu.memory_space<vmem>>, vector<1x2x16xf32>,
    %271 = vector.shape_cast %262 : vector<2x1xi1> to vector<2x1xi1>
    %272 = vector.broadcast %271 : vector<2x1xi1> to vector<2x16xi1>
    %273 = arith.select %272, %260, %229 : vector<2x16xi1>, vector<2x16xf32>
    %c6_i32 = arith.constant 6 : i32
    %274 = arith.index_cast %c6_i32 : i32 to index
    %c0_63 = arith.constant 0 : index
    %c0_64 = arith.constant 0 : index
    %275 = vector.load %arg1[%274, %c0_63, %c0_64] : memref<8x2x48xf32, #tpu.memory_space<vmem>>, vector<1x2x48xf32>
    %276 = vector.shape_cast %275 : vector<1x2x48xf32> to vector<2x48xf32>
    %cst_65 = arith.constant dense<0.000000e+00> : vector<2x48xf32>
    %277 = tpu.matmul %273, %1, %cst_65 {dimension_numbers = #tpu.dot_dimension_numbers<[1], [0], [0], [1], [0, 0, 1, 1], [], []>} : vector<2x16xf32>, vector<16x48xf32>, vector<2x48xf32> -> vector<2x48xf32>
    %278 = arith.addf %277, %5 : vector<2x48xf32>
    %279 = vector.extract_strided_slice %276 {offsets = [0, 0], sizes = [2, 16], strides = [1, 1]} : vector<2x48xf32> to vector<2x16xf32>
    %280 = vector.extract_strided_slice %278 {offsets = [0, 0], sizes = [2, 16], strides = [1, 1]} : vector<2x48xf32> to vector<2x16xf32>
    %281 = arith.addf %279, %280 : vector<2x16xf32>
    %282 = arith.negf %281 : vector<2x16xf32>
    %283 = math.exp %282 : vector<2x16xf32>
    %cst_66 = arith.constant 1.000000e+00 : f32
    %284 = vector.broadcast %cst_66 : f32 to vector<2x16xf32>
    %285 = arith.addf %284, %283 : vector<2x16xf32>
    %286 = arith.divf %284, %285 : vector<2x16xf32>
    %287 = vector.extract_strided_slice %276 {offsets = [0, 16], sizes = [2, 16], strides = [1, 1]} : vector<2x48xf32> to vector<2x16xf32>
    %288 = vector.extract_strided_slice %278 {offsets = [0, 16], sizes = [2, 16], strides = [1, 1]} : vector<2x48xf32> to vector<2x16xf32>
    %289 = arith.addf %287, %288 : vector<2x16xf32>
    %290 = arith.negf %289 : vector<2x16xf32>
    %291 = math.exp %290 : vector<2x16xf32>
    %cst_67 = arith.constant 1.000000e+00 : f32
    %292 = vector.broadcast %cst_67 : f32 to vector<2x16xf32>
    %293 = arith.addf %292, %291 : vector<2x16xf32>
    %294 = arith.divf %292, %293 : vector<2x16xf32>
    %295 = vector.extract_strided_slice %276 {offsets = [0, 32], sizes = [2, 16], strides = [1, 1]} : vector<2x48xf32> to vector<2x16xf32>
    %296 = vector.extract_strided_slice %278 {offsets = [0, 32], sizes = [2, 16], strides = [1, 1]} : vector<2x48xf32> to vector<2x16xf32>
    %297 = arith.mulf %286, %296 : vector<2x16xf32>
    %298 = arith.addf %295, %297 : vector<2x16xf32>
    %299 = math.tanh %298 : vector<2x16xf32>
    %cst_68 = arith.constant 1.000000e+00 : f32
    %300 = vector.broadcast %cst_68 : f32 to vector<2x16xf32>
    %301 = arith.subf %300, %294 : vector<2x16xf32>
    %302 = arith.mulf %301, %299 : vector<2x16xf32>
    %303 = arith.mulf %294, %273 : vector<2x16xf32>
    %304 = arith.addf %302, %303 : vector<2x16xf32>
    %305 = vector.broadcast %c6_i32 : i32 to vector<2x1xi32>
    %306 = arith.cmpi slt, %305, %0 : vector<2x1xi32>
    %cst_69 = arith.constant 0.000000e+00 : f32
    %307 = vector.shape_cast %306 : vector<2x1xi1> to vector<2x1xi1>
    %308 = vector.broadcast %307 : vector<2x1xi1> to vector<2x16xi1>
    %309 = vector.broadcast %cst_69 : f32 to vector<2x16xf32>
    %310 = arith.select %308, %304, %309 : vector<2x16xi1>, vector<2x16xf32>
    %311 = arith.index_cast %c6_i32 : i32 to index
    %c0_70 = arith.constant 0 : index
    %c0_71 = arith.constant 0 : index
    %312 = vector.load %arg7[%311, %c0_70, %c0_71] : memref<8x2x16xf32, #tpu.memory_space<vmem>>, vector<1x2x16xf32>
    %313 = vector.shape_cast %312 : vector<1x2x16xf32> to vector<2x16xf32>
    %314 = vector.shape_cast %310 : vector<2x16xf32> to vector<1x2x16xf32>
    tpu.vector_store %arg7[%311, %c0_70, %c0_71], %314 {strides = array<i32>} : memref<8x2x16xf32, #tpu.memory_space<vmem>>, vector<1x2x16xf32>,
    %315 = vector.shape_cast %306 : vector<2x1xi1> to vector<2x1xi1>
    %316 = vector.broadcast %315 : vector<2x1xi1> to vector<2x16xi1>
    %317 = arith.select %316, %304, %273 : vector<2x16xi1>, vector<2x16xf32>
    %c7_i32 = arith.constant 7 : i32
    %318 = arith.index_cast %c7_i32 : i32 to index
    %c0_72 = arith.constant 0 : index
    %c0_73 = arith.constant 0 : index
    %319 = vector.load %arg1[%318, %c0_72, %c0_73] : memref<8x2x48xf32, #tpu.memory_space<vmem>>, vector<1x2x48xf32>
    %320 = vector.shape_cast %319 : vector<1x2x48xf32> to vector<2x48xf32>
    %cst_74 = arith.constant dense<0.000000e+00> : vector<2x48xf32>
    %321 = tpu.matmul %317, %1, %cst_74 {dimension_numbers = #tpu.dot_dimension_numbers<[1], [0], [0], [1], [0, 0, 1, 1], [], []>} : vector<2x16xf32>, vector<16x48xf32>, vector<2x48xf32> -> vector<2x48xf32>
    %322 = arith.addf %321, %5 : vector<2x48xf32>
    %323 = vector.extract_strided_slice %320 {offsets = [0, 0], sizes = [2, 16], strides = [1, 1]} : vector<2x48xf32> to vector<2x16xf32>
    %324 = vector.extract_strided_slice %322 {offsets = [0, 0], sizes = [2, 16], strides = [1, 1]} : vector<2x48xf32> to vector<2x16xf32>
    %325 = arith.addf %323, %324 : vector<2x16xf32>
    %326 = arith.negf %325 : vector<2x16xf32>
    %327 = math.exp %326 : vector<2x16xf32>
    %cst_75 = arith.constant 1.000000e+00 : f32
    %328 = vector.broadcast %cst_75 : f32 to vector<2x16xf32>
    %329 = arith.addf %328, %327 : vector<2x16xf32>
    %330 = arith.divf %328, %329 : vector<2x16xf32>
    %331 = vector.extract_strided_slice %320 {offsets = [0, 16], sizes = [2, 16], strides = [1, 1]} : vector<2x48xf32> to vector<2x16xf32>
    %332 = vector.extract_strided_slice %322 {offsets = [0, 16], sizes = [2, 16], strides = [1, 1]} : vector<2x48xf32> to vector<2x16xf32>
    %333 = arith.addf %331, %332 : vector<2x16xf32>
    %334 = arith.negf %333 : vector<2x16xf32>
    %335 = math.exp %334 : vector<2x16xf32>
    %cst_76 = arith.constant 1.000000e+00 : f32
    %336 = vector.broadcast %cst_76 : f32 to vector<2x16xf32>
    %337 = arith.addf %336, %335 : vector<2x16xf32>
    %338 = arith.divf %336, %337 : vector<2x16xf32>
    %339 = vector.extract_strided_slice %320 {offsets = [0, 32], sizes = [2, 16], strides = [1, 1]} : vector<2x48xf32> to vector<2x16xf32>
    %340 = vector.extract_strided_slice %322 {offsets = [0, 32], sizes = [2, 16], strides = [1, 1]} : vector<2x48xf32> to vector<2x16xf32>
    %341 = arith.mulf %330, %340 : vector<2x16xf32>
    %342 = arith.addf %339, %341 : vector<2x16xf32>
    %343 = math.tanh %342 : vector<2x16xf32>
    %cst_77 = arith.constant 1.000000e+00 : f32
    %344 = vector.broadcast %cst_77 : f32 to vector<2x16xf32>
    %345 = arith.subf %344, %338 : vector<2x16xf32>
    %346 = arith.mulf %345, %343 : vector<2x16xf32>
    %347 = arith.mulf %338, %317 : vector<2x16xf32>
    %348 = arith.addf %346, %347 : vector<2x16xf32>
    %349 = vector.broadcast %c7_i32 : i32 to vector<2x1xi32>
    %350 = arith.cmpi slt, %349, %0 : vector<2x1xi32>
    %cst_78 = arith.constant 0.000000e+00 : f32
    %351 = vector.shape_cast %350 : vector<2x1xi1> to vector<2x1xi1>
    %352 = vector.broadcast %351 : vector<2x1xi1> to vector<2x16xi1>
    %353 = vector.broadcast %cst_78 : f32 to vector<2x16xf32>
    %354 = arith.select %352, %348, %353 : vector<2x16xi1>, vector<2x16xf32>
    %355 = arith.index_cast %c7_i32 : i32 to index
    %c0_79 = arith.constant 0 : index
    %c0_80 = arith.constant 0 : index
    %356 = vector.load %arg7[%355, %c0_79, %c0_80] : memref<8x2x16xf32, #tpu.memory_space<vmem>>, vector<1x2x16xf32>
    %357 = vector.shape_cast %356 : vector<1x2x16xf32> to vector<2x16xf32>
    %358 = vector.shape_cast %354 : vector<2x16xf32> to vector<1x2x16xf32>
    tpu.vector_store %arg7[%355, %c0_79, %c0_80], %358 {strides = array<i32>} : memref<8x2x16xf32, #tpu.memory_space<vmem>>, vector<1x2x16xf32>,
    %359 = vector.shape_cast %350 : vector<2x1xi1> to vector<2x1xi1>
    %360 = vector.broadcast %359 : vector<2x1xi1> to vector<2x16xi1>
    %361 = arith.select %360, %348, %317 : vector<2x16xi1>, vector<2x16xf32>
    %c8_i32 = arith.constant 8 : i32
    %c0_81 = arith.constant 0 : index
    %c0_82 = arith.constant 0 : index
    %362 = vector.load %arg9[%c0_81, %c0_82] : memref<2x16xf32, #tpu.memory_space<vmem>>, vector<2x16xf32>
    tpu.vector_store %arg9[%c0_81, %c0_82], %361 {strides = array<i32>} : memref<2x16xf32, #tpu.memory_space<vmem>>, vector<2x16xf32>,
    %c0_i32_83 = arith.constant 0 : i32
    %c7_i32_84 = arith.constant 7 : i32
    %363 = arith.subi %c7_i32_84, %c0_i32_83 : i32
    %364 = arith.index_cast %363 : i32 to index
    %c0_85 = arith.constant 0 : index
    %c0_86 = arith.constant 0 : index
    %365 = vector.load %arg2[%364, %c0_85, %c0_86] : memref<8x2x48xf32, #tpu.memory_space<vmem>>, vector<1x2x48xf32>
    %366 = vector.shape_cast %365 : vector<1x2x48xf32> to vector<2x48xf32>
    %cst_87 = arith.constant dense<0.000000e+00> : vector<2x48xf32>
    %367 = tpu.matmul %9, %2, %cst_87 {dimension_numbers = #tpu.dot_dimension_numbers<[1], [0], [0], [1], [0, 0, 1, 1], [], []>} : vector<2x16xf32>, vector<16x48xf32>, vector<2x48xf32> -> vector<2x48xf32>
    %368 = arith.addf %367, %8 : vector<2x48xf32>
    %369 = vector.extract_strided_slice %366 {offsets = [0, 0], sizes = [2, 16], strides = [1, 1]} : vector<2x48xf32> to vector<2x16xf32>
    %370 = vector.extract_strided_slice %368 {offsets = [0, 0], sizes = [2, 16], strides = [1, 1]} : vector<2x48xf32> to vector<2x16xf32>
    %371 = arith.addf %369, %370 : vector<2x16xf32>
    %372 = arith.negf %371 : vector<2x16xf32>
    %373 = math.exp %372 : vector<2x16xf32>
    %cst_88 = arith.constant 1.000000e+00 : f32
    %374 = vector.broadcast %cst_88 : f32 to vector<2x16xf32>
    %375 = arith.addf %374, %373 : vector<2x16xf32>
    %376 = arith.divf %374, %375 : vector<2x16xf32>
    %377 = vector.extract_strided_slice %366 {offsets = [0, 16], sizes = [2, 16], strides = [1, 1]} : vector<2x48xf32> to vector<2x16xf32>
    %378 = vector.extract_strided_slice %368 {offsets = [0, 16], sizes = [2, 16], strides = [1, 1]} : vector<2x48xf32> to vector<2x16xf32>
    %379 = arith.addf %377, %378 : vector<2x16xf32>
    %380 = arith.negf %379 : vector<2x16xf32>
    %381 = math.exp %380 : vector<2x16xf32>
    %cst_89 = arith.constant 1.000000e+00 : f32
    %382 = vector.broadcast %cst_89 : f32 to vector<2x16xf32>
    %383 = arith.addf %382, %381 : vector<2x16xf32>
    %384 = arith.divf %382, %383 : vector<2x16xf32>
    %385 = vector.extract_strided_slice %366 {offsets = [0, 32], sizes = [2, 16], strides = [1, 1]} : vector<2x48xf32> to vector<2x16xf32>
    %386 = vector.extract_strided_slice %368 {offsets = [0, 32], sizes = [2, 16], strides = [1, 1]} : vector<2x48xf32> to vector<2x16xf32>
    %387 = arith.mulf %376, %386 : vector<2x16xf32>
    %388 = arith.addf %385, %387 : vector<2x16xf32>
    %389 = math.tanh %388 : vector<2x16xf32>
    %cst_90 = arith.constant 1.000000e+00 : f32
    %390 = vector.broadcast %cst_90 : f32 to vector<2x16xf32>
    %391 = arith.subf %390, %384 : vector<2x16xf32>
    %392 = arith.mulf %391, %389 : vector<2x16xf32>
    %393 = arith.mulf %384, %9 : vector<2x16xf32>
    %394 = arith.addf %392, %393 : vector<2x16xf32>
    %395 = vector.broadcast %363 : i32 to vector<2x1xi32>
    %396 = arith.cmpi slt, %395, %0 : vector<2x1xi32>
    %cst_91 = arith.constant 0.000000e+00 : f32
    %397 = vector.shape_cast %396 : vector<2x1xi1> to vector<2x1xi1>
    %398 = vector.broadcast %397 : vector<2x1xi1> to vector<2x16xi1>
    %399 = vector.broadcast %cst_91 : f32 to vector<2x16xf32>
    %400 = arith.select %398, %394, %399 : vector<2x16xi1>, vector<2x16xf32>
    %401 = arith.index_cast %363 : i32 to index
    %c0_92 = arith.constant 0 : index
    %c0_93 = arith.constant 0 : index
    %402 = vector.load %arg8[%401, %c0_92, %c0_93] : memref<8x2x16xf32, #tpu.memory_space<vmem>>, vector<1x2x16xf32>
    %403 = vector.shape_cast %402 : vector<1x2x16xf32> to vector<2x16xf32>
    %404 = vector.shape_cast %400 : vector<2x16xf32> to vector<1x2x16xf32>
    tpu.vector_store %arg8[%401, %c0_92, %c0_93], %404 {strides = array<i32>} : memref<8x2x16xf32, #tpu.memory_space<vmem>>, vector<1x2x16xf32>,
    %405 = vector.shape_cast %396 : vector<2x1xi1> to vector<2x1xi1>
    %406 = vector.broadcast %405 : vector<2x1xi1> to vector<2x16xi1>
    %407 = arith.select %406, %394, %9 : vector<2x16xi1>, vector<2x16xf32>
    %c1_i32_94 = arith.constant 1 : i32
    %c7_i32_95 = arith.constant 7 : i32
    %408 = arith.subi %c7_i32_95, %c1_i32_94 : i32
    %409 = arith.index_cast %408 : i32 to index
    %c0_96 = arith.constant 0 : index
    %c0_97 = arith.constant 0 : index
    %410 = vector.load %arg2[%409, %c0_96, %c0_97] : memref<8x2x48xf32, #tpu.memory_space<vmem>>, vector<1x2x48xf32>
    %411 = vector.shape_cast %410 : vector<1x2x48xf32> to vector<2x48xf32>
    %cst_98 = arith.constant dense<0.000000e+00> : vector<2x48xf32>
    %412 = tpu.matmul %407, %2, %cst_98 {dimension_numbers = #tpu.dot_dimension_numbers<[1], [0], [0], [1], [0, 0, 1, 1], [], []>} : vector<2x16xf32>, vector<16x48xf32>, vector<2x48xf32> -> vector<2x48xf32>
    %413 = arith.addf %412, %8 : vector<2x48xf32>
    %414 = vector.extract_strided_slice %411 {offsets = [0, 0], sizes = [2, 16], strides = [1, 1]} : vector<2x48xf32> to vector<2x16xf32>
    %415 = vector.extract_strided_slice %413 {offsets = [0, 0], sizes = [2, 16], strides = [1, 1]} : vector<2x48xf32> to vector<2x16xf32>
    %416 = arith.addf %414, %415 : vector<2x16xf32>
    %417 = arith.negf %416 : vector<2x16xf32>
    %418 = math.exp %417 : vector<2x16xf32>
    %cst_99 = arith.constant 1.000000e+00 : f32
    %419 = vector.broadcast %cst_99 : f32 to vector<2x16xf32>
    %420 = arith.addf %419, %418 : vector<2x16xf32>
    %421 = arith.divf %419, %420 : vector<2x16xf32>
    %422 = vector.extract_strided_slice %411 {offsets = [0, 16], sizes = [2, 16], strides = [1, 1]} : vector<2x48xf32> to vector<2x16xf32>
    %423 = vector.extract_strided_slice %413 {offsets = [0, 16], sizes = [2, 16], strides = [1, 1]} : vector<2x48xf32> to vector<2x16xf32>
    %424 = arith.addf %422, %423 : vector<2x16xf32>
    %425 = arith.negf %424 : vector<2x16xf32>
    %426 = math.exp %425 : vector<2x16xf32>
    %cst_100 = arith.constant 1.000000e+00 : f32
    %427 = vector.broadcast %cst_100 : f32 to vector<2x16xf32>
    %428 = arith.addf %427, %426 : vector<2x16xf32>
    %429 = arith.divf %427, %428 : vector<2x16xf32>
    %430 = vector.extract_strided_slice %411 {offsets = [0, 32], sizes = [2, 16], strides = [1, 1]} : vector<2x48xf32> to vector<2x16xf32>
    %431 = vector.extract_strided_slice %413 {offsets = [0, 32], sizes = [2, 16], strides = [1, 1]} : vector<2x48xf32> to vector<2x16xf32>
    %432 = arith.mulf %421, %431 : vector<2x16xf32>
    %433 = arith.addf %430, %432 : vector<2x16xf32>
    %434 = math.tanh %433 : vector<2x16xf32>
    %cst_101 = arith.constant 1.000000e+00 : f32
    %435 = vector.broadcast %cst_101 : f32 to vector<2x16xf32>
    %436 = arith.subf %435, %429 : vector<2x16xf32>
    %437 = arith.mulf %436, %434 : vector<2x16xf32>
    %438 = arith.mulf %429, %407 : vector<2x16xf32>
    %439 = arith.addf %437, %438 : vector<2x16xf32>
    %440 = vector.broadcast %408 : i32 to vector<2x1xi32>
    %441 = arith.cmpi slt, %440, %0 : vector<2x1xi32>
    %cst_102 = arith.constant 0.000000e+00 : f32
    %442 = vector.shape_cast %441 : vector<2x1xi1> to vector<2x1xi1>
    %443 = vector.broadcast %442 : vector<2x1xi1> to vector<2x16xi1>
    %444 = vector.broadcast %cst_102 : f32 to vector<2x16xf32>
    %445 = arith.select %443, %439, %444 : vector<2x16xi1>, vector<2x16xf32>
    %446 = arith.index_cast %408 : i32 to index
    %c0_103 = arith.constant 0 : index
    %c0_104 = arith.constant 0 : index
    %447 = vector.load %arg8[%446, %c0_103, %c0_104] : memref<8x2x16xf32, #tpu.memory_space<vmem>>, vector<1x2x16xf32>
    %448 = vector.shape_cast %447 : vector<1x2x16xf32> to vector<2x16xf32>
    %449 = vector.shape_cast %445 : vector<2x16xf32> to vector<1x2x16xf32>
    tpu.vector_store %arg8[%446, %c0_103, %c0_104], %449 {strides = array<i32>} : memref<8x2x16xf32, #tpu.memory_space<vmem>>, vector<1x2x16xf32>,
    %450 = vector.shape_cast %441 : vector<2x1xi1> to vector<2x1xi1>
    %451 = vector.broadcast %450 : vector<2x1xi1> to vector<2x16xi1>
    %452 = arith.select %451, %439, %407 : vector<2x16xi1>, vector<2x16xf32>
    %c2_i32_105 = arith.constant 2 : i32
    %c7_i32_106 = arith.constant 7 : i32
    %453 = arith.subi %c7_i32_106, %c2_i32_105 : i32
    %454 = arith.index_cast %453 : i32 to index
    %c0_107 = arith.constant 0 : index
    %c0_108 = arith.constant 0 : index
    %455 = vector.load %arg2[%454, %c0_107, %c0_108] : memref<8x2x48xf32, #tpu.memory_space<vmem>>, vector<1x2x48xf32>
    %456 = vector.shape_cast %455 : vector<1x2x48xf32> to vector<2x48xf32>
    %cst_109 = arith.constant dense<0.000000e+00> : vector<2x48xf32>
    %457 = tpu.matmul %452, %2, %cst_109 {dimension_numbers = #tpu.dot_dimension_numbers<[1], [0], [0], [1], [0, 0, 1, 1], [], []>} : vector<2x16xf32>, vector<16x48xf32>, vector<2x48xf32> -> vector<2x48xf32>
    %458 = arith.addf %457, %8 : vector<2x48xf32>
    %459 = vector.extract_strided_slice %456 {offsets = [0, 0], sizes = [2, 16], strides = [1, 1]} : vector<2x48xf32> to vector<2x16xf32>
    %460 = vector.extract_strided_slice %458 {offsets = [0, 0], sizes = [2, 16], strides = [1, 1]} : vector<2x48xf32> to vector<2x16xf32>
    %461 = arith.addf %459, %460 : vector<2x16xf32>
    %462 = arith.negf %461 : vector<2x16xf32>
    %463 = math.exp %462 : vector<2x16xf32>
    %cst_110 = arith.constant 1.000000e+00 : f32
    %464 = vector.broadcast %cst_110 : f32 to vector<2x16xf32>
    %465 = arith.addf %464, %463 : vector<2x16xf32>
    %466 = arith.divf %464, %465 : vector<2x16xf32>
    %467 = vector.extract_strided_slice %456 {offsets = [0, 16], sizes = [2, 16], strides = [1, 1]} : vector<2x48xf32> to vector<2x16xf32>
    %468 = vector.extract_strided_slice %458 {offsets = [0, 16], sizes = [2, 16], strides = [1, 1]} : vector<2x48xf32> to vector<2x16xf32>
    %469 = arith.addf %467, %468 : vector<2x16xf32>
    %470 = arith.negf %469 : vector<2x16xf32>
    %471 = math.exp %470 : vector<2x16xf32>
    %cst_111 = arith.constant 1.000000e+00 : f32
    %472 = vector.broadcast %cst_111 : f32 to vector<2x16xf32>
    %473 = arith.addf %472, %471 : vector<2x16xf32>
    %474 = arith.divf %472, %473 : vector<2x16xf32>
    %475 = vector.extract_strided_slice %456 {offsets = [0, 32], sizes = [2, 16], strides = [1, 1]} : vector<2x48xf32> to vector<2x16xf32>
    %476 = vector.extract_strided_slice %458 {offsets = [0, 32], sizes = [2, 16], strides = [1, 1]} : vector<2x48xf32> to vector<2x16xf32>
    %477 = arith.mulf %466, %476 : vector<2x16xf32>
    %478 = arith.addf %475, %477 : vector<2x16xf32>
    %479 = math.tanh %478 : vector<2x16xf32>
    %cst_112 = arith.constant 1.000000e+00 : f32
    %480 = vector.broadcast %cst_112 : f32 to vector<2x16xf32>
    %481 = arith.subf %480, %474 : vector<2x16xf32>
    %482 = arith.mulf %481, %479 : vector<2x16xf32>
    %483 = arith.mulf %474, %452 : vector<2x16xf32>
    %484 = arith.addf %482, %483 : vector<2x16xf32>
    %485 = vector.broadcast %453 : i32 to vector<2x1xi32>
    %486 = arith.cmpi slt, %485, %0 : vector<2x1xi32>
    %cst_113 = arith.constant 0.000000e+00 : f32
    %487 = vector.shape_cast %486 : vector<2x1xi1> to vector<2x1xi1>
    %488 = vector.broadcast %487 : vector<2x1xi1> to vector<2x16xi1>
    %489 = vector.broadcast %cst_113 : f32 to vector<2x16xf32>
    %490 = arith.select %488, %484, %489 : vector<2x16xi1>, vector<2x16xf32>
    %491 = arith.index_cast %453 : i32 to index
    %c0_114 = arith.constant 0 : index
    %c0_115 = arith.constant 0 : index
    %492 = vector.load %arg8[%491, %c0_114, %c0_115] : memref<8x2x16xf32, #tpu.memory_space<vmem>>, vector<1x2x16xf32>
    %493 = vector.shape_cast %492 : vector<1x2x16xf32> to vector<2x16xf32>
    %494 = vector.shape_cast %490 : vector<2x16xf32> to vector<1x2x16xf32>
    tpu.vector_store %arg8[%491, %c0_114, %c0_115], %494 {strides = array<i32>} : memref<8x2x16xf32, #tpu.memory_space<vmem>>, vector<1x2x16xf32>,
    %495 = vector.shape_cast %486 : vector<2x1xi1> to vector<2x1xi1>
    %496 = vector.broadcast %495 : vector<2x1xi1> to vector<2x16xi1>
    %497 = arith.select %496, %484, %452 : vector<2x16xi1>, vector<2x16xf32>
    %c3_i32_116 = arith.constant 3 : i32
    %c7_i32_117 = arith.constant 7 : i32
    %498 = arith.subi %c7_i32_117, %c3_i32_116 : i32
    %499 = arith.index_cast %498 : i32 to index
    %c0_118 = arith.constant 0 : index
    %c0_119 = arith.constant 0 : index
    %500 = vector.load %arg2[%499, %c0_118, %c0_119] : memref<8x2x48xf32, #tpu.memory_space<vmem>>, vector<1x2x48xf32>
    %501 = vector.shape_cast %500 : vector<1x2x48xf32> to vector<2x48xf32>
    %cst_120 = arith.constant dense<0.000000e+00> : vector<2x48xf32>
    %502 = tpu.matmul %497, %2, %cst_120 {dimension_numbers = #tpu.dot_dimension_numbers<[1], [0], [0], [1], [0, 0, 1, 1], [], []>} : vector<2x16xf32>, vector<16x48xf32>, vector<2x48xf32> -> vector<2x48xf32>
    %503 = arith.addf %502, %8 : vector<2x48xf32>
    %504 = vector.extract_strided_slice %501 {offsets = [0, 0], sizes = [2, 16], strides = [1, 1]} : vector<2x48xf32> to vector<2x16xf32>
    %505 = vector.extract_strided_slice %503 {offsets = [0, 0], sizes = [2, 16], strides = [1, 1]} : vector<2x48xf32> to vector<2x16xf32>
    %506 = arith.addf %504, %505 : vector<2x16xf32>
    %507 = arith.negf %506 : vector<2x16xf32>
    %508 = math.exp %507 : vector<2x16xf32>
    %cst_121 = arith.constant 1.000000e+00 : f32
    %509 = vector.broadcast %cst_121 : f32 to vector<2x16xf32>
    %510 = arith.addf %509, %508 : vector<2x16xf32>
    %511 = arith.divf %509, %510 : vector<2x16xf32>
    %512 = vector.extract_strided_slice %501 {offsets = [0, 16], sizes = [2, 16], strides = [1, 1]} : vector<2x48xf32> to vector<2x16xf32>
    %513 = vector.extract_strided_slice %503 {offsets = [0, 16], sizes = [2, 16], strides = [1, 1]} : vector<2x48xf32> to vector<2x16xf32>
    %514 = arith.addf %512, %513 : vector<2x16xf32>
    %515 = arith.negf %514 : vector<2x16xf32>
    %516 = math.exp %515 : vector<2x16xf32>
    %cst_122 = arith.constant 1.000000e+00 : f32
    %517 = vector.broadcast %cst_122 : f32 to vector<2x16xf32>
    %518 = arith.addf %517, %516 : vector<2x16xf32>
    %519 = arith.divf %517, %518 : vector<2x16xf32>
    %520 = vector.extract_strided_slice %501 {offsets = [0, 32], sizes = [2, 16], strides = [1, 1]} : vector<2x48xf32> to vector<2x16xf32>
    %521 = vector.extract_strided_slice %503 {offsets = [0, 32], sizes = [2, 16], strides = [1, 1]} : vector<2x48xf32> to vector<2x16xf32>
    %522 = arith.mulf %511, %521 : vector<2x16xf32>
    %523 = arith.addf %520, %522 : vector<2x16xf32>
    %524 = math.tanh %523 : vector<2x16xf32>
    %cst_123 = arith.constant 1.000000e+00 : f32
    %525 = vector.broadcast %cst_123 : f32 to vector<2x16xf32>
    %526 = arith.subf %525, %519 : vector<2x16xf32>
    %527 = arith.mulf %526, %524 : vector<2x16xf32>
    %528 = arith.mulf %519, %497 : vector<2x16xf32>
    %529 = arith.addf %527, %528 : vector<2x16xf32>
    %530 = vector.broadcast %498 : i32 to vector<2x1xi32>
    %531 = arith.cmpi slt, %530, %0 : vector<2x1xi32>
    %cst_124 = arith.constant 0.000000e+00 : f32
    %532 = vector.shape_cast %531 : vector<2x1xi1> to vector<2x1xi1>
    %533 = vector.broadcast %532 : vector<2x1xi1> to vector<2x16xi1>
    %534 = vector.broadcast %cst_124 : f32 to vector<2x16xf32>
    %535 = arith.select %533, %529, %534 : vector<2x16xi1>, vector<2x16xf32>
    %536 = arith.index_cast %498 : i32 to index
    %c0_125 = arith.constant 0 : index
    %c0_126 = arith.constant 0 : index
    %537 = vector.load %arg8[%536, %c0_125, %c0_126] : memref<8x2x16xf32, #tpu.memory_space<vmem>>, vector<1x2x16xf32>
    %538 = vector.shape_cast %537 : vector<1x2x16xf32> to vector<2x16xf32>
    %539 = vector.shape_cast %535 : vector<2x16xf32> to vector<1x2x16xf32>
    tpu.vector_store %arg8[%536, %c0_125, %c0_126], %539 {strides = array<i32>} : memref<8x2x16xf32, #tpu.memory_space<vmem>>, vector<1x2x16xf32>,
    %540 = vector.shape_cast %531 : vector<2x1xi1> to vector<2x1xi1>
    %541 = vector.broadcast %540 : vector<2x1xi1> to vector<2x16xi1>
    %542 = arith.select %541, %529, %497 : vector<2x16xi1>, vector<2x16xf32>
    %c4_i32_127 = arith.constant 4 : i32
    %c7_i32_128 = arith.constant 7 : i32
    %543 = arith.subi %c7_i32_128, %c4_i32_127 : i32
    %544 = arith.index_cast %543 : i32 to index
    %c0_129 = arith.constant 0 : index
    %c0_130 = arith.constant 0 : index
    %545 = vector.load %arg2[%544, %c0_129, %c0_130] : memref<8x2x48xf32, #tpu.memory_space<vmem>>, vector<1x2x48xf32>
    %546 = vector.shape_cast %545 : vector<1x2x48xf32> to vector<2x48xf32>
    %cst_131 = arith.constant dense<0.000000e+00> : vector<2x48xf32>
    %547 = tpu.matmul %542, %2, %cst_131 {dimension_numbers = #tpu.dot_dimension_numbers<[1], [0], [0], [1], [0, 0, 1, 1], [], []>} : vector<2x16xf32>, vector<16x48xf32>, vector<2x48xf32> -> vector<2x48xf32>
    %548 = arith.addf %547, %8 : vector<2x48xf32>
    %549 = vector.extract_strided_slice %546 {offsets = [0, 0], sizes = [2, 16], strides = [1, 1]} : vector<2x48xf32> to vector<2x16xf32>
    %550 = vector.extract_strided_slice %548 {offsets = [0, 0], sizes = [2, 16], strides = [1, 1]} : vector<2x48xf32> to vector<2x16xf32>
    %551 = arith.addf %549, %550 : vector<2x16xf32>
    %552 = arith.negf %551 : vector<2x16xf32>
    %553 = math.exp %552 : vector<2x16xf32>
    %cst_132 = arith.constant 1.000000e+00 : f32
    %554 = vector.broadcast %cst_132 : f32 to vector<2x16xf32>
    %555 = arith.addf %554, %553 : vector<2x16xf32>
    %556 = arith.divf %554, %555 : vector<2x16xf32>
    %557 = vector.extract_strided_slice %546 {offsets = [0, 16], sizes = [2, 16], strides = [1, 1]} : vector<2x48xf32> to vector<2x16xf32>
    %558 = vector.extract_strided_slice %548 {offsets = [0, 16], sizes = [2, 16], strides = [1, 1]} : vector<2x48xf32> to vector<2x16xf32>
    %559 = arith.addf %557, %558 : vector<2x16xf32>
    %560 = arith.negf %559 : vector<2x16xf32>
    %561 = math.exp %560 : vector<2x16xf32>
    %cst_133 = arith.constant 1.000000e+00 : f32
    %562 = vector.broadcast %cst_133 : f32 to vector<2x16xf32>
    %563 = arith.addf %562, %561 : vector<2x16xf32>
    %564 = arith.divf %562, %563 : vector<2x16xf32>
    %565 = vector.extract_strided_slice %546 {offsets = [0, 32], sizes = [2, 16], strides = [1, 1]} : vector<2x48xf32> to vector<2x16xf32>
    %566 = vector.extract_strided_slice %548 {offsets = [0, 32], sizes = [2, 16], strides = [1, 1]} : vector<2x48xf32> to vector<2x16xf32>
    %567 = arith.mulf %556, %566 : vector<2x16xf32>
    %568 = arith.addf %565, %567 : vector<2x16xf32>
    %569 = math.tanh %568 : vector<2x16xf32>
    %cst_134 = arith.constant 1.000000e+00 : f32
    %570 = vector.broadcast %cst_134 : f32 to vector<2x16xf32>
    %571 = arith.subf %570, %564 : vector<2x16xf32>
    %572 = arith.mulf %571, %569 : vector<2x16xf32>
    %573 = arith.mulf %564, %542 : vector<2x16xf32>
    %574 = arith.addf %572, %573 : vector<2x16xf32>
    %575 = vector.broadcast %543 : i32 to vector<2x1xi32>
    %576 = arith.cmpi slt, %575, %0 : vector<2x1xi32>
    %cst_135 = arith.constant 0.000000e+00 : f32
    %577 = vector.shape_cast %576 : vector<2x1xi1> to vector<2x1xi1>
    %578 = vector.broadcast %577 : vector<2x1xi1> to vector<2x16xi1>
    %579 = vector.broadcast %cst_135 : f32 to vector<2x16xf32>
    %580 = arith.select %578, %574, %579 : vector<2x16xi1>, vector<2x16xf32>
    %581 = arith.index_cast %543 : i32 to index
    %c0_136 = arith.constant 0 : index
    %c0_137 = arith.constant 0 : index
    %582 = vector.load %arg8[%581, %c0_136, %c0_137] : memref<8x2x16xf32, #tpu.memory_space<vmem>>, vector<1x2x16xf32>
    %583 = vector.shape_cast %582 : vector<1x2x16xf32> to vector<2x16xf32>
    %584 = vector.shape_cast %580 : vector<2x16xf32> to vector<1x2x16xf32>
    tpu.vector_store %arg8[%581, %c0_136, %c0_137], %584 {strides = array<i32>} : memref<8x2x16xf32, #tpu.memory_space<vmem>>, vector<1x2x16xf32>,
    %585 = vector.shape_cast %576 : vector<2x1xi1> to vector<2x1xi1>
    %586 = vector.broadcast %585 : vector<2x1xi1> to vector<2x16xi1>
    %587 = arith.select %586, %574, %542 : vector<2x16xi1>, vector<2x16xf32>
    %c5_i32_138 = arith.constant 5 : i32
    %c7_i32_139 = arith.constant 7 : i32
    %588 = arith.subi %c7_i32_139, %c5_i32_138 : i32
    %589 = arith.index_cast %588 : i32 to index
    %c0_140 = arith.constant 0 : index
    %c0_141 = arith.constant 0 : index
    %590 = vector.load %arg2[%589, %c0_140, %c0_141] : memref<8x2x48xf32, #tpu.memory_space<vmem>>, vector<1x2x48xf32>
    %591 = vector.shape_cast %590 : vector<1x2x48xf32> to vector<2x48xf32>
    %cst_142 = arith.constant dense<0.000000e+00> : vector<2x48xf32>
    %592 = tpu.matmul %587, %2, %cst_142 {dimension_numbers = #tpu.dot_dimension_numbers<[1], [0], [0], [1], [0, 0, 1, 1], [], []>} : vector<2x16xf32>, vector<16x48xf32>, vector<2x48xf32> -> vector<2x48xf32>
    %593 = arith.addf %592, %8 : vector<2x48xf32>
    %594 = vector.extract_strided_slice %591 {offsets = [0, 0], sizes = [2, 16], strides = [1, 1]} : vector<2x48xf32> to vector<2x16xf32>
    %595 = vector.extract_strided_slice %593 {offsets = [0, 0], sizes = [2, 16], strides = [1, 1]} : vector<2x48xf32> to vector<2x16xf32>
    %596 = arith.addf %594, %595 : vector<2x16xf32>
    %597 = arith.negf %596 : vector<2x16xf32>
    %598 = math.exp %597 : vector<2x16xf32>
    %cst_143 = arith.constant 1.000000e+00 : f32
    %599 = vector.broadcast %cst_143 : f32 to vector<2x16xf32>
    %600 = arith.addf %599, %598 : vector<2x16xf32>
    %601 = arith.divf %599, %600 : vector<2x16xf32>
    %602 = vector.extract_strided_slice %591 {offsets = [0, 16], sizes = [2, 16], strides = [1, 1]} : vector<2x48xf32> to vector<2x16xf32>
    %603 = vector.extract_strided_slice %593 {offsets = [0, 16], sizes = [2, 16], strides = [1, 1]} : vector<2x48xf32> to vector<2x16xf32>
    %604 = arith.addf %602, %603 : vector<2x16xf32>
    %605 = arith.negf %604 : vector<2x16xf32>
    %606 = math.exp %605 : vector<2x16xf32>
    %cst_144 = arith.constant 1.000000e+00 : f32
    %607 = vector.broadcast %cst_144 : f32 to vector<2x16xf32>
    %608 = arith.addf %607, %606 : vector<2x16xf32>
    %609 = arith.divf %607, %608 : vector<2x16xf32>
    %610 = vector.extract_strided_slice %591 {offsets = [0, 32], sizes = [2, 16], strides = [1, 1]} : vector<2x48xf32> to vector<2x16xf32>
    %611 = vector.extract_strided_slice %593 {offsets = [0, 32], sizes = [2, 16], strides = [1, 1]} : vector<2x48xf32> to vector<2x16xf32>
    %612 = arith.mulf %601, %611 : vector<2x16xf32>
    %613 = arith.addf %610, %612 : vector<2x16xf32>
    %614 = math.tanh %613 : vector<2x16xf32>
    %cst_145 = arith.constant 1.000000e+00 : f32
    %615 = vector.broadcast %cst_145 : f32 to vector<2x16xf32>
    %616 = arith.subf %615, %609 : vector<2x16xf32>
    %617 = arith.mulf %616, %614 : vector<2x16xf32>
    %618 = arith.mulf %609, %587 : vector<2x16xf32>
    %619 = arith.addf %617, %618 : vector<2x16xf32>
    %620 = vector.broadcast %588 : i32 to vector<2x1xi32>
    %621 = arith.cmpi slt, %620, %0 : vector<2x1xi32>
    %cst_146 = arith.constant 0.000000e+00 : f32
    %622 = vector.shape_cast %621 : vector<2x1xi1> to vector<2x1xi1>
    %623 = vector.broadcast %622 : vector<2x1xi1> to vector<2x16xi1>
    %624 = vector.broadcast %cst_146 : f32 to vector<2x16xf32>
    %625 = arith.select %623, %619, %624 : vector<2x16xi1>, vector<2x16xf32>
    %626 = arith.index_cast %588 : i32 to index
    %c0_147 = arith.constant 0 : index
    %c0_148 = arith.constant 0 : index
    %627 = vector.load %arg8[%626, %c0_147, %c0_148] : memref<8x2x16xf32, #tpu.memory_space<vmem>>, vector<1x2x16xf32>
    %628 = vector.shape_cast %627 : vector<1x2x16xf32> to vector<2x16xf32>
    %629 = vector.shape_cast %625 : vector<2x16xf32> to vector<1x2x16xf32>
    tpu.vector_store %arg8[%626, %c0_147, %c0_148], %629 {strides = array<i32>} : memref<8x2x16xf32, #tpu.memory_space<vmem>>, vector<1x2x16xf32>,
    %630 = vector.shape_cast %621 : vector<2x1xi1> to vector<2x1xi1>
    %631 = vector.broadcast %630 : vector<2x1xi1> to vector<2x16xi1>
    %632 = arith.select %631, %619, %587 : vector<2x16xi1>, vector<2x16xf32>
    %c6_i32_149 = arith.constant 6 : i32
    %c7_i32_150 = arith.constant 7 : i32
    %633 = arith.subi %c7_i32_150, %c6_i32_149 : i32
    %634 = arith.index_cast %633 : i32 to index
    %c0_151 = arith.constant 0 : index
    %c0_152 = arith.constant 0 : index
    %635 = vector.load %arg2[%634, %c0_151, %c0_152] : memref<8x2x48xf32, #tpu.memory_space<vmem>>, vector<1x2x48xf32>
    %636 = vector.shape_cast %635 : vector<1x2x48xf32> to vector<2x48xf32>
    %cst_153 = arith.constant dense<0.000000e+00> : vector<2x48xf32>
    %637 = tpu.matmul %632, %2, %cst_153 {dimension_numbers = #tpu.dot_dimension_numbers<[1], [0], [0], [1], [0, 0, 1, 1], [], []>} : vector<2x16xf32>, vector<16x48xf32>, vector<2x48xf32> -> vector<2x48xf32>
    %638 = arith.addf %637, %8 : vector<2x48xf32>
    %639 = vector.extract_strided_slice %636 {offsets = [0, 0], sizes = [2, 16], strides = [1, 1]} : vector<2x48xf32> to vector<2x16xf32>
    %640 = vector.extract_strided_slice %638 {offsets = [0, 0], sizes = [2, 16], strides = [1, 1]} : vector<2x48xf32> to vector<2x16xf32>
    %641 = arith.addf %639, %640 : vector<2x16xf32>
    %642 = arith.negf %641 : vector<2x16xf32>
    %643 = math.exp %642 : vector<2x16xf32>
    %cst_154 = arith.constant 1.000000e+00 : f32
    %644 = vector.broadcast %cst_154 : f32 to vector<2x16xf32>
    %645 = arith.addf %644, %643 : vector<2x16xf32>
    %646 = arith.divf %644, %645 : vector<2x16xf32>
    %647 = vector.extract_strided_slice %636 {offsets = [0, 16], sizes = [2, 16], strides = [1, 1]} : vector<2x48xf32> to vector<2x16xf32>
    %648 = vector.extract_strided_slice %638 {offsets = [0, 16], sizes = [2, 16], strides = [1, 1]} : vector<2x48xf32> to vector<2x16xf32>
    %649 = arith.addf %647, %648 : vector<2x16xf32>
    %650 = arith.negf %649 : vector<2x16xf32>
    %651 = math.exp %650 : vector<2x16xf32>
    %cst_155 = arith.constant 1.000000e+00 : f32
    %652 = vector.broadcast %cst_155 : f32 to vector<2x16xf32>
    %653 = arith.addf %652, %651 : vector<2x16xf32>
    %654 = arith.divf %652, %653 : vector<2x16xf32>
    %655 = vector.extract_strided_slice %636 {offsets = [0, 32], sizes = [2, 16], strides = [1, 1]} : vector<2x48xf32> to vector<2x16xf32>
    %656 = vector.extract_strided_slice %638 {offsets = [0, 32], sizes = [2, 16], strides = [1, 1]} : vector<2x48xf32> to vector<2x16xf32>
    %657 = arith.mulf %646, %656 : vector<2x16xf32>
    %658 = arith.addf %655, %657 : vector<2x16xf32>
    %659 = math.tanh %658 : vector<2x16xf32>
    %cst_156 = arith.constant 1.000000e+00 : f32
    %660 = vector.broadcast %cst_156 : f32 to vector<2x16xf32>
    %661 = arith.subf %660, %654 : vector<2x16xf32>
    %662 = arith.mulf %661, %659 : vector<2x16xf32>
    %663 = arith.mulf %654, %632 : vector<2x16xf32>
    %664 = arith.addf %662, %663 : vector<2x16xf32>
    %665 = vector.broadcast %633 : i32 to vector<2x1xi32>
    %666 = arith.cmpi slt, %665, %0 : vector<2x1xi32>
    %cst_157 = arith.constant 0.000000e+00 : f32
    %667 = vector.shape_cast %666 : vector<2x1xi1> to vector<2x1xi1>
    %668 = vector.broadcast %667 : vector<2x1xi1> to vector<2x16xi1>
    %669 = vector.broadcast %cst_157 : f32 to vector<2x16xf32>
    %670 = arith.select %668, %664, %669 : vector<2x16xi1>, vector<2x16xf32>
    %671 = arith.index_cast %633 : i32 to index
    %c0_158 = arith.constant 0 : index
    %c0_159 = arith.constant 0 : index
    %672 = vector.load %arg8[%671, %c0_158, %c0_159] : memref<8x2x16xf32, #tpu.memory_space<vmem>>, vector<1x2x16xf32>
    %673 = vector.shape_cast %672 : vector<1x2x16xf32> to vector<2x16xf32>
    %674 = vector.shape_cast %670 : vector<2x16xf32> to vector<1x2x16xf32>
    tpu.vector_store %arg8[%671, %c0_158, %c0_159], %674 {strides = array<i32>} : memref<8x2x16xf32, #tpu.memory_space<vmem>>, vector<1x2x16xf32>,
    %675 = vector.shape_cast %666 : vector<2x1xi1> to vector<2x1xi1>
    %676 = vector.broadcast %675 : vector<2x1xi1> to vector<2x16xi1>
    %677 = arith.select %676, %664, %632 : vector<2x16xi1>, vector<2x16xf32>
    %c7_i32_160 = arith.constant 7 : i32
    %c7_i32_161 = arith.constant 7 : i32
    %678 = arith.subi %c7_i32_161, %c7_i32_160 : i32
    %679 = arith.index_cast %678 : i32 to index
    %c0_162 = arith.constant 0 : index
    %c0_163 = arith.constant 0 : index
    %680 = vector.load %arg2[%679, %c0_162, %c0_163] : memref<8x2x48xf32, #tpu.memory_space<vmem>>, vector<1x2x48xf32>
    %681 = vector.shape_cast %680 : vector<1x2x48xf32> to vector<2x48xf32>
    %cst_164 = arith.constant dense<0.000000e+00> : vector<2x48xf32>
    %682 = tpu.matmul %677, %2, %cst_164 {dimension_numbers = #tpu.dot_dimension_numbers<[1], [0], [0], [1], [0, 0, 1, 1], [], []>} : vector<2x16xf32>, vector<16x48xf32>, vector<2x48xf32> -> vector<2x48xf32>
    %683 = arith.addf %682, %8 : vector<2x48xf32>
    %684 = vector.extract_strided_slice %681 {offsets = [0, 0], sizes = [2, 16], strides = [1, 1]} : vector<2x48xf32> to vector<2x16xf32>
    %685 = vector.extract_strided_slice %683 {offsets = [0, 0], sizes = [2, 16], strides = [1, 1]} : vector<2x48xf32> to vector<2x16xf32>
    %686 = arith.addf %684, %685 : vector<2x16xf32>
    %687 = arith.negf %686 : vector<2x16xf32>
    %688 = math.exp %687 : vector<2x16xf32>
    %cst_165 = arith.constant 1.000000e+00 : f32
    %689 = vector.broadcast %cst_165 : f32 to vector<2x16xf32>
    %690 = arith.addf %689, %688 : vector<2x16xf32>
    %691 = arith.divf %689, %690 : vector<2x16xf32>
    %692 = vector.extract_strided_slice %681 {offsets = [0, 16], sizes = [2, 16], strides = [1, 1]} : vector<2x48xf32> to vector<2x16xf32>
    %693 = vector.extract_strided_slice %683 {offsets = [0, 16], sizes = [2, 16], strides = [1, 1]} : vector<2x48xf32> to vector<2x16xf32>
    %694 = arith.addf %692, %693 : vector<2x16xf32>
    %695 = arith.negf %694 : vector<2x16xf32>
    %696 = math.exp %695 : vector<2x16xf32>
    %cst_166 = arith.constant 1.000000e+00 : f32
    %697 = vector.broadcast %cst_166 : f32 to vector<2x16xf32>
    %698 = arith.addf %697, %696 : vector<2x16xf32>
    %699 = arith.divf %697, %698 : vector<2x16xf32>
    %700 = vector.extract_strided_slice %681 {offsets = [0, 32], sizes = [2, 16], strides = [1, 1]} : vector<2x48xf32> to vector<2x16xf32>
    %701 = vector.extract_strided_slice %683 {offsets = [0, 32], sizes = [2, 16], strides = [1, 1]} : vector<2x48xf32> to vector<2x16xf32>
    %702 = arith.mulf %691, %701 : vector<2x16xf32>
    %703 = arith.addf %700, %702 : vector<2x16xf32>
    %704 = math.tanh %703 : vector<2x16xf32>
    %cst_167 = arith.constant 1.000000e+00 : f32
    %705 = vector.broadcast %cst_167 : f32 to vector<2x16xf32>
    %706 = arith.subf %705, %699 : vector<2x16xf32>
    %707 = arith.mulf %706, %704 : vector<2x16xf32>
    %708 = arith.mulf %699, %677 : vector<2x16xf32>
    %709 = arith.addf %707, %708 : vector<2x16xf32>
    %710 = vector.broadcast %678 : i32 to vector<2x1xi32>
    %711 = arith.cmpi slt, %710, %0 : vector<2x1xi32>
    %cst_168 = arith.constant 0.000000e+00 : f32
    %712 = vector.shape_cast %711 : vector<2x1xi1> to vector<2x1xi1>
    %713 = vector.broadcast %712 : vector<2x1xi1> to vector<2x16xi1>
    %714 = vector.broadcast %cst_168 : f32 to vector<2x16xf32>
    %715 = arith.select %713, %709, %714 : vector<2x16xi1>, vector<2x16xf32>
    %716 = arith.index_cast %678 : i32 to index
    %c0_169 = arith.constant 0 : index
    %c0_170 = arith.constant 0 : index
    %717 = vector.load %arg8[%716, %c0_169, %c0_170] : memref<8x2x16xf32, #tpu.memory_space<vmem>>, vector<1x2x16xf32>
    %718 = vector.shape_cast %717 : vector<1x2x16xf32> to vector<2x16xf32>
    %719 = vector.shape_cast %715 : vector<2x16xf32> to vector<1x2x16xf32>
    tpu.vector_store %arg8[%716, %c0_169, %c0_170], %719 {strides = array<i32>} : memref<8x2x16xf32, #tpu.memory_space<vmem>>, vector<1x2x16xf32>,
    %720 = vector.shape_cast %711 : vector<2x1xi1> to vector<2x1xi1>
    %721 = vector.broadcast %720 : vector<2x1xi1> to vector<2x16xi1>
    %722 = arith.select %721, %709, %677 : vector<2x16xi1>, vector<2x16xf32>
    %c8_i32_171 = arith.constant 8 : i32
    %c0_172 = arith.constant 0 : index
    %c0_173 = arith.constant 0 : index
    %723 = vector.load %arg10[%c0_172, %c0_173] : memref<2x16xf32, #tpu.memory_space<vmem>>, vector<2x16xf32>
    tpu.vector_store %arg10[%c0_172, %c0_173], %722 {strides = array<i32>} : memref<2x16xf32, #tpu.memory_space<vmem>>, vector<2x16xf32>,
    return
  }
}

module attributes {stable_mosaic.version = 11 : i64} {
  func.func @attn_decoder_kernel(%arg0: memref<6x2x96xf32, #tpu.memory_space<vmem>>, %arg1: memref<2x8x32xf32, #tpu.memory_space<vmem>>, %arg2: memref<2x32xf32, #tpu.memory_space<vmem>>, %arg3: memref<32x32xf32, #tpu.memory_space<vmem>>, %arg4: memref<1x32xf32, #tpu.memory_space<vmem>>, %arg5: memref<32x96xf32, #tpu.memory_space<vmem>>, %arg6: memref<32x96xf32, #tpu.memory_space<vmem>>, %arg7: memref<1x96xf32, #tpu.memory_space<vmem>>, %arg8: memref<6x2x32xf32, #tpu.memory_space<vmem>>, %arg9: memref<6x2x32xf32, #tpu.memory_space<vmem>>) attributes {dimension_semantics = [], scalar_prefetch = 0 : i64, scratch_operands = 0 : i64, tpu.core_type = #tpu.core_type<tc>} {
    %c0 = arith.constant 0 : index
    %c0_0 = arith.constant 0 : index
    %c0_1 = arith.constant 0 : index
    %0 = vector.load %arg1[%c0, %c0_0, %c0_1] : memref<2x8x32xf32, #tpu.memory_space<vmem>>, vector<2x8x32xf32>
    %c0_2 = arith.constant 0 : index
    %c0_3 = arith.constant 0 : index
    %1 = vector.load %arg5[%c0_2, %c0_3] : memref<32x96xf32, #tpu.memory_space<vmem>>, vector<32x96xf32>
    %c0_4 = arith.constant 0 : index
    %c0_5 = arith.constant 0 : index
    %2 = vector.load %arg6[%c0_4, %c0_5] : memref<32x96xf32, #tpu.memory_space<vmem>>, vector<32x96xf32>
    %c0_6 = arith.constant 0 : index
    %c0_7 = arith.constant 0 : index
    %3 = vector.load %arg7[%c0_6, %c0_7] : memref<1x96xf32, #tpu.memory_space<vmem>>, vector<1x96xf32>
    %4 = vector.shape_cast %3 : vector<1x96xf32> to vector<1x96xf32>
    %5 = vector.broadcast %4 : vector<1x96xf32> to vector<2x96xf32>
    %c0_8 = arith.constant 0 : index
    %c0_9 = arith.constant 0 : index
    %6 = vector.load %arg2[%c0_8, %c0_9] : memref<2x32xf32, #tpu.memory_space<vmem>>, vector<2x32xf32>
    %c0_10 = arith.constant 0 : index
    %c0_11 = arith.constant 0 : index
    %7 = vector.load %arg3[%c0_10, %c0_11] : memref<32x32xf32, #tpu.memory_space<vmem>>, vector<32x32xf32>
    %cst = arith.constant dense<0.000000e+00> : vector<2x32xf32>
    %8 = tpu.matmul %6, %7, %cst {dimension_numbers = #tpu.dot_dimension_numbers<[1], [0], [0], [1], [0, 0, 1, 1], [], []>} : vector<2x32xf32>, vector<32x32xf32>, vector<2x32xf32> -> vector<2x32xf32>
    %c0_12 = arith.constant 0 : index
    %c0_13 = arith.constant 0 : index
    %9 = vector.load %arg4[%c0_12, %c0_13] : memref<1x32xf32, #tpu.memory_space<vmem>>, vector<1x32xf32>
    %10 = vector.broadcast %9 : vector<1x32xf32> to vector<2x32xf32>
    %11 = arith.addf %8, %10 : vector<2x32xf32>
    %cst_14 = arith.constant 0.000000e+00 : f32
    %12 = vector.broadcast %cst_14 : f32 to vector<2x32xf32>
    %c0_i32 = arith.constant 0 : i32
    %13 = arith.index_cast %c0_i32 : i32 to index
    %c0_15 = arith.constant 0 : index
    %c0_16 = arith.constant 0 : index
    %14 = vector.load %arg0[%13, %c0_15, %c0_16] : memref<6x2x96xf32, #tpu.memory_space<vmem>>, vector<1x2x96xf32>
    %15 = vector.shape_cast %14 : vector<1x2x96xf32> to vector<2x96xf32>
    %cst_17 = arith.constant dense<0.000000e+00> : vector<2x96xf32>
    %16 = tpu.matmul %12, %1, %cst_17 {dimension_numbers = #tpu.dot_dimension_numbers<[1], [0], [0], [1], [0, 0, 1, 1], [], []>} : vector<2x32xf32>, vector<32x96xf32>, vector<2x96xf32> -> vector<2x96xf32>
    %17 = arith.addf %15, %16 : vector<2x96xf32>
    %cst_18 = arith.constant dense<0.000000e+00> : vector<2x96xf32>
    %18 = tpu.matmul %11, %2, %cst_18 {dimension_numbers = #tpu.dot_dimension_numbers<[1], [0], [0], [1], [0, 0, 1, 1], [], []>} : vector<2x32xf32>, vector<32x96xf32>, vector<2x96xf32> -> vector<2x96xf32>
    %19 = arith.addf %18, %5 : vector<2x96xf32>
    %20 = vector.extract_strided_slice %17 {offsets = [0, 0], sizes = [2, 32], strides = [1, 1]} : vector<2x96xf32> to vector<2x32xf32>
    %21 = vector.extract_strided_slice %19 {offsets = [0, 0], sizes = [2, 32], strides = [1, 1]} : vector<2x96xf32> to vector<2x32xf32>
    %22 = arith.addf %20, %21 : vector<2x32xf32>
    %23 = arith.negf %22 : vector<2x32xf32>
    %24 = math.exp %23 : vector<2x32xf32>
    %cst_19 = arith.constant 1.000000e+00 : f32
    %25 = vector.broadcast %cst_19 : f32 to vector<2x32xf32>
    %26 = arith.addf %25, %24 : vector<2x32xf32>
    %27 = arith.divf %25, %26 : vector<2x32xf32>
    %28 = vector.extract_strided_slice %17 {offsets = [0, 32], sizes = [2, 32], strides = [1, 1]} : vector<2x96xf32> to vector<2x32xf32>
    %29 = vector.extract_strided_slice %19 {offsets = [0, 32], sizes = [2, 32], strides = [1, 1]} : vector<2x96xf32> to vector<2x32xf32>
    %30 = arith.addf %28, %29 : vector<2x32xf32>
    %31 = arith.negf %30 : vector<2x32xf32>
    %32 = math.exp %31 : vector<2x32xf32>
    %cst_20 = arith.constant 1.000000e+00 : f32
    %33 = vector.broadcast %cst_20 : f32 to vector<2x32xf32>
    %34 = arith.addf %33, %32 : vector<2x32xf32>
    %35 = arith.divf %33, %34 : vector<2x32xf32>
    %36 = vector.extract_strided_slice %17 {offsets = [0, 64], sizes = [2, 32], strides = [1, 1]} : vector<2x96xf32> to vector<2x32xf32>
    %37 = vector.extract_strided_slice %19 {offsets = [0, 64], sizes = [2, 32], strides = [1, 1]} : vector<2x96xf32> to vector<2x32xf32>
    %38 = arith.mulf %27, %37 : vector<2x32xf32>
    %39 = arith.addf %36, %38 : vector<2x32xf32>
    %40 = math.tanh %39 : vector<2x32xf32>
    %cst_21 = arith.constant 1.000000e+00 : f32
    %41 = vector.broadcast %cst_21 : f32 to vector<2x32xf32>
    %42 = arith.subf %41, %35 : vector<2x32xf32>
    %43 = arith.mulf %42, %40 : vector<2x32xf32>
    %44 = arith.mulf %35, %11 : vector<2x32xf32>
    %45 = arith.addf %43, %44 : vector<2x32xf32>
    %46 = vector.shape_cast %45 : vector<2x32xf32> to vector<2x1x32xf32>
    "tpu.trace_start"() <{level = 10 : i32, message = "bqd,bsd->bqs"}> : () -> ()
    %cst_22 = arith.constant dense<0.000000e+00> : vector<2x1x8xf32>
    %47 = tpu.matmul %46, %0, %cst_22 {dimension_numbers = #tpu.dot_dimension_numbers<[2], [2], [1], [1], [0, 0, 0, 1, 1, 1], [0], [0]>} : vector<2x1x32xf32>, vector<2x8x32xf32>, vector<2x1x8xf32> -> vector<2x1x8xf32>
    "tpu.trace_stop"() : () -> ()
    %cst_23 = arith.constant dense<0xFF800000> : vector<2x1xf32>
    %48 = vector.multi_reduction <maximumf>, %47, %cst_23 [2] : vector<2x1x8xf32> to vector<2x1xf32>
    %49 = vector.shape_cast %48 : vector<2x1xf32> to vector<2x1x1xf32>
    %50 = vector.broadcast %49 : vector<2x1x1xf32> to vector<2x1x8xf32>
    %51 = arith.subf %47, %50 : vector<2x1x8xf32>
    %52 = math.exp %51 : vector<2x1x8xf32>
    %cst_24 = arith.constant dense<0.000000e+00> : vector<2x1xf32>
    %53 = vector.multi_reduction <add>, %52, %cst_24 [2] : vector<2x1x8xf32> to vector<2x1xf32>
    %54 = vector.shape_cast %53 : vector<2x1xf32> to vector<2x1x1xf32>
    %55 = tpu.reciprocal %54 {approx = true} : vector<2x1x1xf32> -> vector<2x1x1xf32>
    %56 = vector.broadcast %55 : vector<2x1x1xf32> to vector<2x1x8xf32>
    %57 = arith.mulf %52, %56 : vector<2x1x8xf32>
    "tpu.trace_start"() <{level = 10 : i32, message = "bqs,bsd->bqd"}> : () -> ()
    %cst_25 = arith.constant dense<0.000000e+00> : vector<2x1x32xf32>
    %58 = tpu.matmul %57, %0, %cst_25 {dimension_numbers = #tpu.dot_dimension_numbers<[2], [1], [1], [2], [0, 0, 0, 1, 1, 2], [0], [0]>} : vector<2x1x8xf32>, vector<2x8x32xf32>, vector<2x1x32xf32> -> vector<2x1x32xf32>
    "tpu.trace_stop"() : () -> ()
    %cst_26 = arith.constant dense<0.000000e+00> : vector<2x32xf32>
    %59 = vector.multi_reduction <add>, %58, %cst_26 [1] : vector<2x1x32xf32> to vector<2x32xf32>
    %60 = arith.index_cast %c0_i32 : i32 to index
    %c0_27 = arith.constant 0 : index
    %c0_28 = arith.constant 0 : index
    %61 = vector.load %arg8[%60, %c0_27, %c0_28] : memref<6x2x32xf32, #tpu.memory_space<vmem>>, vector<1x2x32xf32>
    %62 = vector.shape_cast %61 : vector<1x2x32xf32> to vector<2x32xf32>
    %63 = vector.shape_cast %45 : vector<2x32xf32> to vector<1x2x32xf32>
    tpu.vector_store %arg8[%60, %c0_27, %c0_28], %63 {strides = array<i32>} : memref<6x2x32xf32, #tpu.memory_space<vmem>>, vector<1x2x32xf32>,
    %64 = arith.index_cast %c0_i32 : i32 to index
    %c0_29 = arith.constant 0 : index
    %c0_30 = arith.constant 0 : index
    %65 = vector.load %arg9[%64, %c0_29, %c0_30] : memref<6x2x32xf32, #tpu.memory_space<vmem>>, vector<1x2x32xf32>
    %66 = vector.shape_cast %65 : vector<1x2x32xf32> to vector<2x32xf32>
    %67 = vector.shape_cast %59 : vector<2x32xf32> to vector<1x2x32xf32>
    tpu.vector_store %arg9[%64, %c0_29, %c0_30], %67 {strides = array<i32>} : memref<6x2x32xf32, #tpu.memory_space<vmem>>, vector<1x2x32xf32>,
    %c1_i32 = arith.constant 1 : i32
    %68 = arith.index_cast %c1_i32 : i32 to index
    %c0_31 = arith.constant 0 : index
    %c0_32 = arith.constant 0 : index
    %69 = vector.load %arg0[%68, %c0_31, %c0_32] : memref<6x2x96xf32, #tpu.memory_space<vmem>>, vector<1x2x96xf32>
    %70 = vector.shape_cast %69 : vector<1x2x96xf32> to vector<2x96xf32>
    %cst_33 = arith.constant dense<0.000000e+00> : vector<2x96xf32>
    %71 = tpu.matmul %59, %1, %cst_33 {dimension_numbers = #tpu.dot_dimension_numbers<[1], [0], [0], [1], [0, 0, 1, 1], [], []>} : vector<2x32xf32>, vector<32x96xf32>, vector<2x96xf32> -> vector<2x96xf32>
    %72 = arith.addf %70, %71 : vector<2x96xf32>
    %cst_34 = arith.constant dense<0.000000e+00> : vector<2x96xf32>
    %73 = tpu.matmul %45, %2, %cst_34 {dimension_numbers = #tpu.dot_dimension_numbers<[1], [0], [0], [1], [0, 0, 1, 1], [], []>} : vector<2x32xf32>, vector<32x96xf32>, vector<2x96xf32> -> vector<2x96xf32>
    %74 = arith.addf %73, %5 : vector<2x96xf32>
    %75 = vector.extract_strided_slice %72 {offsets = [0, 0], sizes = [2, 32], strides = [1, 1]} : vector<2x96xf32> to vector<2x32xf32>
    %76 = vector.extract_strided_slice %74 {offsets = [0, 0], sizes = [2, 32], strides = [1, 1]} : vector<2x96xf32> to vector<2x32xf32>
    %77 = arith.addf %75, %76 : vector<2x32xf32>
    %78 = arith.negf %77 : vector<2x32xf32>
    %79 = math.exp %78 : vector<2x32xf32>
    %cst_35 = arith.constant 1.000000e+00 : f32
    %80 = vector.broadcast %cst_35 : f32 to vector<2x32xf32>
    %81 = arith.addf %80, %79 : vector<2x32xf32>
    %82 = arith.divf %80, %81 : vector<2x32xf32>
    %83 = vector.extract_strided_slice %72 {offsets = [0, 32], sizes = [2, 32], strides = [1, 1]} : vector<2x96xf32> to vector<2x32xf32>
    %84 = vector.extract_strided_slice %74 {offsets = [0, 32], sizes = [2, 32], strides = [1, 1]} : vector<2x96xf32> to vector<2x32xf32>
    %85 = arith.addf %83, %84 : vector<2x32xf32>
    %86 = arith.negf %85 : vector<2x32xf32>
    %87 = math.exp %86 : vector<2x32xf32>
    %cst_36 = arith.constant 1.000000e+00 : f32
    %88 = vector.broadcast %cst_36 : f32 to vector<2x32xf32>
    %89 = arith.addf %88, %87 : vector<2x32xf32>
    %90 = arith.divf %88, %89 : vector<2x32xf32>
    %91 = vector.extract_strided_slice %72 {offsets = [0, 64], sizes = [2, 32], strides = [1, 1]} : vector<2x96xf32> to vector<2x32xf32>
    %92 = vector.extract_strided_slice %74 {offsets = [0, 64], sizes = [2, 32], strides = [1, 1]} : vector<2x96xf32> to vector<2x32xf32>
    %93 = arith.mulf %82, %92 : vector<2x32xf32>
    %94 = arith.addf %91, %93 : vector<2x32xf32>
    %95 = math.tanh %94 : vector<2x32xf32>
    %cst_37 = arith.constant 1.000000e+00 : f32
    %96 = vector.broadcast %cst_37 : f32 to vector<2x32xf32>
    %97 = arith.subf %96, %90 : vector<2x32xf32>
    %98 = arith.mulf %97, %95 : vector<2x32xf32>
    %99 = arith.mulf %90, %45 : vector<2x32xf32>
    %100 = arith.addf %98, %99 : vector<2x32xf32>
    %101 = vector.shape_cast %100 : vector<2x32xf32> to vector<2x1x32xf32>
    "tpu.trace_start"() <{level = 10 : i32, message = "bqd,bsd->bqs"}> : () -> ()
    %cst_38 = arith.constant dense<0.000000e+00> : vector<2x1x8xf32>
    %102 = tpu.matmul %101, %0, %cst_38 {dimension_numbers = #tpu.dot_dimension_numbers<[2], [2], [1], [1], [0, 0, 0, 1, 1, 1], [0], [0]>} : vector<2x1x32xf32>, vector<2x8x32xf32>, vector<2x1x8xf32> -> vector<2x1x8xf32>
    "tpu.trace_stop"() : () -> ()
    %cst_39 = arith.constant dense<0xFF800000> : vector<2x1xf32>
    %103 = vector.multi_reduction <maximumf>, %102, %cst_39 [2] : vector<2x1x8xf32> to vector<2x1xf32>
    %104 = vector.shape_cast %103 : vector<2x1xf32> to vector<2x1x1xf32>
    %105 = vector.broadcast %104 : vector<2x1x1xf32> to vector<2x1x8xf32>
    %106 = arith.subf %102, %105 : vector<2x1x8xf32>
    %107 = math.exp %106 : vector<2x1x8xf32>
    %cst_40 = arith.constant dense<0.000000e+00> : vector<2x1xf32>
    %108 = vector.multi_reduction <add>, %107, %cst_40 [2] : vector<2x1x8xf32> to vector<2x1xf32>
    %109 = vector.shape_cast %108 : vector<2x1xf32> to vector<2x1x1xf32>
    %110 = tpu.reciprocal %109 {approx = true} : vector<2x1x1xf32> -> vector<2x1x1xf32>
    %111 = vector.broadcast %110 : vector<2x1x1xf32> to vector<2x1x8xf32>
    %112 = arith.mulf %107, %111 : vector<2x1x8xf32>
    "tpu.trace_start"() <{level = 10 : i32, message = "bqs,bsd->bqd"}> : () -> ()
    %cst_41 = arith.constant dense<0.000000e+00> : vector<2x1x32xf32>
    %113 = tpu.matmul %112, %0, %cst_41 {dimension_numbers = #tpu.dot_dimension_numbers<[2], [1], [1], [2], [0, 0, 0, 1, 1, 2], [0], [0]>} : vector<2x1x8xf32>, vector<2x8x32xf32>, vector<2x1x32xf32> -> vector<2x1x32xf32>
    "tpu.trace_stop"() : () -> ()
    %cst_42 = arith.constant dense<0.000000e+00> : vector<2x32xf32>
    %114 = vector.multi_reduction <add>, %113, %cst_42 [1] : vector<2x1x32xf32> to vector<2x32xf32>
    %115 = arith.index_cast %c1_i32 : i32 to index
    %c0_43 = arith.constant 0 : index
    %c0_44 = arith.constant 0 : index
    %116 = vector.load %arg8[%115, %c0_43, %c0_44] : memref<6x2x32xf32, #tpu.memory_space<vmem>>, vector<1x2x32xf32>
    %117 = vector.shape_cast %116 : vector<1x2x32xf32> to vector<2x32xf32>
    %118 = vector.shape_cast %100 : vector<2x32xf32> to vector<1x2x32xf32>
    tpu.vector_store %arg8[%115, %c0_43, %c0_44], %118 {strides = array<i32>} : memref<6x2x32xf32, #tpu.memory_space<vmem>>, vector<1x2x32xf32>,
    %119 = arith.index_cast %c1_i32 : i32 to index
    %c0_45 = arith.constant 0 : index
    %c0_46 = arith.constant 0 : index
    %120 = vector.load %arg9[%119, %c0_45, %c0_46] : memref<6x2x32xf32, #tpu.memory_space<vmem>>, vector<1x2x32xf32>
    %121 = vector.shape_cast %120 : vector<1x2x32xf32> to vector<2x32xf32>
    %122 = vector.shape_cast %114 : vector<2x32xf32> to vector<1x2x32xf32>
    tpu.vector_store %arg9[%119, %c0_45, %c0_46], %122 {strides = array<i32>} : memref<6x2x32xf32, #tpu.memory_space<vmem>>, vector<1x2x32xf32>,
    %c2_i32 = arith.constant 2 : i32
    %123 = arith.index_cast %c2_i32 : i32 to index
    %c0_47 = arith.constant 0 : index
    %c0_48 = arith.constant 0 : index
    %124 = vector.load %arg0[%123, %c0_47, %c0_48] : memref<6x2x96xf32, #tpu.memory_space<vmem>>, vector<1x2x96xf32>
    %125 = vector.shape_cast %124 : vector<1x2x96xf32> to vector<2x96xf32>
    %cst_49 = arith.constant dense<0.000000e+00> : vector<2x96xf32>
    %126 = tpu.matmul %114, %1, %cst_49 {dimension_numbers = #tpu.dot_dimension_numbers<[1], [0], [0], [1], [0, 0, 1, 1], [], []>} : vector<2x32xf32>, vector<32x96xf32>, vector<2x96xf32> -> vector<2x96xf32>
    %127 = arith.addf %125, %126 : vector<2x96xf32>
    %cst_50 = arith.constant dense<0.000000e+00> : vector<2x96xf32>
    %128 = tpu.matmul %100, %2, %cst_50 {dimension_numbers = #tpu.dot_dimension_numbers<[1], [0], [0], [1], [0, 0, 1, 1], [], []>} : vector<2x32xf32>, vector<32x96xf32>, vector<2x96xf32> -> vector<2x96xf32>
    %129 = arith.addf %128, %5 : vector<2x96xf32>
    %130 = vector.extract_strided_slice %127 {offsets = [0, 0], sizes = [2, 32], strides = [1, 1]} : vector<2x96xf32> to vector<2x32xf32>
    %131 = vector.extract_strided_slice %129 {offsets = [0, 0], sizes = [2, 32], strides = [1, 1]} : vector<2x96xf32> to vector<2x32xf32>
    %132 = arith.addf %130, %131 : vector<2x32xf32>
    %133 = arith.negf %132 : vector<2x32xf32>
    %134 = math.exp %133 : vector<2x32xf32>
    %cst_51 = arith.constant 1.000000e+00 : f32
    %135 = vector.broadcast %cst_51 : f32 to vector<2x32xf32>
    %136 = arith.addf %135, %134 : vector<2x32xf32>
    %137 = arith.divf %135, %136 : vector<2x32xf32>
    %138 = vector.extract_strided_slice %127 {offsets = [0, 32], sizes = [2, 32], strides = [1, 1]} : vector<2x96xf32> to vector<2x32xf32>
    %139 = vector.extract_strided_slice %129 {offsets = [0, 32], sizes = [2, 32], strides = [1, 1]} : vector<2x96xf32> to vector<2x32xf32>
    %140 = arith.addf %138, %139 : vector<2x32xf32>
    %141 = arith.negf %140 : vector<2x32xf32>
    %142 = math.exp %141 : vector<2x32xf32>
    %cst_52 = arith.constant 1.000000e+00 : f32
    %143 = vector.broadcast %cst_52 : f32 to vector<2x32xf32>
    %144 = arith.addf %143, %142 : vector<2x32xf32>
    %145 = arith.divf %143, %144 : vector<2x32xf32>
    %146 = vector.extract_strided_slice %127 {offsets = [0, 64], sizes = [2, 32], strides = [1, 1]} : vector<2x96xf32> to vector<2x32xf32>
    %147 = vector.extract_strided_slice %129 {offsets = [0, 64], sizes = [2, 32], strides = [1, 1]} : vector<2x96xf32> to vector<2x32xf32>
    %148 = arith.mulf %137, %147 : vector<2x32xf32>
    %149 = arith.addf %146, %148 : vector<2x32xf32>
    %150 = math.tanh %149 : vector<2x32xf32>
    %cst_53 = arith.constant 1.000000e+00 : f32
    %151 = vector.broadcast %cst_53 : f32 to vector<2x32xf32>
    %152 = arith.subf %151, %145 : vector<2x32xf32>
    %153 = arith.mulf %152, %150 : vector<2x32xf32>
    %154 = arith.mulf %145, %100 : vector<2x32xf32>
    %155 = arith.addf %153, %154 : vector<2x32xf32>
    %156 = vector.shape_cast %155 : vector<2x32xf32> to vector<2x1x32xf32>
    "tpu.trace_start"() <{level = 10 : i32, message = "bqd,bsd->bqs"}> : () -> ()
    %cst_54 = arith.constant dense<0.000000e+00> : vector<2x1x8xf32>
    %157 = tpu.matmul %156, %0, %cst_54 {dimension_numbers = #tpu.dot_dimension_numbers<[2], [2], [1], [1], [0, 0, 0, 1, 1, 1], [0], [0]>} : vector<2x1x32xf32>, vector<2x8x32xf32>, vector<2x1x8xf32> -> vector<2x1x8xf32>
    "tpu.trace_stop"() : () -> ()
    %cst_55 = arith.constant dense<0xFF800000> : vector<2x1xf32>
    %158 = vector.multi_reduction <maximumf>, %157, %cst_55 [2] : vector<2x1x8xf32> to vector<2x1xf32>
    %159 = vector.shape_cast %158 : vector<2x1xf32> to vector<2x1x1xf32>
    %160 = vector.broadcast %159 : vector<2x1x1xf32> to vector<2x1x8xf32>
    %161 = arith.subf %157, %160 : vector<2x1x8xf32>
    %162 = math.exp %161 : vector<2x1x8xf32>
    %cst_56 = arith.constant dense<0.000000e+00> : vector<2x1xf32>
    %163 = vector.multi_reduction <add>, %162, %cst_56 [2] : vector<2x1x8xf32> to vector<2x1xf32>
    %164 = vector.shape_cast %163 : vector<2x1xf32> to vector<2x1x1xf32>
    %165 = tpu.reciprocal %164 {approx = true} : vector<2x1x1xf32> -> vector<2x1x1xf32>
    %166 = vector.broadcast %165 : vector<2x1x1xf32> to vector<2x1x8xf32>
    %167 = arith.mulf %162, %166 : vector<2x1x8xf32>
    "tpu.trace_start"() <{level = 10 : i32, message = "bqs,bsd->bqd"}> : () -> ()
    %cst_57 = arith.constant dense<0.000000e+00> : vector<2x1x32xf32>
    %168 = tpu.matmul %167, %0, %cst_57 {dimension_numbers = #tpu.dot_dimension_numbers<[2], [1], [1], [2], [0, 0, 0, 1, 1, 2], [0], [0]>} : vector<2x1x8xf32>, vector<2x8x32xf32>, vector<2x1x32xf32> -> vector<2x1x32xf32>
    "tpu.trace_stop"() : () -> ()
    %cst_58 = arith.constant dense<0.000000e+00> : vector<2x32xf32>
    %169 = vector.multi_reduction <add>, %168, %cst_58 [1] : vector<2x1x32xf32> to vector<2x32xf32>
    %170 = arith.index_cast %c2_i32 : i32 to index
    %c0_59 = arith.constant 0 : index
    %c0_60 = arith.constant 0 : index
    %171 = vector.load %arg8[%170, %c0_59, %c0_60] : memref<6x2x32xf32, #tpu.memory_space<vmem>>, vector<1x2x32xf32>
    %172 = vector.shape_cast %171 : vector<1x2x32xf32> to vector<2x32xf32>
    %173 = vector.shape_cast %155 : vector<2x32xf32> to vector<1x2x32xf32>
    tpu.vector_store %arg8[%170, %c0_59, %c0_60], %173 {strides = array<i32>} : memref<6x2x32xf32, #tpu.memory_space<vmem>>, vector<1x2x32xf32>,
    %174 = arith.index_cast %c2_i32 : i32 to index
    %c0_61 = arith.constant 0 : index
    %c0_62 = arith.constant 0 : index
    %175 = vector.load %arg9[%174, %c0_61, %c0_62] : memref<6x2x32xf32, #tpu.memory_space<vmem>>, vector<1x2x32xf32>
    %176 = vector.shape_cast %175 : vector<1x2x32xf32> to vector<2x32xf32>
    %177 = vector.shape_cast %169 : vector<2x32xf32> to vector<1x2x32xf32>
    tpu.vector_store %arg9[%174, %c0_61, %c0_62], %177 {strides = array<i32>} : memref<6x2x32xf32, #tpu.memory_space<vmem>>, vector<1x2x32xf32>,
    %c3_i32 = arith.constant 3 : i32
    %178 = arith.index_cast %c3_i32 : i32 to index
    %c0_63 = arith.constant 0 : index
    %c0_64 = arith.constant 0 : index
    %179 = vector.load %arg0[%178, %c0_63, %c0_64] : memref<6x2x96xf32, #tpu.memory_space<vmem>>, vector<1x2x96xf32>
    %180 = vector.shape_cast %179 : vector<1x2x96xf32> to vector<2x96xf32>
    %cst_65 = arith.constant dense<0.000000e+00> : vector<2x96xf32>
    %181 = tpu.matmul %169, %1, %cst_65 {dimension_numbers = #tpu.dot_dimension_numbers<[1], [0], [0], [1], [0, 0, 1, 1], [], []>} : vector<2x32xf32>, vector<32x96xf32>, vector<2x96xf32> -> vector<2x96xf32>
    %182 = arith.addf %180, %181 : vector<2x96xf32>
    %cst_66 = arith.constant dense<0.000000e+00> : vector<2x96xf32>
    %183 = tpu.matmul %155, %2, %cst_66 {dimension_numbers = #tpu.dot_dimension_numbers<[1], [0], [0], [1], [0, 0, 1, 1], [], []>} : vector<2x32xf32>, vector<32x96xf32>, vector<2x96xf32> -> vector<2x96xf32>
    %184 = arith.addf %183, %5 : vector<2x96xf32>
    %185 = vector.extract_strided_slice %182 {offsets = [0, 0], sizes = [2, 32], strides = [1, 1]} : vector<2x96xf32> to vector<2x32xf32>
    %186 = vector.extract_strided_slice %184 {offsets = [0, 0], sizes = [2, 32], strides = [1, 1]} : vector<2x96xf32> to vector<2x32xf32>
    %187 = arith.addf %185, %186 : vector<2x32xf32>
    %188 = arith.negf %187 : vector<2x32xf32>
    %189 = math.exp %188 : vector<2x32xf32>
    %cst_67 = arith.constant 1.000000e+00 : f32
    %190 = vector.broadcast %cst_67 : f32 to vector<2x32xf32>
    %191 = arith.addf %190, %189 : vector<2x32xf32>
    %192 = arith.divf %190, %191 : vector<2x32xf32>
    %193 = vector.extract_strided_slice %182 {offsets = [0, 32], sizes = [2, 32], strides = [1, 1]} : vector<2x96xf32> to vector<2x32xf32>
    %194 = vector.extract_strided_slice %184 {offsets = [0, 32], sizes = [2, 32], strides = [1, 1]} : vector<2x96xf32> to vector<2x32xf32>
    %195 = arith.addf %193, %194 : vector<2x32xf32>
    %196 = arith.negf %195 : vector<2x32xf32>
    %197 = math.exp %196 : vector<2x32xf32>
    %cst_68 = arith.constant 1.000000e+00 : f32
    %198 = vector.broadcast %cst_68 : f32 to vector<2x32xf32>
    %199 = arith.addf %198, %197 : vector<2x32xf32>
    %200 = arith.divf %198, %199 : vector<2x32xf32>
    %201 = vector.extract_strided_slice %182 {offsets = [0, 64], sizes = [2, 32], strides = [1, 1]} : vector<2x96xf32> to vector<2x32xf32>
    %202 = vector.extract_strided_slice %184 {offsets = [0, 64], sizes = [2, 32], strides = [1, 1]} : vector<2x96xf32> to vector<2x32xf32>
    %203 = arith.mulf %192, %202 : vector<2x32xf32>
    %204 = arith.addf %201, %203 : vector<2x32xf32>
    %205 = math.tanh %204 : vector<2x32xf32>
    %cst_69 = arith.constant 1.000000e+00 : f32
    %206 = vector.broadcast %cst_69 : f32 to vector<2x32xf32>
    %207 = arith.subf %206, %200 : vector<2x32xf32>
    %208 = arith.mulf %207, %205 : vector<2x32xf32>
    %209 = arith.mulf %200, %155 : vector<2x32xf32>
    %210 = arith.addf %208, %209 : vector<2x32xf32>
    %211 = vector.shape_cast %210 : vector<2x32xf32> to vector<2x1x32xf32>
    "tpu.trace_start"() <{level = 10 : i32, message = "bqd,bsd->bqs"}> : () -> ()
    %cst_70 = arith.constant dense<0.000000e+00> : vector<2x1x8xf32>
    %212 = tpu.matmul %211, %0, %cst_70 {dimension_numbers = #tpu.dot_dimension_numbers<[2], [2], [1], [1], [0, 0, 0, 1, 1, 1], [0], [0]>} : vector<2x1x32xf32>, vector<2x8x32xf32>, vector<2x1x8xf32> -> vector<2x1x8xf32>
    "tpu.trace_stop"() : () -> ()
    %cst_71 = arith.constant dense<0xFF800000> : vector<2x1xf32>
    %213 = vector.multi_reduction <maximumf>, %212, %cst_71 [2] : vector<2x1x8xf32> to vector<2x1xf32>
    %214 = vector.shape_cast %213 : vector<2x1xf32> to vector<2x1x1xf32>
    %215 = vector.broadcast %214 : vector<2x1x1xf32> to vector<2x1x8xf32>
    %216 = arith.subf %212, %215 : vector<2x1x8xf32>
    %217 = math.exp %216 : vector<2x1x8xf32>
    %cst_72 = arith.constant dense<0.000000e+00> : vector<2x1xf32>
    %218 = vector.multi_reduction <add>, %217, %cst_72 [2] : vector<2x1x8xf32> to vector<2x1xf32>
    %219 = vector.shape_cast %218 : vector<2x1xf32> to vector<2x1x1xf32>
    %220 = tpu.reciprocal %219 {approx = true} : vector<2x1x1xf32> -> vector<2x1x1xf32>
    %221 = vector.broadcast %220 : vector<2x1x1xf32> to vector<2x1x8xf32>
    %222 = arith.mulf %217, %221 : vector<2x1x8xf32>
    "tpu.trace_start"() <{level = 10 : i32, message = "bqs,bsd->bqd"}> : () -> ()
    %cst_73 = arith.constant dense<0.000000e+00> : vector<2x1x32xf32>
    %223 = tpu.matmul %222, %0, %cst_73 {dimension_numbers = #tpu.dot_dimension_numbers<[2], [1], [1], [2], [0, 0, 0, 1, 1, 2], [0], [0]>} : vector<2x1x8xf32>, vector<2x8x32xf32>, vector<2x1x32xf32> -> vector<2x1x32xf32>
    "tpu.trace_stop"() : () -> ()
    %cst_74 = arith.constant dense<0.000000e+00> : vector<2x32xf32>
    %224 = vector.multi_reduction <add>, %223, %cst_74 [1] : vector<2x1x32xf32> to vector<2x32xf32>
    %225 = arith.index_cast %c3_i32 : i32 to index
    %c0_75 = arith.constant 0 : index
    %c0_76 = arith.constant 0 : index
    %226 = vector.load %arg8[%225, %c0_75, %c0_76] : memref<6x2x32xf32, #tpu.memory_space<vmem>>, vector<1x2x32xf32>
    %227 = vector.shape_cast %226 : vector<1x2x32xf32> to vector<2x32xf32>
    %228 = vector.shape_cast %210 : vector<2x32xf32> to vector<1x2x32xf32>
    tpu.vector_store %arg8[%225, %c0_75, %c0_76], %228 {strides = array<i32>} : memref<6x2x32xf32, #tpu.memory_space<vmem>>, vector<1x2x32xf32>,
    %229 = arith.index_cast %c3_i32 : i32 to index
    %c0_77 = arith.constant 0 : index
    %c0_78 = arith.constant 0 : index
    %230 = vector.load %arg9[%229, %c0_77, %c0_78] : memref<6x2x32xf32, #tpu.memory_space<vmem>>, vector<1x2x32xf32>
    %231 = vector.shape_cast %230 : vector<1x2x32xf32> to vector<2x32xf32>
    %232 = vector.shape_cast %224 : vector<2x32xf32> to vector<1x2x32xf32>
    tpu.vector_store %arg9[%229, %c0_77, %c0_78], %232 {strides = array<i32>} : memref<6x2x32xf32, #tpu.memory_space<vmem>>, vector<1x2x32xf32>,
    %c4_i32 = arith.constant 4 : i32
    %233 = arith.index_cast %c4_i32 : i32 to index
    %c0_79 = arith.constant 0 : index
    %c0_80 = arith.constant 0 : index
    %234 = vector.load %arg0[%233, %c0_79, %c0_80] : memref<6x2x96xf32, #tpu.memory_space<vmem>>, vector<1x2x96xf32>
    %235 = vector.shape_cast %234 : vector<1x2x96xf32> to vector<2x96xf32>
    %cst_81 = arith.constant dense<0.000000e+00> : vector<2x96xf32>
    %236 = tpu.matmul %224, %1, %cst_81 {dimension_numbers = #tpu.dot_dimension_numbers<[1], [0], [0], [1], [0, 0, 1, 1], [], []>} : vector<2x32xf32>, vector<32x96xf32>, vector<2x96xf32> -> vector<2x96xf32>
    %237 = arith.addf %235, %236 : vector<2x96xf32>
    %cst_82 = arith.constant dense<0.000000e+00> : vector<2x96xf32>
    %238 = tpu.matmul %210, %2, %cst_82 {dimension_numbers = #tpu.dot_dimension_numbers<[1], [0], [0], [1], [0, 0, 1, 1], [], []>} : vector<2x32xf32>, vector<32x96xf32>, vector<2x96xf32> -> vector<2x96xf32>
    %239 = arith.addf %238, %5 : vector<2x96xf32>
    %240 = vector.extract_strided_slice %237 {offsets = [0, 0], sizes = [2, 32], strides = [1, 1]} : vector<2x96xf32> to vector<2x32xf32>
    %241 = vector.extract_strided_slice %239 {offsets = [0, 0], sizes = [2, 32], strides = [1, 1]} : vector<2x96xf32> to vector<2x32xf32>
    %242 = arith.addf %240, %241 : vector<2x32xf32>
    %243 = arith.negf %242 : vector<2x32xf32>
    %244 = math.exp %243 : vector<2x32xf32>
    %cst_83 = arith.constant 1.000000e+00 : f32
    %245 = vector.broadcast %cst_83 : f32 to vector<2x32xf32>
    %246 = arith.addf %245, %244 : vector<2x32xf32>
    %247 = arith.divf %245, %246 : vector<2x32xf32>
    %248 = vector.extract_strided_slice %237 {offsets = [0, 32], sizes = [2, 32], strides = [1, 1]} : vector<2x96xf32> to vector<2x32xf32>
    %249 = vector.extract_strided_slice %239 {offsets = [0, 32], sizes = [2, 32], strides = [1, 1]} : vector<2x96xf32> to vector<2x32xf32>
    %250 = arith.addf %248, %249 : vector<2x32xf32>
    %251 = arith.negf %250 : vector<2x32xf32>
    %252 = math.exp %251 : vector<2x32xf32>
    %cst_84 = arith.constant 1.000000e+00 : f32
    %253 = vector.broadcast %cst_84 : f32 to vector<2x32xf32>
    %254 = arith.addf %253, %252 : vector<2x32xf32>
    %255 = arith.divf %253, %254 : vector<2x32xf32>
    %256 = vector.extract_strided_slice %237 {offsets = [0, 64], sizes = [2, 32], strides = [1, 1]} : vector<2x96xf32> to vector<2x32xf32>
    %257 = vector.extract_strided_slice %239 {offsets = [0, 64], sizes = [2, 32], strides = [1, 1]} : vector<2x96xf32> to vector<2x32xf32>
    %258 = arith.mulf %247, %257 : vector<2x32xf32>
    %259 = arith.addf %256, %258 : vector<2x32xf32>
    %260 = math.tanh %259 : vector<2x32xf32>
    %cst_85 = arith.constant 1.000000e+00 : f32
    %261 = vector.broadcast %cst_85 : f32 to vector<2x32xf32>
    %262 = arith.subf %261, %255 : vector<2x32xf32>
    %263 = arith.mulf %262, %260 : vector<2x32xf32>
    %264 = arith.mulf %255, %210 : vector<2x32xf32>
    %265 = arith.addf %263, %264 : vector<2x32xf32>
    %266 = vector.shape_cast %265 : vector<2x32xf32> to vector<2x1x32xf32>
    "tpu.trace_start"() <{level = 10 : i32, message = "bqd,bsd->bqs"}> : () -> ()
    %cst_86 = arith.constant dense<0.000000e+00> : vector<2x1x8xf32>
    %267 = tpu.matmul %266, %0, %cst_86 {dimension_numbers = #tpu.dot_dimension_numbers<[2], [2], [1], [1], [0, 0, 0, 1, 1, 1], [0], [0]>} : vector<2x1x32xf32>, vector<2x8x32xf32>, vector<2x1x8xf32> -> vector<2x1x8xf32>
    "tpu.trace_stop"() : () -> ()
    %cst_87 = arith.constant dense<0xFF800000> : vector<2x1xf32>
    %268 = vector.multi_reduction <maximumf>, %267, %cst_87 [2] : vector<2x1x8xf32> to vector<2x1xf32>
    %269 = vector.shape_cast %268 : vector<2x1xf32> to vector<2x1x1xf32>
    %270 = vector.broadcast %269 : vector<2x1x1xf32> to vector<2x1x8xf32>
    %271 = arith.subf %267, %270 : vector<2x1x8xf32>
    %272 = math.exp %271 : vector<2x1x8xf32>
    %cst_88 = arith.constant dense<0.000000e+00> : vector<2x1xf32>
    %273 = vector.multi_reduction <add>, %272, %cst_88 [2] : vector<2x1x8xf32> to vector<2x1xf32>
    %274 = vector.shape_cast %273 : vector<2x1xf32> to vector<2x1x1xf32>
    %275 = tpu.reciprocal %274 {approx = true} : vector<2x1x1xf32> -> vector<2x1x1xf32>
    %276 = vector.broadcast %275 : vector<2x1x1xf32> to vector<2x1x8xf32>
    %277 = arith.mulf %272, %276 : vector<2x1x8xf32>
    "tpu.trace_start"() <{level = 10 : i32, message = "bqs,bsd->bqd"}> : () -> ()
    %cst_89 = arith.constant dense<0.000000e+00> : vector<2x1x32xf32>
    %278 = tpu.matmul %277, %0, %cst_89 {dimension_numbers = #tpu.dot_dimension_numbers<[2], [1], [1], [2], [0, 0, 0, 1, 1, 2], [0], [0]>} : vector<2x1x8xf32>, vector<2x8x32xf32>, vector<2x1x32xf32> -> vector<2x1x32xf32>
    "tpu.trace_stop"() : () -> ()
    %cst_90 = arith.constant dense<0.000000e+00> : vector<2x32xf32>
    %279 = vector.multi_reduction <add>, %278, %cst_90 [1] : vector<2x1x32xf32> to vector<2x32xf32>
    %280 = arith.index_cast %c4_i32 : i32 to index
    %c0_91 = arith.constant 0 : index
    %c0_92 = arith.constant 0 : index
    %281 = vector.load %arg8[%280, %c0_91, %c0_92] : memref<6x2x32xf32, #tpu.memory_space<vmem>>, vector<1x2x32xf32>
    %282 = vector.shape_cast %281 : vector<1x2x32xf32> to vector<2x32xf32>
    %283 = vector.shape_cast %265 : vector<2x32xf32> to vector<1x2x32xf32>
    tpu.vector_store %arg8[%280, %c0_91, %c0_92], %283 {strides = array<i32>} : memref<6x2x32xf32, #tpu.memory_space<vmem>>, vector<1x2x32xf32>,
    %284 = arith.index_cast %c4_i32 : i32 to index
    %c0_93 = arith.constant 0 : index
    %c0_94 = arith.constant 0 : index
    %285 = vector.load %arg9[%284, %c0_93, %c0_94] : memref<6x2x32xf32, #tpu.memory_space<vmem>>, vector<1x2x32xf32>
    %286 = vector.shape_cast %285 : vector<1x2x32xf32> to vector<2x32xf32>
    %287 = vector.shape_cast %279 : vector<2x32xf32> to vector<1x2x32xf32>
    tpu.vector_store %arg9[%284, %c0_93, %c0_94], %287 {strides = array<i32>} : memref<6x2x32xf32, #tpu.memory_space<vmem>>, vector<1x2x32xf32>,
    %c5_i32 = arith.constant 5 : i32
    %288 = arith.index_cast %c5_i32 : i32 to index
    %c0_95 = arith.constant 0 : index
    %c0_96 = arith.constant 0 : index
    %289 = vector.load %arg0[%288, %c0_95, %c0_96] : memref<6x2x96xf32, #tpu.memory_space<vmem>>, vector<1x2x96xf32>
    %290 = vector.shape_cast %289 : vector<1x2x96xf32> to vector<2x96xf32>
    %cst_97 = arith.constant dense<0.000000e+00> : vector<2x96xf32>
    %291 = tpu.matmul %279, %1, %cst_97 {dimension_numbers = #tpu.dot_dimension_numbers<[1], [0], [0], [1], [0, 0, 1, 1], [], []>} : vector<2x32xf32>, vector<32x96xf32>, vector<2x96xf32> -> vector<2x96xf32>
    %292 = arith.addf %290, %291 : vector<2x96xf32>
    %cst_98 = arith.constant dense<0.000000e+00> : vector<2x96xf32>
    %293 = tpu.matmul %265, %2, %cst_98 {dimension_numbers = #tpu.dot_dimension_numbers<[1], [0], [0], [1], [0, 0, 1, 1], [], []>} : vector<2x32xf32>, vector<32x96xf32>, vector<2x96xf32> -> vector<2x96xf32>
    %294 = arith.addf %293, %5 : vector<2x96xf32>
    %295 = vector.extract_strided_slice %292 {offsets = [0, 0], sizes = [2, 32], strides = [1, 1]} : vector<2x96xf32> to vector<2x32xf32>
    %296 = vector.extract_strided_slice %294 {offsets = [0, 0], sizes = [2, 32], strides = [1, 1]} : vector<2x96xf32> to vector<2x32xf32>
    %297 = arith.addf %295, %296 : vector<2x32xf32>
    %298 = arith.negf %297 : vector<2x32xf32>
    %299 = math.exp %298 : vector<2x32xf32>
    %cst_99 = arith.constant 1.000000e+00 : f32
    %300 = vector.broadcast %cst_99 : f32 to vector<2x32xf32>
    %301 = arith.addf %300, %299 : vector<2x32xf32>
    %302 = arith.divf %300, %301 : vector<2x32xf32>
    %303 = vector.extract_strided_slice %292 {offsets = [0, 32], sizes = [2, 32], strides = [1, 1]} : vector<2x96xf32> to vector<2x32xf32>
    %304 = vector.extract_strided_slice %294 {offsets = [0, 32], sizes = [2, 32], strides = [1, 1]} : vector<2x96xf32> to vector<2x32xf32>
    %305 = arith.addf %303, %304 : vector<2x32xf32>
    %306 = arith.negf %305 : vector<2x32xf32>
    %307 = math.exp %306 : vector<2x32xf32>
    %cst_100 = arith.constant 1.000000e+00 : f32
    %308 = vector.broadcast %cst_100 : f32 to vector<2x32xf32>
    %309 = arith.addf %308, %307 : vector<2x32xf32>
    %310 = arith.divf %308, %309 : vector<2x32xf32>
    %311 = vector.extract_strided_slice %292 {offsets = [0, 64], sizes = [2, 32], strides = [1, 1]} : vector<2x96xf32> to vector<2x32xf32>
    %312 = vector.extract_strided_slice %294 {offsets = [0, 64], sizes = [2, 32], strides = [1, 1]} : vector<2x96xf32> to vector<2x32xf32>
    %313 = arith.mulf %302, %312 : vector<2x32xf32>
    %314 = arith.addf %311, %313 : vector<2x32xf32>
    %315 = math.tanh %314 : vector<2x32xf32>
    %cst_101 = arith.constant 1.000000e+00 : f32
    %316 = vector.broadcast %cst_101 : f32 to vector<2x32xf32>
    %317 = arith.subf %316, %310 : vector<2x32xf32>
    %318 = arith.mulf %317, %315 : vector<2x32xf32>
    %319 = arith.mulf %310, %265 : vector<2x32xf32>
    %320 = arith.addf %318, %319 : vector<2x32xf32>
    %321 = vector.shape_cast %320 : vector<2x32xf32> to vector<2x1x32xf32>
    "tpu.trace_start"() <{level = 10 : i32, message = "bqd,bsd->bqs"}> : () -> ()
    %cst_102 = arith.constant dense<0.000000e+00> : vector<2x1x8xf32>
    %322 = tpu.matmul %321, %0, %cst_102 {dimension_numbers = #tpu.dot_dimension_numbers<[2], [2], [1], [1], [0, 0, 0, 1, 1, 1], [0], [0]>} : vector<2x1x32xf32>, vector<2x8x32xf32>, vector<2x1x8xf32> -> vector<2x1x8xf32>
    "tpu.trace_stop"() : () -> ()
    %cst_103 = arith.constant dense<0xFF800000> : vector<2x1xf32>
    %323 = vector.multi_reduction <maximumf>, %322, %cst_103 [2] : vector<2x1x8xf32> to vector<2x1xf32>
    %324 = vector.shape_cast %323 : vector<2x1xf32> to vector<2x1x1xf32>
    %325 = vector.broadcast %324 : vector<2x1x1xf32> to vector<2x1x8xf32>
    %326 = arith.subf %322, %325 : vector<2x1x8xf32>
    %327 = math.exp %326 : vector<2x1x8xf32>
    %cst_104 = arith.constant dense<0.000000e+00> : vector<2x1xf32>
    %328 = vector.multi_reduction <add>, %327, %cst_104 [2] : vector<2x1x8xf32> to vector<2x1xf32>
    %329 = vector.shape_cast %328 : vector<2x1xf32> to vector<2x1x1xf32>
    %330 = tpu.reciprocal %329 {approx = true} : vector<2x1x1xf32> -> vector<2x1x1xf32>
    %331 = vector.broadcast %330 : vector<2x1x1xf32> to vector<2x1x8xf32>
    %332 = arith.mulf %327, %331 : vector<2x1x8xf32>
    "tpu.trace_start"() <{level = 10 : i32, message = "bqs,bsd->bqd"}> : () -> ()
    %cst_105 = arith.constant dense<0.000000e+00> : vector<2x1x32xf32>
    %333 = tpu.matmul %332, %0, %cst_105 {dimension_numbers = #tpu.dot_dimension_numbers<[2], [1], [1], [2], [0, 0, 0, 1, 1, 2], [0], [0]>} : vector<2x1x8xf32>, vector<2x8x32xf32>, vector<2x1x32xf32> -> vector<2x1x32xf32>
    "tpu.trace_stop"() : () -> ()
    %cst_106 = arith.constant dense<0.000000e+00> : vector<2x32xf32>
    %334 = vector.multi_reduction <add>, %333, %cst_106 [1] : vector<2x1x32xf32> to vector<2x32xf32>
    %335 = arith.index_cast %c5_i32 : i32 to index
    %c0_107 = arith.constant 0 : index
    %c0_108 = arith.constant 0 : index
    %336 = vector.load %arg8[%335, %c0_107, %c0_108] : memref<6x2x32xf32, #tpu.memory_space<vmem>>, vector<1x2x32xf32>
    %337 = vector.shape_cast %336 : vector<1x2x32xf32> to vector<2x32xf32>
    %338 = vector.shape_cast %320 : vector<2x32xf32> to vector<1x2x32xf32>
    tpu.vector_store %arg8[%335, %c0_107, %c0_108], %338 {strides = array<i32>} : memref<6x2x32xf32, #tpu.memory_space<vmem>>, vector<1x2x32xf32>,
    %339 = arith.index_cast %c5_i32 : i32 to index
    %c0_109 = arith.constant 0 : index
    %c0_110 = arith.constant 0 : index
    %340 = vector.load %arg9[%339, %c0_109, %c0_110] : memref<6x2x32xf32, #tpu.memory_space<vmem>>, vector<1x2x32xf32>
    %341 = vector.shape_cast %340 : vector<1x2x32xf32> to vector<2x32xf32>
    %342 = vector.shape_cast %334 : vector<2x32xf32> to vector<1x2x32xf32>
    tpu.vector_store %arg9[%339, %c0_109, %c0_110], %342 {strides = array<i32>} : memref<6x2x32xf32, #tpu.memory_space<vmem>>, vector<1x2x32xf32>,
    %c6_i32 = arith.constant 6 : i32
    return
  }
}

module attributes {stable_mosaic.version = 11 : i64} {
  func.func @classifier_kernel(%arg0: memref<12x32xf32, #tpu.memory_space<vmem>>, %arg1: memref<12x32xf32, #tpu.memory_space<vmem>>, %arg2: memref<32x24xf32, #tpu.memory_space<vmem>>, %arg3: memref<32x24xf32, #tpu.memory_space<vmem>>, %arg4: memref<1x24xf32, #tpu.memory_space<vmem>>, %arg5: memref<12x24xf32, #tpu.memory_space<vmem>>) attributes {dimension_semantics = [], scalar_prefetch = 0 : i64, scratch_operands = 0 : i64, tpu.core_type = #tpu.core_type<tc>} {
    %c0 = arith.constant 0 : index
    %c0_0 = arith.constant 0 : index
    %0 = vector.load %arg0[%c0, %c0_0] : memref<12x32xf32, #tpu.memory_space<vmem>>, vector<12x32xf32>
    %c0_1 = arith.constant 0 : index
    %c0_2 = arith.constant 0 : index
    %1 = vector.load %arg2[%c0_1, %c0_2] : memref<32x24xf32, #tpu.memory_space<vmem>>, vector<32x24xf32>
    %cst = arith.constant dense<0.000000e+00> : vector<12x24xf32>
    %2 = tpu.matmul %0, %1, %cst {dimension_numbers = #tpu.dot_dimension_numbers<[1], [0], [0], [1], [0, 0, 1, 1], [], []>} : vector<12x32xf32>, vector<32x24xf32>, vector<12x24xf32> -> vector<12x24xf32>
    %c0_3 = arith.constant 0 : index
    %c0_4 = arith.constant 0 : index
    %3 = vector.load %arg1[%c0_3, %c0_4] : memref<12x32xf32, #tpu.memory_space<vmem>>, vector<12x32xf32>
    %c0_5 = arith.constant 0 : index
    %c0_6 = arith.constant 0 : index
    %4 = vector.load %arg3[%c0_5, %c0_6] : memref<32x24xf32, #tpu.memory_space<vmem>>, vector<32x24xf32>
    %cst_7 = arith.constant dense<0.000000e+00> : vector<12x24xf32>
    %5 = tpu.matmul %3, %4, %cst_7 {dimension_numbers = #tpu.dot_dimension_numbers<[1], [0], [0], [1], [0, 0, 1, 1], [], []>} : vector<12x32xf32>, vector<32x24xf32>, vector<12x24xf32> -> vector<12x24xf32>
    %6 = arith.addf %2, %5 : vector<12x24xf32>
    %c0_8 = arith.constant 0 : index
    %c0_9 = arith.constant 0 : index
    %7 = vector.load %arg4[%c0_8, %c0_9] : memref<1x24xf32, #tpu.memory_space<vmem>>, vector<1x24xf32>
    %8 = vector.broadcast %7 : vector<1x24xf32> to vector<12x24xf32>
    %9 = arith.addf %6, %8 : vector<12x24xf32>
    %c0_10 = arith.constant 0 : index
    %c0_11 = arith.constant 0 : index
    %10 = vector.load %arg5[%c0_10, %c0_11] : memref<12x24xf32, #tpu.memory_space<vmem>>, vector<12x24xf32>
    tpu.vector_store %arg5[%c0_10, %c0_11], %9 {strides = array<i32>} : memref<12x24xf32, #tpu.memory_space<vmem>>, vector<12x24xf32>,
    return
  }
}

</mosaic_0001>

<llo_original>
// kernel: attention_model_forward.5
$region0: #{attention_model_forward.5}
  #allocation0 [shape = 'u32[]', space=smem, size = 0x4, offset = 0x4, fixed_abs, tag = 'smem constant byte address 0x4 - core index']
  #allocation1 [shape = 'u32[144,128]{1,0:T(1,128)}', space=vmem, size = 0x12000, scoped, tag = 'internal scratch']
  %s0 = inlined_call_operand.vmem [shape: f32[16,16], index: 0, kind: input, shape index: {}]
  %s1 = inlined_call_operand.vmem [shape: f32[16,96], index: 1, kind: input, shape index: {}]
  %s2 = inlined_call_operand.vmem [shape: f32[1,96], index: 2, kind: input, shape index: {}]
  %s3 = inlined_call_operand.vmem [shape: f32[16,96], index: 3, kind: output, shape index: {}]
  %s4 = sld [smem:[#allocation0]]
  $region22: #{attention_model_forward.5} parent=0
    _
  %s6 = ssub.s32 1, %s4
  %s7 = scalar_select 0, %s6, %s4
  // Predicated region
  $region2: #{attention_model_forward.5} parent=0 // pred_check
    _
  $region3: #{attention_model_forward.5} parent=0 // pred_check_branch
    %9 = sbr.rel (0) target = $region5
  $region4: #{attention_model_forward.5} parent=0 // pred_region
    _
  $region5: #{attention_model_forward.5} parent=0 // pred_fallthru
    _
  // Predicated region
  $region6: #{attention_model_forward.5} parent=0 // pred_check
    _
  $region7: #{attention_model_forward.5} parent=0 // pred_check_branch
    %11 = sbr.rel (0) target = $region9
  $region8: #{attention_model_forward.5} parent=0 // pred_region
    _
  $region9: #{attention_model_forward.5} parent=0 // pred_fallthru
    _
  // Predicated region
  $region10: #{attention_model_forward.5} parent=0 // pred_check
    _
  $region11: #{attention_model_forward.5} parent=0 // pred_check_branch
    %13 = sbr.rel (0) target = $region13
  $region12: #{attention_model_forward.5} parent=0 // pred_region
    _
  $region13: #{attention_model_forward.5} parent=0 // pred_fallthru
    _
  %v14 = vld [vmem:[%s0] sm:$0xff]
  %v15 = vld [vmem:[%s0 + $0x8] sm:$0xff]
  %v16 = vld [vmem:[%s1] sm:$0xff]
  %v17 = vld [vmem:[%s1 + $0x8] sm:$0xff]
  %v18 = vld [vmem:[%s2] sm:$0x1]
  %v20 = vlaneseq
  %v21 = vshrl.u32 %v20, 7
  %v22 = vsub.s32 0, %v21
  %v23 = vrot.slane %v18, %v22
  %vm25 = vcmask 130048
  %v27 = vsel %vm25, %v14, 0
  %v30 = vsel %vm25, %v15, 0
  %32 = vmatprep.subr.mxu0 0.0
  %33 = vmatpush1.msra.mxu0 0.0
  %34 = vmatprep.subr.mxu0 0.0
  %35 = vmatpush1.msra.mxu0 0.0
  %36 = vmatprep.subr.mxu0 0.0
  %37 = vmatpush1.msra.mxu0 0.0
  %38 = vmatprep.subr.mxu0 0.0
  %39 = vmatpush1.msra.mxu0 0.0
  %40 = vmatprep.subr.mxu0 0.0
  %41 = vmatpush1.msra.mxu0 0.0
  %42 = vmatprep.subr.mxu0 0.0
  %43 = vmatpush1.msra.mxu0 0.0
  %44 = vmatprep.subr.mxu0 0.0
  %45 = vmatpush1.msra.mxu0 0.0
  %46 = vmatprep.subr.mxu0 0.0
  %47 = vmatpush1.msra.mxu0 0.0
  %48 = vmatprep.subr.mxu0 0.0
  %49 = vmatpush1.msra.mxu0 0.0
  %50 = vmatprep.subr.mxu0 0.0
  %51 = vmatpush1.msra.mxu0 0.0
  %52 = vmatprep.subr.mxu0 0.0
  %53 = vmatpush1.msra.mxu0 0.0
  %54 = vmatprep.subr.mxu0 0.0
  %55 = vmatpush1.msra.mxu0 0.0
  %56 = vmatprep.subr.mxu0 0.0
  %57 = vmatpush1.msra.mxu0 0.0
  %58 = vmatprep.subr.mxu0 0.0
  %59 = vmatpush1.msra.mxu0 0.0
  %60 = vmatprep.subr.mxu0 0.0
  %61 = vmatpush1.msra.mxu0 %v17
  %62 = vmatprep.subr.mxu0 0.0
  %63 = vmatpush1.msra.mxu0 %v16
  %64 = vmatprep.subr.mxu0 0.0
  %65 = vmatpush2.msra.mxu0 0.0
  %66 = vmatprep.subr.mxu0 0.0
  %67 = vmatpush2.msra.mxu0 0.0
  %68 = vmatprep.subr.mxu0 0.0
  %69 = vmatpush2.msra.mxu0 0.0
  %70 = vmatprep.subr.mxu0 0.0
  %71 = vmatpush2.msra.mxu0 0.0
  %72 = vmatprep.subr.mxu0 0.0
  %73 = vmatpush2.msra.mxu0 0.0
  %74 = vmatprep.subr.mxu0 0.0
  %75 = vmatpush2.msra.mxu0 0.0
  %76 = vmatprep.subr.mxu0 0.0
  %77 = vmatpush2.msra.mxu0 0.0
  %78 = vmatprep.subr.mxu0 0.0
  %79 = vmatpush2.msra.mxu0 0.0
  %80 = vmatprep.subr.mxu0 0.0
  %81 = vmatpush2.msra.mxu0 0.0
  %82 = vmatprep.subr.mxu0 0.0
  %83 = vmatpush2.msra.mxu0 0.0
  %84 = vmatprep.subr.mxu0 0.0
  %85 = vmatpush2.msra.mxu0 0.0
  %86 = vmatprep.subr.mxu0 0.0
  %87 = vmatpush2.msra.mxu0 0.0
  %88 = vmatprep.subr.mxu0 0.0
  %89 = vmatpush2.msra.mxu0 0.0
  %90 = vmatprep.subr.mxu0 0.0
  %91 = vmatpush2.msra.mxu0 0.0
  %92 = vmatprep.subr.mxu0 0.0
  %93 = vmatpush2.msra.mxu0 0.0
  %94 = vmatprep.subr.mxu0 0.0
  %95 = vmatpush2.msra.mxu0 0.0
  %96 = vmatprep.mubr.f32.mxu0 0.0
  %97 = vmatmul.mubr.f32.gmra.mxu0 %v27
  %v98 = vpop.f32.mrf.mxu0
  %v99 = vadd.f32 %v23, %v98
  %v100 = vpop.f32.mrf.mxu0
  %101 = vmatprep.mubr.f32.mxu0 0.0
  %102 = vmatmul.mubr.f32.gmra.mxu0 %v30
  %v103 = vpop.f32.mrf.mxu0
  %v104 = vadd.f32 %v23, %v103
  %v105 = vpop.f32.mrf.mxu0
  %106 = vdwg.mxu0
  %vm107 = vcmask 785408
  %108 = vst.msk [vmem:[%s3] sm:$0xff] %vm107, %v99
  %109 = vst.msk [vmem:[%s3 + $0x8] sm:$0xff] %vm107, %v104
  // Predicated region
  $region14: #{attention_model_forward.5} parent=0 // pred_check
    _
  $region15: #{attention_model_forward.5} parent=0 // pred_check_branch
    %111 = sbr.rel (0) target = $region17
  $region16: #{attention_model_forward.5} parent=0 // pred_region
    _
  $region17: #{attention_model_forward.5} parent=0 // pred_fallthru
    _
  // Predicated region
  $region18: #{attention_model_forward.5} parent=0 // pred_check
    _
  $region19: #{attention_model_forward.5} parent=0 // pred_check_branch
    %113 = sbr.rel (0) target = $region21
  $region20: #{attention_model_forward.5} parent=0 // pred_region
    _
  $region21: #{attention_model_forward.5} parent=0 // pred_fallthru
    _

// kernel: attention_model_forward.7
$region0: #{attention_model_forward.7}
  #allocation0 [shape = 'u32[]', space=smem, size = 0x4, offset = 0x4, fixed_abs, tag = 'smem constant byte address 0x4 - core index']
  #allocation1 [shape = 'u32[144,128]{1,0:T(1,128)}', space=vmem, size = 0x12000, scoped, tag = 'internal scratch']
  %s0 = inlined_call_operand.vmem [shape: f32[12,16], index: 0, kind: input, shape index: {}]
  %s1 = inlined_call_operand.vmem [shape: f32[16,96], index: 1, kind: input, shape index: {}]
  %s2 = inlined_call_operand.vmem [shape: f32[1,96], index: 2, kind: input, shape index: {}]
  %s3 = inlined_call_operand.vmem [shape: f32[12,96], index: 3, kind: output, shape index: {}]
  %s4 = sld [smem:[#allocation0]]
  $region22: #{attention_model_forward.7} parent=0
    _
  %s6 = ssub.s32 1, %s4
  %s7 = scalar_select 0, %s6, %s4
  // Predicated region
  $region2: #{attention_model_forward.7} parent=0 // pred_check
    _
  $region3: #{attention_model_forward.7} parent=0 // pred_check_branch
    %9 = sbr.rel (0) target = $region5
  $region4: #{attention_model_forward.7} parent=0 // pred_region
    _
  $region5: #{attention_model_forward.7} parent=0 // pred_fallthru
    _
  // Predicated region
  $region6: #{attention_model_forward.7} parent=0 // pred_check
    _
  $region7: #{attention_model_forward.7} parent=0 // pred_check_branch
    %11 = sbr.rel (0) target = $region9
  $region8: #{attention_model_forward.7} parent=0 // pred_region
    _
  $region9: #{attention_model_forward.7} parent=0 // pred_fallthru
    _
  // Predicated region
  $region10: #{attention_model_forward.7} parent=0 // pred_check
    _
  $region11: #{attention_model_forward.7} parent=0 // pred_check_branch
    %13 = sbr.rel (0) target = $region13
  $region12: #{attention_model_forward.7} parent=0 // pred_region
    _
  $region13: #{attention_model_forward.7} parent=0 // pred_fallthru
    _
  %v14 = vld [vmem:[%s0] sm:$0xff]
  %v15 = vld [vmem:[%s0 + $0x8] sm:$0xf]
  %v16 = vld [vmem:[%s1] sm:$0xff]
  %v17 = vld [vmem:[%s1 + $0x8] sm:$0xff]
  %v18 = vld [vmem:[%s2] sm:$0x1]
  %v20 = vlaneseq
  %v21 = vshrl.u32 %v20, 7
  %v22 = vsub.s32 0, %v21
  %v23 = vrot.slane %v18, %v22
  %vm25 = vcmask 130048
  %v27 = vsel %vm25, %v14, 0
  %v30 = vsel %vm25, %v15, 0
  %32 = vmatprep.subr.mxu0 0.0
  %33 = vmatpush1.msra.mxu0 0.0
  %34 = vmatprep.subr.mxu0 0.0
  %35 = vmatpush1.msra.mxu0 0.0
  %36 = vmatprep.subr.mxu0 0.0
  %37 = vmatpush1.msra.mxu0 0.0
  %38 = vmatprep.subr.mxu0 0.0
  %39 = vmatpush1.msra.mxu0 0.0
  %40 = vmatprep.subr.mxu0 0.0
  %41 = vmatpush1.msra.mxu0 0.0
  %42 = vmatprep.subr.mxu0 0.0
  %43 = vmatpush1.msra.mxu0 0.0
  %44 = vmatprep.subr.mxu0 0.0
  %45 = vmatpush1.msra.mxu0 0.0
  %46 = vmatprep.subr.mxu0 0.0
  %47 = vmatpush1.msra.mxu0 0.0
  %48 = vmatprep.subr.mxu0 0.0
  %49 = vmatpush1.msra.mxu0 0.0
  %50 = vmatprep.subr.mxu0 0.0
  %51 = vmatpush1.msra.mxu0 0.0
  %52 = vmatprep.subr.mxu0 0.0
  %53 = vmatpush1.msra.mxu0 0.0
  %54 = vmatprep.subr.mxu0 0.0
  %55 = vmatpush1.msra.mxu0 0.0
  %56 = vmatprep.subr.mxu0 0.0
  %57 = vmatpush1.msra.mxu0 0.0
  %58 = vmatprep.subr.mxu0 0.0
  %59 = vmatpush1.msra.mxu0 0.0
  %60 = vmatprep.subr.mxu0 0.0
  %61 = vmatpush1.msra.mxu0 %v17
  %62 = vmatprep.subr.mxu0 0.0
  %63 = vmatpush1.msra.mxu0 %v16
  %64 = vmatprep.subr.mxu0 0.0
  %65 = vmatpush2.msra.mxu0 0.0
  %66 = vmatprep.subr.mxu0 0.0
  %67 = vmatpush2.msra.mxu0 0.0
  %68 = vmatprep.subr.mxu0 0.0
  %69 = vmatpush2.msra.mxu0 0.0
  %70 = vmatprep.subr.mxu0 0.0
  %71 = vmatpush2.msra.mxu0 0.0
  %72 = vmatprep.subr.mxu0 0.0
  %73 = vmatpush2.msra.mxu0 0.0
  %74 = vmatprep.subr.mxu0 0.0
  %75 = vmatpush2.msra.mxu0 0.0
  %76 = vmatprep.subr.mxu0 0.0
  %77 = vmatpush2.msra.mxu0 0.0
  %78 = vmatprep.subr.mxu0 0.0
  %79 = vmatpush2.msra.mxu0 0.0
  %80 = vmatprep.subr.mxu0 0.0
  %81 = vmatpush2.msra.mxu0 0.0
  %82 = vmatprep.subr.mxu0 0.0
  %83 = vmatpush2.msra.mxu0 0.0
  %84 = vmatprep.subr.mxu0 0.0
  %85 = vmatpush2.msra.mxu0 0.0
  %86 = vmatprep.subr.mxu0 0.0
  %87 = vmatpush2.msra.mxu0 0.0
  %88 = vmatprep.subr.mxu0 0.0
  %89 = vmatpush2.msra.mxu0 0.0
  %90 = vmatprep.subr.mxu0 0.0
  %91 = vmatpush2.msra.mxu0 0.0
  %92 = vmatprep.subr.mxu0 0.0
  %93 = vmatpush2.msra.mxu0 0.0
  %94 = vmatprep.subr.mxu0 0.0
  %95 = vmatpush2.msra.mxu0 0.0
  %96 = vmatprep.mubr.f32.mxu0 0.0
  %97 = vmatmul.mubr.f32.gmra.mxu0 %v27
  %v98 = vpop.f32.mrf.mxu0
  %v99 = vadd.f32 %v23, %v98
  %v100 = vpop.f32.mrf.mxu0
  %101 = vmatprep.mubr.f32.mxu0 0.0
  %102 = vmatmul.mubr.f32.gmra.mxu0 %v30
  %v103 = vpop.f32.mrf.mxu0
  %v104 = vadd.f32 %v23, %v103
  %v105 = vpop.f32.mrf.mxu0
  %106 = vdwg.mxu0
  %vm107 = vcmask 785408
  %108 = vst.msk [vmem:[%s3] sm:$0xff] %vm107, %v99
  %vm109 = vcmask 781312
  %110 = vst.msk [vmem:[%s3 + $0x8] sm:$0xf] %vm109, %v104
  // Predicated region
  $region14: #{attention_model_forward.7} parent=0 // pred_check
    _
  $region15: #{attention_model_forward.7} parent=0 // pred_check_branch
    %112 = sbr.rel (0) target = $region17
  $region16: #{attention_model_forward.7} parent=0 // pred_region
    _
  $region17: #{attention_model_forward.7} parent=0 // pred_fallthru
    _
  // Predicated region
  $region18: #{attention_model_forward.7} parent=0 // pred_check
    _
  $region19: #{attention_model_forward.7} parent=0 // pred_check_branch
    %114 = sbr.rel (0) target = $region21
  $region20: #{attention_model_forward.7} parent=0 // pred_region
    _
  $region21: #{attention_model_forward.7} parent=0 // pred_fallthru
    _

// kernel: attention_model_forward.9
$region0: #{attention_model_forward.9}
  #allocation0 [shape = 'u32[]', space=smem, size = 0x4, offset = 0x4, fixed_abs, tag = 'smem constant byte address 0x4 - core index']
  #allocation1 [shape = 'u32[144,128]{1,0:T(1,128)}', space=vmem, size = 0x12000, scoped, tag = 'internal scratch']
  %s0 = inlined_call_operand.vmem [shape: f32[12,32], index: 0, kind: input, shape index: {}]
  %s1 = inlined_call_operand.vmem [shape: f32[12,32], index: 1, kind: input, shape index: {}]
  %s2 = inlined_call_operand.vmem [shape: f32[32,24], index: 2, kind: input, shape index: {}]
  %s3 = inlined_call_operand.vmem [shape: f32[32,24], index: 3, kind: input, shape index: {}]
  %s4 = inlined_call_operand.vmem [shape: f32[1,24], index: 4, kind: input, shape index: {}]
  %s5 = inlined_call_operand.vmem [shape: f32[12,24], index: 5, kind: output, shape index: {}]
  %s6 = sld [smem:[#allocation0]]
  $region30: #{attention_model_forward.9} parent=0
    _
  %s8 = ssub.s32 1, %s6
  %s9 = scalar_select 0, %s8, %s6
  // Predicated region
  $region2: #{attention_model_forward.9} parent=0 // pred_check
    _
  $region3: #{attention_model_forward.9} parent=0 // pred_check_branch
    %11 = sbr.rel (0) target = $region5
  $region4: #{attention_model_forward.9} parent=0 // pred_region
    _
  $region5: #{attention_model_forward.9} parent=0 // pred_fallthru
    _
  // Predicated region
  $region6: #{attention_model_forward.9} parent=0 // pred_check
    _
  $region7: #{attention_model_forward.9} parent=0 // pred_check_branch
    %13 = sbr.rel (0) target = $region9
  $region8: #{attention_model_forward.9} parent=0 // pred_region
    _
  $region9: #{attention_model_forward.9} parent=0 // pred_fallthru
    _
  // Predicated region
  $region10: #{attention_model_forward.9} parent=0 // pred_check
    _
  $region11: #{attention_model_forward.9} parent=0 // pred_check_branch
    %15 = sbr.rel (0) target = $region13
  $region12: #{attention_model_forward.9} parent=0 // pred_region
    _
  $region13: #{attention_model_forward.9} parent=0 // pred_fallthru
    _
  // Predicated region
  $region14: #{attention_model_forward.9} parent=0 // pred_check
    _
  $region15: #{attention_model_forward.9} parent=0 // pred_check_branch
    %17 = sbr.rel (0) target = $region17
  $region16: #{attention_model_forward.9} parent=0 // pred_region
    _
  $region17: #{attention_model_forward.9} parent=0 // pred_fallthru
    _
  // Predicated region
  $region18: #{attention_model_forward.9} parent=0 // pred_check
    _
  $region19: #{attention_model_forward.9} parent=0 // pred_check_branch
    %19 = sbr.rel (0) target = $region21
  $region20: #{attention_model_forward.9} parent=0 // pred_region
    _
  $region21: #{attention_model_forward.9} parent=0 // pred_fallthru
    _
  %v20 = vld [vmem:[%s0] sm:$0xff]
  %v21 = vld [vmem:[%s0 + $0x8] sm:$0xf]
  %v22 = vld [vmem:[%s2] sm:$0xff]
  %v23 = vld [vmem:[%s2 + $0x8] sm:$0xff]
  %v24 = vld [vmem:[%s2 + $0x10] sm:$0xff]
  %v25 = vld [vmem:[%s2 + $0x18] sm:$0xff]
  %v26 = vld [vmem:[%s1] sm:$0xff]
  %v27 = vld [vmem:[%s1 + $0x8] sm:$0xf]
  %v28 = vld [vmem:[%s3] sm:$0xff]
  %v29 = vld [vmem:[%s3 + $0x8] sm:$0xff]
  %v30 = vld [vmem:[%s3 + $0x10] sm:$0xff]
  %v31 = vld [vmem:[%s3 + $0x18] sm:$0xff]
  %vm32 = vcmask 261120
  %v34 = vsel %vm32, %v26, 0
  %v37 = vsel %vm32, %v27, 0
  %39 = vmatprep.subr.mxu0 0.0
  %40 = vmatpush1.msra.mxu0 0.0
  %41 = vmatprep.subr.mxu0 0.0
  %42 = vmatpush1.msra.mxu0 0.0
  %43 = vmatprep.subr.mxu0 0.0
  %44 = vmatpush1.msra.mxu0 0.0
  %45 = vmatprep.subr.mxu0 0.0
  %46 = vmatpush1.msra.mxu0 0.0
  %47 = vmatprep.subr.mxu0 0.0
  %48 = vmatpush1.msra.mxu0 0.0
  %49 = vmatprep.subr.mxu0 0.0
  %50 = vmatpush1.msra.mxu0 0.0
  %51 = vmatprep.subr.mxu0 0.0
  %52 = vmatpush1.msra.mxu0 0.0
  %53 = vmatprep.subr.mxu0 0.0
  %54 = vmatpush1.msra.mxu0 0.0
  %55 = vmatprep.subr.mxu0 0.0
  %56 = vmatpush1.msra.mxu0 0.0
  %57 = vmatprep.subr.mxu0 0.0
  %58 = vmatpush1.msra.mxu0 0.0
  %59 = vmatprep.subr.mxu0 0.0
  %60 = vmatpush1.msra.mxu0 0.0
  %61 = vmatprep.subr.mxu0 0.0
  %62 = vmatpush1.msra.mxu0 0.0
  %63 = vmatprep.subr.mxu0 0.0
  %64 = vmatpush1.msra.mxu0 %v31
  %65 = vmatprep.subr.mxu0 0.0
  %66 = vmatpush1.msra.mxu0 %v30
  %67 = vmatprep.subr.mxu0 0.0
  %68 = vmatpush1.msra.mxu0 %v29
  %69 = vmatprep.subr.mxu0 0.0
  %70 = vmatpush1.msra.mxu0 %v28
  %71 = vmatprep.subr.mxu0 0.0
  %72 = vmatpush2.msra.mxu0 0.0
  %73 = vmatprep.subr.mxu0 0.0
  %74 = vmatpush2.msra.mxu0 0.0
  %75 = vmatprep.subr.mxu0 0.0
  %76 = vmatpush2.msra.mxu0 0.0
  %77 = vmatprep.subr.mxu0 0.0
  %78 = vmatpush2.msra.mxu0 0.0
  %79 = vmatprep.subr.mxu0 0.0
  %80 = vmatpush2.msra.mxu0 0.0
  %81 = vmatprep.subr.mxu0 0.0
  %82 = vmatpush2.msra.mxu0 0.0
  %83 = vmatprep.subr.mxu0 0.0
  %84 = vmatpush2.msra.mxu0 0.0
  %85 = vmatprep.subr.mxu0 0.0
  %86 = vmatpush2.msra.mxu0 0.0
  %87 = vmatprep.subr.mxu0 0.0
  %88 = vmatpush2.msra.mxu0 0.0
  %89 = vmatprep.subr.mxu0 0.0
  %90 = vmatpush2.msra.mxu0 0.0
  %91 = vmatprep.subr.mxu0 0.0
  %92 = vmatpush2.msra.mxu0 0.0
  %93 = vmatprep.subr.mxu0 0.0
  %94 = vmatpush2.msra.mxu0 0.0
  %95 = vmatprep.subr.mxu0 0.0
  %96 = vmatpush2.msra.mxu0 0.0
  %97 = vmatprep.subr.mxu0 0.0
  %98 = vmatpush2.msra.mxu0 0.0
  %99 = vmatprep.subr.mxu0 0.0
  %100 = vmatpush2.msra.mxu0 0.0
  %101 = vmatprep.subr.mxu0 0.0
  %102 = vmatpush2.msra.mxu0 0.0
  %103 = vmatprep.mubr.f32.mxu0 0.0
  %104 = vmatmul.mubr.f32.gmra.mxu0 %v34
  %v105 = vpop.f32.mrf.mxu0
  %v106 = vadd.f32 0.0, %v105
  %v107 = vpop.f32.mrf.mxu0
  %108 = vmatprep.mubr.f32.mxu0 0.0
  %109 = vmatmul.mubr.f32.gmra.mxu0 %v37
  %v110 = vpop.f32.mrf.mxu0
  %v111 = vadd.f32 0.0, %v110
  %v112 = vpop.f32.mrf.mxu0
  %113 = vdwg.mxu0
  %v115 = vsel %vm32, %v20, 0
  %v118 = vsel %vm32, %v21, 0
  %120 = vmatprep.subr.mxu0 0.0
  %121 = vmatpush1.msra.mxu0 0.0
  %122 = vmatprep.subr.mxu0 0.0
  %123 = vmatpush1.msra.mxu0 0.0
  %124 = vmatprep.subr.mxu0 0.0
  %125 = vmatpush1.msra.mxu0 0.0
  %126 = vmatprep.subr.mxu0 0.0
  %127 = vmatpush1.msra.mxu0 0.0
  %128 = vmatprep.subr.mxu0 0.0
  %129 = vmatpush1.msra.mxu0 0.0
  %130 = vmatprep.subr.mxu0 0.0
  %131 = vmatpush1.msra.mxu0 0.0
  %132 = vmatprep.subr.mxu0 0.0
  %133 = vmatpush1.msra.mxu0 0.0
  %134 = vmatprep.subr.mxu0 0.0
  %135 = vmatpush1.msra.mxu0 0.0
  %136 = vmatprep.subr.mxu0 0.0
  %137 = vmatpush1.msra.mxu0 0.0
  %138 = vmatprep.subr.mxu0 0.0
  %139 = vmatpush1.msra.mxu0 0.0
  %140 = vmatprep.subr.mxu0 0.0
  %141 = vmatpush1.msra.mxu0 0.0
  %142 = vmatprep.subr.mxu0 0.0
  %143 = vmatpush1.msra.mxu0 0.0
  %144 = vmatprep.subr.mxu0 0.0
  %145 = vmatpush1.msra.mxu0 %v25
  %146 = vmatprep.subr.mxu0 0.0
  %147 = vmatpush1.msra.mxu0 %v24
  %148 = vmatprep.subr.mxu0 0.0
  %149 = vmatpush1.msra.mxu0 %v23
  %150 = vmatprep.subr.mxu0 0.0
  %151 = vmatpush1.msra.mxu0 %v22
  %152 = vmatprep.subr.mxu0 0.0
  %153 = vmatpush2.msra.mxu0 0.0
  %154 = vmatprep.subr.mxu0 0.0
  %155 = vmatpush2.msra.mxu0 0.0
  %156 = vmatprep.subr.mxu0 0.0
  %157 = vmatpush2.msra.mxu0 0.0
  %158 = vmatprep.subr.mxu0 0.0
  %159 = vmatpush2.msra.mxu0 0.0
  %160 = vmatprep.subr.mxu0 0.0
  %161 = vmatpush2.msra.mxu0 0.0
  %162 = vmatprep.subr.mxu0 0.0
  %163 = vmatpush2.msra.mxu0 0.0
  %164 = vmatprep.subr.mxu0 0.0
  %165 = vmatpush2.msra.mxu0 0.0
  %166 = vmatprep.subr.mxu0 0.0
  %167 = vmatpush2.msra.mxu0 0.0
  %168 = vmatprep.subr.mxu0 0.0
  %169 = vmatpush2.msra.mxu0 0.0
  %170 = vmatprep.subr.mxu0 0.0
  %171 = vmatpush2.msra.mxu0 0.0
  %172 = vmatprep.subr.mxu0 0.0
  %173 = vmatpush2.msra.mxu0 0.0
  %174 = vmatprep.subr.mxu0 0.0
  %175 = vmatpush2.msra.mxu0 0.0
  %176 = vmatprep.subr.mxu0 0.0
  %177 = vmatpush2.msra.mxu0 0.0
  %178 = vmatprep.subr.mxu0 0.0
  %179 = vmatpush2.msra.mxu0 0.0
  %180 = vmatprep.subr.mxu0 0.0
  %181 = vmatpush2.msra.mxu0 0.0
  %182 = vmatprep.subr.mxu0 0.0
  %183 = vmatpush2.msra.mxu0 0.0
  %184 = vmatprep.mubr.f32.mxu0 0.0
  %185 = vmatmul.mubr.f32.gmra.mxu0 %v115
  %v186 = vpop.f32.mrf.mxu0
  %v187 = vadd.f32 %v106, %v186
  %v188 = vpop.f32.mrf.mxu0
  %189 = vmatprep.mubr.f32.mxu0 0.0
  %190 = vmatmul.mubr.f32.gmra.mxu0 %v118
  %v191 = vpop.f32.mrf.mxu0
  %v192 = vadd.f32 %v111, %v191
  %v193 = vpop.f32.mrf.mxu0
  %194 = vdwg.mxu0
  %v195 = vld [vmem:[%s4] sm:$0x1]
  %v197 = vlaneseq
  %v198 = vshrl.u32 %v197, 7
  %v199 = vsub.s32 0, %v198
  %v200 = vrot.slane %v195, %v199
  %v202 = vadd.f32 %v187, %v200
  %v203 = vadd.f32 %v192, %v200
  %vm204 = vcmask 195584
  %205 = vst.msk [vmem:[%s5] sm:$0xff] %vm204, %v202
  %vm206 = vcmask 191488
  %207 = vst.msk [vmem:[%s5 + $0x8] sm:$0xf] %vm206, %v203
  // Predicated region
  $region22: #{attention_model_forward.9} parent=0 // pred_check
    _
  $region23: #{attention_model_forward.9} parent=0 // pred_check_branch
    %209 = sbr.rel (0) target = $region25
  $region24: #{attention_model_forward.9} parent=0 // pred_region
    _
  $region25: #{attention_model_forward.9} parent=0 // pred_fallthru
    _
  // Predicated region
  $region26: #{attention_model_forward.9} parent=0 // pred_check
    _
  $region27: #{attention_model_forward.9} parent=0 // pred_check_branch
    %211 = sbr.rel (0) target = $region29
  $region28: #{attention_model_forward.9} parent=0 // pred_region
    _
  $region29: #{attention_model_forward.9} parent=0 // pred_fallthru
    _

// kernel: attention_model_forward.6
$region0: #{attention_model_forward.6}
  #allocation0 [shape = 'u32[]', space=smem, size = 0x4, offset = 0x4, fixed_abs, tag = 'smem constant byte address 0x4 - core index']
  #allocation1 [shape = 'u32[144,128]{1,0:T(1,128)}', space=vmem, size = 0x12000, scoped, tag = 'internal scratch']
  %s0 = inlined_call_operand.vmem [shape: s32[2,1], index: 0, kind: input, shape index: {}]
  %s1 = inlined_call_operand.vmem [shape: f32[8,2,48], index: 1, kind: input, shape index: {}]
  %s2 = inlined_call_operand.vmem [shape: f32[8,2,48], index: 2, kind: input, shape index: {}]
  %s3 = inlined_call_operand.vmem [shape: f32[16,48], index: 3, kind: input, shape index: {}]
  %s4 = inlined_call_operand.vmem [shape: f32[1,48], index: 4, kind: input, shape index: {}]
  %s5 = inlined_call_operand.vmem [shape: f32[16,48], index: 5, kind: input, shape index: {}]
  %s6 = inlined_call_operand.vmem [shape: f32[1,48], index: 6, kind: input, shape index: {}]
  %s7 = inlined_call_operand.vmem [shape: f32[8,2,16], index: 7, kind: output, shape index: {0}]
  %s8 = inlined_call_operand.vmem [shape: f32[8,2,16], index: 8, kind: output, shape index: {1}]
  %s9 = inlined_call_operand.vmem [shape: f32[2,16], index: 9, kind: output, shape index: {2}]
  %s10 = inlined_call_operand.vmem [shape: f32[2,16], index: 10, kind: output, shape index: {3}]
  %11 = xla_tuple %s7, %s8, %s9, %s10
  %s12 = sld [smem:[#allocation0]]
  $region62: #{attention_model_forward.6} parent=0
    _
  %s14 = ssub.s32 1, %s12
  %s15 = scalar_select 0, %s14, %s12
  // Predicated region
  $region2: #{attention_model_forward.6} parent=0 // pred_check
    _
  $region3: #{attention_model_forward.6} parent=0 // pred_check_branch
    %17 = sbr.rel (0) target = $region5
  $region4: #{attention_model_forward.6} parent=0 // pred_region
    _
  $region5: #{attention_model_forward.6} parent=0 // pred_fallthru
    _
  // Predicated region
  $region6: #{attention_model_forward.6} parent=0 // pred_check
    _
  $region7: #{attention_model_forward.6} parent=0 // pred_check_branch
    %19 = sbr.rel (0) target = $region9
  $region8: #{attention_model_forward.6} parent=0 // pred_region
    _
  $region9: #{attention_model_forward.6} parent=0 // pred_fallthru
    _
  // Predicated region
  $region10: #{attention_model_forward.6} parent=0 // pred_check
    _
  $region11: #{attention_model_forward.6} parent=0 // pred_check_branch
    %21 = sbr.rel (0) target = $region13
  $region12: #{attention_model_forward.6} parent=0 // pred_region
    _
  $region13: #{attention_model_forward.6} parent=0 // pred_fallthru
    _
  // Predicated region
  $region14: #{attention_model_forward.6} parent=0 // pred_check
    _
  $region15: #{attention_model_forward.6} parent=0 // pred_check_branch
    %23 = sbr.rel (0) target = $region17
  $region16: #{attention_model_forward.6} parent=0 // pred_region
    _
  $region17: #{attention_model_forward.6} parent=0 // pred_fallthru
    _
  // Predicated region
  $region18: #{attention_model_forward.6} parent=0 // pred_check
    _
  $region19: #{attention_model_forward.6} parent=0 // pred_check_branch
    %25 = sbr.rel (0) target = $region21
  $region20: #{attention_model_forward.6} parent=0 // pred_region
    _
  $region21: #{attention_model_forward.6} parent=0 // pred_fallthru
    _
  // Predicated region
  $region22: #{attention_model_forward.6} parent=0 // pred_check
    _
  $region23: #{attention_model_forward.6} parent=0 // pred_check_branch
    %27 = sbr.rel (0) target = $region25
  $region24: #{attention_model_forward.6} parent=0 // pred_region
    _
  $region25: #{attention_model_forward.6} parent=0 // pred_fallthru
    _
  // Predicated region
  $region26: #{attention_model_forward.6} parent=0 // pred_check
    _
  $region27: #{attention_model_forward.6} parent=0 // pred_check_branch
    %29 = sbr.rel (0) target = $region29
  $region28: #{attention_model_forward.6} parent=0 // pred_region
    _
  $region29: #{attention_model_forward.6} parent=0 // pred_fallthru
    _
  %v30 = vld [vmem:[%s0] sm:$0x3]
  %v31 = vld [vmem:[%s3] sm:$0xff]
  %v32 = vld [vmem:[%s3 + $0x8] sm:$0xff]
  %v33 = vld [vmem:[%s5] sm:$0xff]
  %v34 = vld [vmem:[%s5 + $0x8] sm:$0xff]
  %v35 = vld [vmem:[%s4] sm:$0x1]
  %v37 = vlaneseq
  %v38 = vshrl.u32 %v37, 7
  %v39 = vsub.s32 0, %v38
  %v40 = vrot.slane %v35, %v39
  %v42 = vld [vmem:[%s6] sm:$0x1]
  %v44 = vlaneseq
  %v45 = vshrl.u32 %v44, 7
  %v46 = vsub.s32 0, %v45
  %v47 = vrot.slane %v42, %v46
  %v49 = vld [vmem:[%s1] sm:$0x3]
  %vm50 = vcmask 130048
  %v52 = vsel %vm50, 0.0, 0
  %54 = vmatprep.subr.mxu0 0.0
  %55 = vmatpush1.msra.mxu0 0.0
  %56 = vmatprep.subr.mxu0 0.0
  %57 = vmatpush1.msra.mxu0 0.0
  %58 = vmatprep.subr.mxu0 0.0
  %59 = vmatpush1.msra.mxu0 0.0
  %60 = vmatprep.subr.mxu0 0.0
  %61 = vmatpush1.msra.mxu0 0.0
  %62 = vmatprep.subr.mxu0 0.0
  %63 = vmatpush1.msra.mxu0 0.0
  %64 = vmatprep.subr.mxu0 0.0
  %65 = vmatpush1.msra.mxu0 0.0
  %66 = vmatprep.subr.mxu0 0.0
  %67 = vmatpush1.msra.mxu0 0.0
  %68 = vmatprep.subr.mxu0 0.0
  %69 = vmatpush1.msra.mxu0 0.0
  %70 = vmatprep.subr.mxu0 0.0
  %71 = vmatpush1.msra.mxu0 0.0
  %72 = vmatprep.subr.mxu0 0.0
  %73 = vmatpush1.msra.mxu0 0.0
  %74 = vmatprep.subr.mxu0 0.0
  %75 = vmatpush1.msra.mxu0 0.0
  %76 = vmatprep.subr.mxu0 0.0
  %77 = vmatpush1.msra.mxu0 0.0
  %78 = vmatprep.subr.mxu0 0.0
  %79 = vmatpush1.msra.mxu0 0.0
  %80 = vmatprep.subr.mxu0 0.0
  %81 = vmatpush1.msra.mxu0 0.0
  %82 = vmatprep.subr.mxu0 0.0
  %83 = vmatpush1.msra.mxu0 %v32
  %84 = vmatprep.subr.mxu0 0.0
  %85 = vmatpush1.msra.mxu0 %v31
  %86 = vmatprep.subr.mxu0 0.0
  %87 = vmatpush2.msra.mxu0 0.0
  %88 = vmatprep.subr.mxu0 0.0
  %89 = vmatpush2.msra.mxu0 0.0
  %90 = vmatprep.subr.mxu0 0.0
  %91 = vmatpush2.msra.mxu0 0.0
  %92 = vmatprep.subr.mxu0 0.0
  %93 = vmatpush2.msra.mxu0 0.0
  %94 = vmatprep.subr.mxu0 0.0
  %95 = vmatpush2.msra.mxu0 0.0
  %96 = vmatprep.subr.mxu0 0.0
  %97 = vmatpush2.msra.mxu0 0.0
  %98 = vmatprep.subr.mxu0 0.0
  %99 = vmatpush2.msra.mxu0 0.0
  %100 = vmatprep.subr.mxu0 0.0
  %101 = vmatpush2.msra.mxu0 0.0
  %102 = vmatprep.subr.mxu0 0.0
  %103 = vmatpush2.msra.mxu0 0.0
  %104 = vmatprep.subr.mxu0 0.0
  %105 = vmatpush2.msra.mxu0 0.0
  %106 = vmatprep.subr.mxu0 0.0
  %107 = vmatpush2.msra.mxu0 0.0
  %108 = vmatprep.subr.mxu0 0.0
  %109 = vmatpush2.msra.mxu0 0.0
  %110 = vmatprep.subr.mxu0 0.0
  %111 = vmatpush2.msra.mxu0 0.0
  %112 = vmatprep.subr.mxu0 0.0
  %113 = vmatpush2.msra.mxu0 0.0
  %114 = vmatprep.subr.mxu0 0.0
  %115 = vmatpush2.msra.mxu0 0.0
  %116 = vmatprep.subr.mxu0 0.0
  %117 = vmatpush2.msra.mxu0 0.0
  %118 = vmatprep.mubr.f32.mxu0 0.0
  %119 = vmatmul.mubr.f32.gmra.mxu0 %v52
  %v120 = vpop.f32.mrf.mxu0
  %v121 = vadd.f32 %v40, %v120
  %v122 = vpop.f32.mrf.mxu0
  %123 = vdwg.mxu0
  %v124 = vadd.f32 %v49, %v121
  %v125 = vxor.u32 %v124, 2147483648
  %v126 = vmul.f32 %v125, 1.442695
  %v127 = vpow.pop %v126
  %v128 = vadd.f32 %v127, 1.0
  %v129 = vrcp.pop %v128
  %v130 = vmul.f32 1.0, %v129
  %132 = vrot.lane.b32.xlu0 %v121, 96
  %v133 = vpop.permute.xlu0 %132
  %v135 = vmul.f32 %v130, %v133
  %137 = vrot.lane.b32.xlu0 %v135, 32
  %v138 = vpop.permute.xlu0 %137
  %v140 = vadd.f32 %v49, %v138
  %v141 = vtanh.pop %v140
  %v142 = vsub.f32 1.0, %v130
  %144 = vrot.lane.b32.xlu0 %v141, 112
  %v145 = vpop.permute.xlu0 %144
  %v147 = vmul.f32 %v142, %v145
  %v148 = vmul.f32 %v130, 0.0
  %v149 = vadd.f32 %v147, %v148
  %vm150 = vcmp.gt.s32.totalorder %v30, 0
  %v151 = vsel %vm150, 1, 0
  %152 = vset.pattern.permute.xlu0 0
  %153 = vperm.xlu0 %152, %v151
  %v154 = vpop.permute.xlu0 %153
  %vm155 = vcmp.eq.s32.totalorder %v154, 1
  %v156 = vsel %vm155, %v149, 0.0
  %158 = vrot.lane.b32.xlu0 %v156, 112
  %v159 = vpop.permute.xlu0 %158
  %vm161 = vcmask 123904
  %162 = vst.msk [vmem:[%s7] sm:$0x3] %vm161, %v159
  %s163 = scalar_lea.vmem %s1, 2
  %v164 = vld [vmem:[%s163] sm:$0x3]
  %v165 = vsel %vm50, %v159, 0
  %167 = vmatprep.subr.mxu0 0.0
  %168 = vmatpush1.msra.mxu0 0.0
  %169 = vmatprep.subr.mxu0 0.0
  %170 = vmatpush1.msra.mxu0 0.0
  %171 = vmatprep.subr.mxu0 0.0
  %172 = vmatpush1.msra.mxu0 0.0
  %173 = vmatprep.subr.mxu0 0.0
  %174 = vmatpush1.msra.mxu0 0.0
  %175 = vmatprep.subr.mxu0 0.0
  %176 = vmatpush1.msra.mxu0 0.0
  %177 = vmatprep.subr.mxu0 0.0
  %178 = vmatpush1.msra.mxu0 0.0
  %179 = vmatprep.subr.mxu0 0.0
  %180 = vmatpush1.msra.mxu0 0.0
  %181 = vmatprep.subr.mxu0 0.0
  %182 = vmatpush1.msra.mxu0 0.0
  %183 = vmatprep.subr.mxu0 0.0
  %184 = vmatpush1.msra.mxu0 0.0
  %185 = vmatprep.subr.mxu0 0.0
  %186 = vmatpush1.msra.mxu0 0.0
  %187 = vmatprep.subr.mxu0 0.0
  %188 = vmatpush1.msra.mxu0 0.0
  %189 = vmatprep.subr.mxu0 0.0
  %190 = vmatpush1.msra.mxu0 0.0
  %191 = vmatprep.subr.mxu0 0.0
  %192 = vmatpush1.msra.mxu0 0.0
  %193 = vmatprep.subr.mxu0 0.0
  %194 = vmatpush1.msra.mxu0 0.0
  %195 = vmatprep.subr.mxu0 0.0
  %196 = vmatpush1.msra.mxu0 %v32
  %197 = vmatprep.subr.mxu0 0.0
  %198 = vmatpush1.msra.mxu0 %v31
  %199 = vmatprep.subr.mxu0 0.0
  %200 = vmatpush2.msra.mxu0 0.0
  %201 = vmatprep.subr.mxu0 0.0
  %202 = vmatpush2.msra.mxu0 0.0
  %203 = vmatprep.subr.mxu0 0.0
  %204 = vmatpush2.msra.mxu0 0.0
  %205 = vmatprep.subr.mxu0 0.0
  %206 = vmatpush2.msra.mxu0 0.0
  %207 = vmatprep.subr.mxu0 0.0
  %208 = vmatpush2.msra.mxu0 0.0
  %209 = vmatprep.subr.mxu0 0.0
  %210 = vmatpush2.msra.mxu0 0.0
  %211 = vmatprep.subr.mxu0 0.0
  %212 = vmatpush2.msra.mxu0 0.0
  %213 = vmatprep.subr.mxu0 0.0
  %214 = vmatpush2.msra.mxu0 0.0
  %215 = vmatprep.subr.mxu0 0.0
  %216 = vmatpush2.msra.mxu0 0.0
  %217 = vmatprep.subr.mxu0 0.0
  %218 = vmatpush2.msra.mxu0 0.0
  %219 = vmatprep.subr.mxu0 0.0
  %220 = vmatpush2.msra.mxu0 0.0
  %221 = vmatprep.subr.mxu0 0.0
  %222 = vmatpush2.msra.mxu0 0.0
  %223 = vmatprep.subr.mxu0 0.0
  %224 = vmatpush2.msra.mxu0 0.0
  %225 = vmatprep.subr.mxu0 0.0
  %226 = vmatpush2.msra.mxu0 0.0
  %227 = vmatprep.subr.mxu0 0.0
  %228 = vmatpush2.msra.mxu0 0.0
  %229 = vmatprep.subr.mxu0 0.0
  %230 = vmatpush2.msra.mxu0 0.0
  %231 = vmatprep.mubr.f32.mxu0 0.0
  %232 = vmatmul.mubr.f32.gmra.mxu0 %v165
  %v233 = vpop.f32.mrf.mxu0
  %v234 = vadd.f32 %v40, %v233
  %v235 = vpop.f32.mrf.mxu0
  %236 = vdwg.mxu0
  %v237 = vadd.f32 %v164, %v234
  %v238 = vxor.u32 %v237, 2147483648
  %v239 = vmul.f32 %v238, 1.442695
  %v240 = vpow.pop %v239
  %v241 = vadd.f32 %v240, 1.0
  %v242 = vrcp.pop %v241
  %v243 = vmul.f32 1.0, %v242
  %245 = vrot.lane.b32.xlu0 %v234, 96
  %v246 = vpop.permute.xlu0 %245
  %v248 = vmul.f32 %v243, %v246
  %250 = vrot.lane.b32.xlu0 %v248, 32
  %v251 = vpop.permute.xlu0 %250
  %v253 = vadd.f32 %v164, %v251
  %v254 = vtanh.pop %v253
  %v255 = vsub.f32 1.0, %v243
  %257 = vrot.lane.b32.xlu0 %v254, 112
  %v258 = vpop.permute.xlu0 %257
  %v260 = vmul.f32 %v255, %v258
  %v261 = vmul.f32 %v243, %v156
  %v262 = vadd.f32 %v260, %v261
  %vm263 = vcmp.gt.s32.totalorder %v30, 1
  %v264 = vsel %vm263, 1, 0
  %265 = vset.pattern.permute.xlu0 0
  %266 = vperm.xlu0 %265, %v264
  %v267 = vpop.permute.xlu0 %266
  %vm268 = vcmp.eq.s32.totalorder %v267, 1
  %v269 = vsel %vm268, %v262, 0.0
  %271 = vrot.lane.b32.xlu0 %v269, 112
  %v272 = vpop.permute.xlu0 %271
  %s274 = scalar_lea.vmem %s7, 2
  %275 = vst.msk [vmem:[%s274] sm:$0x3] %vm161, %v272
  %v276 = vsel %vm268, %v262, %v156
  %s277 = scalar_lea.vmem %s1, 4
  %v278 = vld [vmem:[%s277] sm:$0x3]
  %280 = vrot.lane.b32.xlu0 %v276, 112
  %v281 = vpop.permute.xlu0 %280
  %v282 = vsel %vm50, %v281, 0
  %284 = vmatprep.subr.mxu0 0.0
  %285 = vmatpush1.msra.mxu0 0.0
  %286 = vmatprep.subr.mxu0 0.0
  %287 = vmatpush1.msra.mxu0 0.0
  %288 = vmatprep.subr.mxu0 0.0
  %289 = vmatpush1.msra.mxu0 0.0
  %290 = vmatprep.subr.mxu0 0.0
  %291 = vmatpush1.msra.mxu0 0.0
  %292 = vmatprep.subr.mxu0 0.0
  %293 = vmatpush1.msra.mxu0 0.0
  %294 = vmatprep.subr.mxu0 0.0
  %295 = vmatpush1.msra.mxu0 0.0
  %296 = vmatprep.subr.mxu0 0.0
  %297 = vmatpush1.msra.mxu0 0.0
  %298 = vmatprep.subr.mxu0 0.0
  %299 = vmatpush1.msra.mxu0 0.0
  %300 = vmatprep.subr.mxu0 0.0
  %301 = vmatpush1.msra.mxu0 0.0
  %302 = vmatprep.subr.mxu0 0.0
  %303 = vmatpush1.msra.mxu0 0.0
  %304 = vmatprep.subr.mxu0 0.0
  %305 = vmatpush1.msra.mxu0 0.0
  %306 = vmatprep.subr.mxu0 0.0
  %307 = vmatpush1.msra.mxu0 0.0
  %308 = vmatprep.subr.mxu0 0.0
  %309 = vmatpush1.msra.mxu0 0.0
  %310 = vmatprep.subr.mxu0 0.0
  %311 = vmatpush1.msra.mxu0 0.0
  %312 = vmatprep.subr.mxu0 0.0
  %313 = vmatpush1.msra.mxu0 %v32
  %314 = vmatprep.subr.mxu0 0.0
  %315 = vmatpush1.msra.mxu0 %v31
  %316 = vmatprep.subr.mxu0 0.0
  %317 = vmatpush2.msra.mxu0 0.0
  %318 = vmatprep.subr.mxu0 0.0
  %319 = vmatpush2.msra.mxu0 0.0
  %320 = vmatprep.subr.mxu0 0.0
  %321 = vmatpush2.msra.mxu0 0.0
  %322 = vmatprep.subr.mxu0 0.0
  %323 = vmatpush2.msra.mxu0 0.0
  %324 = vmatprep.subr.mxu0 0.0
  %325 = vmatpush2.msra.mxu0 0.0
  %326 = vmatprep.subr.mxu0 0.0
  %327 = vmatpush2.msra.mxu0 0.0
  %328 = vmatprep.subr.mxu0 0.0
  %329 = vmatpush2.msra.mxu0 0.0
  %330 = vmatprep.subr.mxu0 0.0
  %331 = vmatpush2.msra.mxu0 0.0
  %332 = vmatprep.subr.mxu0 0.0
  %333 = vmatpush2.msra.mxu0 0.0
  %334 = vmatprep.subr.mxu0 0.0
  %335 = vmatpush2.msra.mxu0 0.0
  %336 = vmatprep.subr.mxu0 0.0
  %337 = vmatpush2.msra.mxu0 0.0
  %338 = vmatprep.subr.mxu0 0.0
  %339 = vmatpush2.msra.mxu0 0.0
  %340 = vmatprep.subr.mxu0 0.0
  %341 = vmatpush2.msra.mxu0 0.0
  %342 = vmatprep.subr.mxu0 0.0
  %343 = vmatpush2.msra.mxu0 0.0
  %344 = vmatprep.subr.mxu0 0.0
  %345 = vmatpush2.msra.mxu0 0.0
  %346 = vmatprep.subr.mxu0 0.0
  %347 = vmatpush2.msra.mxu0 0.0
  %348 = vmatprep.mubr.f32.mxu0 0.0
  %349 = vmatmul.mubr.f32.gmra.mxu0 %v282
  %v350 = vpop.f32.mrf.mxu0
  %v351 = vadd.f32 %v40, %v350
  %v352 = vpop.f32.mrf.mxu0
  %353 = vdwg.mxu0
  %v354 = vadd.f32 %v278, %v351
  %v355 = vxor.u32 %v354, 2147483648
  %v356 = vmul.f32 %v355, 1.442695
  %v357 = vpow.pop %v356
  %v358 = vadd.f32 %v357, 1.0
  %v359 = vrcp.pop %v358
  %v360 = vmul.f32 1.0, %v359
  %362 = vrot.lane.b32.xlu0 %v351, 96
  %v363 = vpop.permute.xlu0 %362
  %v365 = vmul.f32 %v360, %v363
  %367 = vrot.lane.b32.xlu0 %v365, 32
  %v368 = vpop.permute.xlu0 %367
  %v370 = vadd.f32 %v278, %v368
  %v371 = vtanh.pop %v370
  %v372 = vsub.f32 1.0, %v360
  %374 = vrot.lane.b32.xlu0 %v371, 112
  %v375 = vpop.permute.xlu0 %374
  %v377 = vmul.f32 %v372, %v375
  %v378 = vmul.f32 %v360, %v276
  %v379 = vadd.f32 %v377, %v378
  %vm380 = vcmp.gt.s32.totalorder %v30, 2
  %v381 = vsel %vm380, 1, 0
  %382 = vset.pattern.permute.xlu0 0
  %383 = vperm.xlu0 %382, %v381
  %v384 = vpop.permute.xlu0 %383
  %vm385 = vcmp.eq.s32.totalorder %v384, 1
  %v386 = vsel %vm385, %v379, 0.0
  %388 = vrot.lane.b32.xlu0 %v386, 112
  %v389 = vpop.permute.xlu0 %388
  %s391 = scalar_lea.vmem %s7, 4
  %392 = vst.msk [vmem:[%s391] sm:$0x3] %vm161, %v389
  %v393 = vsel %vm385, %v379, %v276
  %s394 = scalar_lea.vmem %s1, 6
  %v395 = vld [vmem:[%s394] sm:$0x3]
  %397 = vrot.lane.b32.xlu0 %v393, 112
  %v398 = vpop.permute.xlu0 %397
  %v399 = vsel %vm50, %v398, 0
  %401 = vmatprep.subr.mxu0 0.0
  %402 = vmatpush1.msra.mxu0 0.0
  %403 = vmatprep.subr.mxu0 0.0
  %404 = vmatpush1.msra.mxu0 0.0
  %405 = vmatprep.subr.mxu0 0.0
  %406 = vmatpush1.msra.mxu0 0.0
  %407 = vmatprep.subr.mxu0 0.0
  %408 = vmatpush1.msra.mxu0 0.0
  %409 = vmatprep.subr.mxu0 0.0
  %410 = vmatpush1.msra.mxu0 0.0
  %411 = vmatprep.subr.mxu0 0.0
  %412 = vmatpush1.msra.mxu0 0.0
  %413 = vmatprep.subr.mxu0 0.0
  %414 = vmatpush1.msra.mxu0 0.0
  %415 = vmatprep.subr.mxu0 0.0
  %416 = vmatpush1.msra.mxu0 0.0
  %417 = vmatprep.subr.mxu0 0.0
  %418 = vmatpush1.msra.mxu0 0.0
  %419 = vmatprep.subr.mxu0 0.0
  %420 = vmatpush1.msra.mxu0 0.0
  %421 = vmatprep.subr.mxu0 0.0
  %422 = vmatpush1.msra.mxu0 0.0
  %423 = vmatprep.subr.mxu0 0.0
  %424 = vmatpush1.msra.mxu0 0.0
  %425 = vmatprep.subr.mxu0 0.0
  %426 = vmatpush1.msra.mxu0 0.0
  %427 = vmatprep.subr.mxu0 0.0
  %428 = vmatpush1.msra.mxu0 0.0
  %429 = vmatprep.subr.mxu0 0.0
  %430 = vmatpush1.msra.mxu0 %v32
  %431 = vmatprep.subr.mxu0 0.0
  %432 = vmatpush1.msra.mxu0 %v31
  %433 = vmatprep.subr.mxu0 0.0
  %434 = vmatpush2.msra.mxu0 0.0
  %435 = vmatprep.subr.mxu0 0.0
  %436 = vmatpush2.msra.mxu0 0.0
  %437 = vmatprep.subr.mxu0 0.0
  %438 = vmatpush2.msra.mxu0 0.0
  %439 = vmatprep.subr.mxu0 0.0
  %440 = vmatpush2.msra.mxu0 0.0
  %441 = vmatprep.subr.mxu0 0.0
  %442 = vmatpush2.msra.mxu0 0.0
  %443 = vmatprep.subr.mxu0 0.0
  %444 = vmatpush2.msra.mxu0 0.0
  %445 = vmatprep.subr.mxu0 0.0
  %446 = vmatpush2.msra.mxu0 0.0
  %447 = vmatprep.subr.mxu0 0.0
  %448 = vmatpush2.msra.mxu0 0.0
  %449 = vmatprep.subr.mxu0 0.0
  %450 = vmatpush2.msra.mxu0 0.0
  %451 = vmatprep.subr.mxu0 0.0
  %452 = vmatpush2.msra.mxu0 0.0
  %453 = vmatprep.subr.mxu0 0.0
  %454 = vmatpush2.msra.mxu0 0.0
  %455 = vmatprep.subr.mxu0 0.0
  %456 = vmatpush2.msra.mxu0 0.0
  %457 = vmatprep.subr.mxu0 0.0
  %458 = vmatpush2.msra.mxu0 0.0
  %459 = vmatprep.subr.mxu0 0.0
  %460 = vmatpush2.msra.mxu0 0.0
  %461 = vmatprep.subr.mxu0 0.0
  %462 = vmatpush2.msra.mxu0 0.0
  %463 = vmatprep.subr.mxu0 0.0
  %464 = vmatpush2.msra.mxu0 0.0
  %465 = vmatprep.mubr.f32.mxu0 0.0
  %466 = vmatmul.mubr.f32.gmra.mxu0 %v399
  %v467 = vpop.f32.mrf.mxu0
  %v468 = vadd.f32 %v40, %v467
  %v469 = vpop.f32.mrf.mxu0
  %470 = vdwg.mxu0
  %v471 = vadd.f32 %v395, %v468
  %v472 = vxor.u32 %v471, 2147483648
  %v473 = vmul.f32 %v472, 1.442695
  %v474 = vpow.pop %v473
  %v475 = vadd.f32 %v474, 1.0
  %v476 = vrcp.pop %v475
  %v477 = vmul.f32 1.0, %v476
  %479 = vrot.lane.b32.xlu0 %v468, 96
  %v480 = vpop.permute.xlu0 %479
  %v482 = vmul.f32 %v477, %v480
  %484 = vrot.lane.b32.xlu0 %v482, 32
  %v485 = vpop.permute.xlu0 %484
  %v487 = vadd.f32 %v395, %v485
  %v488 = vtanh.pop %v487
  %v489 = vsub.f32 1.0, %v477
  %491 = vrot.lane.b32.xlu0 %v488, 112
  %v492 = vpop.permute.xlu0 %491
  %v494 = vmul.f32 %v489, %v492
  %v495 = vmul.f32 %v477, %v393
  %v496 = vadd.f32 %v494, %v495
  %vm497 = vcmp.gt.s32.totalorder %v30, 3
  %v498 = vsel %vm497, 1, 0
  %499 = vset.pattern.permute.xlu0 0
  %500 = vperm.xlu0 %499, %v498
  %v501 = vpop.permute.xlu0 %500
  %vm502 = vcmp.eq.s32.totalorder %v501, 1
  %v503 = vsel %vm502, %v496, 0.0
  %505 = vrot.lane.b32.xlu0 %v503, 112
  %v506 = vpop.permute.xlu0 %505
  %s508 = scalar_lea.vmem %s7, 6
  %509 = vst.msk [vmem:[%s508] sm:$0x3] %vm161, %v506
  %v510 = vsel %vm502, %v496, %v393
  %s511 = scalar_lea.vmem %s1, 8
  %v512 = vld [vmem:[%s511] sm:$0x3]
  %514 = vrot.lane.b32.xlu0 %v510, 112
  %v515 = vpop.permute.xlu0 %514
  %v516 = vsel %vm50, %v515, 0
  %518 = vmatprep.subr.mxu0 0.0
  %519 = vmatpush1.msra.mxu0 0.0
  %520 = vmatprep.subr.mxu0 0.0
  %521 = vmatpush1.msra.mxu0 0.0
  %522 = vmatprep.subr.mxu0 0.0
  %523 = vmatpush1.msra.mxu0 0.0
  %524 = vmatprep.subr.mxu0 0.0
  %525 = vmatpush1.msra.mxu0 0.0
  %526 = vmatprep.subr.mxu0 0.0
  %527 = vmatpush1.msra.mxu0 0.0
  %528 = vmatprep.subr.mxu0 0.0
  %529 = vmatpush1.msra.mxu0 0.0
  %530 = vmatprep.subr.mxu0 0.0
  %531 = vmatpush1.msra.mxu0 0.0
  %532 = vmatprep.subr.mxu0 0.0
  %533 = vmatpush1.msra.mxu0 0.0
  %534 = vmatprep.subr.mxu0 0.0
  %535 = vmatpush1.msra.mxu0 0.0
  %536 = vmatprep.subr.mxu0 0.0
  %537 = vmatpush1.msra.mxu0 0.0
  %538 = vmatprep.subr.mxu0 0.0
  %539 = vmatpush1.msra.mxu0 0.0
  %540 = vmatprep.subr.mxu0 0.0
  %541 = vmatpush1.msra.mxu0 0.0
  %542 = vmatprep.subr.mxu0 0.0
  %543 = vmatpush1.msra.mxu0 0.0
  %544 = vmatprep.subr.mxu0 0.0
  %545 = vmatpush1.msra.mxu0 0.0
  %546 = vmatprep.subr.mxu0 0.0
  %547 = vmatpush1.msra.mxu0 %v32
  %548 = vmatprep.subr.mxu0 0.0
  %549 = vmatpush1.msra.mxu0 %v31
  %550 = vmatprep.subr.mxu0 0.0
  %551 = vmatpush2.msra.mxu0 0.0
  %552 = vmatprep.subr.mxu0 0.0
  %553 = vmatpush2.msra.mxu0 0.0
  %554 = vmatprep.subr.mxu0 0.0
  %555 = vmatpush2.msra.mxu0 0.0
  %556 = vmatprep.subr.mxu0 0.0
  %557 = vmatpush2.msra.mxu0 0.0
  %558 = vmatprep.subr.mxu0 0.0
  %559 = vmatpush2.msra.mxu0 0.0
  %560 = vmatprep.subr.mxu0 0.0
  %561 = vmatpush2.msra.mxu0 0.0
  %562 = vmatprep.subr.mxu0 0.0
  %563 = vmatpush2.msra.mxu0 0.0
  %564 = vmatprep.subr.mxu0 0.0
  %565 = vmatpush2.msra.mxu0 0.0
  %566 = vmatprep.subr.mxu0 0.0
  %567 = vmatpush2.msra.mxu0 0.0
  %568 = vmatprep.subr.mxu0 0.0
  %569 = vmatpush2.msra.mxu0 0.0
  %570 = vmatprep.subr.mxu0 0.0
  %571 = vmatpush2.msra.mxu0 0.0
  %572 = vmatprep.subr.mxu0 0.0
  %573 = vmatpush2.msra.mxu0 0.0
  %574 = vmatprep.subr.mxu0 0.0
  %575 = vmatpush2.msra.mxu0 0.0
  %576 = vmatprep.subr.mxu0 0.0
  %577 = vmatpush2.msra.mxu0 0.0
  %578 = vmatprep.subr.mxu0 0.0
  %579 = vmatpush2.msra.mxu0 0.0
  %580 = vmatprep.subr.mxu0 0.0
  %581 = vmatpush2.msra.mxu0 0.0
  %582 = vmatprep.mubr.f32.mxu0 0.0
  %583 = vmatmul.mubr.f32.gmra.mxu0 %v516
  %v584 = vpop.f32.mrf.mxu0
  %v585 = vadd.f32 %v40, %v584
  %v586 = vpop.f32.mrf.mxu0
  %587 = vdwg.mxu0
  %v588 = vadd.f32 %v512, %v585
  %v589 = vxor.u32 %v588, 2147483648
  %v590 = vmul.f32 %v589, 1.442695
  %v591 = vpow.pop %v590
  %v592 = vadd.f32 %v591, 1.0
  %v593 = vrcp.pop %v592
  %v594 = vmul.f32 1.0, %v593
  %596 = vrot.lane.b32.xlu0 %v585, 96
  %v597 = vpop.permute.xlu0 %596
  %v599 = vmul.f32 %v594, %v597
  %601 = vrot.lane.b32.xlu0 %v599, 32
  %v602 = vpop.permute.xlu0 %601
  %v604 = vadd.f32 %v512, %v602
  %v605 = vtanh.pop %v604
  %v606 = vsub.f32 1.0, %v594
  %608 = vrot.lane.b32.xlu0 %v605, 112
  %v609 = vpop.permute.xlu0 %608
  %v611 = vmul.f32 %v606, %v609
  %v612 = vmul.f32 %v594, %v510
  %v613 = vadd.f32 %v611, %v612
  %vm614 = vcmp.gt.s32.totalorder %v30, 4
  %v615 = vsel %vm614, 1, 0
  %616 = vset.pattern.permute.xlu0 0
  %617 = vperm.xlu0 %616, %v615
  %v618 = vpop.permute.xlu0 %617
  %vm619 = vcmp.eq.s32.totalorder %v618, 1
  %v620 = vsel %vm619, %v613, 0.0
  %622 = vrot.lane.b32.xlu0 %v620, 112
  %v623 = vpop.permute.xlu0 %622
  %s625 = scalar_lea.vmem %s7, 8
  %626 = vst.msk [vmem:[%s625] sm:$0x3] %vm161, %v623
  %v627 = vsel %vm619, %v613, %v510
  %s628 = scalar_lea.vmem %s1, 10
  %v629 = vld [vmem:[%s628] sm:$0x3]
  %631 = vrot.lane.b32.xlu0 %v627, 112
  %v632 = vpop.permute.xlu0 %631
  %v633 = vsel %vm50, %v632, 0
  %635 = vmatprep.subr.mxu0 0.0
  %636 = vmatpush1.msra.mxu0 0.0
  %637 = vmatprep.subr.mxu0 0.0
  %638 = vmatpush1.msra.mxu0 0.0
  %639 = vmatprep.subr.mxu0 0.0
  %640 = vmatpush1.msra.mxu0 0.0
  %641 = vmatprep.subr.mxu0 0.0
  %642 = vmatpush1.msra.mxu0 0.0
  %643 = vmatprep.subr.mxu0 0.0
  %644 = vmatpush1.msra.mxu0 0.0
  %645 = vmatprep.subr.mxu0 0.0
  %646 = vmatpush1.msra.mxu0 0.0
  %647 = vmatprep.subr.mxu0 0.0
  %648 = vmatpush1.msra.mxu0 0.0
  %649 = vmatprep.subr.mxu0 0.0
  %650 = vmatpush1.msra.mxu0 0.0
  %651 = vmatprep.subr.mxu0 0.0
  %652 = vmatpush1.msra.mxu0 0.0
  %653 = vmatprep.subr.mxu0 0.0
  %654 = vmatpush1.msra.mxu0 0.0
  %655 = vmatprep.subr.mxu0 0.0
  %656 = vmatpush1.msra.mxu0 0.0
  %657 = vmatprep.subr.mxu0 0.0
  %658 = vmatpush1.msra.mxu0 0.0
  %659 = vmatprep.subr.mxu0 0.0
  %660 = vmatpush1.msra.mxu0 0.0
  %661 = vmatprep.subr.mxu0 0.0
  %662 = vmatpush1.msra.mxu0 0.0
  %663 = vmatprep.subr.mxu0 0.0
  %664 = vmatpush1.msra.mxu0 %v32
  %665 = vmatprep.subr.mxu0 0.0
  %666 = vmatpush1.msra.mxu0 %v31
  %667 = vmatprep.subr.mxu0 0.0
  %668 = vmatpush2.msra.mxu0 0.0
  %669 = vmatprep.subr.mxu0 0.0
  %670 = vmatpush2.msra.mxu0 0.0
  %671 = vmatprep.subr.mxu0 0.0
  %672 = vmatpush2.msra.mxu0 0.0
  %673 = vmatprep.subr.mxu0 0.0
  %674 = vmatpush2.msra.mxu0 0.0
  %675 = vmatprep.subr.mxu0 0.0
  %676 = vmatpush2.msra.mxu0 0.0
  %677 = vmatprep.subr.mxu0 0.0
  %678 = vmatpush2.msra.mxu0 0.0
  %679 = vmatprep.subr.mxu0 0.0
  %680 = vmatpush2.msra.mxu0 0.0
  %681 = vmatprep.subr.mxu0 0.0
  %682 = vmatpush2.msra.mxu0 0.0
  %683 = vmatprep.subr.mxu0 0.0
  %684 = vmatpush2.msra.mxu0 0.0
  %685 = vmatprep.subr.mxu0 0.0
  %686 = vmatpush2.msra.mxu0 0.0
  %687 = vmatprep.subr.mxu0 0.0
  %688 = vmatpush2.msra.mxu0 0.0
  %689 = vmatprep.subr.mxu0 0.0
  %690 = vmatpush2.msra.mxu0 0.0
  %691 = vmatprep.subr.mxu0 0.0
  %692 = vmatpush2.msra.mxu0 0.0
  %693 = vmatprep.subr.mxu0 0.0
  %694 = vmatpush2.msra.mxu0 0.0
  %695 = vmatprep.subr.mxu0 0.0
  %696 = vmatpush2.msra.mxu0 0.0
  %697 = vmatprep.subr.mxu0 0.0
  %698 = vmatpush2.msra.mxu0 0.0
  %699 = vmatprep.mubr.f32.mxu0 0.0
  %700 = vmatmul.mubr.f32.gmra.mxu0 %v633
  %v701 = vpop.f32.mrf.mxu0
  %v702 = vadd.f32 %v40, %v701
  %v703 = vpop.f32.mrf.mxu0
  %704 = vdwg.mxu0
  %v705 = vadd.f32 %v629, %v702
  %v706 = vxor.u32 %v705, 2147483648
  %v707 = vmul.f32 %v706, 1.442695
  %v708 = vpow.pop %v707
  %v709 = vadd.f32 %v708, 1.0
  %v710 = vrcp.pop %v709
  %v711 = vmul.f32 1.0, %v710
  %713 = vrot.lane.b32.xlu0 %v702, 96
  %v714 = vpop.permute.xlu0 %713
  %v716 = vmul.f32 %v711, %v714
  %718 = vrot.lane.b32.xlu0 %v716, 32
  %v719 = vpop.permute.xlu0 %718
  %v721 = vadd.f32 %v629, %v719
  %v722 = vtanh.pop %v721
  %v723 = vsub.f32 1.0, %v711
  %725 = vrot.lane.b32.xlu0 %v722, 112
  %v726 = vpop.permute.xlu0 %725
  %v728 = vmul.f32 %v723, %v726
  %v729 = vmul.f32 %v711, %v627
  %v730 = vadd.f32 %v728, %v729
  %vm731 = vcmp.gt.s32.totalorder %v30, 5
  %v732 = vsel %vm731, 1, 0
  %733 = vset.pattern.permute.xlu0 0
  %734 = vperm.xlu0 %733, %v732
  %v735 = vpop.permute.xlu0 %734
  %vm736 = vcmp.eq.s32.totalorder %v735, 1
  %v737 = vsel %vm736, %v730, 0.0
  %739 = vrot.lane.b32.xlu0 %v737, 112
  %v740 = vpop.permute.xlu0 %739
  %s742 = scalar_lea.vmem %s7, 10
  %743 = vst.msk [vmem:[%s742] sm:$0x3] %vm161, %v740
  %v744 = vsel %vm736, %v730, %v627
  %s745 = scalar_lea.vmem %s1, 12
  %v746 = vld [vmem:[%s745] sm:$0x3]
  %748 = vrot.lane.b32.xlu0 %v744, 112
  %v749 = vpop.permute.xlu0 %748
  %v750 = vsel %vm50, %v749, 0
  %752 = vmatprep.subr.mxu0 0.0
  %753 = vmatpush1.msra.mxu0 0.0
  %754 = vmatprep.subr.mxu0 0.0
  %755 = vmatpush1.msra.mxu0 0.0
  %756 = vmatprep.subr.mxu0 0.0
  %757 = vmatpush1.msra.mxu0 0.0
  %758 = vmatprep.subr.mxu0 0.0
  %759 = vmatpush1.msra.mxu0 0.0
  %760 = vmatprep.subr.mxu0 0.0
  %761 = vmatpush1.msra.mxu0 0.0
  %762 = vmatprep.subr.mxu0 0.0
  %763 = vmatpush1.msra.mxu0 0.0
  %764 = vmatprep.subr.mxu0 0.0
  %765 = vmatpush1.msra.mxu0 0.0
  %766 = vmatprep.subr.mxu0 0.0
  %767 = vmatpush1.msra.mxu0 0.0
  %768 = vmatprep.subr.mxu0 0.0
  %769 = vmatpush1.msra.mxu0 0.0
  %770 = vmatprep.subr.mxu0 0.0
  %771 = vmatpush1.msra.mxu0 0.0
  %772 = vmatprep.subr.mxu0 0.0
  %773 = vmatpush1.msra.mxu0 0.0
  %774 = vmatprep.subr.mxu0 0.0
  %775 = vmatpush1.msra.mxu0 0.0
  %776 = vmatprep.subr.mxu0 0.0
  %777 = vmatpush1.msra.mxu0 0.0
  %778 = vmatprep.subr.mxu0 0.0
  %779 = vmatpush1.msra.mxu0 0.0
  %780 = vmatprep.subr.mxu0 0.0
  %781 = vmatpush1.msra.mxu0 %v32
  %782 = vmatprep.subr.mxu0 0.0
  %783 = vmatpush1.msra.mxu0 %v31
  %784 = vmatprep.subr.mxu0 0.0
  %785 = vmatpush2.msra.mxu0 0.0
  %786 = vmatprep.subr.mxu0 0.0
  %787 = vmatpush2.msra.mxu0 0.0
  %788 = vmatprep.subr.mxu0 0.0
  %789 = vmatpush2.msra.mxu0 0.0
  %790 = vmatprep.subr.mxu0 0.0
  %791 = vmatpush2.msra.mxu0 0.0
  %792 = vmatprep.subr.mxu0 0.0
  %793 = vmatpush2.msra.mxu0 0.0
  %794 = vmatprep.subr.mxu0 0.0
  %795 = vmatpush2.msra.mxu0 0.0
  %796 = vmatprep.subr.mxu0 0.0
  %797 = vmatpush2.msra.mxu0 0.0
  %798 = vmatprep.subr.mxu0 0.0
  %799 = vmatpush2.msra.mxu0 0.0
  %800 = vmatprep.subr.mxu0 0.0
  %801 = vmatpush2.msra.mxu0 0.0
  %802 = vmatprep.subr.mxu0 0.0
  %803 = vmatpush2.msra.mxu0 0.0
  %804 = vmatprep.subr.mxu0 0.0
  %805 = vmatpush2.msra.mxu0 0.0
  %806 = vmatprep.subr.mxu0 0.0
  %807 = vmatpush2.msra.mxu0 0.0
  %808 = vmatprep.subr.mxu0 0.0
  %809 = vmatpush2.msra.mxu0 0.0
  %810 = vmatprep.subr.mxu0 0.0
  %811 = vmatpush2.msra.mxu0 0.0
  %812 = vmatprep.subr.mxu0 0.0
  %813 = vmatpush2.msra.mxu0 0.0
  %814 = vmatprep.subr.mxu0 0.0
  %815 = vmatpush2.msra.mxu0 0.0
  %816 = vmatprep.mubr.f32.mxu0 0.0
  %817 = vmatmul.mubr.f32.gmra.mxu0 %v750
  %v818 = vpop.f32.mrf.mxu0
  %v819 = vadd.f32 %v40, %v818
  %v820 = vpop.f32.mrf.mxu0
  %821 = vdwg.mxu0
  %v822 = vadd.f32 %v746, %v819
  %v823 = vxor.u32 %v822, 2147483648
  %v824 = vmul.f32 %v823, 1.442695
  %v825 = vpow.pop %v824
  %v826 = vadd.f32 %v825, 1.0
  %v827 = vrcp.pop %v826
  %v828 = vmul.f32 1.0, %v827
  %830 = vrot.lane.b32.xlu0 %v819, 96
  %v831 = vpop.permute.xlu0 %830
  %v833 = vmul.f32 %v828, %v831
  %835 = vrot.lane.b32.xlu0 %v833, 32
  %v836 = vpop.permute.xlu0 %835
  %v838 = vadd.f32 %v746, %v836
  %v839 = vtanh.pop %v838
  %v840 = vsub.f32 1.0, %v828
  %842 = vrot.lane.b32.xlu0 %v839, 112
  %v843 = vpop.permute.xlu0 %842
  %v845 = vmul.f32 %v840, %v843
  %v846 = vmul.f32 %v828, %v744
  %v847 = vadd.f32 %v845, %v846
  %vm848 = vcmp.gt.s32.totalorder %v30, 6
  %v849 = vsel %vm848, 1, 0
  %850 = vset.pattern.permute.xlu0 0
  %851 = vperm.xlu0 %850, %v849
  %v852 = vpop.permute.xlu0 %851
  %vm853 = vcmp.eq.s32.totalorder %v852, 1
  %v854 = vsel %vm853, %v847, 0.0
  %856 = vrot.lane.b32.xlu0 %v854, 112
  %v857 = vpop.permute.xlu0 %856
  %s859 = scalar_lea.vmem %s7, 12
  %860 = vst.msk [vmem:[%s859] sm:$0x3] %vm161, %v857
  %v861 = vsel %vm853, %v847, %v744
  %s862 = scalar_lea.vmem %s1, 14
  %v863 = vld [vmem:[%s862] sm:$0x3]
  %865 = vrot.lane.b32.xlu0 %v861, 112
  %v866 = vpop.permute.xlu0 %865
  %v867 = vsel %vm50, %v866, 0
  %869 = vmatprep.subr.mxu0 0.0
  %870 = vmatpush1.msra.mxu0 0.0
  %871 = vmatprep.subr.mxu0 0.0
  %872 = vmatpush1.msra.mxu0 0.0
  %873 = vmatprep.subr.mxu0 0.0
  %874 = vmatpush1.msra.mxu0 0.0
  %875 = vmatprep.subr.mxu0 0.0
  %876 = vmatpush1.msra.mxu0 0.0
  %877 = vmatprep.subr.mxu0 0.0
  %878 = vmatpush1.msra.mxu0 0.0
  %879 = vmatprep.subr.mxu0 0.0
  %880 = vmatpush1.msra.mxu0 0.0
  %881 = vmatprep.subr.mxu0 0.0
  %882 = vmatpush1.msra.mxu0 0.0
  %883 = vmatprep.subr.mxu0 0.0
  %884 = vmatpush1.msra.mxu0 0.0
  %885 = vmatprep.subr.mxu0 0.0
  %886 = vmatpush1.msra.mxu0 0.0
  %887 = vmatprep.subr.mxu0 0.0
  %888 = vmatpush1.msra.mxu0 0.0
  %889 = vmatprep.subr.mxu0 0.0
  %890 = vmatpush1.msra.mxu0 0.0
  %891 = vmatprep.subr.mxu0 0.0
  %892 = vmatpush1.msra.mxu0 0.0
  %893 = vmatprep.subr.mxu0 0.0
  %894 = vmatpush1.msra.mxu0 0.0
  %895 = vmatprep.subr.mxu0 0.0
  %896 = vmatpush1.msra.mxu0 0.0
  %897 = vmatprep.subr.mxu0 0.0
  %898 = vmatpush1.msra.mxu0 %v32
  %899 = vmatprep.subr.mxu0 0.0
  %900 = vmatpush1.msra.mxu0 %v31
  %901 = vmatprep.subr.mxu0 0.0
  %902 = vmatpush2.msra.mxu0 0.0
  %903 = vmatprep.subr.mxu0 0.0
  %904 = vmatpush2.msra.mxu0 0.0
  %905 = vmatprep.subr.mxu0 0.0
  %906 = vmatpush2.msra.mxu0 0.0
  %907 = vmatprep.subr.mxu0 0.0
  %908 = vmatpush2.msra.mxu0 0.0
  %909 = vmatprep.subr.mxu0 0.0
  %910 = vmatpush2.msra.mxu0 0.0
  %911 = vmatprep.subr.mxu0 0.0
  %912 = vmatpush2.msra.mxu0 0.0
  %913 = vmatprep.subr.mxu0 0.0
  %914 = vmatpush2.msra.mxu0 0.0
  %915 = vmatprep.subr.mxu0 0.0
  %916 = vmatpush2.msra.mxu0 0.0
  %917 = vmatprep.subr.mxu0 0.0
  %918 = vmatpush2.msra.mxu0 0.0
  %919 = vmatprep.subr.mxu0 0.0
  %920 = vmatpush2.msra.mxu0 0.0
  %921 = vmatprep.subr.mxu0 0.0
  %922 = vmatpush2.msra.mxu0 0.0
  %923 = vmatprep.subr.mxu0 0.0
  %924 = vmatpush2.msra.mxu0 0.0
  %925 = vmatprep.subr.mxu0 0.0
  %926 = vmatpush2.msra.mxu0 0.0
  %927 = vmatprep.subr.mxu0 0.0
  %928 = vmatpush2.msra.mxu0 0.0
  %929 = vmatprep.subr.mxu0 0.0
  %930 = vmatpush2.msra.mxu0 0.0
  %931 = vmatprep.subr.mxu0 0.0
  %932 = vmatpush2.msra.mxu0 0.0
  %933 = vmatprep.mubr.f32.mxu0 0.0
  %934 = vmatmul.mubr.f32.gmra.mxu0 %v867
  %v935 = vpop.f32.mrf.mxu0
  %v936 = vadd.f32 %v40, %v935
  %v937 = vpop.f32.mrf.mxu0
  %938 = vdwg.mxu0
  %v939 = vadd.f32 %v863, %v936
  %v940 = vxor.u32 %v939, 2147483648
  %v941 = vmul.f32 %v940, 1.442695
  %v942 = vpow.pop %v941
  %v943 = vadd.f32 %v942, 1.0
  %v944 = vrcp.pop %v943
  %v945 = vmul.f32 1.0, %v944
  %947 = vrot.lane.b32.xlu0 %v936, 96
  %v948 = vpop.permute.xlu0 %947
  %v950 = vmul.f32 %v945, %v948
  %952 = vrot.lane.b32.xlu0 %v950, 32
  %v953 = vpop.permute.xlu0 %952
  %v955 = vadd.f32 %v863, %v953
  %v956 = vtanh.pop %v955
  %v957 = vsub.f32 1.0, %v945
  %959 = vrot.lane.b32.xlu0 %v956, 112
  %v960 = vpop.permute.xlu0 %959
  %v962 = vmul.f32 %v957, %v960
  %v963 = vmul.f32 %v945, %v861
  %v964 = vadd.f32 %v962, %v963
  %vm965 = vcmp.gt.s32.totalorder %v30, 7
  %v966 = vsel %vm965, 1, 0
  %967 = vset.pattern.permute.xlu0 0
  %968 = vperm.xlu0 %967, %v966
  %v969 = vpop.permute.xlu0 %968
  %vm970 = vcmp.eq.s32.totalorder %v969, 1
  %v971 = vsel %vm970, %v964, 0.0
  %973 = vrot.lane.b32.xlu0 %v971, 112
  %v974 = vpop.permute.xlu0 %973
  %s976 = scalar_lea.vmem %s7, 14
  %977 = vst.msk [vmem:[%s976] sm:$0x3] %vm161, %v974
  %v978 = vsel %vm970, %v964, %v861
  %980 = vrot.lane.b32.xlu0 %v978, 112
  %v981 = vpop.permute.xlu0 %980
  %983 = vst.msk [vmem:[%s9] sm:$0x3] %vm161, %v981
  %s984 = scalar_lea.vmem %s2, 14
  %v985 = vld [vmem:[%s984] sm:$0x3]
  %986 = vmatprep.subr.mxu0 0.0
  %987 = vmatpush1.msra.mxu0 0.0
  %988 = vmatprep.subr.mxu0 0.0
  %989 = vmatpush1.msra.mxu0 0.0
  %990 = vmatprep.subr.mxu0 0.0
  %991 = vmatpush1.msra.mxu0 0.0
  %992 = vmatprep.subr.mxu0 0.0
  %993 = vmatpush1.msra.mxu0 0.0
  %994 = vmatprep.subr.mxu0 0.0
  %995 = vmatpush1.msra.mxu0 0.0
  %996 = vmatprep.subr.mxu0 0.0
  %997 = vmatpush1.msra.mxu0 0.0
  %998 = vmatprep.subr.mxu0 0.0
  %999 = vmatpush1.msra.mxu0 0.0
  %1000 = vmatprep.subr.mxu0 0.0
  %1001 = vmatpush1.msra.mxu0 0.0
  %1002 = vmatprep.subr.mxu0 0.0
  %1003 = vmatpush1.msra.mxu0 0.0
  %1004 = vmatprep.subr.mxu0 0.0
  %1005 = vmatpush1.msra.mxu0 0.0
  %1006 = vmatprep.subr.mxu0 0.0
  %1007 = vmatpush1.msra.mxu0 0.0
  %1008 = vmatprep.subr.mxu0 0.0
  %1009 = vmatpush1.msra.mxu0 0.0
  %1010 = vmatprep.subr.mxu0 0.0
  %1011 = vmatpush1.msra.mxu0 0.0
  %1012 = vmatprep.subr.mxu0 0.0
  %1013 = vmatpush1.msra.mxu0 0.0
  %1014 = vmatprep.subr.mxu0 0.0
  %1015 = vmatpush1.msra.mxu0 %v34
  %1016 = vmatprep.subr.mxu0 0.0
  %1017 = vmatpush1.msra.mxu0 %v33
  %1018 = vmatprep.subr.mxu0 0.0
  %1019 = vmatpush2.msra.mxu0 0.0
  %1020 = vmatprep.subr.mxu0 0.0
  %1021 = vmatpush2.msra.mxu0 0.0
  %1022 = vmatprep.subr.mxu0 0.0
  %1023 = vmatpush2.msra.mxu0 0.0
  %1024 = vmatprep.subr.mxu0 0.0
  %1025 = vmatpush2.msra.mxu0 0.0
  %1026 = vmatprep.subr.mxu0 0.0
  %1027 = vmatpush2.msra.mxu0 0.0
  %1028 = vmatprep.subr.mxu0 0.0
  %1029 = vmatpush2.msra.mxu0 0.0
  %1030 = vmatprep.subr.mxu0 0.0
  %1031 = vmatpush2.msra.mxu0 0.0
  %1032 = vmatprep.subr.mxu0 0.0
  %1033 = vmatpush2.msra.mxu0 0.0
  %1034 = vmatprep.subr.mxu0 0.0
  %1035 = vmatpush2.msra.mxu0 0.0
  %1036 = vmatprep.subr.mxu0 0.0
  %1037 = vmatpush2.msra.mxu0 0.0
  %1038 = vmatprep.subr.mxu0 0.0
  %1039 = vmatpush2.msra.mxu0 0.0
  %1040 = vmatprep.subr.mxu0 0.0
  %1041 = vmatpush2.msra.mxu0 0.0
  %1042 = vmatprep.subr.mxu0 0.0
  %1043 = vmatpush2.msra.mxu0 0.0
  %1044 = vmatprep.subr.mxu0 0.0
  %1045 = vmatpush2.msra.mxu0 0.0
  %1046 = vmatprep.subr.mxu0 0.0
  %1047 = vmatpush2.msra.mxu0 0.0
  %1048 = vmatprep.subr.mxu0 0.0
  %1049 = vmatpush2.msra.mxu0 0.0
  %1050 = vmatprep.mubr.f32.mxu0 0.0
  %1051 = vmatmul.mubr.f32.gmra.mxu0 %v52
  %v1052 = vpop.f32.mrf.mxu0
  %v1053 = vadd.f32 %v47, %v1052
  %v1054 = vpop.f32.mrf.mxu0
  %1055 = vdwg.mxu0
  %v1056 = vadd.f32 %v985, %v1053
  %v1057 = vxor.u32 %v1056, 2147483648
  %v1058 = vmul.f32 %v1057, 1.442695
  %v1059 = vpow.pop %v1058
  %v1060 = vadd.f32 %v1059, 1.0
  %v1061 = vrcp.pop %v1060
  %v1062 = vmul.f32 1.0, %v1061
  %1064 = vrot.lane.b32.xlu0 %v1053, 96
  %v1065 = vpop.permute.xlu0 %1064
  %v1067 = vmul.f32 %v1062, %v1065
  %1069 = vrot.lane.b32.xlu0 %v1067, 32
  %v1070 = vpop.permute.xlu0 %1069
  %v1072 = vadd.f32 %v985, %v1070
  %v1073 = vtanh.pop %v1072
  %v1074 = vsub.f32 1.0, %v1062
  %1076 = vrot.lane.b32.xlu0 %v1073, 112
  %v1077 = vpop.permute.xlu0 %1076
  %v1079 = vmul.f32 %v1074, %v1077
  %v1080 = vmul.f32 %v1062, 0.0
  %v1081 = vadd.f32 %v1079, %v1080
  %v1082 = vsel %vm970, %v1081, 0.0
  %1084 = vrot.lane.b32.xlu0 %v1082, 112
  %v1085 = vpop.permute.xlu0 %1084
  %s1087 = scalar_lea.vmem %s8, 14
  %1088 = vst.msk [vmem:[%s1087] sm:$0x3] %vm161, %v1085
  %s1089 = scalar_lea.vmem %s2, 12
  %v1090 = vld [vmem:[%s1089] sm:$0x3]
  %v1091 = vsel %vm50, %v1085, 0
  %1093 = vmatprep.subr.mxu0 0.0
  %1094 = vmatpush1.msra.mxu0 0.0
  %1095 = vmatprep.subr.mxu0 0.0
  %1096 = vmatpush1.msra.mxu0 0.0
  %1097 = vmatprep.subr.mxu0 0.0
  %1098 = vmatpush1.msra.mxu0 0.0
  %1099 = vmatprep.subr.mxu0 0.0
  %1100 = vmatpush1.msra.mxu0 0.0
  %1101 = vmatprep.subr.mxu0 0.0
  %1102 = vmatpush1.msra.mxu0 0.0
  %1103 = vmatprep.subr.mxu0 0.0
  %1104 = vmatpush1.msra.mxu0 0.0
  %1105 = vmatprep.subr.mxu0 0.0
  %1106 = vmatpush1.msra.mxu0 0.0
  %1107 = vmatprep.subr.mxu0 0.0
  %1108 = vmatpush1.msra.mxu0 0.0
  %1109 = vmatprep.subr.mxu0 0.0
  %1110 = vmatpush1.msra.mxu0 0.0
  %1111 = vmatprep.subr.mxu0 0.0
  %1112 = vmatpush1.msra.mxu0 0.0
  %1113 = vmatprep.subr.mxu0 0.0
  %1114 = vmatpush1.msra.mxu0 0.0
  %1115 = vmatprep.subr.mxu0 0.0
  %1116 = vmatpush1.msra.mxu0 0.0
  %1117 = vmatprep.subr.mxu0 0.0
  %1118 = vmatpush1.msra.mxu0 0.0
  %1119 = vmatprep.subr.mxu0 0.0
  %1120 = vmatpush1.msra.mxu0 0.0
  %1121 = vmatprep.subr.mxu0 0.0
  %1122 = vmatpush1.msra.mxu0 %v34
  %1123 = vmatprep.subr.mxu0 0.0
  %1124 = vmatpush1.msra.mxu0 %v33
  %1125 = vmatprep.subr.mxu0 0.0
  %1126 = vmatpush2.msra.mxu0 0.0
  %1127 = vmatprep.subr.mxu0 0.0
  %1128 = vmatpush2.msra.mxu0 0.0
  %1129 = vmatprep.subr.mxu0 0.0
  %1130 = vmatpush2.msra.mxu0 0.0
  %1131 = vmatprep.subr.mxu0 0.0
  %1132 = vmatpush2.msra.mxu0 0.0
  %1133 = vmatprep.subr.mxu0 0.0
  %1134 = vmatpush2.msra.mxu0 0.0
  %1135 = vmatprep.subr.mxu0 0.0
  %1136 = vmatpush2.msra.mxu0 0.0
  %1137 = vmatprep.subr.mxu0 0.0
  %1138 = vmatpush2.msra.mxu0 0.0
  %1139 = vmatprep.subr.mxu0 0.0
  %1140 = vmatpush2.msra.mxu0 0.0
  %1141 = vmatprep.subr.mxu0 0.0
  %1142 = vmatpush2.msra.mxu0 0.0
  %1143 = vmatprep.subr.mxu0 0.0
  %1144 = vmatpush2.msra.mxu0 0.0
  %1145 = vmatprep.subr.mxu0 0.0
  %1146 = vmatpush2.msra.mxu0 0.0
  %1147 = vmatprep.subr.mxu0 0.0
  %1148 = vmatpush2.msra.mxu0 0.0
  %1149 = vmatprep.subr.mxu0 0.0
  %1150 = vmatpush2.msra.mxu0 0.0
  %1151 = vmatprep.subr.mxu0 0.0
  %1152 = vmatpush2.msra.mxu0 0.0
  %1153 = vmatprep.subr.mxu0 0.0
  %1154 = vmatpush2.msra.mxu0 0.0
  %1155 = vmatprep.subr.mxu0 0.0
  %1156 = vmatpush2.msra.mxu0 0.0
  %1157 = vmatprep.mubr.f32.mxu0 0.0
  %1158 = vmatmul.mubr.f32.gmra.mxu0 %v1091
  %v1159 = vpop.f32.mrf.mxu0
  %v1160 = vadd.f32 %v47, %v1159
  %v1161 = vpop.f32.mrf.mxu0
  %1162 = vdwg.mxu0
  %v1163 = vadd.f32 %v1090, %v1160
  %v1164 = vxor.u32 %v1163, 2147483648
  %v1165 = vmul.f32 %v1164, 1.442695
  %v1166 = vpow.pop %v1165
  %v1167 = vadd.f32 %v1166, 1.0
  %v1168 = vrcp.pop %v1167
  %v1169 = vmul.f32 1.0, %v1168
  %1171 = vrot.lane.b32.xlu0 %v1160, 96
  %v1172 = vpop.permute.xlu0 %1171
  %v1174 = vmul.f32 %v1169, %v1172
  %1176 = vrot.lane.b32.xlu0 %v1174, 32
  %v1177 = vpop.permute.xlu0 %1176
  %v1179 = vadd.f32 %v1090, %v1177
  %v1180 = vtanh.pop %v1179
  %v1181 = vsub.f32 1.0, %v1169
  %1183 = vrot.lane.b32.xlu0 %v1180, 112
  %v1184 = vpop.permute.xlu0 %1183
  %v1186 = vmul.f32 %v1181, %v1184
  %v1187 = vmul.f32 %v1169, %v1082
  %v1188 = vadd.f32 %v1186, %v1187
  %v1189 = vsel %vm853, %v1188, 0.0
  %1191 = vrot.lane.b32.xlu0 %v1189, 112
  %v1192 = vpop.permute.xlu0 %1191
  %s1194 = scalar_lea.vmem %s8, 12
  %1195 = vst.msk [vmem:[%s1194] sm:$0x3] %vm161, %v1192
  %v1196 = vsel %vm853, %v1188, %v1082
  %s1197 = scalar_lea.vmem %s2, 10
  %v1198 = vld [vmem:[%s1197] sm:$0x3]
  %1200 = vrot.lane.b32.xlu0 %v1196, 112
  %v1201 = vpop.permute.xlu0 %1200
  %v1202 = vsel %vm50, %v1201, 0
  %1204 = vmatprep.subr.mxu0 0.0
  %1205 = vmatpush1.msra.mxu0 0.0
  %1206 = vmatprep.subr.mxu0 0.0
  %1207 = vmatpush1.msra.mxu0 0.0
  %1208 = vmatprep.subr.mxu0 0.0
  %1209 = vmatpush1.msra.mxu0 0.0
  %1210 = vmatprep.subr.mxu0 0.0
  %1211 = vmatpush1.msra.mxu0 0.0
  %1212 = vmatprep.subr.mxu0 0.0
  %1213 = vmatpush1.msra.mxu0 0.0
  %1214 = vmatprep.subr.mxu0 0.0
  %1215 = vmatpush1.msra.mxu0 0.0
  %1216 = vmatprep.subr.mxu0 0.0
  %1217 = vmatpush1.msra.mxu0 0.0
  %1218 = vmatprep.subr.mxu0 0.0
  %1219 = vmatpush1.msra.mxu0 0.0
  %1220 = vmatprep.subr.mxu0 0.0
  %1221 = vmatpush1.msra.mxu0 0.0
  %1222 = vmatprep.subr.mxu0 0.0
  %1223 = vmatpush1.msra.mxu0 0.0
  %1224 = vmatprep.subr.mxu0 0.0
  %1225 = vmatpush1.msra.mxu0 0.0
  %1226 = vmatprep.subr.mxu0 0.0
  %1227 = vmatpush1.msra.mxu0 0.0
  %1228 = vmatprep.subr.mxu0 0.0
  %1229 = vmatpush1.msra.mxu0 0.0
  %1230 = vmatprep.subr.mxu0 0.0
  %1231 = vmatpush1.msra.mxu0 0.0
  %1232 = vmatprep.subr.mxu0 0.0
  %1233 = vmatpush1.msra.mxu0 %v34
  %1234 = vmatprep.subr.mxu0 0.0
  %1235 = vmatpush1.msra.mxu0 %v33
  %1236 = vmatprep.subr.mxu0 0.0
  %1237 = vmatpush2.msra.mxu0 0.0
  %1238 = vmatprep.subr.mxu0 0.0
  %1239 = vmatpush2.msra.mxu0 0.0
  %1240 = vmatprep.subr.mxu0 0.0
  %1241 = vmatpush2.msra.mxu0 0.0
  %1242 = vmatprep.subr.mxu0 0.0
  %1243 = vmatpush2.msra.mxu0 0.0
  %1244 = vmatprep.subr.mxu0 0.0
  %1245 = vmatpush2.msra.mxu0 0.0
  %1246 = vmatprep.subr.mxu0 0.0
  %1247 = vmatpush2.msra.mxu0 0.0
  %1248 = vmatprep.subr.mxu0 0.0
  %1249 = vmatpush2.msra.mxu0 0.0
  %1250 = vmatprep.subr.mxu0 0.0
  %1251 = vmatpush2.msra.mxu0 0.0
  %1252 = vmatprep.subr.mxu0 0.0
  %1253 = vmatpush2.msra.mxu0 0.0
  %1254 = vmatprep.subr.mxu0 0.0
  %1255 = vmatpush2.msra.mxu0 0.0
  %1256 = vmatprep.subr.mxu0 0.0
  %1257 = vmatpush2.msra.mxu0 0.0
  %1258 = vmatprep.subr.mxu0 0.0
  %1259 = vmatpush2.msra.mxu0 0.0
  %1260 = vmatprep.subr.mxu0 0.0
  %1261 = vmatpush2.msra.mxu0 0.0
  %1262 = vmatprep.subr.mxu0 0.0
  %1263 = vmatpush2.msra.mxu0 0.0
  %1264 = vmatprep.subr.mxu0 0.0
  %1265 = vmatpush2.msra.mxu0 0.0
  %1266 = vmatprep.subr.mxu0 0.0
  %1267 = vmatpush2.msra.mxu0 0.0
  %1268 = vmatprep.mubr.f32.mxu0 0.0
  %1269 = vmatmul.mubr.f32.gmra.mxu0 %v1202
  %v1270 = vpop.f32.mrf.mxu0
  %v1271 = vadd.f32 %v47, %v1270
  %v1272 = vpop.f32.mrf.mxu0
  %1273 = vdwg.mxu0
  %v1274 = vadd.f32 %v1198, %v1271
  %v1275 = vxor.u32 %v1274, 2147483648
  %v1276 = vmul.f32 %v1275, 1.442695
  %v1277 = vpow.pop %v1276
  %v1278 = vadd.f32 %v1277, 1.0
  %v1279 = vrcp.pop %v1278
  %v1280 = vmul.f32 1.0, %v1279
  %1282 = vrot.lane.b32.xlu0 %v1271, 96
  %v1283 = vpop.permute.xlu0 %1282
  %v1285 = vmul.f32 %v1280, %v1283
  %1287 = vrot.lane.b32.xlu0 %v1285, 32
  %v1288 = vpop.permute.xlu0 %1287
  %v1290 = vadd.f32 %v1198, %v1288
  %v1291 = vtanh.pop %v1290
  %v1292 = vsub.f32 1.0, %v1280
  %1294 = vrot.lane.b32.xlu0 %v1291, 112
  %v1295 = vpop.permute.xlu0 %1294
  %v1297 = vmul.f32 %v1292, %v1295
  %v1298 = vmul.f32 %v1280, %v1196
  %v1299 = vadd.f32 %v1297, %v1298
  %v1300 = vsel %vm736, %v1299, 0.0
  %1302 = vrot.lane.b32.xlu0 %v1300, 112
  %v1303 = vpop.permute.xlu0 %1302
  %s1305 = scalar_lea.vmem %s8, 10
  %1306 = vst.msk [vmem:[%s1305] sm:$0x3] %vm161, %v1303
  %v1307 = vsel %vm736, %v1299, %v1196
  %s1308 = scalar_lea.vmem %s2, 8
  %v1309 = vld [vmem:[%s1308] sm:$0x3]
  %1311 = vrot.lane.b32.xlu0 %v1307, 112
  %v1312 = vpop.permute.xlu0 %1311
  %v1313 = vsel %vm50, %v1312, 0
  %1315 = vmatprep.subr.mxu0 0.0
  %1316 = vmatpush1.msra.mxu0 0.0
  %1317 = vmatprep.subr.mxu0 0.0
  %1318 = vmatpush1.msra.mxu0 0.0
  %1319 = vmatprep.subr.mxu0 0.0
  %1320 = vmatpush1.msra.mxu0 0.0
  %1321 = vmatprep.subr.mxu0 0.0
  %1322 = vmatpush1.msra.mxu0 0.0
  %1323 = vmatprep.subr.mxu0 0.0
  %1324 = vmatpush1.msra.mxu0 0.0
  %1325 = vmatprep.subr.mxu0 0.0
  %1326 = vmatpush1.msra.mxu0 0.0
  %1327 = vmatprep.subr.mxu0 0.0
  %1328 = vmatpush1.msra.mxu0 0.0
  %1329 = vmatprep.subr.mxu0 0.0
  %1330 = vmatpush1.msra.mxu0 0.0
  %1331 = vmatprep.subr.mxu0 0.0
  %1332 = vmatpush1.msra.mxu0 0.0
  %1333 = vmatprep.subr.mxu0 0.0
  %1334 = vmatpush1.msra.mxu0 0.0
  %1335 = vmatprep.subr.mxu0 0.0
  %1336 = vmatpush1.msra.mxu0 0.0
  %1337 = vmatprep.subr.mxu0 0.0
  %1338 = vmatpush1.msra.mxu0 0.0
  %1339 = vmatprep.subr.mxu0 0.0
  %1340 = vmatpush1.msra.mxu0 0.0
  %1341 = vmatprep.subr.mxu0 0.0
  %1342 = vmatpush1.msra.mxu0 0.0
  %1343 = vmatprep.subr.mxu0 0.0
  %1344 = vmatpush1.msra.mxu0 %v34
  %1345 = vmatprep.subr.mxu0 0.0
  %1346 = vmatpush1.msra.mxu0 %v33
  %1347 = vmatprep.subr.mxu0 0.0
  %1348 = vmatpush2.msra.mxu0 0.0
  %1349 = vmatprep.subr.mxu0 0.0
  %1350 = vmatpush2.msra.mxu0 0.0
  %1351 = vmatprep.subr.mxu0 0.0
  %1352 = vmatpush2.msra.mxu0 0.0
  %1353 = vmatprep.subr.mxu0 0.0
  %1354 = vmatpush2.msra.mxu0 0.0
  %1355 = vmatprep.subr.mxu0 0.0
  %1356 = vmatpush2.msra.mxu0 0.0
  %1357 = vmatprep.subr.mxu0 0.0
  %1358 = vmatpush2.msra.mxu0 0.0
  %1359 = vmatprep.subr.mxu0 0.0
  %1360 = vmatpush2.msra.mxu0 0.0
  %1361 = vmatprep.subr.mxu0 0.0
  %1362 = vmatpush2.msra.mxu0 0.0
  %1363 = vmatprep.subr.mxu0 0.0
  %1364 = vmatpush2.msra.mxu0 0.0
  %1365 = vmatprep.subr.mxu0 0.0
  %1366 = vmatpush2.msra.mxu0 0.0
  %1367 = vmatprep.subr.mxu0 0.0
  %1368 = vmatpush2.msra.mxu0 0.0
  %1369 = vmatprep.subr.mxu0 0.0
  %1370 = vmatpush2.msra.mxu0 0.0
  %1371 = vmatprep.subr.mxu0 0.0
  %1372 = vmatpush2.msra.mxu0 0.0
  %1373 = vmatprep.subr.mxu0 0.0
  %1374 = vmatpush2.msra.mxu0 0.0
  %1375 = vmatprep.subr.mxu0 0.0
  %1376 = vmatpush2.msra.mxu0 0.0
  %1377 = vmatprep.subr.mxu0 0.0
  %1378 = vmatpush2.msra.mxu0 0.0
  %1379 = vmatprep.mubr.f32.mxu0 0.0
  %1380 = vmatmul.mubr.f32.gmra.mxu0 %v1313
  %v1381 = vpop.f32.mrf.mxu0
  %v1382 = vadd.f32 %v47, %v1381
  %v1383 = vpop.f32.mrf.mxu0
  %1384 = vdwg.mxu0
  %v1385 = vadd.f32 %v1309, %v1382
  %v1386 = vxor.u32 %v1385, 2147483648
  %v1387 = vmul.f32 %v1386, 1.442695
  %v1388 = vpow.pop %v1387
  %v1389 = vadd.f32 %v1388, 1.0
  %v1390 = vrcp.pop %v1389
  %v1391 = vmul.f32 1.0, %v1390
  %1393 = vrot.lane.b32.xlu0 %v1382, 96
  %v1394 = vpop.permute.xlu0 %1393
  %v1396 = vmul.f32 %v1391, %v1394
  %1398 = vrot.lane.b32.xlu0 %v1396, 32
  %v1399 = vpop.permute.xlu0 %1398
  %v1401 = vadd.f32 %v1309, %v1399
  %v1402 = vtanh.pop %v1401
  %v1403 = vsub.f32 1.0, %v1391
  %1405 = vrot.lane.b32.xlu0 %v1402, 112
  %v1406 = vpop.permute.xlu0 %1405
  %v1408 = vmul.f32 %v1403, %v1406
  %v1409 = vmul.f32 %v1391, %v1307
  %v1410 = vadd.f32 %v1408, %v1409
  %v1411 = vsel %vm619, %v1410, 0.0
  %1413 = vrot.lane.b32.xlu0 %v1411, 112
  %v1414 = vpop.permute.xlu0 %1413
  %s1416 = scalar_lea.vmem %s8, 8
  %1417 = vst.msk [vmem:[%s1416] sm:$0x3] %vm161, %v1414
  %v1418 = vsel %vm619, %v1410, %v1307
  %s1419 = scalar_lea.vmem %s2, 6
  %v1420 = vld [vmem:[%s1419] sm:$0x3]
  %1422 = vrot.lane.b32.xlu0 %v1418, 112
  %v1423 = vpop.permute.xlu0 %1422
  %v1424 = vsel %vm50, %v1423, 0
  %1426 = vmatprep.subr.mxu0 0.0
  %1427 = vmatpush1.msra.mxu0 0.0
  %1428 = vmatprep.subr.mxu0 0.0
  %1429 = vmatpush1.msra.mxu0 0.0
  %1430 = vmatprep.subr.mxu0 0.0
  %1431 = vmatpush1.msra.mxu0 0.0
  %1432 = vmatprep.subr.mxu0 0.0
  %1433 = vmatpush1.msra.mxu0 0.0
  %1434 = vmatprep.subr.mxu0 0.0
  %1435 = vmatpush1.msra.mxu0 0.0
  %1436 = vmatprep.subr.mxu0 0.0
  %1437 = vmatpush1.msra.mxu0 0.0
  %1438 = vmatprep.subr.mxu0 0.0
  %1439 = vmatpush1.msra.mxu0 0.0
  %1440 = vmatprep.subr.mxu0 0.0
  %1441 = vmatpush1.msra.mxu0 0.0
  %1442 = vmatprep.subr.mxu0 0.0
  %1443 = vmatpush1.msra.mxu0 0.0
  %1444 = vmatprep.subr.mxu0 0.0
  %1445 = vmatpush1.msra.mxu0 0.0
  %1446 = vmatprep.subr.mxu0 0.0
  %1447 = vmatpush1.msra.mxu0 0.0
  %1448 = vmatprep.subr.mxu0 0.0
  %1449 = vmatpush1.msra.mxu0 0.0
  %1450 = vmatprep.subr.mxu0 0.0
  %1451 = vmatpush1.msra.mxu0 0.0
  %1452 = vmatprep.subr.mxu0 0.0
  %1453 = vmatpush1.msra.mxu0 0.0
  %1454 = vmatprep.subr.mxu0 0.0
  %1455 = vmatpush1.msra.mxu0 %v34
  %1456 = vmatprep.subr.mxu0 0.0
  %1457 = vmatpush1.msra.mxu0 %v33
  %1458 = vmatprep.subr.mxu0 0.0
  %1459 = vmatpush2.msra.mxu0 0.0
  %1460 = vmatprep.subr.mxu0 0.0
  %1461 = vmatpush2.msra.mxu0 0.0
  %1462 = vmatprep.subr.mxu0 0.0
  %1463 = vmatpush2.msra.mxu0 0.0
  %1464 = vmatprep.subr.mxu0 0.0
  %1465 = vmatpush2.msra.mxu0 0.0
  %1466 = vmatprep.subr.mxu0 0.0
  %1467 = vmatpush2.msra.mxu0 0.0
  %1468 = vmatprep.subr.mxu0 0.0
  %1469 = vmatpush2.msra.mxu0 0.0
  %1470 = vmatprep.subr.mxu0 0.0
  %1471 = vmatpush2.msra.mxu0 0.0
  %1472 = vmatprep.subr.mxu0 0.0
  %1473 = vmatpush2.msra.mxu0 0.0
  %1474 = vmatprep.subr.mxu0 0.0
  %1475 = vmatpush2.msra.mxu0 0.0
  %1476 = vmatprep.subr.mxu0 0.0
  %1477 = vmatpush2.msra.mxu0 0.0
  %1478 = vmatprep.subr.mxu0 0.0
  %1479 = vmatpush2.msra.mxu0 0.0
  %1480 = vmatprep.subr.mxu0 0.0
  %1481 = vmatpush2.msra.mxu0 0.0
  %1482 = vmatprep.subr.mxu0 0.0
  %1483 = vmatpush2.msra.mxu0 0.0
  %1484 = vmatprep.subr.mxu0 0.0
  %1485 = vmatpush2.msra.mxu0 0.0
  %1486 = vmatprep.subr.mxu0 0.0
  %1487 = vmatpush2.msra.mxu0 0.0
  %1488 = vmatprep.subr.mxu0 0.0
  %1489 = vmatpush2.msra.mxu0 0.0
  %1490 = vmatprep.mubr.f32.mxu0 0.0
  %1491 = vmatmul.mubr.f32.gmra.mxu0 %v1424
  %v1492 = vpop.f32.mrf.mxu0
  %v1493 = vadd.f32 %v47, %v1492
  %v1494 = vpop.f32.mrf.mxu0
  %1495 = vdwg.mxu0
  %v1496 = vadd.f32 %v1420, %v1493
  %v1497 = vxor.u32 %v1496, 2147483648
  %v1498 = vmul.f32 %v1497, 1.442695
  %v1499 = vpow.pop %v1498
  %v1500 = vadd.f32 %v1499, 1.0
  %v1501 = vrcp.pop %v1500
  %v1502 = vmul.f32 1.0, %v1501
  %1504 = vrot.lane.b32.xlu0 %v1493, 96
  %v1505 = vpop.permute.xlu0 %1504
  %v1507 = vmul.f32 %v1502, %v1505
  %1509 = vrot.lane.b32.xlu0 %v1507, 32
  %v1510 = vpop.permute.xlu0 %1509
  %v1512 = vadd.f32 %v1420, %v1510
  %v1513 = vtanh.pop %v1512
  %v1514 = vsub.f32 1.0, %v1502
  %1516 = vrot.lane.b32.xlu0 %v1513, 112
  %v1517 = vpop.permute.xlu0 %1516
  %v1519 = vmul.f32 %v1514, %v1517
  %v1520 = vmul.f32 %v1502, %v1418
  %v1521 = vadd.f32 %v1519, %v1520
  %v1522 = vsel %vm502, %v1521, 0.0
  %1524 = vrot.lane.b32.xlu0 %v1522, 112
  %v1525 = vpop.permute.xlu0 %1524
  %s1527 = scalar_lea.vmem %s8, 6
  %1528 = vst.msk [vmem:[%s1527] sm:$0x3] %vm161, %v1525
  %v1529 = vsel %vm502, %v1521, %v1418
  %s1530 = scalar_lea.vmem %s2, 4
  %v1531 = vld [vmem:[%s1530] sm:$0x3]
  %1533 = vrot.lane.b32.xlu0 %v1529, 112
  %v1534 = vpop.permute.xlu0 %1533
  %v1535 = vsel %vm50, %v1534, 0
  %1537 = vmatprep.subr.mxu0 0.0
  %1538 = vmatpush1.msra.mxu0 0.0
  %1539 = vmatprep.subr.mxu0 0.0
  %1540 = vmatpush1.msra.mxu0 0.0
  %1541 = vmatprep.subr.mxu0 0.0
  %1542 = vmatpush1.msra.mxu0 0.0
  %1543 = vmatprep.subr.mxu0 0.0
  %1544 = vmatpush1.msra.mxu0 0.0
  %1545 = vmatprep.subr.mxu0 0.0
  %1546 = vmatpush1.msra.mxu0 0.0
  %1547 = vmatprep.subr.mxu0 0.0
  %1548 = vmatpush1.msra.mxu0 0.0
  %1549 = vmatprep.subr.mxu0 0.0
  %1550 = vmatpush1.msra.mxu0 0.0
  %1551 = vmatprep.subr.mxu0 0.0
  %1552 = vmatpush1.msra.mxu0 0.0
  %1553 = vmatprep.subr.mxu0 0.0
  %1554 = vmatpush1.msra.mxu0 0.0
  %1555 = vmatprep.subr.mxu0 0.0
  %1556 = vmatpush1.msra.mxu0 0.0
  %1557 = vmatprep.subr.mxu0 0.0
  %1558 = vmatpush1.msra.mxu0 0.0
  %1559 = vmatprep.subr.mxu0 0.0
  %1560 = vmatpush1.msra.mxu0 0.0
  %1561 = vmatprep.subr.mxu0 0.0
  %1562 = vmatpush1.msra.mxu0 0.0
  %1563 = vmatprep.subr.mxu0 0.0
  %1564 = vmatpush1.msra.mxu0 0.0
  %1565 = vmatprep.subr.mxu0 0.0
  %1566 = vmatpush1.msra.mxu0 %v34
  %1567 = vmatprep.subr.mxu0 0.0
  %1568 = vmatpush1.msra.mxu0 %v33
  %1569 = vmatprep.subr.mxu0 0.0
  %1570 = vmatpush2.msra.mxu0 0.0
  %1571 = vmatprep.subr.mxu0 0.0
  %1572 = vmatpush2.msra.mxu0 0.0
  %1573 = vmatprep.subr.mxu0 0.0
  %1574 = vmatpush2.msra.mxu0 0.0
  %1575 = vmatprep.subr.mxu0 0.0
  %1576 = vmatpush2.msra.mxu0 0.0
  %1577 = vmatprep.subr.mxu0 0.0
  %1578 = vmatpush2.msra.mxu0 0.0
  %1579 = vmatprep.subr.mxu0 0.0
  %1580 = vmatpush2.msra.mxu0 0.0
  %1581 = vmatprep.subr.mxu0 0.0
  %1582 = vmatpush2.msra.mxu0 0.0
  %1583 = vmatprep.subr.mxu0 0.0
  %1584 = vmatpush2.msra.mxu0 0.0
  %1585 = vmatprep.subr.mxu0 0.0
  %1586 = vmatpush2.msra.mxu0 0.0
  %1587 = vmatprep.subr.mxu0 0.0
  %1588 = vmatpush2.msra.mxu0 0.0
  %1589 = vmatprep.subr.mxu0 0.0
  %1590 = vmatpush2.msra.mxu0 0.0
  %1591 = vmatprep.subr.mxu0 0.0
  %1592 = vmatpush2.msra.mxu0 0.0
  %1593 = vmatprep.subr.mxu0 0.0
  %1594 = vmatpush2.msra.mxu0 0.0
  %1595 = vmatprep.subr.mxu0 0.0
  %1596 = vmatpush2.msra.mxu0 0.0
  %1597 = vmatprep.subr.mxu0 0.0
  %1598 = vmatpush2.msra.mxu0 0.0
  %1599 = vmatprep.subr.mxu0 0.0
  %1600 = vmatpush2.msra.mxu0 0.0
  %1601 = vmatprep.mubr.f32.mxu0 0.0
  %1602 = vmatmul.mubr.f32.gmra.mxu0 %v1535
  %v1603 = vpop.f32.mrf.mxu0
  %v1604 = vadd.f32 %v47, %v1603
  %v1605 = vpop.f32.mrf.mxu0
  %1606 = vdwg.mxu0
  %v1607 = vadd.f32 %v1531, %v1604
  %v1608 = vxor.u32 %v1607, 2147483648
  %v1609 = vmul.f32 %v1608, 1.442695
  %v1610 = vpow.pop %v1609
  %v1611 = vadd.f32 %v1610, 1.0
  %v1612 = vrcp.pop %v1611
  %v1613 = vmul.f32 1.0, %v1612
  %1615 = vrot.lane.b32.xlu0 %v1604, 96
  %v1616 = vpop.permute.xlu0 %1615
  %v1618 = vmul.f32 %v1613, %v1616
  %1620 = vrot.lane.b32.xlu0 %v1618, 32
  %v1621 = vpop.permute.xlu0 %1620
  %v1623 = vadd.f32 %v1531, %v1621
  %v1624 = vtanh.pop %v1623
  %v1625 = vsub.f32 1.0, %v1613
  %1627 = vrot.lane.b32.xlu0 %v1624, 112
  %v1628 = vpop.permute.xlu0 %1627
  %v1630 = vmul.f32 %v1625, %v1628
  %v1631 = vmul.f32 %v1613, %v1529
  %v1632 = vadd.f32 %v1630, %v1631
  %v1633 = vsel %vm385, %v1632, 0.0
  %1635 = vrot.lane.b32.xlu0 %v1633, 112
  %v1636 = vpop.permute.xlu0 %1635
  %s1638 = scalar_lea.vmem %s8, 4
  %1639 = vst.msk [vmem:[%s1638] sm:$0x3] %vm161, %v1636
  %v1640 = vsel %vm385, %v1632, %v1529
  %s1641 = scalar_lea.vmem %s2, 2
  %v1642 = vld [vmem:[%s1641] sm:$0x3]
  %1644 = vrot.lane.b32.xlu0 %v1640, 112
  %v1645 = vpop.permute.xlu0 %1644
  %v1646 = vsel %vm50, %v1645, 0
  %1648 = vmatprep.subr.mxu0 0.0
  %1649 = vmatpush1.msra.mxu0 0.0
  %1650 = vmatprep.subr.mxu0 0.0
  %1651 = vmatpush1.msra.mxu0 0.0
  %1652 = vmatprep.subr.mxu0 0.0
  %1653 = vmatpush1.msra.mxu0 0.0
  %1654 = vmatprep.subr.mxu0 0.0
  %1655 = vmatpush1.msra.mxu0 0.0
  %1656 = vmatprep.subr.mxu0 0.0
  %1657 = vmatpush1.msra.mxu0 0.0
  %1658 = vmatprep.subr.mxu0 0.0
  %1659 = vmatpush1.msra.mxu0 0.0
  %1660 = vmatprep.subr.mxu0 0.0
  %1661 = vmatpush1.msra.mxu0 0.0
  %1662 = vmatprep.subr.mxu0 0.0
  %1663 = vmatpush1.msra.mxu0 0.0
  %1664 = vmatprep.subr.mxu0 0.0
  %1665 = vmatpush1.msra.mxu0 0.0
  %1666 = vmatprep.subr.mxu0 0.0
  %1667 = vmatpush1.msra.mxu0 0.0
  %1668 = vmatprep.subr.mxu0 0.0
  %1669 = vmatpush1.msra.mxu0 0.0
  %1670 = vmatprep.subr.mxu0 0.0
  %1671 = vmatpush1.msra.mxu0 0.0
  %1672 = vmatprep.subr.mxu0 0.0
  %1673 = vmatpush1.msra.mxu0 0.0
  %1674 = vmatprep.subr.mxu0 0.0
  %1675 = vmatpush1.msra.mxu0 0.0
  %1676 = vmatprep.subr.mxu0 0.0
  %1677 = vmatpush1.msra.mxu0 %v34
  %1678 = vmatprep.subr.mxu0 0.0
  %1679 = vmatpush1.msra.mxu0 %v33
  %1680 = vmatprep.subr.mxu0 0.0
  %1681 = vmatpush2.msra.mxu0 0.0
  %1682 = vmatprep.subr.mxu0 0.0
  %1683 = vmatpush2.msra.mxu0 0.0
  %1684 = vmatprep.subr.mxu0 0.0
  %1685 = vmatpush2.msra.mxu0 0.0
  %1686 = vmatprep.subr.mxu0 0.0
  %1687 = vmatpush2.msra.mxu0 0.0
  %1688 = vmatprep.subr.mxu0 0.0
  %1689 = vmatpush2.msra.mxu0 0.0
  %1690 = vmatprep.subr.mxu0 0.0
  %1691 = vmatpush2.msra.mxu0 0.0
  %1692 = vmatprep.subr.mxu0 0.0
  %1693 = vmatpush2.msra.mxu0 0.0
  %1694 = vmatprep.subr.mxu0 0.0
  %1695 = vmatpush2.msra.mxu0 0.0
  %1696 = vmatprep.subr.mxu0 0.0
  %1697 = vmatpush2.msra.mxu0 0.0
  %1698 = vmatprep.subr.mxu0 0.0
  %1699 = vmatpush2.msra.mxu0 0.0
  %1700 = vmatprep.subr.mxu0 0.0
  %1701 = vmatpush2.msra.mxu0 0.0
  %1702 = vmatprep.subr.mxu0 0.0
  %1703 = vmatpush2.msra.mxu0 0.0
  %1704 = vmatprep.subr.mxu0 0.0
  %1705 = vmatpush2.msra.mxu0 0.0
  %1706 = vmatprep.subr.mxu0 0.0
  %1707 = vmatpush2.msra.mxu0 0.0
  %1708 = vmatprep.subr.mxu0 0.0
  %1709 = vmatpush2.msra.mxu0 0.0
  %1710 = vmatprep.subr.mxu0 0.0
  %1711 = vmatpush2.msra.mxu0 0.0
  %1712 = vmatprep.mubr.f32.mxu0 0.0
  %1713 = vmatmul.mubr.f32.gmra.mxu0 %v1646
  %v1714 = vpop.f32.mrf.mxu0
  %v1715 = vadd.f32 %v47, %v1714
  %v1716 = vpop.f32.mrf.mxu0
  %1717 = vdwg.mxu0
  %v1718 = vadd.f32 %v1642, %v1715
  %v1719 = vxor.u32 %v1718, 2147483648
  %v1720 = vmul.f32 %v1719, 1.442695
  %v1721 = vpow.pop %v1720
  %v1722 = vadd.f32 %v1721, 1.0
  %v1723 = vrcp.pop %v1722
  %v1724 = vmul.f32 1.0, %v1723
  %1726 = vrot.lane.b32.xlu0 %v1715, 96
  %v1727 = vpop.permute.xlu0 %1726
  %v1729 = vmul.f32 %v1724, %v1727
  %1731 = vrot.lane.b32.xlu0 %v1729, 32
  %v1732 = vpop.permute.xlu0 %1731
  %v1734 = vadd.f32 %v1642, %v1732
  %v1735 = vtanh.pop %v1734
  %v1736 = vsub.f32 1.0, %v1724
  %1738 = vrot.lane.b32.xlu0 %v1735, 112
  %v1739 = vpop.permute.xlu0 %1738
  %v1741 = vmul.f32 %v1736, %v1739
  %v1742 = vmul.f32 %v1724, %v1640
  %v1743 = vadd.f32 %v1741, %v1742
  %v1744 = vsel %vm268, %v1743, 0.0
  %1746 = vrot.lane.b32.xlu0 %v1744, 112
  %v1747 = vpop.permute.xlu0 %1746
  %s1749 = scalar_lea.vmem %s8, 2
  %1750 = vst.msk [vmem:[%s1749] sm:$0x3] %vm161, %v1747
  %v1751 = vsel %vm268, %v1743, %v1640
  %v1752 = vld [vmem:[%s2] sm:$0x3]
  %1754 = vrot.lane.b32.xlu0 %v1751, 112
  %v1755 = vpop.permute.xlu0 %1754
  %v1756 = vsel %vm50, %v1755, 0
  %1758 = vmatprep.subr.mxu0 0.0
  %1759 = vmatpush1.msra.mxu0 0.0
  %1760 = vmatprep.subr.mxu0 0.0
  %1761 = vmatpush1.msra.mxu0 0.0
  %1762 = vmatprep.subr.mxu0 0.0
  %1763 = vmatpush1.msra.mxu0 0.0
  %1764 = vmatprep.subr.mxu0 0.0
  %1765 = vmatpush1.msra.mxu0 0.0
  %1766 = vmatprep.subr.mxu0 0.0
  %1767 = vmatpush1.msra.mxu0 0.0
  %1768 = vmatprep.subr.mxu0 0.0
  %1769 = vmatpush1.msra.mxu0 0.0
  %1770 = vmatprep.subr.mxu0 0.0
  %1771 = vmatpush1.msra.mxu0 0.0
  %1772 = vmatprep.subr.mxu0 0.0
  %1773 = vmatpush1.msra.mxu0 0.0
  %1774 = vmatprep.subr.mxu0 0.0
  %1775 = vmatpush1.msra.mxu0 0.0
  %1776 = vmatprep.subr.mxu0 0.0
  %1777 = vmatpush1.msra.mxu0 0.0
  %1778 = vmatprep.subr.mxu0 0.0
  %1779 = vmatpush1.msra.mxu0 0.0
  %1780 = vmatprep.subr.mxu0 0.0
  %1781 = vmatpush1.msra.mxu0 0.0
  %1782 = vmatprep.subr.mxu0 0.0
  %1783 = vmatpush1.msra.mxu0 0.0
  %1784 = vmatprep.subr.mxu0 0.0
  %1785 = vmatpush1.msra.mxu0 0.0
  %1786 = vmatprep.subr.mxu0 0.0
  %1787 = vmatpush1.msra.mxu0 %v34
  %1788 = vmatprep.subr.mxu0 0.0
  %1789 = vmatpush1.msra.mxu0 %v33
  %1790 = vmatprep.subr.mxu0 0.0
  %1791 = vmatpush2.msra.mxu0 0.0
  %1792 = vmatprep.subr.mxu0 0.0
  %1793 = vmatpush2.msra.mxu0 0.0
  %1794 = vmatprep.subr.mxu0 0.0
  %1795 = vmatpush2.msra.mxu0 0.0
  %1796 = vmatprep.subr.mxu0 0.0
  %1797 = vmatpush2.msra.mxu0 0.0
  %1798 = vmatprep.subr.mxu0 0.0
  %1799 = vmatpush2.msra.mxu0 0.0
  %1800 = vmatprep.subr.mxu0 0.0
  %1801 = vmatpush2.msra.mxu0 0.0
  %1802 = vmatprep.subr.mxu0 0.0
  %1803 = vmatpush2.msra.mxu0 0.0
  %1804 = vmatprep.subr.mxu0 0.0
  %1805 = vmatpush2.msra.mxu0 0.0
  %1806 = vmatprep.subr.mxu0 0.0
  %1807 = vmatpush2.msra.mxu0 0.0
  %1808 = vmatprep.subr.mxu0 0.0
  %1809 = vmatpush2.msra.mxu0 0.0
  %1810 = vmatprep.subr.mxu0 0.0
  %1811 = vmatpush2.msra.mxu0 0.0
  %1812 = vmatprep.subr.mxu0 0.0
  %1813 = vmatpush2.msra.mxu0 0.0
  %1814 = vmatprep.subr.mxu0 0.0
  %1815 = vmatpush2.msra.mxu0 0.0
  %1816 = vmatprep.subr.mxu0 0.0
  %1817 = vmatpush2.msra.mxu0 0.0
  %1818 = vmatprep.subr.mxu0 0.0
  %1819 = vmatpush2.msra.mxu0 0.0
  %1820 = vmatprep.subr.mxu0 0.0
  %1821 = vmatpush2.msra.mxu0 0.0
  %1822 = vmatprep.mubr.f32.mxu0 0.0
  %1823 = vmatmul.mubr.f32.gmra.mxu0 %v1756
  %v1824 = vpop.f32.mrf.mxu0
  %v1825 = vadd.f32 %v47, %v1824
  %v1826 = vpop.f32.mrf.mxu0
  %1827 = vdwg.mxu0
  %v1828 = vadd.f32 %v1752, %v1825
  %v1829 = vxor.u32 %v1828, 2147483648
  %v1830 = vmul.f32 %v1829, 1.442695
  %v1831 = vpow.pop %v1830
  %v1832 = vadd.f32 %v1831, 1.0
  %v1833 = vrcp.pop %v1832
  %v1834 = vmul.f32 1.0, %v1833
  %1836 = vrot.lane.b32.xlu0 %v1825, 96
  %v1837 = vpop.permute.xlu0 %1836
  %v1839 = vmul.f32 %v1834, %v1837
  %1841 = vrot.lane.b32.xlu0 %v1839, 32
  %v1842 = vpop.permute.xlu0 %1841
  %v1844 = vadd.f32 %v1752, %v1842
  %v1845 = vtanh.pop %v1844
  %v1846 = vsub.f32 1.0, %v1834
  %1848 = vrot.lane.b32.xlu0 %v1845, 112
  %v1849 = vpop.permute.xlu0 %1848
  %v1851 = vmul.f32 %v1846, %v1849
  %v1852 = vmul.f32 %v1834, %v1751
  %v1853 = vadd.f32 %v1851, %v1852
  %v1854 = vsel %vm155, %v1853, 0.0
  %1856 = vrot.lane.b32.xlu0 %v1854, 112
  %v1857 = vpop.permute.xlu0 %1856
  %1859 = vst.msk [vmem:[%s8] sm:$0x3] %vm161, %v1857
  %v1860 = vsel %vm155, %v1853, %v1751
  %1862 = vrot.lane.b32.xlu0 %v1860, 112
  %v1863 = vpop.permute.xlu0 %1862
  %1865 = vst.msk [vmem:[%s10] sm:$0x3] %vm161, %v1863
  // Predicated region
  $region30: #{attention_model_forward.6} parent=0 // pred_check
    _
  $region31: #{attention_model_forward.6} parent=0 // pred_check_branch
    %1867 = sbr.rel (0) target = $region33
  $region32: #{attention_model_forward.6} parent=0 // pred_region
    _
  $region33: #{attention_model_forward.6} parent=0 // pred_fallthru
    _
  // Predicated region
  $region34: #{attention_model_forward.6} parent=0 // pred_check
    _
  $region35: #{attention_model_forward.6} parent=0 // pred_check_branch
    %1869 = sbr.rel (0) target = $region37
  $region36: #{attention_model_forward.6} parent=0 // pred_region
    _
  $region37: #{attention_model_forward.6} parent=0 // pred_fallthru
    _
  // Predicated region
  $region38: #{attention_model_forward.6} parent=0 // pred_check
    _
  $region39: #{attention_model_forward.6} parent=0 // pred_check_branch
    %1871 = sbr.rel (0) target = $region41
  $region40: #{attention_model_forward.6} parent=0 // pred_region
    _
  $region41: #{attention_model_forward.6} parent=0 // pred_fallthru
    _
  // Predicated region
  $region42: #{attention_model_forward.6} parent=0 // pred_check
    _
  $region43: #{attention_model_forward.6} parent=0 // pred_check_branch
    %1873 = sbr.rel (0) target = $region45
  $region44: #{attention_model_forward.6} parent=0 // pred_region
    _
  $region45: #{attention_model_forward.6} parent=0 // pred_fallthru
    _
  // Predicated region
  $region46: #{attention_model_forward.6} parent=0 // pred_check
    _
  $region47: #{attention_model_forward.6} parent=0 // pred_check_branch
    %1875 = sbr.rel (0) target = $region49
  $region48: #{attention_model_forward.6} parent=0 // pred_region
    _
  $region49: #{attention_model_forward.6} parent=0 // pred_fallthru
    _
  // Predicated region
  $region50: #{attention_model_forward.6} parent=0 // pred_check
    _
  $region51: #{attention_model_forward.6} parent=0 // pred_check_branch
    %1877 = sbr.rel (0) target = $region53
  $region52: #{attention_model_forward.6} parent=0 // pred_region
    _
  $region53: #{attention_model_forward.6} parent=0 // pred_fallthru
    _
  // Predicated region
  $region54: #{attention_model_forward.6} parent=0 // pred_check
    _
  $region55: #{attention_model_forward.6} parent=0 // pred_check_branch
    %1879 = sbr.rel (0) target = $region57
  $region56: #{attention_model_forward.6} parent=0 // pred_region
    _
  $region57: #{attention_model_forward.6} parent=0 // pred_fallthru
    _
  // Predicated region
  $region58: #{attention_model_forward.6} parent=0 // pred_check
    _
  $region59: #{attention_model_forward.6} parent=0 // pred_check_branch
    %1881 = sbr.rel (0) target = $region61
  $region60: #{attention_model_forward.6} parent=0 // pred_region
    _
  $region61: #{attention_model_forward.6} parent=0 // pred_fallthru
    _

// kernel: attention_model_forward.8
$region0: #{attention_model_forward.8}
  #allocation0 [shape = 'u32[]', space=smem, size = 0x4, offset = 0x4, fixed_abs, tag = 'smem constant byte address 0x4 - core index']
  #allocation1 [shape = 'u32[144,128]{1,0:T(1,128)}', space=vmem, size = 0x12000, scoped, tag = 'internal scratch']
  %s0 = inlined_call_operand.vmem [shape: f32[6,2,96], index: 0, kind: input, shape index: {}]
  %s1 = inlined_call_operand.vmem [shape: f32[2,8,32], index: 1, kind: input, shape index: {}]
  %s2 = inlined_call_operand.vmem [shape: f32[2,32], index: 2, kind: input, shape index: {}]
  %s3 = inlined_call_operand.vmem [shape: f32[32,32], index: 3, kind: input, shape index: {}]
  %s4 = inlined_call_operand.vmem [shape: f32[1,32], index: 4, kind: input, shape index: {}]
  %s5 = inlined_call_operand.vmem [shape: f32[32,96], index: 5, kind: input, shape index: {}]
  %s6 = inlined_call_operand.vmem [shape: f32[32,96], index: 6, kind: input, shape index: {}]
  %s7 = inlined_call_operand.vmem [shape: f32[1,96], index: 7, kind: input, shape index: {}]
  %s8 = inlined_call_operand.vmem [shape: f32[6,2,32], index: 8, kind: output, shape index: {0}]
  %s9 = inlined_call_operand.vmem [shape: f32[6,2,32], index: 9, kind: output, shape index: {1}]
  %10 = xla_tuple %s8, %s9
  %s11 = sld [smem:[#allocation0]]
  $region50: #{attention_model_forward.8} parent=0
    _
  %s13 = ssub.s32 1, %s11
  %s14 = scalar_select 0, %s13, %s11
  // Predicated region
  $region2: #{attention_model_forward.8} parent=0 // pred_check
    _
  $region3: #{attention_model_forward.8} parent=0 // pred_check_branch
    %16 = sbr.rel (0) target = $region5
  $region4: #{attention_model_forward.8} parent=0 // pred_region
    _
  $region5: #{attention_model_forward.8} parent=0 // pred_fallthru
    _
  // Predicated region
  $region6: #{attention_model_forward.8} parent=0 // pred_check
    _
  $region7: #{attention_model_forward.8} parent=0 // pred_check_branch
    %18 = sbr.rel (0) target = $region9
  $region8: #{attention_model_forward.8} parent=0 // pred_region
    _
  $region9: #{attention_model_forward.8} parent=0 // pred_fallthru
    _
  // Predicated region
  $region10: #{attention_model_forward.8} parent=0 // pred_check
    _
  $region11: #{attention_model_forward.8} parent=0 // pred_check_branch
    %20 = sbr.rel (0) target = $region13
  $region12: #{attention_model_forward.8} parent=0 // pred_region
    _
  $region13: #{attention_model_forward.8} parent=0 // pred_fallthru
    _
  // Predicated region
  $region14: #{attention_model_forward.8} parent=0 // pred_check
    _
  $region15: #{attention_model_forward.8} parent=0 // pred_check_branch
    %22 = sbr.rel (0) target = $region17
  $region16: #{attention_model_forward.8} parent=0 // pred_region
    _
  $region17: #{attention_model_forward.8} parent=0 // pred_fallthru
    _
  // Predicated region
  $region18: #{attention_model_forward.8} parent=0 // pred_check
    _
  $region19: #{attention_model_forward.8} parent=0 // pred_check_branch
    %24 = sbr.rel (0) target = $region21
  $region20: #{attention_model_forward.8} parent=0 // pred_region
    _
  $region21: #{attention_model_forward.8} parent=0 // pred_fallthru
    _
  // Predicated region
  $region22: #{attention_model_forward.8} parent=0 // pred_check
    _
  $region23: #{attention_model_forward.8} parent=0 // pred_check_branch
    %26 = sbr.rel (0) target = $region25
  $region24: #{attention_model_forward.8} parent=0 // pred_region
    _
  $region25: #{attention_model_forward.8} parent=0 // pred_fallthru
    _
  // Predicated region
  $region26: #{attention_model_forward.8} parent=0 // pred_check
    _
  $region27: #{attention_model_forward.8} parent=0 // pred_check_branch
    %28 = sbr.rel (0) target = $region29
  $region28: #{attention_model_forward.8} parent=0 // pred_region
    _
  $region29: #{attention_model_forward.8} parent=0 // pred_fallthru
    _
  // Predicated region
  $region30: #{attention_model_forward.8} parent=0 // pred_check
    _
  $region31: #{attention_model_forward.8} parent=0 // pred_check_branch
    %30 = sbr.rel (0) target = $region33
  $region32: #{attention_model_forward.8} parent=0 // pred_region
    _
  $region33: #{attention_model_forward.8} parent=0 // pred_fallthru
    _
  %v31 = vld [vmem:[%s1] sm:$0xff]
  %v32 = vld [vmem:[%s1 + $0x8] sm:$0xff]
  %v33 = vld [vmem:[%s5] sm:$0xff]
  %v34 = vld [vmem:[%s5 + $0x8] sm:$0xff]
  %v35 = vld [vmem:[%s5 + $0x10] sm:$0xff]
  %v36 = vld [vmem:[%s5 + $0x18] sm:$0xff]
  %v37 = vld [vmem:[%s6] sm:$0xff]
  %v38 = vld [vmem:[%s6 + $0x8] sm:$0xff]
  %v39 = vld [vmem:[%s6 + $0x10] sm:$0xff]
  %v40 = vld [vmem:[%s6 + $0x18] sm:$0xff]
  %v41 = vld [vmem:[%s7] sm:$0x1]
  %v43 = vlaneseq
  %v44 = vshrl.u32 %v43, 7
  %v45 = vsub.s32 0, %v44
  %v46 = vrot.slane %v41, %v45
  %v48 = vld [vmem:[%s2] sm:$0x3]
  %v49 = vld [vmem:[%s3] sm:$0xff]
  %v50 = vld [vmem:[%s3 + $0x8] sm:$0xff]
  %v51 = vld [vmem:[%s3 + $0x10] sm:$0xff]
  %v52 = vld [vmem:[%s3 + $0x18] sm:$0xff]
  %v53 = vld [vmem:[%s4] sm:$0x1]
  %v55 = vlaneseq
  %v56 = vshrl.u32 %v55, 7
  %v57 = vsub.s32 0, %v56
  %v58 = vrot.slane %v53, %v57
  %vm60 = vcmask 261120
  %v62 = vsel %vm60, %v48, 0
  %64 = vmatprep.subr.mxu0 0.0
  %65 = vmatpush1.msra.mxu0 0.0
  %66 = vmatprep.subr.mxu0 0.0
  %67 = vmatpush1.msra.mxu0 0.0
  %68 = vmatprep.subr.mxu0 0.0
  %69 = vmatpush1.msra.mxu0 0.0
  %70 = vmatprep.subr.mxu0 0.0
  %71 = vmatpush1.msra.mxu0 0.0
  %72 = vmatprep.subr.mxu0 0.0
  %73 = vmatpush1.msra.mxu0 0.0
  %74 = vmatprep.subr.mxu0 0.0
  %75 = vmatpush1.msra.mxu0 0.0
  %76 = vmatprep.subr.mxu0 0.0
  %77 = vmatpush1.msra.mxu0 0.0
  %78 = vmatprep.subr.mxu0 0.0
  %79 = vmatpush1.msra.mxu0 0.0
  %80 = vmatprep.subr.mxu0 0.0
  %81 = vmatpush1.msra.mxu0 0.0
  %82 = vmatprep.subr.mxu0 0.0
  %83 = vmatpush1.msra.mxu0 0.0
  %84 = vmatprep.subr.mxu0 0.0
  %85 = vmatpush1.msra.mxu0 0.0
  %86 = vmatprep.subr.mxu0 0.0
  %87 = vmatpush1.msra.mxu0 0.0
  %88 = vmatprep.subr.mxu0 0.0
  %89 = vmatpush1.msra.mxu0 %v52
  %90 = vmatprep.subr.mxu0 0.0
  %91 = vmatpush1.msra.mxu0 %v51
  %92 = vmatprep.subr.mxu0 0.0
  %93 = vmatpush1.msra.mxu0 %v50
  %94 = vmatprep.subr.mxu0 0.0
  %95 = vmatpush1.msra.mxu0 %v49
  %96 = vmatprep.subr.mxu0 0.0
  %97 = vmatpush2.msra.mxu0 0.0
  %98 = vmatprep.subr.mxu0 0.0
  %99 = vmatpush2.msra.mxu0 0.0
  %100 = vmatprep.subr.mxu0 0.0
  %101 = vmatpush2.msra.mxu0 0.0
  %102 = vmatprep.subr.mxu0 0.0
  %103 = vmatpush2.msra.mxu0 0.0
  %104 = vmatprep.subr.mxu0 0.0
  %105 = vmatpush2.msra.mxu0 0.0
  %106 = vmatprep.subr.mxu0 0.0
  %107 = vmatpush2.msra.mxu0 0.0
  %108 = vmatprep.subr.mxu0 0.0
  %109 = vmatpush2.msra.mxu0 0.0
  %110 = vmatprep.subr.mxu0 0.0
  %111 = vmatpush2.msra.mxu0 0.0
  %112 = vmatprep.subr.mxu0 0.0
  %113 = vmatpush2.msra.mxu0 0.0
  %114 = vmatprep.subr.mxu0 0.0
  %115 = vmatpush2.msra.mxu0 0.0
  %116 = vmatprep.subr.mxu0 0.0
  %117 = vmatpush2.msra.mxu0 0.0
  %118 = vmatprep.subr.mxu0 0.0
  %119 = vmatpush2.msra.mxu0 0.0
  %120 = vmatprep.subr.mxu0 0.0
  %121 = vmatpush2.msra.mxu0 0.0
  %122 = vmatprep.subr.mxu0 0.0
  %123 = vmatpush2.msra.mxu0 0.0
  %124 = vmatprep.subr.mxu0 0.0
  %125 = vmatpush2.msra.mxu0 0.0
  %126 = vmatprep.subr.mxu0 0.0
  %127 = vmatpush2.msra.mxu0 0.0
  %128 = vmatprep.mubr.f32.mxu0 0.0
  %129 = vmatmul.mubr.f32.gmra.mxu0 %v62
  %v130 = vpop.f32.mrf.mxu0
  %v131 = vadd.f32 %v58, %v130
  %v132 = vpop.f32.mrf.mxu0
  %133 = vdwg.mxu0
  %v134 = vld [vmem:[%s0] sm:$0x3]
  %v136 = vsel %vm60, 0.0, 0
  %138 = vmatprep.subr.mxu0 0.0
  %139 = vmatpush1.msra.mxu0 0.0
  %140 = vmatprep.subr.mxu0 0.0
  %141 = vmatpush1.msra.mxu0 0.0
  %142 = vmatprep.subr.mxu0 0.0
  %143 = vmatpush1.msra.mxu0 0.0
  %144 = vmatprep.subr.mxu0 0.0
  %145 = vmatpush1.msra.mxu0 0.0
  %146 = vmatprep.subr.mxu0 0.0
  %147 = vmatpush1.msra.mxu0 0.0
  %148 = vmatprep.subr.mxu0 0.0
  %149 = vmatpush1.msra.mxu0 0.0
  %150 = vmatprep.subr.mxu0 0.0
  %151 = vmatpush1.msra.mxu0 0.0
  %152 = vmatprep.subr.mxu0 0.0
  %153 = vmatpush1.msra.mxu0 0.0
  %154 = vmatprep.subr.mxu0 0.0
  %155 = vmatpush1.msra.mxu0 0.0
  %156 = vmatprep.subr.mxu0 0.0
  %157 = vmatpush1.msra.mxu0 0.0
  %158 = vmatprep.subr.mxu0 0.0
  %159 = vmatpush1.msra.mxu0 0.0
  %160 = vmatprep.subr.mxu0 0.0
  %161 = vmatpush1.msra.mxu0 0.0
  %162 = vmatprep.subr.mxu0 0.0
  %163 = vmatpush1.msra.mxu0 %v36
  %164 = vmatprep.subr.mxu0 0.0
  %165 = vmatpush1.msra.mxu0 %v35
  %166 = vmatprep.subr.mxu0 0.0
  %167 = vmatpush1.msra.mxu0 %v34
  %168 = vmatprep.subr.mxu0 0.0
  %169 = vmatpush1.msra.mxu0 %v33
  %170 = vmatprep.subr.mxu0 0.0
  %171 = vmatpush2.msra.mxu0 0.0
  %172 = vmatprep.subr.mxu0 0.0
  %173 = vmatpush2.msra.mxu0 0.0
  %174 = vmatprep.subr.mxu0 0.0
  %175 = vmatpush2.msra.mxu0 0.0
  %176 = vmatprep.subr.mxu0 0.0
  %177 = vmatpush2.msra.mxu0 0.0
  %178 = vmatprep.subr.mxu0 0.0
  %179 = vmatpush2.msra.mxu0 0.0
  %180 = vmatprep.subr.mxu0 0.0
  %181 = vmatpush2.msra.mxu0 0.0
  %182 = vmatprep.subr.mxu0 0.0
  %183 = vmatpush2.msra.mxu0 0.0
  %184 = vmatprep.subr.mxu0 0.0
  %185 = vmatpush2.msra.mxu0 0.0
  %186 = vmatprep.subr.mxu0 0.0
  %187 = vmatpush2.msra.mxu0 0.0
  %188 = vmatprep.subr.mxu0 0.0
  %189 = vmatpush2.msra.mxu0 0.0
  %190 = vmatprep.subr.mxu0 0.0
  %191 = vmatpush2.msra.mxu0 0.0
  %192 = vmatprep.subr.mxu0 0.0
  %193 = vmatpush2.msra.mxu0 0.0
  %194 = vmatprep.subr.mxu0 0.0
  %195 = vmatpush2.msra.mxu0 0.0
  %196 = vmatprep.subr.mxu0 0.0
  %197 = vmatpush2.msra.mxu0 0.0
  %198 = vmatprep.subr.mxu0 0.0
  %199 = vmatpush2.msra.mxu0 0.0
  %200 = vmatprep.subr.mxu0 0.0
  %201 = vmatpush2.msra.mxu0 0.0
  %202 = vmatprep.mubr.f32.mxu0 0.0
  %203 = vmatmul.mubr.f32.gmra.mxu0 %v136
  %v204 = vpop.f32.mrf.mxu0
  %v205 = vadd.f32 0.0, %v204
  %v206 = vpop.f32.mrf.mxu0
  %207 = vdwg.mxu0
  %v208 = vadd.f32 %v134, %v205
  %v210 = vsel %vm60, %v131, 0
  %212 = vmatprep.subr.mxu0 0.0
  %213 = vmatpush1.msra.mxu0 0.0
  %214 = vmatprep.subr.mxu0 0.0
  %215 = vmatpush1.msra.mxu0 0.0
  %216 = vmatprep.subr.mxu0 0.0
  %217 = vmatpush1.msra.mxu0 0.0
  %218 = vmatprep.subr.mxu0 0.0
  %219 = vmatpush1.msra.mxu0 0.0
  %220 = vmatprep.subr.mxu0 0.0
  %221 = vmatpush1.msra.mxu0 0.0
  %222 = vmatprep.subr.mxu0 0.0
  %223 = vmatpush1.msra.mxu0 0.0
  %224 = vmatprep.subr.mxu0 0.0
  %225 = vmatpush1.msra.mxu0 0.0
  %226 = vmatprep.subr.mxu0 0.0
  %227 = vmatpush1.msra.mxu0 0.0
  %228 = vmatprep.subr.mxu0 0.0
  %229 = vmatpush1.msra.mxu0 0.0
  %230 = vmatprep.subr.mxu0 0.0
  %231 = vmatpush1.msra.mxu0 0.0
  %232 = vmatprep.subr.mxu0 0.0
  %233 = vmatpush1.msra.mxu0 0.0
  %234 = vmatprep.subr.mxu0 0.0
  %235 = vmatpush1.msra.mxu0 0.0
  %236 = vmatprep.subr.mxu0 0.0
  %237 = vmatpush1.msra.mxu0 %v40
  %238 = vmatprep.subr.mxu0 0.0
  %239 = vmatpush1.msra.mxu0 %v39
  %240 = vmatprep.subr.mxu0 0.0
  %241 = vmatpush1.msra.mxu0 %v38
  %242 = vmatprep.subr.mxu0 0.0
  %243 = vmatpush1.msra.mxu0 %v37
  %244 = vmatprep.subr.mxu0 0.0
  %245 = vmatpush2.msra.mxu0 0.0
  %246 = vmatprep.subr.mxu0 0.0
  %247 = vmatpush2.msra.mxu0 0.0
  %248 = vmatprep.subr.mxu0 0.0
  %249 = vmatpush2.msra.mxu0 0.0
  %250 = vmatprep.subr.mxu0 0.0
  %251 = vmatpush2.msra.mxu0 0.0
  %252 = vmatprep.subr.mxu0 0.0
  %253 = vmatpush2.msra.mxu0 0.0
  %254 = vmatprep.subr.mxu0 0.0
  %255 = vmatpush2.msra.mxu0 0.0
  %256 = vmatprep.subr.mxu0 0.0
  %257 = vmatpush2.msra.mxu0 0.0
  %258 = vmatprep.subr.mxu0 0.0
  %259 = vmatpush2.msra.mxu0 0.0
  %260 = vmatprep.subr.mxu0 0.0
  %261 = vmatpush2.msra.mxu0 0.0
  %262 = vmatprep.subr.mxu0 0.0
  %263 = vmatpush2.msra.mxu0 0.0
  %264 = vmatprep.subr.mxu0 0.0
  %265 = vmatpush2.msra.mxu0 0.0
  %266 = vmatprep.subr.mxu0 0.0
  %267 = vmatpush2.msra.mxu0 0.0
  %268 = vmatprep.subr.mxu0 0.0
  %269 = vmatpush2.msra.mxu0 0.0
  %270 = vmatprep.subr.mxu0 0.0
  %271 = vmatpush2.msra.mxu0 0.0
  %272 = vmatprep.subr.mxu0 0.0
  %273 = vmatpush2.msra.mxu0 0.0
  %274 = vmatprep.subr.mxu0 0.0
  %275 = vmatpush2.msra.mxu0 0.0
  %276 = vmatprep.mubr.f32.mxu0 0.0
  %277 = vmatmul.mubr.f32.gmra.mxu0 %v210
  %v278 = vpop.f32.mrf.mxu0
  %v279 = vadd.f32 %v46, %v278
  %v280 = vpop.f32.mrf.mxu0
  %281 = vdwg.mxu0
  %v282 = vadd.f32 %v208, %v279
  %v283 = vxor.u32 %v282, 2147483648
  %v284 = vmul.f32 %v283, 1.442695
  %v285 = vpow.pop %v284
  %v286 = vadd.f32 %v285, 1.0
  %v287 = vrcp.pop %v286
  %v288 = vmul.f32 1.0, %v287
  %290 = vrot.lane.b32.xlu0 %v279, 64
  %v291 = vpop.permute.xlu0 %290
  %v293 = vmul.f32 %v288, %v291
  %295 = vrot.lane.b32.xlu0 %v293, 64
  %v296 = vpop.permute.xlu0 %295
  %v298 = vadd.f32 %v208, %v296
  %v299 = vtanh.pop %v298
  %v300 = vsub.f32 1.0, %v288
  %302 = vrot.lane.b32.xlu0 %v299, 96
  %v303 = vpop.permute.xlu0 %302
  %v305 = vmul.f32 %v300, %v303
  %306 = vrot.lane.b32.xlu0 %v131, 32
  %v307 = vpop.permute.xlu0 %306
  %v309 = vmul.f32 %v288, %v307
  %v310 = vadd.f32 %v305, %v309
  %v313 = vunpack.c.l.s4 1966171168
  %v314 = vunpack.c.0.s8 %v313
  %v315 = vlaneseq
  %v316 = vshrl.u32 %v315, 7
  %v317 = vsub.s32 %v314, %v316
  %v318 = vrot.slane %v310, %v317
  %v319 = vcombine.high %v318, %v318
  %v321 = vunpack.c.l.s4 1966171168
  %v322 = vunpack.c.0.s8 %v321
  %v323 = vlaneseq
  %v324 = vshrl.u32 %v323, 7
  %v325 = vsub.s32 %v322, %v324
  %v326 = vrot.slane %v318, %v325
  %v328 = vunpack.c.l.s4 1966171168
  %v329 = vunpack.c.0.s8 %v328
  %v330 = vlaneseq
  %v331 = vshrl.u32 %v330, 7
  %v332 = vsub.s32 %v329, %v331
  %v333 = vrot.slane %v319, %v332
  %v334 = vlaneseq
  %v335 = vshrl.u32 %v334, 7
  %v336 = vsub.s32 0, %v335
  %v337 = vrot.slane %v326, %v336
  %338 = vrot.lane.b32.xlu0 %v337, 96
  %v339 = vpop.permute.xlu0 %338
  %v340 = vsel %vm60, %v339, 0
  %v343 = vsel %vm60, %v31, 0
  %345 = vmatprep.subr.mxu0 0.0
  %346 = vmatpush1.xpose.msra.mxu0 0.0
  %347 = vmatprep.subr.mxu0 0.0
  %348 = vmatpush1.xpose.msra.mxu0 0.0
  %349 = vmatprep.subr.mxu0 0.0
  %350 = vmatpush1.xpose.msra.mxu0 0.0
  %351 = vmatprep.subr.mxu0 0.0
  %352 = vmatpush1.xpose.msra.mxu0 0.0
  %353 = vmatprep.subr.mxu0 0.0
  %354 = vmatpush1.xpose.msra.mxu0 0.0
  %355 = vmatprep.subr.mxu0 0.0
  %356 = vmatpush1.xpose.msra.mxu0 0.0
  %357 = vmatprep.subr.mxu0 0.0
  %358 = vmatpush1.xpose.msra.mxu0 0.0
  %359 = vmatprep.subr.mxu0 0.0
  %360 = vmatpush1.xpose.msra.mxu0 0.0
  %361 = vmatprep.subr.mxu0 0.0
  %362 = vmatpush1.xpose.msra.mxu0 0.0
  %363 = vmatprep.subr.mxu0 0.0
  %364 = vmatpush1.xpose.msra.mxu0 0.0
  %365 = vmatprep.subr.mxu0 0.0
  %366 = vmatpush1.xpose.msra.mxu0 0.0
  %367 = vmatprep.subr.mxu0 0.0
  %368 = vmatpush1.xpose.msra.mxu0 0.0
  %369 = vmatprep.subr.mxu0 0.0
  %370 = vmatpush1.xpose.msra.mxu0 0.0
  %371 = vmatprep.subr.mxu0 0.0
  %372 = vmatpush1.xpose.msra.mxu0 0.0
  %373 = vmatprep.subr.mxu0 0.0
  %374 = vmatpush1.xpose.msra.mxu0 0.0
  %375 = vmatprep.subr.mxu0 0.0
  %376 = vmatpush1.xpose.msra.mxu0 %v343
  %377 = vmatprep.subr.mxu0 0.0
  %378 = vmatpush2.xpose.msra.mxu0 0.0
  %379 = vmatprep.subr.mxu0 0.0
  %380 = vmatpush2.xpose.msra.mxu0 0.0
  %381 = vmatprep.subr.mxu0 0.0
  %382 = vmatpush2.xpose.msra.mxu0 0.0
  %383 = vmatprep.subr.mxu0 0.0
  %384 = vmatpush2.xpose.msra.mxu0 0.0
  %385 = vmatprep.subr.mxu0 0.0
  %386 = vmatpush2.xpose.msra.mxu0 0.0
  %387 = vmatprep.subr.mxu0 0.0
  %388 = vmatpush2.xpose.msra.mxu0 0.0
  %389 = vmatprep.subr.mxu0 0.0
  %390 = vmatpush2.xpose.msra.mxu0 0.0
  %391 = vmatprep.subr.mxu0 0.0
  %392 = vmatpush2.xpose.msra.mxu0 0.0
  %393 = vmatprep.subr.mxu0 0.0
  %394 = vmatpush2.xpose.msra.mxu0 0.0
  %395 = vmatprep.subr.mxu0 0.0
  %396 = vmatpush2.xpose.msra.mxu0 0.0
  %397 = vmatprep.subr.mxu0 0.0
  %398 = vmatpush2.xpose.msra.mxu0 0.0
  %399 = vmatprep.subr.mxu0 0.0
  %400 = vmatpush2.xpose.msra.mxu0 0.0
  %401 = vmatprep.subr.mxu0 0.0
  %402 = vmatpush2.xpose.msra.mxu0 0.0
  %403 = vmatprep.subr.mxu0 0.0
  %404 = vmatpush2.xpose.msra.mxu0 0.0
  %405 = vmatprep.subr.mxu0 0.0
  %406 = vmatpush2.xpose.msra.mxu0 0.0
  %407 = vmatprep.subr.mxu0 0.0
  %408 = vmatpush2.xpose.msra.mxu0 0.0
  %409 = vmatprep.mubr.f32.mxu0 0.0
  %410 = vmatmul.mubr.f32.gmra.mxu0 %v340
  %v411 = vpop.f32.mrf.mxu0
  %v412 = vadd.f32 0.0, %v411
  %v413 = vpop.f32.mrf.mxu0
  %414 = vdwg.mxu0
  %v415 = vlaneseq
  %v416 = vshrl.u32 %v415, 7
  %v417 = vsub.s32 0, %v416
  %v418 = vrot.slane %v333, %v417
  %419 = vrot.lane.b32.xlu0 %v418, 96
  %v420 = vpop.permute.xlu0 %419
  %v421 = vsel %vm60, %v420, 0
  %v424 = vsel %vm60, %v32, 0
  %426 = vmatprep.subr.mxu0 0.0
  %427 = vmatpush1.xpose.msra.mxu0 0.0
  %428 = vmatprep.subr.mxu0 0.0
  %429 = vmatpush1.xpose.msra.mxu0 0.0
  %430 = vmatprep.subr.mxu0 0.0
  %431 = vmatpush1.xpose.msra.mxu0 0.0
  %432 = vmatprep.subr.mxu0 0.0
  %433 = vmatpush1.xpose.msra.mxu0 0.0
  %434 = vmatprep.subr.mxu0 0.0
  %435 = vmatpush1.xpose.msra.mxu0 0.0
  %436 = vmatprep.subr.mxu0 0.0
  %437 = vmatpush1.xpose.msra.mxu0 0.0
  %438 = vmatprep.subr.mxu0 0.0
  %439 = vmatpush1.xpose.msra.mxu0 0.0
  %440 = vmatprep.subr.mxu0 0.0
  %441 = vmatpush1.xpose.msra.mxu0 0.0
  %442 = vmatprep.subr.mxu0 0.0
  %443 = vmatpush1.xpose.msra.mxu0 0.0
  %444 = vmatprep.subr.mxu0 0.0
  %445 = vmatpush1.xpose.msra.mxu0 0.0
  %446 = vmatprep.subr.mxu0 0.0
  %447 = vmatpush1.xpose.msra.mxu0 0.0
  %448 = vmatprep.subr.mxu0 0.0
  %449 = vmatpush1.xpose.msra.mxu0 0.0
  %450 = vmatprep.subr.mxu0 0.0
  %451 = vmatpush1.xpose.msra.mxu0 0.0
  %452 = vmatprep.subr.mxu0 0.0
  %453 = vmatpush1.xpose.msra.mxu0 0.0
  %454 = vmatprep.subr.mxu0 0.0
  %455 = vmatpush1.xpose.msra.mxu0 0.0
  %456 = vmatprep.subr.mxu0 0.0
  %457 = vmatpush1.xpose.msra.mxu0 %v424
  %458 = vmatprep.subr.mxu0 0.0
  %459 = vmatpush2.xpose.msra.mxu0 0.0
  %460 = vmatprep.subr.mxu0 0.0
  %461 = vmatpush2.xpose.msra.mxu0 0.0
  %462 = vmatprep.subr.mxu0 0.0
  %463 = vmatpush2.xpose.msra.mxu0 0.0
  %464 = vmatprep.subr.mxu0 0.0
  %465 = vmatpush2.xpose.msra.mxu0 0.0
  %466 = vmatprep.subr.mxu0 0.0
  %467 = vmatpush2.xpose.msra.mxu0 0.0
  %468 = vmatprep.subr.mxu0 0.0
  %469 = vmatpush2.xpose.msra.mxu0 0.0
  %470 = vmatprep.subr.mxu0 0.0
  %471 = vmatpush2.xpose.msra.mxu0 0.0
  %472 = vmatprep.subr.mxu0 0.0
  %473 = vmatpush2.xpose.msra.mxu0 0.0
  %474 = vmatprep.subr.mxu0 0.0
  %475 = vmatpush2.xpose.msra.mxu0 0.0
  %476 = vmatprep.subr.mxu0 0.0
  %477 = vmatpush2.xpose.msra.mxu0 0.0
  %478 = vmatprep.subr.mxu0 0.0
  %479 = vmatpush2.xpose.msra.mxu0 0.0
  %480 = vmatprep.subr.mxu0 0.0
  %481 = vmatpush2.xpose.msra.mxu0 0.0
  %482 = vmatprep.subr.mxu0 0.0
  %483 = vmatpush2.xpose.msra.mxu0 0.0
  %484 = vmatprep.subr.mxu0 0.0
  %485 = vmatpush2.xpose.msra.mxu0 0.0
  %486 = vmatprep.subr.mxu0 0.0
  %487 = vmatpush2.xpose.msra.mxu0 0.0
  %488 = vmatprep.subr.mxu0 0.0
  %489 = vmatpush2.xpose.msra.mxu0 0.0
  %490 = vmatprep.mubr.f32.mxu0 0.0
  %491 = vmatmul.mubr.f32.gmra.mxu0 %v421
  %v492 = vpop.f32.mrf.mxu0
  %v493 = vadd.f32 0.0, %v492
  %v494 = vpop.f32.mrf.mxu0
  %495 = vdwg.mxu0
  %vm496 = vcmask 57344
  %v497 = vsel %vm496, %v412, -inf
  %498 = vmax.xlane.f32.xlu0 %v497
  %v499 = vpop.xlane.xlu0 %498
  %v500 = vsel %vm496, %v493, -inf
  %501 = vmax.xlane.f32.xlu0 %v500
  %v502 = vpop.xlane.xlu0 %501
  %v503 = vsub.f32 %v412, %v499
  %v504 = vsub.f32 %v493, %v502
  %v505 = vmul.f32 %v503, 1.442695
  %v506 = vpow.pop %v505
  %v507 = vmul.f32 %v504, 1.442695
  %v508 = vpow.pop %v507
  %v509 = vsel %vm496, %v506, 0.0
  %510 = vadd.xlane.f32.xlu0 %v509
  %v511 = vpop.xlane.xlu0 %510
  %v512 = vsel %vm496, %v508, 0.0
  %513 = vadd.xlane.f32.xlu0 %v512
  %v514 = vpop.xlane.xlu0 %513
  %v515 = vrcp.pop %v511
  %v516 = vrcp.pop %v514
  %v517 = vmul.f32 %v506, %v515
  %v518 = vmul.f32 %v508, %v516
  %vm519 = vcmask 64512
  %v521 = vsel %vm519, %v517, 0
  %523 = vmatprep.subr.mxu0 0.0
  %524 = vmatpush1.msra.mxu0 0.0
  %525 = vmatprep.subr.mxu0 0.0
  %526 = vmatpush1.msra.mxu0 0.0
  %527 = vmatprep.subr.mxu0 0.0
  %528 = vmatpush1.msra.mxu0 0.0
  %529 = vmatprep.subr.mxu0 0.0
  %530 = vmatpush1.msra.mxu0 0.0
  %531 = vmatprep.subr.mxu0 0.0
  %532 = vmatpush1.msra.mxu0 0.0
  %533 = vmatprep.subr.mxu0 0.0
  %534 = vmatpush1.msra.mxu0 0.0
  %535 = vmatprep.subr.mxu0 0.0
  %536 = vmatpush1.msra.mxu0 0.0
  %537 = vmatprep.subr.mxu0 0.0
  %538 = vmatpush1.msra.mxu0 0.0
  %539 = vmatprep.subr.mxu0 0.0
  %540 = vmatpush1.msra.mxu0 0.0
  %541 = vmatprep.subr.mxu0 0.0
  %542 = vmatpush1.msra.mxu0 0.0
  %543 = vmatprep.subr.mxu0 0.0
  %544 = vmatpush1.msra.mxu0 0.0
  %545 = vmatprep.subr.mxu0 0.0
  %546 = vmatpush1.msra.mxu0 0.0
  %547 = vmatprep.subr.mxu0 0.0
  %548 = vmatpush1.msra.mxu0 0.0
  %549 = vmatprep.subr.mxu0 0.0
  %550 = vmatpush1.msra.mxu0 0.0
  %551 = vmatprep.subr.mxu0 0.0
  %552 = vmatpush1.msra.mxu0 0.0
  %553 = vmatprep.subr.mxu0 0.0
  %554 = vmatpush1.msra.mxu0 %v31
  %555 = vmatprep.subr.mxu0 0.0
  %556 = vmatpush2.msra.mxu0 0.0
  %557 = vmatprep.subr.mxu0 0.0
  %558 = vmatpush2.msra.mxu0 0.0
  %559 = vmatprep.subr.mxu0 0.0
  %560 = vmatpush2.msra.mxu0 0.0
  %561 = vmatprep.subr.mxu0 0.0
  %562 = vmatpush2.msra.mxu0 0.0
  %563 = vmatprep.subr.mxu0 0.0
  %564 = vmatpush2.msra.mxu0 0.0
  %565 = vmatprep.subr.mxu0 0.0
  %566 = vmatpush2.msra.mxu0 0.0
  %567 = vmatprep.subr.mxu0 0.0
  %568 = vmatpush2.msra.mxu0 0.0
  %569 = vmatprep.subr.mxu0 0.0
  %570 = vmatpush2.msra.mxu0 0.0
  %571 = vmatprep.subr.mxu0 0.0
  %572 = vmatpush2.msra.mxu0 0.0
  %573 = vmatprep.subr.mxu0 0.0
  %574 = vmatpush2.msra.mxu0 0.0
  %575 = vmatprep.subr.mxu0 0.0
  %576 = vmatpush2.msra.mxu0 0.0
  %577 = vmatprep.subr.mxu0 0.0
  %578 = vmatpush2.msra.mxu0 0.0
  %579 = vmatprep.subr.mxu0 0.0
  %580 = vmatpush2.msra.mxu0 0.0
  %581 = vmatprep.subr.mxu0 0.0
  %582 = vmatpush2.msra.mxu0 0.0
  %583 = vmatprep.subr.mxu0 0.0
  %584 = vmatpush2.msra.mxu0 0.0
  %585 = vmatprep.subr.mxu0 0.0
  %586 = vmatpush2.msra.mxu0 0.0
  %587 = vmatprep.mubr.f32.mxu0 0.0
  %588 = vmatmul.mubr.f32.gmra.mxu0 %v521
  %v589 = vpop.f32.mrf.mxu0
  %v590 = vadd.f32 0.0, %v589
  %v591 = vpop.f32.mrf.mxu0
  %592 = vdwg.mxu0
  %v594 = vsel %vm519, %v518, 0
  %596 = vmatprep.subr.mxu0 0.0
  %597 = vmatpush1.msra.mxu0 0.0
  %598 = vmatprep.subr.mxu0 0.0
  %599 = vmatpush1.msra.mxu0 0.0
  %600 = vmatprep.subr.mxu0 0.0
  %601 = vmatpush1.msra.mxu0 0.0
  %602 = vmatprep.subr.mxu0 0.0
  %603 = vmatpush1.msra.mxu0 0.0
  %604 = vmatprep.subr.mxu0 0.0
  %605 = vmatpush1.msra.mxu0 0.0
  %606 = vmatprep.subr.mxu0 0.0
  %607 = vmatpush1.msra.mxu0 0.0
  %608 = vmatprep.subr.mxu0 0.0
  %609 = vmatpush1.msra.mxu0 0.0
  %610 = vmatprep.subr.mxu0 0.0
  %611 = vmatpush1.msra.mxu0 0.0
  %612 = vmatprep.subr.mxu0 0.0
  %613 = vmatpush1.msra.mxu0 0.0
  %614 = vmatprep.subr.mxu0 0.0
  %615 = vmatpush1.msra.mxu0 0.0
  %616 = vmatprep.subr.mxu0 0.0
  %617 = vmatpush1.msra.mxu0 0.0
  %618 = vmatprep.subr.mxu0 0.0
  %619 = vmatpush1.msra.mxu0 0.0
  %620 = vmatprep.subr.mxu0 0.0
  %621 = vmatpush1.msra.mxu0 0.0
  %622 = vmatprep.subr.mxu0 0.0
  %623 = vmatpush1.msra.mxu0 0.0
  %624 = vmatprep.subr.mxu0 0.0
  %625 = vmatpush1.msra.mxu0 0.0
  %626 = vmatprep.subr.mxu0 0.0
  %627 = vmatpush1.msra.mxu0 %v32
  %628 = vmatprep.subr.mxu0 0.0
  %629 = vmatpush2.msra.mxu0 0.0
  %630 = vmatprep.subr.mxu0 0.0
  %631 = vmatpush2.msra.mxu0 0.0
  %632 = vmatprep.subr.mxu0 0.0
  %633 = vmatpush2.msra.mxu0 0.0
  %634 = vmatprep.subr.mxu0 0.0
  %635 = vmatpush2.msra.mxu0 0.0
  %636 = vmatprep.subr.mxu0 0.0
  %637 = vmatpush2.msra.mxu0 0.0
  %638 = vmatprep.subr.mxu0 0.0
  %639 = vmatpush2.msra.mxu0 0.0
  %640 = vmatprep.subr.mxu0 0.0
  %641 = vmatpush2.msra.mxu0 0.0
  %642 = vmatprep.subr.mxu0 0.0
  %643 = vmatpush2.msra.mxu0 0.0
  %644 = vmatprep.subr.mxu0 0.0
  %645 = vmatpush2.msra.mxu0 0.0
  %646 = vmatprep.subr.mxu0 0.0
  %647 = vmatpush2.msra.mxu0 0.0
  %648 = vmatprep.subr.mxu0 0.0
  %649 = vmatpush2.msra.mxu0 0.0
  %650 = vmatprep.subr.mxu0 0.0
  %651 = vmatpush2.msra.mxu0 0.0
  %652 = vmatprep.subr.mxu0 0.0
  %653 = vmatpush2.msra.mxu0 0.0
  %654 = vmatprep.subr.mxu0 0.0
  %655 = vmatpush2.msra.mxu0 0.0
  %656 = vmatprep.subr.mxu0 0.0
  %657 = vmatpush2.msra.mxu0 0.0
  %658 = vmatprep.subr.mxu0 0.0
  %659 = vmatpush2.msra.mxu0 0.0
  %660 = vmatprep.mubr.f32.mxu0 0.0
  %661 = vmatmul.mubr.f32.gmra.mxu0 %v594
  %v662 = vpop.f32.mrf.mxu0
  %v663 = vadd.f32 0.0, %v662
  %v664 = vpop.f32.mrf.mxu0
  %665 = vdwg.mxu0
  %v666 = vadd.f32 %v590, 0.0
  %v667 = vadd.f32 %v663, 0.0
  %668 = vrot.lane.b32.xlu0 %v310, 96
  %v669 = vpop.permute.xlu0 %668
  %vm671 = vcmask 254976
  %672 = vst.msk [vmem:[%s8] sm:$0x3] %vm671, %v669
  %v675 = vrot.slane %v667, 7
  %vm676 = vcmask 1041409
  %v677 = vsel %vm676, %v675, %v666
  %679 = vst.msk [vmem:[%s9] sm:$0x3] %vm671, %v677
  %s680 = scalar_lea.vmem %s0, 2
  %v681 = vld [vmem:[%s680] sm:$0x3]
  %v682 = vsel %vm60, %v677, 0
  %684 = vmatprep.subr.mxu0 0.0
  %685 = vmatpush1.msra.mxu0 0.0
  %686 = vmatprep.subr.mxu0 0.0
  %687 = vmatpush1.msra.mxu0 0.0
  %688 = vmatprep.subr.mxu0 0.0
  %689 = vmatpush1.msra.mxu0 0.0
  %690 = vmatprep.subr.mxu0 0.0
  %691 = vmatpush1.msra.mxu0 0.0
  %692 = vmatprep.subr.mxu0 0.0
  %693 = vmatpush1.msra.mxu0 0.0
  %694 = vmatprep.subr.mxu0 0.0
  %695 = vmatpush1.msra.mxu0 0.0
  %696 = vmatprep.subr.mxu0 0.0
  %697 = vmatpush1.msra.mxu0 0.0
  %698 = vmatprep.subr.mxu0 0.0
  %699 = vmatpush1.msra.mxu0 0.0
  %700 = vmatprep.subr.mxu0 0.0
  %701 = vmatpush1.msra.mxu0 0.0
  %702 = vmatprep.subr.mxu0 0.0
  %703 = vmatpush1.msra.mxu0 0.0
  %704 = vmatprep.subr.mxu0 0.0
  %705 = vmatpush1.msra.mxu0 0.0
  %706 = vmatprep.subr.mxu0 0.0
  %707 = vmatpush1.msra.mxu0 0.0
  %708 = vmatprep.subr.mxu0 0.0
  %709 = vmatpush1.msra.mxu0 %v36
  %710 = vmatprep.subr.mxu0 0.0
  %711 = vmatpush1.msra.mxu0 %v35
  %712 = vmatprep.subr.mxu0 0.0
  %713 = vmatpush1.msra.mxu0 %v34
  %714 = vmatprep.subr.mxu0 0.0
  %715 = vmatpush1.msra.mxu0 %v33
  %716 = vmatprep.subr.mxu0 0.0
  %717 = vmatpush2.msra.mxu0 0.0
  %718 = vmatprep.subr.mxu0 0.0
  %719 = vmatpush2.msra.mxu0 0.0
  %720 = vmatprep.subr.mxu0 0.0
  %721 = vmatpush2.msra.mxu0 0.0
  %722 = vmatprep.subr.mxu0 0.0
  %723 = vmatpush2.msra.mxu0 0.0
  %724 = vmatprep.subr.mxu0 0.0
  %725 = vmatpush2.msra.mxu0 0.0
  %726 = vmatprep.subr.mxu0 0.0
  %727 = vmatpush2.msra.mxu0 0.0
  %728 = vmatprep.subr.mxu0 0.0
  %729 = vmatpush2.msra.mxu0 0.0
  %730 = vmatprep.subr.mxu0 0.0
  %731 = vmatpush2.msra.mxu0 0.0
  %732 = vmatprep.subr.mxu0 0.0
  %733 = vmatpush2.msra.mxu0 0.0
  %734 = vmatprep.subr.mxu0 0.0
  %735 = vmatpush2.msra.mxu0 0.0
  %736 = vmatprep.subr.mxu0 0.0
  %737 = vmatpush2.msra.mxu0 0.0
  %738 = vmatprep.subr.mxu0 0.0
  %739 = vmatpush2.msra.mxu0 0.0
  %740 = vmatprep.subr.mxu0 0.0
  %741 = vmatpush2.msra.mxu0 0.0
  %742 = vmatprep.subr.mxu0 0.0
  %743 = vmatpush2.msra.mxu0 0.0
  %744 = vmatprep.subr.mxu0 0.0
  %745 = vmatpush2.msra.mxu0 0.0
  %746 = vmatprep.subr.mxu0 0.0
  %747 = vmatpush2.msra.mxu0 0.0
  %748 = vmatprep.mubr.f32.mxu0 0.0
  %749 = vmatmul.mubr.f32.gmra.mxu0 %v682
  %v750 = vpop.f32.mrf.mxu0
  %v751 = vadd.f32 0.0, %v750
  %v752 = vpop.f32.mrf.mxu0
  %753 = vdwg.mxu0
  %v754 = vadd.f32 %v681, %v751
  %v755 = vsel %vm60, %v669, 0
  %757 = vmatprep.subr.mxu0 0.0
  %758 = vmatpush1.msra.mxu0 0.0
  %759 = vmatprep.subr.mxu0 0.0
  %760 = vmatpush1.msra.mxu0 0.0
  %761 = vmatprep.subr.mxu0 0.0
  %762 = vmatpush1.msra.mxu0 0.0
  %763 = vmatprep.subr.mxu0 0.0
  %764 = vmatpush1.msra.mxu0 0.0
  %765 = vmatprep.subr.mxu0 0.0
  %766 = vmatpush1.msra.mxu0 0.0
  %767 = vmatprep.subr.mxu0 0.0
  %768 = vmatpush1.msra.mxu0 0.0
  %769 = vmatprep.subr.mxu0 0.0
  %770 = vmatpush1.msra.mxu0 0.0
  %771 = vmatprep.subr.mxu0 0.0
  %772 = vmatpush1.msra.mxu0 0.0
  %773 = vmatprep.subr.mxu0 0.0
  %774 = vmatpush1.msra.mxu0 0.0
  %775 = vmatprep.subr.mxu0 0.0
  %776 = vmatpush1.msra.mxu0 0.0
  %777 = vmatprep.subr.mxu0 0.0
  %778 = vmatpush1.msra.mxu0 0.0
  %779 = vmatprep.subr.mxu0 0.0
  %780 = vmatpush1.msra.mxu0 0.0
  %781 = vmatprep.subr.mxu0 0.0
  %782 = vmatpush1.msra.mxu0 %v40
  %783 = vmatprep.subr.mxu0 0.0
  %784 = vmatpush1.msra.mxu0 %v39
  %785 = vmatprep.subr.mxu0 0.0
  %786 = vmatpush1.msra.mxu0 %v38
  %787 = vmatprep.subr.mxu0 0.0
  %788 = vmatpush1.msra.mxu0 %v37
  %789 = vmatprep.subr.mxu0 0.0
  %790 = vmatpush2.msra.mxu0 0.0
  %791 = vmatprep.subr.mxu0 0.0
  %792 = vmatpush2.msra.mxu0 0.0
  %793 = vmatprep.subr.mxu0 0.0
  %794 = vmatpush2.msra.mxu0 0.0
  %795 = vmatprep.subr.mxu0 0.0
  %796 = vmatpush2.msra.mxu0 0.0
  %797 = vmatprep.subr.mxu0 0.0
  %798 = vmatpush2.msra.mxu0 0.0
  %799 = vmatprep.subr.mxu0 0.0
  %800 = vmatpush2.msra.mxu0 0.0
  %801 = vmatprep.subr.mxu0 0.0
  %802 = vmatpush2.msra.mxu0 0.0
  %803 = vmatprep.subr.mxu0 0.0
  %804 = vmatpush2.msra.mxu0 0.0
  %805 = vmatprep.subr.mxu0 0.0
  %806 = vmatpush2.msra.mxu0 0.0
  %807 = vmatprep.subr.mxu0 0.0
  %808 = vmatpush2.msra.mxu0 0.0
  %809 = vmatprep.subr.mxu0 0.0
  %810 = vmatpush2.msra.mxu0 0.0
  %811 = vmatprep.subr.mxu0 0.0
  %812 = vmatpush2.msra.mxu0 0.0
  %813 = vmatprep.subr.mxu0 0.0
  %814 = vmatpush2.msra.mxu0 0.0
  %815 = vmatprep.subr.mxu0 0.0
  %816 = vmatpush2.msra.mxu0 0.0
  %817 = vmatprep.subr.mxu0 0.0
  %818 = vmatpush2.msra.mxu0 0.0
  %819 = vmatprep.subr.mxu0 0.0
  %820 = vmatpush2.msra.mxu0 0.0
  %821 = vmatprep.mubr.f32.mxu0 0.0
  %822 = vmatmul.mubr.f32.gmra.mxu0 %v755
  %v823 = vpop.f32.mrf.mxu0
  %v824 = vadd.f32 %v46, %v823
  %v825 = vpop.f32.mrf.mxu0
  %826 = vdwg.mxu0
  %v827 = vadd.f32 %v754, %v824
  %v828 = vxor.u32 %v827, 2147483648
  %v829 = vmul.f32 %v828, 1.442695
  %v830 = vpow.pop %v829
  %v831 = vadd.f32 %v830, 1.0
  %v832 = vrcp.pop %v831
  %v833 = vmul.f32 1.0, %v832
  %835 = vrot.lane.b32.xlu0 %v824, 64
  %v836 = vpop.permute.xlu0 %835
  %v838 = vmul.f32 %v833, %v836
  %840 = vrot.lane.b32.xlu0 %v838, 64
  %v841 = vpop.permute.xlu0 %840
  %v843 = vadd.f32 %v754, %v841
  %v844 = vtanh.pop %v843
  %v845 = vsub.f32 1.0, %v833
  %847 = vrot.lane.b32.xlu0 %v844, 96
  %v848 = vpop.permute.xlu0 %847
  %v850 = vmul.f32 %v845, %v848
  %v851 = vmul.f32 %v833, %v310
  %v852 = vadd.f32 %v850, %v851
  %v855 = vunpack.c.l.s4 1966171168
  %v856 = vunpack.c.0.s8 %v855
  %v857 = vlaneseq
  %v858 = vshrl.u32 %v857, 7
  %v859 = vsub.s32 %v856, %v858
  %v860 = vrot.slane %v852, %v859
  %v861 = vcombine.high %v860, %v860
  %v863 = vunpack.c.l.s4 1966171168
  %v864 = vunpack.c.0.s8 %v863
  %v865 = vlaneseq
  %v866 = vshrl.u32 %v865, 7
  %v867 = vsub.s32 %v864, %v866
  %v868 = vrot.slane %v860, %v867
  %v870 = vunpack.c.l.s4 1966171168
  %v871 = vunpack.c.0.s8 %v870
  %v872 = vlaneseq
  %v873 = vshrl.u32 %v872, 7
  %v874 = vsub.s32 %v871, %v873
  %v875 = vrot.slane %v861, %v874
  %v876 = vlaneseq
  %v877 = vshrl.u32 %v876, 7
  %v878 = vsub.s32 0, %v877
  %v879 = vrot.slane %v868, %v878
  %880 = vrot.lane.b32.xlu0 %v879, 96
  %v881 = vpop.permute.xlu0 %880
  %v882 = vsel %vm60, %v881, 0
  %884 = vmatprep.subr.mxu0 0.0
  %885 = vmatpush1.xpose.msra.mxu0 0.0
  %886 = vmatprep.subr.mxu0 0.0
  %887 = vmatpush1.xpose.msra.mxu0 0.0
  %888 = vmatprep.subr.mxu0 0.0
  %889 = vmatpush1.xpose.msra.mxu0 0.0
  %890 = vmatprep.subr.mxu0 0.0
  %891 = vmatpush1.xpose.msra.mxu0 0.0
  %892 = vmatprep.subr.mxu0 0.0
  %893 = vmatpush1.xpose.msra.mxu0 0.0
  %894 = vmatprep.subr.mxu0 0.0
  %895 = vmatpush1.xpose.msra.mxu0 0.0
  %896 = vmatprep.subr.mxu0 0.0
  %897 = vmatpush1.xpose.msra.mxu0 0.0
  %898 = vmatprep.subr.mxu0 0.0
  %899 = vmatpush1.xpose.msra.mxu0 0.0
  %900 = vmatprep.subr.mxu0 0.0
  %901 = vmatpush1.xpose.msra.mxu0 0.0
  %902 = vmatprep.subr.mxu0 0.0
  %903 = vmatpush1.xpose.msra.mxu0 0.0
  %904 = vmatprep.subr.mxu0 0.0
  %905 = vmatpush1.xpose.msra.mxu0 0.0
  %906 = vmatprep.subr.mxu0 0.0
  %907 = vmatpush1.xpose.msra.mxu0 0.0
  %908 = vmatprep.subr.mxu0 0.0
  %909 = vmatpush1.xpose.msra.mxu0 0.0
  %910 = vmatprep.subr.mxu0 0.0
  %911 = vmatpush1.xpose.msra.mxu0 0.0
  %912 = vmatprep.subr.mxu0 0.0
  %913 = vmatpush1.xpose.msra.mxu0 0.0
  %914 = vmatprep.subr.mxu0 0.0
  %915 = vmatpush1.xpose.msra.mxu0 %v343
  %916 = vmatprep.subr.mxu0 0.0
  %917 = vmatpush2.xpose.msra.mxu0 0.0
  %918 = vmatprep.subr.mxu0 0.0
  %919 = vmatpush2.xpose.msra.mxu0 0.0
  %920 = vmatprep.subr.mxu0 0.0
  %921 = vmatpush2.xpose.msra.mxu0 0.0
  %922 = vmatprep.subr.mxu0 0.0
  %923 = vmatpush2.xpose.msra.mxu0 0.0
  %924 = vmatprep.subr.mxu0 0.0
  %925 = vmatpush2.xpose.msra.mxu0 0.0
  %926 = vmatprep.subr.mxu0 0.0
  %927 = vmatpush2.xpose.msra.mxu0 0.0
  %928 = vmatprep.subr.mxu0 0.0
  %929 = vmatpush2.xpose.msra.mxu0 0.0
  %930 = vmatprep.subr.mxu0 0.0
  %931 = vmatpush2.xpose.msra.mxu0 0.0
  %932 = vmatprep.subr.mxu0 0.0
  %933 = vmatpush2.xpose.msra.mxu0 0.0
  %934 = vmatprep.subr.mxu0 0.0
  %935 = vmatpush2.xpose.msra.mxu0 0.0
  %936 = vmatprep.subr.mxu0 0.0
  %937 = vmatpush2.xpose.msra.mxu0 0.0
  %938 = vmatprep.subr.mxu0 0.0
  %939 = vmatpush2.xpose.msra.mxu0 0.0
  %940 = vmatprep.subr.mxu0 0.0
  %941 = vmatpush2.xpose.msra.mxu0 0.0
  %942 = vmatprep.subr.mxu0 0.0
  %943 = vmatpush2.xpose.msra.mxu0 0.0
  %944 = vmatprep.subr.mxu0 0.0
  %945 = vmatpush2.xpose.msra.mxu0 0.0
  %946 = vmatprep.subr.mxu0 0.0
  %947 = vmatpush2.xpose.msra.mxu0 0.0
  %948 = vmatprep.mubr.f32.mxu0 0.0
  %949 = vmatmul.mubr.f32.gmra.mxu0 %v882
  %v950 = vpop.f32.mrf.mxu0
  %v951 = vadd.f32 0.0, %v950
  %v952 = vpop.f32.mrf.mxu0
  %953 = vdwg.mxu0
  %v954 = vlaneseq
  %v955 = vshrl.u32 %v954, 7
  %v956 = vsub.s32 0, %v955
  %v957 = vrot.slane %v875, %v956
  %958 = vrot.lane.b32.xlu0 %v957, 96
  %v959 = vpop.permute.xlu0 %958
  %v960 = vsel %vm60, %v959, 0
  %962 = vmatprep.subr.mxu0 0.0
  %963 = vmatpush1.xpose.msra.mxu0 0.0
  %964 = vmatprep.subr.mxu0 0.0
  %965 = vmatpush1.xpose.msra.mxu0 0.0
  %966 = vmatprep.subr.mxu0 0.0
  %967 = vmatpush1.xpose.msra.mxu0 0.0
  %968 = vmatprep.subr.mxu0 0.0
  %969 = vmatpush1.xpose.msra.mxu0 0.0
  %970 = vmatprep.subr.mxu0 0.0
  %971 = vmatpush1.xpose.msra.mxu0 0.0
  %972 = vmatprep.subr.mxu0 0.0
  %973 = vmatpush1.xpose.msra.mxu0 0.0
  %974 = vmatprep.subr.mxu0 0.0
  %975 = vmatpush1.xpose.msra.mxu0 0.0
  %976 = vmatprep.subr.mxu0 0.0
  %977 = vmatpush1.xpose.msra.mxu0 0.0
  %978 = vmatprep.subr.mxu0 0.0
  %979 = vmatpush1.xpose.msra.mxu0 0.0
  %980 = vmatprep.subr.mxu0 0.0
  %981 = vmatpush1.xpose.msra.mxu0 0.0
  %982 = vmatprep.subr.mxu0 0.0
  %983 = vmatpush1.xpose.msra.mxu0 0.0
  %984 = vmatprep.subr.mxu0 0.0
  %985 = vmatpush1.xpose.msra.mxu0 0.0
  %986 = vmatprep.subr.mxu0 0.0
  %987 = vmatpush1.xpose.msra.mxu0 0.0
  %988 = vmatprep.subr.mxu0 0.0
  %989 = vmatpush1.xpose.msra.mxu0 0.0
  %990 = vmatprep.subr.mxu0 0.0
  %991 = vmatpush1.xpose.msra.mxu0 0.0
  %992 = vmatprep.subr.mxu0 0.0
  %993 = vmatpush1.xpose.msra.mxu0 %v424
  %994 = vmatprep.subr.mxu0 0.0
  %995 = vmatpush2.xpose.msra.mxu0 0.0
  %996 = vmatprep.subr.mxu0 0.0
  %997 = vmatpush2.xpose.msra.mxu0 0.0
  %998 = vmatprep.subr.mxu0 0.0
  %999 = vmatpush2.xpose.msra.mxu0 0.0
  %1000 = vmatprep.subr.mxu0 0.0
  %1001 = vmatpush2.xpose.msra.mxu0 0.0
  %1002 = vmatprep.subr.mxu0 0.0
  %1003 = vmatpush2.xpose.msra.mxu0 0.0
  %1004 = vmatprep.subr.mxu0 0.0
  %1005 = vmatpush2.xpose.msra.mxu0 0.0
  %1006 = vmatprep.subr.mxu0 0.0
  %1007 = vmatpush2.xpose.msra.mxu0 0.0
  %1008 = vmatprep.subr.mxu0 0.0
  %1009 = vmatpush2.xpose.msra.mxu0 0.0
  %1010 = vmatprep.subr.mxu0 0.0
  %1011 = vmatpush2.xpose.msra.mxu0 0.0
  %1012 = vmatprep.subr.mxu0 0.0
  %1013 = vmatpush2.xpose.msra.mxu0 0.0
  %1014 = vmatprep.subr.mxu0 0.0
  %1015 = vmatpush2.xpose.msra.mxu0 0.0
  %1016 = vmatprep.subr.mxu0 0.0
  %1017 = vmatpush2.xpose.msra.mxu0 0.0
  %1018 = vmatprep.subr.mxu0 0.0
  %1019 = vmatpush2.xpose.msra.mxu0 0.0
  %1020 = vmatprep.subr.mxu0 0.0
  %1021 = vmatpush2.xpose.msra.mxu0 0.0
  %1022 = vmatprep.subr.mxu0 0.0
  %1023 = vmatpush2.xpose.msra.mxu0 0.0
  %1024 = vmatprep.subr.mxu0 0.0
  %1025 = vmatpush2.xpose.msra.mxu0 0.0
  %1026 = vmatprep.mubr.f32.mxu0 0.0
  %1027 = vmatmul.mubr.f32.gmra.mxu0 %v960
  %v1028 = vpop.f32.mrf.mxu0
  %v1029 = vadd.f32 0.0, %v1028
  %v1030 = vpop.f32.mrf.mxu0
  %1031 = vdwg.mxu0
  %v1032 = vsel %vm496, %v951, -inf
  %1033 = vmax.xlane.f32.xlu0 %v1032
  %v1034 = vpop.xlane.xlu0 %1033
  %v1035 = vsel %vm496, %v1029, -inf
  %1036 = vmax.xlane.f32.xlu0 %v1035
  %v1037 = vpop.xlane.xlu0 %1036
  %v1038 = vsub.f32 %v951, %v1034
  %v1039 = vsub.f32 %v1029, %v1037
  %v1040 = vmul.f32 %v1038, 1.442695
  %v1041 = vpow.pop %v1040
  %v1042 = vmul.f32 %v1039, 1.442695
  %v1043 = vpow.pop %v1042
  %v1044 = vsel %vm496, %v1041, 0.0
  %1045 = vadd.xlane.f32.xlu0 %v1044
  %v1046 = vpop.xlane.xlu0 %1045
  %v1047 = vsel %vm496, %v1043, 0.0
  %1048 = vadd.xlane.f32.xlu0 %v1047
  %v1049 = vpop.xlane.xlu0 %1048
  %v1050 = vrcp.pop %v1046
  %v1051 = vrcp.pop %v1049
  %v1052 = vmul.f32 %v1041, %v1050
  %v1053 = vmul.f32 %v1043, %v1051
  %v1055 = vsel %vm519, %v1052, 0
  %1057 = vmatprep.subr.mxu0 0.0
  %1058 = vmatpush1.msra.mxu0 0.0
  %1059 = vmatprep.subr.mxu0 0.0
  %1060 = vmatpush1.msra.mxu0 0.0
  %1061 = vmatprep.subr.mxu0 0.0
  %1062 = vmatpush1.msra.mxu0 0.0
  %1063 = vmatprep.subr.mxu0 0.0
  %1064 = vmatpush1.msra.mxu0 0.0
  %1065 = vmatprep.subr.mxu0 0.0
  %1066 = vmatpush1.msra.mxu0 0.0
  %1067 = vmatprep.subr.mxu0 0.0
  %1068 = vmatpush1.msra.mxu0 0.0
  %1069 = vmatprep.subr.mxu0 0.0
  %1070 = vmatpush1.msra.mxu0 0.0
  %1071 = vmatprep.subr.mxu0 0.0
  %1072 = vmatpush1.msra.mxu0 0.0
  %1073 = vmatprep.subr.mxu0 0.0
  %1074 = vmatpush1.msra.mxu0 0.0
  %1075 = vmatprep.subr.mxu0 0.0
  %1076 = vmatpush1.msra.mxu0 0.0
  %1077 = vmatprep.subr.mxu0 0.0
  %1078 = vmatpush1.msra.mxu0 0.0
  %1079 = vmatprep.subr.mxu0 0.0
  %1080 = vmatpush1.msra.mxu0 0.0
  %1081 = vmatprep.subr.mxu0 0.0
  %1082 = vmatpush1.msra.mxu0 0.0
  %1083 = vmatprep.subr.mxu0 0.0
  %1084 = vmatpush1.msra.mxu0 0.0
  %1085 = vmatprep.subr.mxu0 0.0
  %1086 = vmatpush1.msra.mxu0 0.0
  %1087 = vmatprep.subr.mxu0 0.0
  %1088 = vmatpush1.msra.mxu0 %v31
  %1089 = vmatprep.subr.mxu0 0.0
  %1090 = vmatpush2.msra.mxu0 0.0
  %1091 = vmatprep.subr.mxu0 0.0
  %1092 = vmatpush2.msra.mxu0 0.0
  %1093 = vmatprep.subr.mxu0 0.0
  %1094 = vmatpush2.msra.mxu0 0.0
  %1095 = vmatprep.subr.mxu0 0.0
  %1096 = vmatpush2.msra.mxu0 0.0
  %1097 = vmatprep.subr.mxu0 0.0
  %1098 = vmatpush2.msra.mxu0 0.0
  %1099 = vmatprep.subr.mxu0 0.0
  %1100 = vmatpush2.msra.mxu0 0.0
  %1101 = vmatprep.subr.mxu0 0.0
  %1102 = vmatpush2.msra.mxu0 0.0
  %1103 = vmatprep.subr.mxu0 0.0
  %1104 = vmatpush2.msra.mxu0 0.0
  %1105 = vmatprep.subr.mxu0 0.0
  %1106 = vmatpush2.msra.mxu0 0.0
  %1107 = vmatprep.subr.mxu0 0.0
  %1108 = vmatpush2.msra.mxu0 0.0
  %1109 = vmatprep.subr.mxu0 0.0
  %1110 = vmatpush2.msra.mxu0 0.0
  %1111 = vmatprep.subr.mxu0 0.0
  %1112 = vmatpush2.msra.mxu0 0.0
  %1113 = vmatprep.subr.mxu0 0.0
  %1114 = vmatpush2.msra.mxu0 0.0
  %1115 = vmatprep.subr.mxu0 0.0
  %1116 = vmatpush2.msra.mxu0 0.0
  %1117 = vmatprep.subr.mxu0 0.0
  %1118 = vmatpush2.msra.mxu0 0.0
  %1119 = vmatprep.subr.mxu0 0.0
  %1120 = vmatpush2.msra.mxu0 0.0
  %1121 = vmatprep.mubr.f32.mxu0 0.0
  %1122 = vmatmul.mubr.f32.gmra.mxu0 %v1055
  %v1123 = vpop.f32.mrf.mxu0
  %v1124 = vadd.f32 0.0, %v1123
  %v1125 = vpop.f32.mrf.mxu0
  %1126 = vdwg.mxu0
  %v1128 = vsel %vm519, %v1053, 0
  %1130 = vmatprep.subr.mxu0 0.0
  %1131 = vmatpush1.msra.mxu0 0.0
  %1132 = vmatprep.subr.mxu0 0.0
  %1133 = vmatpush1.msra.mxu0 0.0
  %1134 = vmatprep.subr.mxu0 0.0
  %1135 = vmatpush1.msra.mxu0 0.0
  %1136 = vmatprep.subr.mxu0 0.0
  %1137 = vmatpush1.msra.mxu0 0.0
  %1138 = vmatprep.subr.mxu0 0.0
  %1139 = vmatpush1.msra.mxu0 0.0
  %1140 = vmatprep.subr.mxu0 0.0
  %1141 = vmatpush1.msra.mxu0 0.0
  %1142 = vmatprep.subr.mxu0 0.0
  %1143 = vmatpush1.msra.mxu0 0.0
  %1144 = vmatprep.subr.mxu0 0.0
  %1145 = vmatpush1.msra.mxu0 0.0
  %1146 = vmatprep.subr.mxu0 0.0
  %1147 = vmatpush1.msra.mxu0 0.0
  %1148 = vmatprep.subr.mxu0 0.0
  %1149 = vmatpush1.msra.mxu0 0.0
  %1150 = vmatprep.subr.mxu0 0.0
  %1151 = vmatpush1.msra.mxu0 0.0
  %1152 = vmatprep.subr.mxu0 0.0
  %1153 = vmatpush1.msra.mxu0 0.0
  %1154 = vmatprep.subr.mxu0 0.0
  %1155 = vmatpush1.msra.mxu0 0.0
  %1156 = vmatprep.subr.mxu0 0.0
  %1157 = vmatpush1.msra.mxu0 0.0
  %1158 = vmatprep.subr.mxu0 0.0
  %1159 = vmatpush1.msra.mxu0 0.0
  %1160 = vmatprep.subr.mxu0 0.0
  %1161 = vmatpush1.msra.mxu0 %v32
  %1162 = vmatprep.subr.mxu0 0.0
  %1163 = vmatpush2.msra.mxu0 0.0
  %1164 = vmatprep.subr.mxu0 0.0
  %1165 = vmatpush2.msra.mxu0 0.0
  %1166 = vmatprep.subr.mxu0 0.0
  %1167 = vmatpush2.msra.mxu0 0.0
  %1168 = vmatprep.subr.mxu0 0.0
  %1169 = vmatpush2.msra.mxu0 0.0
  %1170 = vmatprep.subr.mxu0 0.0
  %1171 = vmatpush2.msra.mxu0 0.0
  %1172 = vmatprep.subr.mxu0 0.0
  %1173 = vmatpush2.msra.mxu0 0.0
  %1174 = vmatprep.subr.mxu0 0.0
  %1175 = vmatpush2.msra.mxu0 0.0
  %1176 = vmatprep.subr.mxu0 0.0
  %1177 = vmatpush2.msra.mxu0 0.0
  %1178 = vmatprep.subr.mxu0 0.0
  %1179 = vmatpush2.msra.mxu0 0.0
  %1180 = vmatprep.subr.mxu0 0.0
  %1181 = vmatpush2.msra.mxu0 0.0
  %1182 = vmatprep.subr.mxu0 0.0
  %1183 = vmatpush2.msra.mxu0 0.0
  %1184 = vmatprep.subr.mxu0 0.0
  %1185 = vmatpush2.msra.mxu0 0.0
  %1186 = vmatprep.subr.mxu0 0.0
  %1187 = vmatpush2.msra.mxu0 0.0
  %1188 = vmatprep.subr.mxu0 0.0
  %1189 = vmatpush2.msra.mxu0 0.0
  %1190 = vmatprep.subr.mxu0 0.0
  %1191 = vmatpush2.msra.mxu0 0.0
  %1192 = vmatprep.subr.mxu0 0.0
  %1193 = vmatpush2.msra.mxu0 0.0
  %1194 = vmatprep.mubr.f32.mxu0 0.0
  %1195 = vmatmul.mubr.f32.gmra.mxu0 %v1128
  %v1196 = vpop.f32.mrf.mxu0
  %v1197 = vadd.f32 0.0, %v1196
  %v1198 = vpop.f32.mrf.mxu0
  %1199 = vdwg.mxu0
  %v1200 = vadd.f32 %v1124, 0.0
  %v1201 = vadd.f32 %v1197, 0.0
  %1202 = vrot.lane.b32.xlu0 %v852, 96
  %v1203 = vpop.permute.xlu0 %1202
  %s1205 = scalar_lea.vmem %s8, 2
  %1206 = vst.msk [vmem:[%s1205] sm:$0x3] %vm671, %v1203
  %v1209 = vrot.slane %v1201, 7
  %v1210 = vsel %vm676, %v1209, %v1200
  %s1212 = scalar_lea.vmem %s9, 2
  %1213 = vst.msk [vmem:[%s1212] sm:$0x3] %vm671, %v1210
  %s1214 = scalar_lea.vmem %s0, 4
  %v1215 = vld [vmem:[%s1214] sm:$0x3]
  %v1216 = vsel %vm60, %v1210, 0
  %1218 = vmatprep.subr.mxu0 0.0
  %1219 = vmatpush1.msra.mxu0 0.0
  %1220 = vmatprep.subr.mxu0 0.0
  %1221 = vmatpush1.msra.mxu0 0.0
  %1222 = vmatprep.subr.mxu0 0.0
  %1223 = vmatpush1.msra.mxu0 0.0
  %1224 = vmatprep.subr.mxu0 0.0
  %1225 = vmatpush1.msra.mxu0 0.0
  %1226 = vmatprep.subr.mxu0 0.0
  %1227 = vmatpush1.msra.mxu0 0.0
  %1228 = vmatprep.subr.mxu0 0.0
  %1229 = vmatpush1.msra.mxu0 0.0
  %1230 = vmatprep.subr.mxu0 0.0
  %1231 = vmatpush1.msra.mxu0 0.0
  %1232 = vmatprep.subr.mxu0 0.0
  %1233 = vmatpush1.msra.mxu0 0.0
  %1234 = vmatprep.subr.mxu0 0.0
  %1235 = vmatpush1.msra.mxu0 0.0
  %1236 = vmatprep.subr.mxu0 0.0
  %1237 = vmatpush1.msra.mxu0 0.0
  %1238 = vmatprep.subr.mxu0 0.0
  %1239 = vmatpush1.msra.mxu0 0.0
  %1240 = vmatprep.subr.mxu0 0.0
  %1241 = vmatpush1.msra.mxu0 0.0
  %1242 = vmatprep.subr.mxu0 0.0
  %1243 = vmatpush1.msra.mxu0 %v36
  %1244 = vmatprep.subr.mxu0 0.0
  %1245 = vmatpush1.msra.mxu0 %v35
  %1246 = vmatprep.subr.mxu0 0.0
  %1247 = vmatpush1.msra.mxu0 %v34
  %1248 = vmatprep.subr.mxu0 0.0
  %1249 = vmatpush1.msra.mxu0 %v33
  %1250 = vmatprep.subr.mxu0 0.0
  %1251 = vmatpush2.msra.mxu0 0.0
  %1252 = vmatprep.subr.mxu0 0.0
  %1253 = vmatpush2.msra.mxu0 0.0
  %1254 = vmatprep.subr.mxu0 0.0
  %1255 = vmatpush2.msra.mxu0 0.0
  %1256 = vmatprep.subr.mxu0 0.0
  %1257 = vmatpush2.msra.mxu0 0.0
  %1258 = vmatprep.subr.mxu0 0.0
  %1259 = vmatpush2.msra.mxu0 0.0
  %1260 = vmatprep.subr.mxu0 0.0
  %1261 = vmatpush2.msra.mxu0 0.0
  %1262 = vmatprep.subr.mxu0 0.0
  %1263 = vmatpush2.msra.mxu0 0.0
  %1264 = vmatprep.subr.mxu0 0.0
  %1265 = vmatpush2.msra.mxu0 0.0
  %1266 = vmatprep.subr.mxu0 0.0
  %1267 = vmatpush2.msra.mxu0 0.0
  %1268 = vmatprep.subr.mxu0 0.0
  %1269 = vmatpush2.msra.mxu0 0.0
  %1270 = vmatprep.subr.mxu0 0.0
  %1271 = vmatpush2.msra.mxu0 0.0
  %1272 = vmatprep.subr.mxu0 0.0
  %1273 = vmatpush2.msra.mxu0 0.0
  %1274 = vmatprep.subr.mxu0 0.0
  %1275 = vmatpush2.msra.mxu0 0.0
  %1276 = vmatprep.subr.mxu0 0.0
  %1277 = vmatpush2.msra.mxu0 0.0
  %1278 = vmatprep.subr.mxu0 0.0
  %1279 = vmatpush2.msra.mxu0 0.0
  %1280 = vmatprep.subr.mxu0 0.0
  %1281 = vmatpush2.msra.mxu0 0.0
  %1282 = vmatprep.mubr.f32.mxu0 0.0
  %1283 = vmatmul.mubr.f32.gmra.mxu0 %v1216
  %v1284 = vpop.f32.mrf.mxu0
  %v1285 = vadd.f32 0.0, %v1284
  %v1286 = vpop.f32.mrf.mxu0
  %1287 = vdwg.mxu0
  %v1288 = vadd.f32 %v1215, %v1285
  %v1289 = vsel %vm60, %v1203, 0
  %1291 = vmatprep.subr.mxu0 0.0
  %1292 = vmatpush1.msra.mxu0 0.0
  %1293 = vmatprep.subr.mxu0 0.0
  %1294 = vmatpush1.msra.mxu0 0.0
  %1295 = vmatprep.subr.mxu0 0.0
  %1296 = vmatpush1.msra.mxu0 0.0
  %1297 = vmatprep.subr.mxu0 0.0
  %1298 = vmatpush1.msra.mxu0 0.0
  %1299 = vmatprep.subr.mxu0 0.0
  %1300 = vmatpush1.msra.mxu0 0.0
  %1301 = vmatprep.subr.mxu0 0.0
  %1302 = vmatpush1.msra.mxu0 0.0
  %1303 = vmatprep.subr.mxu0 0.0
  %1304 = vmatpush1.msra.mxu0 0.0
  %1305 = vmatprep.subr.mxu0 0.0
  %1306 = vmatpush1.msra.mxu0 0.0
  %1307 = vmatprep.subr.mxu0 0.0
  %1308 = vmatpush1.msra.mxu0 0.0
  %1309 = vmatprep.subr.mxu0 0.0
  %1310 = vmatpush1.msra.mxu0 0.0
  %1311 = vmatprep.subr.mxu0 0.0
  %1312 = vmatpush1.msra.mxu0 0.0
  %1313 = vmatprep.subr.mxu0 0.0
  %1314 = vmatpush1.msra.mxu0 0.0
  %1315 = vmatprep.subr.mxu0 0.0
  %1316 = vmatpush1.msra.mxu0 %v40
  %1317 = vmatprep.subr.mxu0 0.0
  %1318 = vmatpush1.msra.mxu0 %v39
  %1319 = vmatprep.subr.mxu0 0.0
  %1320 = vmatpush1.msra.mxu0 %v38
  %1321 = vmatprep.subr.mxu0 0.0
  %1322 = vmatpush1.msra.mxu0 %v37
  %1323 = vmatprep.subr.mxu0 0.0
  %1324 = vmatpush2.msra.mxu0 0.0
  %1325 = vmatprep.subr.mxu0 0.0
  %1326 = vmatpush2.msra.mxu0 0.0
  %1327 = vmatprep.subr.mxu0 0.0
  %1328 = vmatpush2.msra.mxu0 0.0
  %1329 = vmatprep.subr.mxu0 0.0
  %1330 = vmatpush2.msra.mxu0 0.0
  %1331 = vmatprep.subr.mxu0 0.0
  %1332 = vmatpush2.msra.mxu0 0.0
  %1333 = vmatprep.subr.mxu0 0.0
  %1334 = vmatpush2.msra.mxu0 0.0
  %1335 = vmatprep.subr.mxu0 0.0
  %1336 = vmatpush2.msra.mxu0 0.0
  %1337 = vmatprep.subr.mxu0 0.0
  %1338 = vmatpush2.msra.mxu0 0.0
  %1339 = vmatprep.subr.mxu0 0.0
  %1340 = vmatpush2.msra.mxu0 0.0
  %1341 = vmatprep.subr.mxu0 0.0
  %1342 = vmatpush2.msra.mxu0 0.0
  %1343 = vmatprep.subr.mxu0 0.0
  %1344 = vmatpush2.msra.mxu0 0.0
  %1345 = vmatprep.subr.mxu0 0.0
  %1346 = vmatpush2.msra.mxu0 0.0
  %1347 = vmatprep.subr.mxu0 0.0
  %1348 = vmatpush2.msra.mxu0 0.0
  %1349 = vmatprep.subr.mxu0 0.0
  %1350 = vmatpush2.msra.mxu0 0.0
  %1351 = vmatprep.subr.mxu0 0.0
  %1352 = vmatpush2.msra.mxu0 0.0
  %1353 = vmatprep.subr.mxu0 0.0
  %1354 = vmatpush2.msra.mxu0 0.0
  %1355 = vmatprep.mubr.f32.mxu0 0.0
  %1356 = vmatmul.mubr.f32.gmra.mxu0 %v1289
  %v1357 = vpop.f32.mrf.mxu0
  %v1358 = vadd.f32 %v46, %v1357
  %v1359 = vpop.f32.mrf.mxu0
  %1360 = vdwg.mxu0
  %v1361 = vadd.f32 %v1288, %v1358
  %v1362 = vxor.u32 %v1361, 2147483648
  %v1363 = vmul.f32 %v1362, 1.442695
  %v1364 = vpow.pop %v1363
  %v1365 = vadd.f32 %v1364, 1.0
  %v1366 = vrcp.pop %v1365
  %v1367 = vmul.f32 1.0, %v1366
  %1369 = vrot.lane.b32.xlu0 %v1358, 64
  %v1370 = vpop.permute.xlu0 %1369
  %v1372 = vmul.f32 %v1367, %v1370
  %1374 = vrot.lane.b32.xlu0 %v1372, 64
  %v1375 = vpop.permute.xlu0 %1374
  %v1377 = vadd.f32 %v1288, %v1375
  %v1378 = vtanh.pop %v1377
  %v1379 = vsub.f32 1.0, %v1367
  %1381 = vrot.lane.b32.xlu0 %v1378, 96
  %v1382 = vpop.permute.xlu0 %1381
  %v1384 = vmul.f32 %v1379, %v1382
  %v1385 = vmul.f32 %v1367, %v852
  %v1386 = vadd.f32 %v1384, %v1385
  %v1389 = vunpack.c.l.s4 1966171168
  %v1390 = vunpack.c.0.s8 %v1389
  %v1391 = vlaneseq
  %v1392 = vshrl.u32 %v1391, 7
  %v1393 = vsub.s32 %v1390, %v1392
  %v1394 = vrot.slane %v1386, %v1393
  %v1395 = vcombine.high %v1394, %v1394
  %v1397 = vunpack.c.l.s4 1966171168
  %v1398 = vunpack.c.0.s8 %v1397
  %v1399 = vlaneseq
  %v1400 = vshrl.u32 %v1399, 7
  %v1401 = vsub.s32 %v1398, %v1400
  %v1402 = vrot.slane %v1394, %v1401
  %v1404 = vunpack.c.l.s4 1966171168
  %v1405 = vunpack.c.0.s8 %v1404
  %v1406 = vlaneseq
  %v1407 = vshrl.u32 %v1406, 7
  %v1408 = vsub.s32 %v1405, %v1407
  %v1409 = vrot.slane %v1395, %v1408
  %v1410 = vlaneseq
  %v1411 = vshrl.u32 %v1410, 7
  %v1412 = vsub.s32 0, %v1411
  %v1413 = vrot.slane %v1402, %v1412
  %1414 = vrot.lane.b32.xlu0 %v1413, 96
  %v1415 = vpop.permute.xlu0 %1414
  %v1416 = vsel %vm60, %v1415, 0
  %1418 = vmatprep.subr.mxu0 0.0
  %1419 = vmatpush1.xpose.msra.mxu0 0.0
  %1420 = vmatprep.subr.mxu0 0.0
  %1421 = vmatpush1.xpose.msra.mxu0 0.0
  %1422 = vmatprep.subr.mxu0 0.0
  %1423 = vmatpush1.xpose.msra.mxu0 0.0
  %1424 = vmatprep.subr.mxu0 0.0
  %1425 = vmatpush1.xpose.msra.mxu0 0.0
  %1426 = vmatprep.subr.mxu0 0.0
  %1427 = vmatpush1.xpose.msra.mxu0 0.0
  %1428 = vmatprep.subr.mxu0 0.0
  %1429 = vmatpush1.xpose.msra.mxu0 0.0
  %1430 = vmatprep.subr.mxu0 0.0
  %1431 = vmatpush1.xpose.msra.mxu0 0.0
  %1432 = vmatprep.subr.mxu0 0.0
  %1433 = vmatpush1.xpose.msra.mxu0 0.0
  %1434 = vmatprep.subr.mxu0 0.0
  %1435 = vmatpush1.xpose.msra.mxu0 0.0
  %1436 = vmatprep.subr.mxu0 0.0
  %1437 = vmatpush1.xpose.msra.mxu0 0.0
  %1438 = vmatprep.subr.mxu0 0.0
  %1439 = vmatpush1.xpose.msra.mxu0 0.0
  %1440 = vmatprep.subr.mxu0 0.0
  %1441 = vmatpush1.xpose.msra.mxu0 0.0
  %1442 = vmatprep.subr.mxu0 0.0
  %1443 = vmatpush1.xpose.msra.mxu0 0.0
  %1444 = vmatprep.subr.mxu0 0.0
  %1445 = vmatpush1.xpose.msra.mxu0 0.0
  %1446 = vmatprep.subr.mxu0 0.0
  %1447 = vmatpush1.xpose.msra.mxu0 0.0
  %1448 = vmatprep.subr.mxu0 0.0
  %1449 = vmatpush1.xpose.msra.mxu0 %v343
  %1450 = vmatprep.subr.mxu0 0.0
  %1451 = vmatpush2.xpose.msra.mxu0 0.0
  %1452 = vmatprep.subr.mxu0 0.0
  %1453 = vmatpush2.xpose.msra.mxu0 0.0
  %1454 = vmatprep.subr.mxu0 0.0
  %1455 = vmatpush2.xpose.msra.mxu0 0.0
  %1456 = vmatprep.subr.mxu0 0.0
  %1457 = vmatpush2.xpose.msra.mxu0 0.0
  %1458 = vmatprep.subr.mxu0 0.0
  %1459 = vmatpush2.xpose.msra.mxu0 0.0
  %1460 = vmatprep.subr.mxu0 0.0
  %1461 = vmatpush2.xpose.msra.mxu0 0.0
  %1462 = vmatprep.subr.mxu0 0.0
  %1463 = vmatpush2.xpose.msra.mxu0 0.0
  %1464 = vmatprep.subr.mxu0 0.0
  %1465 = vmatpush2.xpose.msra.mxu0 0.0
  %1466 = vmatprep.subr.mxu0 0.0
  %1467 = vmatpush2.xpose.msra.mxu0 0.0
  %1468 = vmatprep.subr.mxu0 0.0
  %1469 = vmatpush2.xpose.msra.mxu0 0.0
  %1470 = vmatprep.subr.mxu0 0.0
  %1471 = vmatpush2.xpose.msra.mxu0 0.0
  %1472 = vmatprep.subr.mxu0 0.0
  %1473 = vmatpush2.xpose.msra.mxu0 0.0
  %1474 = vmatprep.subr.mxu0 0.0
  %1475 = vmatpush2.xpose.msra.mxu0 0.0
  %1476 = vmatprep.subr.mxu0 0.0
  %1477 = vmatpush2.xpose.msra.mxu0 0.0
  %1478 = vmatprep.subr.mxu0 0.0
  %1479 = vmatpush2.xpose.msra.mxu0 0.0
  %1480 = vmatprep.subr.mxu0 0.0
  %1481 = vmatpush2.xpose.msra.mxu0 0.0
  %1482 = vmatprep.mubr.f32.mxu0 0.0
  %1483 = vmatmul.mubr.f32.gmra.mxu0 %v1416
  %v1484 = vpop.f32.mrf.mxu0
  %v1485 = vadd.f32 0.0, %v1484
  %v1486 = vpop.f32.mrf.mxu0
  %1487 = vdwg.mxu0
  %v1488 = vlaneseq
  %v1489 = vshrl.u32 %v1488, 7
  %v1490 = vsub.s32 0, %v1489
  %v1491 = vrot.slane %v1409, %v1490
  %1492 = vrot.lane.b32.xlu0 %v1491, 96
  %v1493 = vpop.permute.xlu0 %1492
  %v1494 = vsel %vm60, %v1493, 0
  %1496 = vmatprep.subr.mxu0 0.0
  %1497 = vmatpush1.xpose.msra.mxu0 0.0
  %1498 = vmatprep.subr.mxu0 0.0
  %1499 = vmatpush1.xpose.msra.mxu0 0.0
  %1500 = vmatprep.subr.mxu0 0.0
  %1501 = vmatpush1.xpose.msra.mxu0 0.0
  %1502 = vmatprep.subr.mxu0 0.0
  %1503 = vmatpush1.xpose.msra.mxu0 0.0
  %1504 = vmatprep.subr.mxu0 0.0
  %1505 = vmatpush1.xpose.msra.mxu0 0.0
  %1506 = vmatprep.subr.mxu0 0.0
  %1507 = vmatpush1.xpose.msra.mxu0 0.0
  %1508 = vmatprep.subr.mxu0 0.0
  %1509 = vmatpush1.xpose.msra.mxu0 0.0
  %1510 = vmatprep.subr.mxu0 0.0
  %1511 = vmatpush1.xpose.msra.mxu0 0.0
  %1512 = vmatprep.subr.mxu0 0.0
  %1513 = vmatpush1.xpose.msra.mxu0 0.0
  %1514 = vmatprep.subr.mxu0 0.0
  %1515 = vmatpush1.xpose.msra.mxu0 0.0
  %1516 = vmatprep.subr.mxu0 0.0
  %1517 = vmatpush1.xpose.msra.mxu0 0.0
  %1518 = vmatprep.subr.mxu0 0.0
  %1519 = vmatpush1.xpose.msra.mxu0 0.0
  %1520 = vmatprep.subr.mxu0 0.0
  %1521 = vmatpush1.xpose.msra.mxu0 0.0
  %1522 = vmatprep.subr.mxu0 0.0
  %1523 = vmatpush1.xpose.msra.mxu0 0.0
  %1524 = vmatprep.subr.mxu0 0.0
  %1525 = vmatpush1.xpose.msra.mxu0 0.0
  %1526 = vmatprep.subr.mxu0 0.0
  %1527 = vmatpush1.xpose.msra.mxu0 %v424
  %1528 = vmatprep.subr.mxu0 0.0
  %1529 = vmatpush2.xpose.msra.mxu0 0.0
  %1530 = vmatprep.subr.mxu0 0.0
  %1531 = vmatpush2.xpose.msra.mxu0 0.0
  %1532 = vmatprep.subr.mxu0 0.0
  %1533 = vmatpush2.xpose.msra.mxu0 0.0
  %1534 = vmatprep.subr.mxu0 0.0
  %1535 = vmatpush2.xpose.msra.mxu0 0.0
  %1536 = vmatprep.subr.mxu0 0.0
  %1537 = vmatpush2.xpose.msra.mxu0 0.0
  %1538 = vmatprep.subr.mxu0 0.0
  %1539 = vmatpush2.xpose.msra.mxu0 0.0
  %1540 = vmatprep.subr.mxu0 0.0
  %1541 = vmatpush2.xpose.msra.mxu0 0.0
  %1542 = vmatprep.subr.mxu0 0.0
  %1543 = vmatpush2.xpose.msra.mxu0 0.0
  %1544 = vmatprep.subr.mxu0 0.0
  %1545 = vmatpush2.xpose.msra.mxu0 0.0
  %1546 = vmatprep.subr.mxu0 0.0
  %1547 = vmatpush2.xpose.msra.mxu0 0.0
  %1548 = vmatprep.subr.mxu0 0.0
  %1549 = vmatpush2.xpose.msra.mxu0 0.0
  %1550 = vmatprep.subr.mxu0 0.0
  %1551 = vmatpush2.xpose.msra.mxu0 0.0
  %1552 = vmatprep.subr.mxu0 0.0
  %1553 = vmatpush2.xpose.msra.mxu0 0.0
  %1554 = vmatprep.subr.mxu0 0.0
  %1555 = vmatpush2.xpose.msra.mxu0 0.0
  %1556 = vmatprep.subr.mxu0 0.0
  %1557 = vmatpush2.xpose.msra.mxu0 0.0
  %1558 = vmatprep.subr.mxu0 0.0
  %1559 = vmatpush2.xpose.msra.mxu0 0.0
  %1560 = vmatprep.mubr.f32.mxu0 0.0
  %1561 = vmatmul.mubr.f32.gmra.mxu0 %v1494
  %v1562 = vpop.f32.mrf.mxu0
  %v1563 = vadd.f32 0.0, %v1562
  %v1564 = vpop.f32.mrf.mxu0
  %1565 = vdwg.mxu0
  %v1566 = vsel %vm496, %v1485, -inf
  %1567 = vmax.xlane.f32.xlu0 %v1566
  %v1568 = vpop.xlane.xlu0 %1567
  %v1569 = vsel %vm496, %v1563, -inf
  %1570 = vmax.xlane.f32.xlu0 %v1569
  %v1571 = vpop.xlane.xlu0 %1570
  %v1572 = vsub.f32 %v1485, %v1568
  %v1573 = vsub.f32 %v1563, %v1571
  %v1574 = vmul.f32 %v1572, 1.442695
  %v1575 = vpow.pop %v1574
  %v1576 = vmul.f32 %v1573, 1.442695
  %v1577 = vpow.pop %v1576
  %v1578 = vsel %vm496, %v1575, 0.0
  %1579 = vadd.xlane.f32.xlu0 %v1578
  %v1580 = vpop.xlane.xlu0 %1579
  %v1581 = vsel %vm496, %v1577, 0.0
  %1582 = vadd.xlane.f32.xlu0 %v1581
  %v1583 = vpop.xlane.xlu0 %1582
  %v1584 = vrcp.pop %v1580
  %v1585 = vrcp.pop %v1583
  %v1586 = vmul.f32 %v1575, %v1584
  %v1587 = vmul.f32 %v1577, %v1585
  %v1589 = vsel %vm519, %v1586, 0
  %1591 = vmatprep.subr.mxu0 0.0
  %1592 = vmatpush1.msra.mxu0 0.0
  %1593 = vmatprep.subr.mxu0 0.0
  %1594 = vmatpush1.msra.mxu0 0.0
  %1595 = vmatprep.subr.mxu0 0.0
  %1596 = vmatpush1.msra.mxu0 0.0
  %1597 = vmatprep.subr.mxu0 0.0
  %1598 = vmatpush1.msra.mxu0 0.0
  %1599 = vmatprep.subr.mxu0 0.0
  %1600 = vmatpush1.msra.mxu0 0.0
  %1601 = vmatprep.subr.mxu0 0.0
  %1602 = vmatpush1.msra.mxu0 0.0
  %1603 = vmatprep.subr.mxu0 0.0
  %1604 = vmatpush1.msra.mxu0 0.0
  %1605 = vmatprep.subr.mxu0 0.0
  %1606 = vmatpush1.msra.mxu0 0.0
  %1607 = vmatprep.subr.mxu0 0.0
  %1608 = vmatpush1.msra.mxu0 0.0
  %1609 = vmatprep.subr.mxu0 0.0
  %1610 = vmatpush1.msra.mxu0 0.0
  %1611 = vmatprep.subr.mxu0 0.0
  %1612 = vmatpush1.msra.mxu0 0.0
  %1613 = vmatprep.subr.mxu0 0.0
  %1614 = vmatpush1.msra.mxu0 0.0
  %1615 = vmatprep.subr.mxu0 0.0
  %1616 = vmatpush1.msra.mxu0 0.0
  %1617 = vmatprep.subr.mxu0 0.0
  %1618 = vmatpush1.msra.mxu0 0.0
  %1619 = vmatprep.subr.mxu0 0.0
  %1620 = vmatpush1.msra.mxu0 0.0
  %1621 = vmatprep.subr.mxu0 0.0
  %1622 = vmatpush1.msra.mxu0 %v31
  %1623 = vmatprep.subr.mxu0 0.0
  %1624 = vmatpush2.msra.mxu0 0.0
  %1625 = vmatprep.subr.mxu0 0.0
  %1626 = vmatpush2.msra.mxu0 0.0
  %1627 = vmatprep.subr.mxu0 0.0
  %1628 = vmatpush2.msra.mxu0 0.0
  %1629 = vmatprep.subr.mxu0 0.0
  %1630 = vmatpush2.msra.mxu0 0.0
  %1631 = vmatprep.subr.mxu0 0.0
  %1632 = vmatpush2.msra.mxu0 0.0
  %1633 = vmatprep.subr.mxu0 0.0
  %1634 = vmatpush2.msra.mxu0 0.0
  %1635 = vmatprep.subr.mxu0 0.0
  %1636 = vmatpush2.msra.mxu0 0.0
  %1637 = vmatprep.subr.mxu0 0.0
  %1638 = vmatpush2.msra.mxu0 0.0
  %1639 = vmatprep.subr.mxu0 0.0
  %1640 = vmatpush2.msra.mxu0 0.0
  %1641 = vmatprep.subr.mxu0 0.0
  %1642 = vmatpush2.msra.mxu0 0.0
  %1643 = vmatprep.subr.mxu0 0.0
  %1644 = vmatpush2.msra.mxu0 0.0
  %1645 = vmatprep.subr.mxu0 0.0
  %1646 = vmatpush2.msra.mxu0 0.0
  %1647 = vmatprep.subr.mxu0 0.0
  %1648 = vmatpush2.msra.mxu0 0.0
  %1649 = vmatprep.subr.mxu0 0.0
  %1650 = vmatpush2.msra.mxu0 0.0
  %1651 = vmatprep.subr.mxu0 0.0
  %1652 = vmatpush2.msra.mxu0 0.0
  %1653 = vmatprep.subr.mxu0 0.0
  %1654 = vmatpush2.msra.mxu0 0.0
  %1655 = vmatprep.mubr.f32.mxu0 0.0
  %1656 = vmatmul.mubr.f32.gmra.mxu0 %v1589
  %v1657 = vpop.f32.mrf.mxu0
  %v1658 = vadd.f32 0.0, %v1657
  %v1659 = vpop.f32.mrf.mxu0
  %1660 = vdwg.mxu0
  %v1662 = vsel %vm519, %v1587, 0
  %1664 = vmatprep.subr.mxu0 0.0
  %1665 = vmatpush1.msra.mxu0 0.0
  %1666 = vmatprep.subr.mxu0 0.0
  %1667 = vmatpush1.msra.mxu0 0.0
  %1668 = vmatprep.subr.mxu0 0.0
  %1669 = vmatpush1.msra.mxu0 0.0
  %1670 = vmatprep.subr.mxu0 0.0
  %1671 = vmatpush1.msra.mxu0 0.0
  %1672 = vmatprep.subr.mxu0 0.0
  %1673 = vmatpush1.msra.mxu0 0.0
  %1674 = vmatprep.subr.mxu0 0.0
  %1675 = vmatpush1.msra.mxu0 0.0
  %1676 = vmatprep.subr.mxu0 0.0
  %1677 = vmatpush1.msra.mxu0 0.0
  %1678 = vmatprep.subr.mxu0 0.0
  %1679 = vmatpush1.msra.mxu0 0.0
  %1680 = vmatprep.subr.mxu0 0.0
  %1681 = vmatpush1.msra.mxu0 0.0
  %1682 = vmatprep.subr.mxu0 0.0
  %1683 = vmatpush1.msra.mxu0 0.0
  %1684 = vmatprep.subr.mxu0 0.0
  %1685 = vmatpush1.msra.mxu0 0.0
  %1686 = vmatprep.subr.mxu0 0.0
  %1687 = vmatpush1.msra.mxu0 0.0
  %1688 = vmatprep.subr.mxu0 0.0
  %1689 = vmatpush1.msra.mxu0 0.0
  %1690 = vmatprep.subr.mxu0 0.0
  %1691 = vmatpush1.msra.mxu0 0.0
  %1692 = vmatprep.subr.mxu0 0.0
  %1693 = vmatpush1.msra.mxu0 0.0
  %1694 = vmatprep.subr.mxu0 0.0
  %1695 = vmatpush1.msra.mxu0 %v32
  %1696 = vmatprep.subr.mxu0 0.0
  %1697 = vmatpush2.msra.mxu0 0.0
  %1698 = vmatprep.subr.mxu0 0.0
  %1699 = vmatpush2.msra.mxu0 0.0
  %1700 = vmatprep.subr.mxu0 0.0
  %1701 = vmatpush2.msra.mxu0 0.0
  %1702 = vmatprep.subr.mxu0 0.0
  %1703 = vmatpush2.msra.mxu0 0.0
  %1704 = vmatprep.subr.mxu0 0.0
  %1705 = vmatpush2.msra.mxu0 0.0
  %1706 = vmatprep.subr.mxu0 0.0
  %1707 = vmatpush2.msra.mxu0 0.0
  %1708 = vmatprep.subr.mxu0 0.0
  %1709 = vmatpush2.msra.mxu0 0.0
  %1710 = vmatprep.subr.mxu0 0.0
  %1711 = vmatpush2.msra.mxu0 0.0
  %1712 = vmatprep.subr.mxu0 0.0
  %1713 = vmatpush2.msra.mxu0 0.0
  %1714 = vmatprep.subr.mxu0 0.0
  %1715 = vmatpush2.msra.mxu0 0.0
  %1716 = vmatprep.subr.mxu0 0.0
  %1717 = vmatpush2.msra.mxu0 0.0
  %1718 = vmatprep.subr.mxu0 0.0
  %1719 = vmatpush2.msra.mxu0 0.0
  %1720 = vmatprep.subr.mxu0 0.0
  %1721 = vmatpush2.msra.mxu0 0.0
  %1722 = vmatprep.subr.mxu0 0.0
  %1723 = vmatpush2.msra.mxu0 0.0
  %1724 = vmatprep.subr.mxu0 0.0
  %1725 = vmatpush2.msra.mxu0 0.0
  %1726 = vmatprep.subr.mxu0 0.0
  %1727 = vmatpush2.msra.mxu0 0.0
  %1728 = vmatprep.mubr.f32.mxu0 0.0
  %1729 = vmatmul.mubr.f32.gmra.mxu0 %v1662
  %v1730 = vpop.f32.mrf.mxu0
  %v1731 = vadd.f32 0.0, %v1730
  %v1732 = vpop.f32.mrf.mxu0
  %1733 = vdwg.mxu0
  %v1734 = vadd.f32 %v1658, 0.0
  %v1735 = vadd.f32 %v1731, 0.0
  %1736 = vrot.lane.b32.xlu0 %v1386, 96
  %v1737 = vpop.permute.xlu0 %1736
  %s1739 = scalar_lea.vmem %s8, 4
  %1740 = vst.msk [vmem:[%s1739] sm:$0x3] %vm671, %v1737
  %v1743 = vrot.slane %v1735, 7
  %v1744 = vsel %vm676, %v1743, %v1734
  %s1746 = scalar_lea.vmem %s9, 4
  %1747 = vst.msk [vmem:[%s1746] sm:$0x3] %vm671, %v1744
  %s1748 = scalar_lea.vmem %s0, 6
  %v1749 = vld [vmem:[%s1748] sm:$0x3]
  %v1750 = vsel %vm60, %v1744, 0
  %1752 = vmatprep.subr.mxu0 0.0
  %1753 = vmatpush1.msra.mxu0 0.0
  %1754 = vmatprep.subr.mxu0 0.0
  %1755 = vmatpush1.msra.mxu0 0.0
  %1756 = vmatprep.subr.mxu0 0.0
  %1757 = vmatpush1.msra.mxu0 0.0
  %1758 = vmatprep.subr.mxu0 0.0
  %1759 = vmatpush1.msra.mxu0 0.0
  %1760 = vmatprep.subr.mxu0 0.0
  %1761 = vmatpush1.msra.mxu0 0.0
  %1762 = vmatprep.subr.mxu0 0.0
  %1763 = vmatpush1.msra.mxu0 0.0
  %1764 = vmatprep.subr.mxu0 0.0
  %1765 = vmatpush1.msra.mxu0 0.0
  %1766 = vmatprep.subr.mxu0 0.0
  %1767 = vmatpush1.msra.mxu0 0.0
  %1768 = vmatprep.subr.mxu0 0.0
  %1769 = vmatpush1.msra.mxu0 0.0
  %1770 = vmatprep.subr.mxu0 0.0
  %1771 = vmatpush1.msra.mxu0 0.0
  %1772 = vmatprep.subr.mxu0 0.0
  %1773 = vmatpush1.msra.mxu0 0.0
  %1774 = vmatprep.subr.mxu0 0.0
  %1775 = vmatpush1.msra.mxu0 0.0
  %1776 = vmatprep.subr.mxu0 0.0
  %1777 = vmatpush1.msra.mxu0 %v36
  %1778 = vmatprep.subr.mxu0 0.0
  %1779 = vmatpush1.msra.mxu0 %v35
  %1780 = vmatprep.subr.mxu0 0.0
  %1781 = vmatpush1.msra.mxu0 %v34
  %1782 = vmatprep.subr.mxu0 0.0
  %1783 = vmatpush1.msra.mxu0 %v33
  %1784 = vmatprep.subr.mxu0 0.0
  %1785 = vmatpush2.msra.mxu0 0.0
  %1786 = vmatprep.subr.mxu0 0.0
  %1787 = vmatpush2.msra.mxu0 0.0
  %1788 = vmatprep.subr.mxu0 0.0
  %1789 = vmatpush2.msra.mxu0 0.0
  %1790 = vmatprep.subr.mxu0 0.0
  %1791 = vmatpush2.msra.mxu0 0.0
  %1792 = vmatprep.subr.mxu0 0.0
  %1793 = vmatpush2.msra.mxu0 0.0
  %1794 = vmatprep.subr.mxu0 0.0
  %1795 = vmatpush2.msra.mxu0 0.0
  %1796 = vmatprep.subr.mxu0 0.0
  %1797 = vmatpush2.msra.mxu0 0.0
  %1798 = vmatprep.subr.mxu0 0.0
  %1799 = vmatpush2.msra.mxu0 0.0
  %1800 = vmatprep.subr.mxu0 0.0
  %1801 = vmatpush2.msra.mxu0 0.0
  %1802 = vmatprep.subr.mxu0 0.0
  %1803 = vmatpush2.msra.mxu0 0.0
  %1804 = vmatprep.subr.mxu0 0.0
  %1805 = vmatpush2.msra.mxu0 0.0
  %1806 = vmatprep.subr.mxu0 0.0
  %1807 = vmatpush2.msra.mxu0 0.0
  %1808 = vmatprep.subr.mxu0 0.0
  %1809 = vmatpush2.msra.mxu0 0.0
  %1810 = vmatprep.subr.mxu0 0.0
  %1811 = vmatpush2.msra.mxu0 0.0
  %1812 = vmatprep.subr.mxu0 0.0
  %1813 = vmatpush2.msra.mxu0 0.0
  %1814 = vmatprep.subr.mxu0 0.0
  %1815 = vmatpush2.msra.mxu0 0.0
  %1816 = vmatprep.mubr.f32.mxu0 0.0
  %1817 = vmatmul.mubr.f32.gmra.mxu0 %v1750
  %v1818 = vpop.f32.mrf.mxu0
  %v1819 = vadd.f32 0.0, %v1818
  %v1820 = vpop.f32.mrf.mxu0
  %1821 = vdwg.mxu0
  %v1822 = vadd.f32 %v1749, %v1819
  %v1823 = vsel %vm60, %v1737, 0
  %1825 = vmatprep.subr.mxu0 0.0
  %1826 = vmatpush1.msra.mxu0 0.0
  %1827 = vmatprep.subr.mxu0 0.0
  %1828 = vmatpush1.msra.mxu0 0.0
  %1829 = vmatprep.subr.mxu0 0.0
  %1830 = vmatpush1.msra.mxu0 0.0
  %1831 = vmatprep.subr.mxu0 0.0
  %1832 = vmatpush1.msra.mxu0 0.0
  %1833 = vmatprep.subr.mxu0 0.0
  %1834 = vmatpush1.msra.mxu0 0.0
  %1835 = vmatprep.subr.mxu0 0.0
  %1836 = vmatpush1.msra.mxu0 0.0
  %1837 = vmatprep.subr.mxu0 0.0
  %1838 = vmatpush1.msra.mxu0 0.0
  %1839 = vmatprep.subr.mxu0 0.0
  %1840 = vmatpush1.msra.mxu0 0.0
  %1841 = vmatprep.subr.mxu0 0.0
  %1842 = vmatpush1.msra.mxu0 0.0
  %1843 = vmatprep.subr.mxu0 0.0
  %1844 = vmatpush1.msra.mxu0 0.0
  %1845 = vmatprep.subr.mxu0 0.0
  %1846 = vmatpush1.msra.mxu0 0.0
  %1847 = vmatprep.subr.mxu0 0.0
  %1848 = vmatpush1.msra.mxu0 0.0
  %1849 = vmatprep.subr.mxu0 0.0
  %1850 = vmatpush1.msra.mxu0 %v40
  %1851 = vmatprep.subr.mxu0 0.0
  %1852 = vmatpush1.msra.mxu0 %v39
  %1853 = vmatprep.subr.mxu0 0.0
  %1854 = vmatpush1.msra.mxu0 %v38
  %1855 = vmatprep.subr.mxu0 0.0
  %1856 = vmatpush1.msra.mxu0 %v37
  %1857 = vmatprep.subr.mxu0 0.0
  %1858 = vmatpush2.msra.mxu0 0.0
  %1859 = vmatprep.subr.mxu0 0.0
  %1860 = vmatpush2.msra.mxu0 0.0
  %1861 = vmatprep.subr.mxu0 0.0
  %1862 = vmatpush2.msra.mxu0 0.0
  %1863 = vmatprep.subr.mxu0 0.0
  %1864 = vmatpush2.msra.mxu0 0.0
  %1865 = vmatprep.subr.mxu0 0.0
  %1866 = vmatpush2.msra.mxu0 0.0
  %1867 = vmatprep.subr.mxu0 0.0
  %1868 = vmatpush2.msra.mxu0 0.0
  %1869 = vmatprep.subr.mxu0 0.0
  %1870 = vmatpush2.msra.mxu0 0.0
  %1871 = vmatprep.subr.mxu0 0.0
  %1872 = vmatpush2.msra.mxu0 0.0
  %1873 = vmatprep.subr.mxu0 0.0
  %1874 = vmatpush2.msra.mxu0 0.0
  %1875 = vmatprep.subr.mxu0 0.0
  %1876 = vmatpush2.msra.mxu0 0.0
  %1877 = vmatprep.subr.mxu0 0.0
  %1878 = vmatpush2.msra.mxu0 0.0
  %1879 = vmatprep.subr.mxu0 0.0
  %1880 = vmatpush2.msra.mxu0 0.0
  %1881 = vmatprep.subr.mxu0 0.0
  %1882 = vmatpush2.msra.mxu0 0.0
  %1883 = vmatprep.subr.mxu0 0.0
  %1884 = vmatpush2.msra.mxu0 0.0
  %1885 = vmatprep.subr.mxu0 0.0
  %1886 = vmatpush2.msra.mxu0 0.0
  %1887 = vmatprep.subr.mxu0 0.0
  %1888 = vmatpush2.msra.mxu0 0.0
  %1889 = vmatprep.mubr.f32.mxu0 0.0
  %1890 = vmatmul.mubr.f32.gmra.mxu0 %v1823
  %v1891 = vpop.f32.mrf.mxu0
  %v1892 = vadd.f32 %v46, %v1891
  %v1893 = vpop.f32.mrf.mxu0
  %1894 = vdwg.mxu0
  %v1895 = vadd.f32 %v1822, %v1892
  %v1896 = vxor.u32 %v1895, 2147483648
  %v1897 = vmul.f32 %v1896, 1.442695
  %v1898 = vpow.pop %v1897
  %v1899 = vadd.f32 %v1898, 1.0
  %v1900 = vrcp.pop %v1899
  %v1901 = vmul.f32 1.0, %v1900
  %1903 = vrot.lane.b32.xlu0 %v1892, 64
  %v1904 = vpop.permute.xlu0 %1903
  %v1906 = vmul.f32 %v1901, %v1904
  %1908 = vrot.lane.b32.xlu0 %v1906, 64
  %v1909 = vpop.permute.xlu0 %1908
  %v1911 = vadd.f32 %v1822, %v1909
  %v1912 = vtanh.pop %v1911
  %v1913 = vsub.f32 1.0, %v1901
  %1915 = vrot.lane.b32.xlu0 %v1912, 96
  %v1916 = vpop.permute.xlu0 %1915
  %v1918 = vmul.f32 %v1913, %v1916
  %v1919 = vmul.f32 %v1901, %v1386
  %v1920 = vadd.f32 %v1918, %v1919
  %v1923 = vunpack.c.l.s4 1966171168
  %v1924 = vunpack.c.0.s8 %v1923
  %v1925 = vlaneseq
  %v1926 = vshrl.u32 %v1925, 7
  %v1927 = vsub.s32 %v1924, %v1926
  %v1928 = vrot.slane %v1920, %v1927
  %v1929 = vcombine.high %v1928, %v1928
  %v1931 = vunpack.c.l.s4 1966171168
  %v1932 = vunpack.c.0.s8 %v1931
  %v1933 = vlaneseq
  %v1934 = vshrl.u32 %v1933, 7
  %v1935 = vsub.s32 %v1932, %v1934
  %v1936 = vrot.slane %v1928, %v1935
  %v1938 = vunpack.c.l.s4 1966171168
  %v1939 = vunpack.c.0.s8 %v1938
  %v1940 = vlaneseq
  %v1941 = vshrl.u32 %v1940, 7
  %v1942 = vsub.s32 %v1939, %v1941
  %v1943 = vrot.slane %v1929, %v1942
  %v1944 = vlaneseq
  %v1945 = vshrl.u32 %v1944, 7
  %v1946 = vsub.s32 0, %v1945
  %v1947 = vrot.slane %v1936, %v1946
  %1948 = vrot.lane.b32.xlu0 %v1947, 96
  %v1949 = vpop.permute.xlu0 %1948
  %v1950 = vsel %vm60, %v1949, 0
  %1952 = vmatprep.subr.mxu0 0.0
  %1953 = vmatpush1.xpose.msra.mxu0 0.0
  %1954 = vmatprep.subr.mxu0 0.0
  %1955 = vmatpush1.xpose.msra.mxu0 0.0
  %1956 = vmatprep.subr.mxu0 0.0
  %1957 = vmatpush1.xpose.msra.mxu0 0.0
  %1958 = vmatprep.subr.mxu0 0.0
  %1959 = vmatpush1.xpose.msra.mxu0 0.0
  %1960 = vmatprep.subr.mxu0 0.0
  %1961 = vmatpush1.xpose.msra.mxu0 0.0
  %1962 = vmatprep.subr.mxu0 0.0
  %1963 = vmatpush1.xpose.msra.mxu0 0.0
  %1964 = vmatprep.subr.mxu0 0.0
  %1965 = vmatpush1.xpose.msra.mxu0 0.0
  %1966 = vmatprep.subr.mxu0 0.0
  %1967 = vmatpush1.xpose.msra.mxu0 0.0
  %1968 = vmatprep.subr.mxu0 0.0
  %1969 = vmatpush1.xpose.msra.mxu0 0.0
  %1970 = vmatprep.subr.mxu0 0.0
  %1971 = vmatpush1.xpose.msra.mxu0 0.0
  %1972 = vmatprep.subr.mxu0 0.0
  %1973 = vmatpush1.xpose.msra.mxu0 0.0
  %1974 = vmatprep.subr.mxu0 0.0
  %1975 = vmatpush1.xpose.msra.mxu0 0.0
  %1976 = vmatprep.subr.mxu0 0.0
  %1977 = vmatpush1.xpose.msra.mxu0 0.0
  %1978 = vmatprep.subr.mxu0 0.0
  %1979 = vmatpush1.xpose.msra.mxu0 0.0
  %1980 = vmatprep.subr.mxu0 0.0
  %1981 = vmatpush1.xpose.msra.mxu0 0.0
  %1982 = vmatprep.subr.mxu0 0.0
  %1983 = vmatpush1.xpose.msra.mxu0 %v343
  %1984 = vmatprep.subr.mxu0 0.0
  %1985 = vmatpush2.xpose.msra.mxu0 0.0
  %1986 = vmatprep.subr.mxu0 0.0
  %1987 = vmatpush2.xpose.msra.mxu0 0.0
  %1988 = vmatprep.subr.mxu0 0.0
  %1989 = vmatpush2.xpose.msra.mxu0 0.0
  %1990 = vmatprep.subr.mxu0 0.0
  %1991 = vmatpush2.xpose.msra.mxu0 0.0
  %1992 = vmatprep.subr.mxu0 0.0
  %1993 = vmatpush2.xpose.msra.mxu0 0.0
  %1994 = vmatprep.subr.mxu0 0.0
  %1995 = vmatpush2.xpose.msra.mxu0 0.0
  %1996 = vmatprep.subr.mxu0 0.0
  %1997 = vmatpush2.xpose.msra.mxu0 0.0
  %1998 = vmatprep.subr.mxu0 0.0
  %1999 = vmatpush2.xpose.msra.mxu0 0.0
  %2000 = vmatprep.subr.mxu0 0.0
  %2001 = vmatpush2.xpose.msra.mxu0 0.0
  %2002 = vmatprep.subr.mxu0 0.0
  %2003 = vmatpush2.xpose.msra.mxu0 0.0
  %2004 = vmatprep.subr.mxu0 0.0
  %2005 = vmatpush2.xpose.msra.mxu0 0.0
  %2006 = vmatprep.subr.mxu0 0.0
  %2007 = vmatpush2.xpose.msra.mxu0 0.0
  %2008 = vmatprep.subr.mxu0 0.0
  %2009 = vmatpush2.xpose.msra.mxu0 0.0
  %2010 = vmatprep.subr.mxu0 0.0
  %2011 = vmatpush2.xpose.msra.mxu0 0.0
  %2012 = vmatprep.subr.mxu0 0.0
  %2013 = vmatpush2.xpose.msra.mxu0 0.0
  %2014 = vmatprep.subr.mxu0 0.0
  %2015 = vmatpush2.xpose.msra.mxu0 0.0
  %2016 = vmatprep.mubr.f32.mxu0 0.0
  %2017 = vmatmul.mubr.f32.gmra.mxu0 %v1950
  %v2018 = vpop.f32.mrf.mxu0
  %v2019 = vadd.f32 0.0, %v2018
  %v2020 = vpop.f32.mrf.mxu0
  %2021 = vdwg.mxu0
  %v2022 = vlaneseq
  %v2023 = vshrl.u32 %v2022, 7
  %v2024 = vsub.s32 0, %v2023
  %v2025 = vrot.slane %v1943, %v2024
  %2026 = vrot.lane.b32.xlu0 %v2025, 96
  %v2027 = vpop.permute.xlu0 %2026
  %v2028 = vsel %vm60, %v2027, 0
  %2030 = vmatprep.subr.mxu0 0.0
  %2031 = vmatpush1.xpose.msra.mxu0 0.0
  %2032 = vmatprep.subr.mxu0 0.0
  %2033 = vmatpush1.xpose.msra.mxu0 0.0
  %2034 = vmatprep.subr.mxu0 0.0
  %2035 = vmatpush1.xpose.msra.mxu0 0.0
  %2036 = vmatprep.subr.mxu0 0.0
  %2037 = vmatpush1.xpose.msra.mxu0 0.0
  %2038 = vmatprep.subr.mxu0 0.0
  %2039 = vmatpush1.xpose.msra.mxu0 0.0
  %2040 = vmatprep.subr.mxu0 0.0
  %2041 = vmatpush1.xpose.msra.mxu0 0.0
  %2042 = vmatprep.subr.mxu0 0.0
  %2043 = vmatpush1.xpose.msra.mxu0 0.0
  %2044 = vmatprep.subr.mxu0 0.0
  %2045 = vmatpush1.xpose.msra.mxu0 0.0
  %2046 = vmatprep.subr.mxu0 0.0
  %2047 = vmatpush1.xpose.msra.mxu0 0.0
  %2048 = vmatprep.subr.mxu0 0.0
  %2049 = vmatpush1.xpose.msra.mxu0 0.0
  %2050 = vmatprep.subr.mxu0 0.0
  %2051 = vmatpush1.xpose.msra.mxu0 0.0
  %2052 = vmatprep.subr.mxu0 0.0
  %2053 = vmatpush1.xpose.msra.mxu0 0.0
  %2054 = vmatprep.subr.mxu0 0.0
  %2055 = vmatpush1.xpose.msra.mxu0 0.0
  %2056 = vmatprep.subr.mxu0 0.0
  %2057 = vmatpush1.xpose.msra.mxu0 0.0
  %2058 = vmatprep.subr.mxu0 0.0
  %2059 = vmatpush1.xpose.msra.mxu0 0.0
  %2060 = vmatprep.subr.mxu0 0.0
  %2061 = vmatpush1.xpose.msra.mxu0 %v424
  %2062 = vmatprep.subr.mxu0 0.0
  %2063 = vmatpush2.xpose.msra.mxu0 0.0
  %2064 = vmatprep.subr.mxu0 0.0
  %2065 = vmatpush2.xpose.msra.mxu0 0.0
  %2066 = vmatprep.subr.mxu0 0.0
  %2067 = vmatpush2.xpose.msra.mxu0 0.0
  %2068 = vmatprep.subr.mxu0 0.0
  %2069 = vmatpush2.xpose.msra.mxu0 0.0
  %2070 = vmatprep.subr.mxu0 0.0
  %2071 = vmatpush2.xpose.msra.mxu0 0.0
  %2072 = vmatprep.subr.mxu0 0.0
  %2073 = vmatpush2.xpose.msra.mxu0 0.0
  %2074 = vmatprep.subr.mxu0 0.0
  %2075 = vmatpush2.xpose.msra.mxu0 0.0
  %2076 = vmatprep.subr.mxu0 0.0
  %2077 = vmatpush2.xpose.msra.mxu0 0.0
  %2078 = vmatprep.subr.mxu0 0.0
  %2079 = vmatpush2.xpose.msra.mxu0 0.0
  %2080 = vmatprep.subr.mxu0 0.0
  %2081 = vmatpush2.xpose.msra.mxu0 0.0
  %2082 = vmatprep.subr.mxu0 0.0
  %2083 = vmatpush2.xpose.msra.mxu0 0.0
  %2084 = vmatprep.subr.mxu0 0.0
  %2085 = vmatpush2.xpose.msra.mxu0 0.0
  %2086 = vmatprep.subr.mxu0 0.0
  %2087 = vmatpush2.xpose.msra.mxu0 0.0
  %2088 = vmatprep.subr.mxu0 0.0
  %2089 = vmatpush2.xpose.msra.mxu0 0.0
  %2090 = vmatprep.subr.mxu0 0.0
  %2091 = vmatpush2.xpose.msra.mxu0 0.0
  %2092 = vmatprep.subr.mxu0 0.0
  %2093 = vmatpush2.xpose.msra.mxu0 0.0
  %2094 = vmatprep.mubr.f32.mxu0 0.0
  %2095 = vmatmul.mubr.f32.gmra.mxu0 %v2028
  %v2096 = vpop.f32.mrf.mxu0
  %v2097 = vadd.f32 0.0, %v2096
  %v2098 = vpop.f32.mrf.mxu0
  %2099 = vdwg.mxu0
  %v2100 = vsel %vm496, %v2019, -inf
  %2101 = vmax.xlane.f32.xlu0 %v2100
  %v2102 = vpop.xlane.xlu0 %2101
  %v2103 = vsel %vm496, %v2097, -inf
  %2104 = vmax.xlane.f32.xlu0 %v2103
  %v2105 = vpop.xlane.xlu0 %2104
  %v2106 = vsub.f32 %v2019, %v2102
  %v2107 = vsub.f32 %v2097, %v2105
  %v2108 = vmul.f32 %v2106, 1.442695
  %v2109 = vpow.pop %v2108
  %v2110 = vmul.f32 %v2107, 1.442695
  %v2111 = vpow.pop %v2110
  %v2112 = vsel %vm496, %v2109, 0.0
  %2113 = vadd.xlane.f32.xlu0 %v2112
  %v2114 = vpop.xlane.xlu0 %2113
  %v2115 = vsel %vm496, %v2111, 0.0
  %2116 = vadd.xlane.f32.xlu0 %v2115
  %v2117 = vpop.xlane.xlu0 %2116
  %v2118 = vrcp.pop %v2114
  %v2119 = vrcp.pop %v2117
  %v2120 = vmul.f32 %v2109, %v2118
  %v2121 = vmul.f32 %v2111, %v2119
  %v2123 = vsel %vm519, %v2120, 0
  %2125 = vmatprep.subr.mxu0 0.0
  %2126 = vmatpush1.msra.mxu0 0.0
  %2127 = vmatprep.subr.mxu0 0.0
  %2128 = vmatpush1.msra.mxu0 0.0
  %2129 = vmatprep.subr.mxu0 0.0
  %2130 = vmatpush1.msra.mxu0 0.0
  %2131 = vmatprep.subr.mxu0 0.0
  %2132 = vmatpush1.msra.mxu0 0.0
  %2133 = vmatprep.subr.mxu0 0.0
  %2134 = vmatpush1.msra.mxu0 0.0
  %2135 = vmatprep.subr.mxu0 0.0
  %2136 = vmatpush1.msra.mxu0 0.0
  %2137 = vmatprep.subr.mxu0 0.0
  %2138 = vmatpush1.msra.mxu0 0.0
  %2139 = vmatprep.subr.mxu0 0.0
  %2140 = vmatpush1.msra.mxu0 0.0
  %2141 = vmatprep.subr.mxu0 0.0
  %2142 = vmatpush1.msra.mxu0 0.0
  %2143 = vmatprep.subr.mxu0 0.0
  %2144 = vmatpush1.msra.mxu0 0.0
  %2145 = vmatprep.subr.mxu0 0.0
  %2146 = vmatpush1.msra.mxu0 0.0
  %2147 = vmatprep.subr.mxu0 0.0
  %2148 = vmatpush1.msra.mxu0 0.0
  %2149 = vmatprep.subr.mxu0 0.0
  %2150 = vmatpush1.msra.mxu0 0.0
  %2151 = vmatprep.subr.mxu0 0.0
  %2152 = vmatpush1.msra.mxu0 0.0
  %2153 = vmatprep.subr.mxu0 0.0
  %2154 = vmatpush1.msra.mxu0 0.0
  %2155 = vmatprep.subr.mxu0 0.0
  %2156 = vmatpush1.msra.mxu0 %v31
  %2157 = vmatprep.subr.mxu0 0.0
  %2158 = vmatpush2.msra.mxu0 0.0
  %2159 = vmatprep.subr.mxu0 0.0
  %2160 = vmatpush2.msra.mxu0 0.0
  %2161 = vmatprep.subr.mxu0 0.0
  %2162 = vmatpush2.msra.mxu0 0.0
  %2163 = vmatprep.subr.mxu0 0.0
  %2164 = vmatpush2.msra.mxu0 0.0
  %2165 = vmatprep.subr.mxu0 0.0
  %2166 = vmatpush2.msra.mxu0 0.0
  %2167 = vmatprep.subr.mxu0 0.0
  %2168 = vmatpush2.msra.mxu0 0.0
  %2169 = vmatprep.subr.mxu0 0.0
  %2170 = vmatpush2.msra.mxu0 0.0
  %2171 = vmatprep.subr.mxu0 0.0
  %2172 = vmatpush2.msra.mxu0 0.0
  %2173 = vmatprep.subr.mxu0 0.0
  %2174 = vmatpush2.msra.mxu0 0.0
  %2175 = vmatprep.subr.mxu0 0.0
  %2176 = vmatpush2.msra.mxu0 0.0
  %2177 = vmatprep.subr.mxu0 0.0
  %2178 = vmatpush2.msra.mxu0 0.0
  %2179 = vmatprep.subr.mxu0 0.0
  %2180 = vmatpush2.msra.mxu0 0.0
  %2181 = vmatprep.subr.mxu0 0.0
  %2182 = vmatpush2.msra.mxu0 0.0
  %2183 = vmatprep.subr.mxu0 0.0
  %2184 = vmatpush2.msra.mxu0 0.0
  %2185 = vmatprep.subr.mxu0 0.0
  %2186 = vmatpush2.msra.mxu0 0.0
  %2187 = vmatprep.subr.mxu0 0.0
  %2188 = vmatpush2.msra.mxu0 0.0
  %2189 = vmatprep.mubr.f32.mxu0 0.0
  %2190 = vmatmul.mubr.f32.gmra.mxu0 %v2123
  %v2191 = vpop.f32.mrf.mxu0
  %v2192 = vadd.f32 0.0, %v2191
  %v2193 = vpop.f32.mrf.mxu0
  %2194 = vdwg.mxu0
  %v2196 = vsel %vm519, %v2121, 0
  %2198 = vmatprep.subr.mxu0 0.0
  %2199 = vmatpush1.msra.mxu0 0.0
  %2200 = vmatprep.subr.mxu0 0.0
  %2201 = vmatpush1.msra.mxu0 0.0
  %2202 = vmatprep.subr.mxu0 0.0
  %2203 = vmatpush1.msra.mxu0 0.0
  %2204 = vmatprep.subr.mxu0 0.0
  %2205 = vmatpush1.msra.mxu0 0.0
  %2206 = vmatprep.subr.mxu0 0.0
  %2207 = vmatpush1.msra.mxu0 0.0
  %2208 = vmatprep.subr.mxu0 0.0
  %2209 = vmatpush1.msra.mxu0 0.0
  %2210 = vmatprep.subr.mxu0 0.0
  %2211 = vmatpush1.msra.mxu0 0.0
  %2212 = vmatprep.subr.mxu0 0.0
  %2213 = vmatpush1.msra.mxu0 0.0
  %2214 = vmatprep.subr.mxu0 0.0
  %2215 = vmatpush1.msra.mxu0 0.0
  %2216 = vmatprep.subr.mxu0 0.0
  %2217 = vmatpush1.msra.mxu0 0.0
  %2218 = vmatprep.subr.mxu0 0.0
  %2219 = vmatpush1.msra.mxu0 0.0
  %2220 = vmatprep.subr.mxu0 0.0
  %2221 = vmatpush1.msra.mxu0 0.0
  %2222 = vmatprep.subr.mxu0 0.0
  %2223 = vmatpush1.msra.mxu0 0.0
  %2224 = vmatprep.subr.mxu0 0.0
  %2225 = vmatpush1.msra.mxu0 0.0
  %2226 = vmatprep.subr.mxu0 0.0
  %2227 = vmatpush1.msra.mxu0 0.0
  %2228 = vmatprep.subr.mxu0 0.0
  %2229 = vmatpush1.msra.mxu0 %v32
  %2230 = vmatprep.subr.mxu0 0.0
  %2231 = vmatpush2.msra.mxu0 0.0
  %2232 = vmatprep.subr.mxu0 0.0
  %2233 = vmatpush2.msra.mxu0 0.0
  %2234 = vmatprep.subr.mxu0 0.0
  %2235 = vmatpush2.msra.mxu0 0.0
  %2236 = vmatprep.subr.mxu0 0.0
  %2237 = vmatpush2.msra.mxu0 0.0
  %2238 = vmatprep.subr.mxu0 0.0
  %2239 = vmatpush2.msra.mxu0 0.0
  %2240 = vmatprep.subr.mxu0 0.0
  %2241 = vmatpush2.msra.mxu0 0.0
  %2242 = vmatprep.subr.mxu0 0.0
  %2243 = vmatpush2.msra.mxu0 0.0
  %2244 = vmatprep.subr.mxu0 0.0
  %2245 = vmatpush2.msra.mxu0 0.0
  %2246 = vmatprep.subr.mxu0 0.0
  %2247 = vmatpush2.msra.mxu0 0.0
  %2248 = vmatprep.subr.mxu0 0.0
  %2249 = vmatpush2.msra.mxu0 0.0
  %2250 = vmatprep.subr.mxu0 0.0
  %2251 = vmatpush2.msra.mxu0 0.0
  %2252 = vmatprep.subr.mxu0 0.0
  %2253 = vmatpush2.msra.mxu0 0.0
  %2254 = vmatprep.subr.mxu0 0.0
  %2255 = vmatpush2.msra.mxu0 0.0
  %2256 = vmatprep.subr.mxu0 0.0
  %2257 = vmatpush2.msra.mxu0 0.0
  %2258 = vmatprep.subr.mxu0 0.0
  %2259 = vmatpush2.msra.mxu0 0.0
  %2260 = vmatprep.subr.mxu0 0.0
  %2261 = vmatpush2.msra.mxu0 0.0
  %2262 = vmatprep.mubr.f32.mxu0 0.0
  %2263 = vmatmul.mubr.f32.gmra.mxu0 %v2196
  %v2264 = vpop.f32.mrf.mxu0
  %v2265 = vadd.f32 0.0, %v2264
  %v2266 = vpop.f32.mrf.mxu0
  %2267 = vdwg.mxu0
  %v2268 = vadd.f32 %v2192, 0.0
  %v2269 = vadd.f32 %v2265, 0.0
  %2270 = vrot.lane.b32.xlu0 %v1920, 96
  %v2271 = vpop.permute.xlu0 %2270
  %s2273 = scalar_lea.vmem %s8, 6
  %2274 = vst.msk [vmem:[%s2273] sm:$0x3] %vm671, %v2271
  %v2277 = vrot.slane %v2269, 7
  %v2278 = vsel %vm676, %v2277, %v2268
  %s2280 = scalar_lea.vmem %s9, 6
  %2281 = vst.msk [vmem:[%s2280] sm:$0x3] %vm671, %v2278
  %s2282 = scalar_lea.vmem %s0, 8
  %v2283 = vld [vmem:[%s2282] sm:$0x3]
  %v2284 = vsel %vm60, %v2278, 0
  %2286 = vmatprep.subr.mxu0 0.0
  %2287 = vmatpush1.msra.mxu0 0.0
  %2288 = vmatprep.subr.mxu0 0.0
  %2289 = vmatpush1.msra.mxu0 0.0
  %2290 = vmatprep.subr.mxu0 0.0
  %2291 = vmatpush1.msra.mxu0 0.0
  %2292 = vmatprep.subr.mxu0 0.0
  %2293 = vmatpush1.msra.mxu0 0.0
  %2294 = vmatprep.subr.mxu0 0.0
  %2295 = vmatpush1.msra.mxu0 0.0
  %2296 = vmatprep.subr.mxu0 0.0
  %2297 = vmatpush1.msra.mxu0 0.0
  %2298 = vmatprep.subr.mxu0 0.0
  %2299 = vmatpush1.msra.mxu0 0.0
  %2300 = vmatprep.subr.mxu0 0.0
  %2301 = vmatpush1.msra.mxu0 0.0
  %2302 = vmatprep.subr.mxu0 0.0
  %2303 = vmatpush1.msra.mxu0 0.0
  %2304 = vmatprep.subr.mxu0 0.0
  %2305 = vmatpush1.msra.mxu0 0.0
  %2306 = vmatprep.subr.mxu0 0.0
  %2307 = vmatpush1.msra.mxu0 0.0
  %2308 = vmatprep.subr.mxu0 0.0
  %2309 = vmatpush1.msra.mxu0 0.0
  %2310 = vmatprep.subr.mxu0 0.0
  %2311 = vmatpush1.msra.mxu0 %v36
  %2312 = vmatprep.subr.mxu0 0.0
  %2313 = vmatpush1.msra.mxu0 %v35
  %2314 = vmatprep.subr.mxu0 0.0
  %2315 = vmatpush1.msra.mxu0 %v34
  %2316 = vmatprep.subr.mxu0 0.0
  %2317 = vmatpush1.msra.mxu0 %v33
  %2318 = vmatprep.subr.mxu0 0.0
  %2319 = vmatpush2.msra.mxu0 0.0
  %2320 = vmatprep.subr.mxu0 0.0
  %2321 = vmatpush2.msra.mxu0 0.0
  %2322 = vmatprep.subr.mxu0 0.0
  %2323 = vmatpush2.msra.mxu0 0.0
  %2324 = vmatprep.subr.mxu0 0.0
  %2325 = vmatpush2.msra.mxu0 0.0
  %2326 = vmatprep.subr.mxu0 0.0
  %2327 = vmatpush2.msra.mxu0 0.0
  %2328 = vmatprep.subr.mxu0 0.0
  %2329 = vmatpush2.msra.mxu0 0.0
  %2330 = vmatprep.subr.mxu0 0.0
  %2331 = vmatpush2.msra.mxu0 0.0
  %2332 = vmatprep.subr.mxu0 0.0
  %2333 = vmatpush2.msra.mxu0 0.0
  %2334 = vmatprep.subr.mxu0 0.0
  %2335 = vmatpush2.msra.mxu0 0.0
  %2336 = vmatprep.subr.mxu0 0.0
  %2337 = vmatpush2.msra.mxu0 0.0
  %2338 = vmatprep.subr.mxu0 0.0
  %2339 = vmatpush2.msra.mxu0 0.0
  %2340 = vmatprep.subr.mxu0 0.0
  %2341 = vmatpush2.msra.mxu0 0.0
  %2342 = vmatprep.subr.mxu0 0.0
  %2343 = vmatpush2.msra.mxu0 0.0
  %2344 = vmatprep.subr.mxu0 0.0
  %2345 = vmatpush2.msra.mxu0 0.0
  %2346 = vmatprep.subr.mxu0 0.0
  %2347 = vmatpush2.msra.mxu0 0.0
  %2348 = vmatprep.subr.mxu0 0.0
  %2349 = vmatpush2.msra.mxu0 0.0
  %2350 = vmatprep.mubr.f32.mxu0 0.0
  %2351 = vmatmul.mubr.f32.gmra.mxu0 %v2284
  %v2352 = vpop.f32.mrf.mxu0
  %v2353 = vadd.f32 0.0, %v2352
  %v2354 = vpop.f32.mrf.mxu0
  %2355 = vdwg.mxu0
  %v2356 = vadd.f32 %v2283, %v2353
  %v2357 = vsel %vm60, %v2271, 0
  %2359 = vmatprep.subr.mxu0 0.0
  %2360 = vmatpush1.msra.mxu0 0.0
  %2361 = vmatprep.subr.mxu0 0.0
  %2362 = vmatpush1.msra.mxu0 0.0
  %2363 = vmatprep.subr.mxu0 0.0
  %2364 = vmatpush1.msra.mxu0 0.0
  %2365 = vmatprep.subr.mxu0 0.0
  %2366 = vmatpush1.msra.mxu0 0.0
  %2367 = vmatprep.subr.mxu0 0.0
  %2368 = vmatpush1.msra.mxu0 0.0
  %2369 = vmatprep.subr.mxu0 0.0
  %2370 = vmatpush1.msra.mxu0 0.0
  %2371 = vmatprep.subr.mxu0 0.0
  %2372 = vmatpush1.msra.mxu0 0.0
  %2373 = vmatprep.subr.mxu0 0.0
  %2374 = vmatpush1.msra.mxu0 0.0
  %2375 = vmatprep.subr.mxu0 0.0
  %2376 = vmatpush1.msra.mxu0 0.0
  %2377 = vmatprep.subr.mxu0 0.0
  %2378 = vmatpush1.msra.mxu0 0.0
  %2379 = vmatprep.subr.mxu0 0.0
  %2380 = vmatpush1.msra.mxu0 0.0
  %2381 = vmatprep.subr.mxu0 0.0
  %2382 = vmatpush1.msra.mxu0 0.0
  %2383 = vmatprep.subr.mxu0 0.0
  %2384 = vmatpush1.msra.mxu0 %v40
  %2385 = vmatprep.subr.mxu0 0.0
  %2386 = vmatpush1.msra.mxu0 %v39
  %2387 = vmatprep.subr.mxu0 0.0
  %2388 = vmatpush1.msra.mxu0 %v38
  %2389 = vmatprep.subr.mxu0 0.0
  %2390 = vmatpush1.msra.mxu0 %v37
  %2391 = vmatprep.subr.mxu0 0.0
  %2392 = vmatpush2.msra.mxu0 0.0
  %2393 = vmatprep.subr.mxu0 0.0
  %2394 = vmatpush2.msra.mxu0 0.0
  %2395 = vmatprep.subr.mxu0 0.0
  %2396 = vmatpush2.msra.mxu0 0.0
  %2397 = vmatprep.subr.mxu0 0.0
  %2398 = vmatpush2.msra.mxu0 0.0
  %2399 = vmatprep.subr.mxu0 0.0
  %2400 = vmatpush2.msra.mxu0 0.0
  %2401 = vmatprep.subr.mxu0 0.0
  %2402 = vmatpush2.msra.mxu0 0.0
  %2403 = vmatprep.subr.mxu0 0.0
  %2404 = vmatpush2.msra.mxu0 0.0
  %2405 = vmatprep.subr.mxu0 0.0
  %2406 = vmatpush2.msra.mxu0 0.0
  %2407 = vmatprep.subr.mxu0 0.0
  %2408 = vmatpush2.msra.mxu0 0.0
  %2409 = vmatprep.subr.mxu0 0.0
  %2410 = vmatpush2.msra.mxu0 0.0
  %2411 = vmatprep.subr.mxu0 0.0
  %2412 = vmatpush2.msra.mxu0 0.0
  %2413 = vmatprep.subr.mxu0 0.0
  %2414 = vmatpush2.msra.mxu0 0.0
  %2415 = vmatprep.subr.mxu0 0.0
  %2416 = vmatpush2.msra.mxu0 0.0
  %2417 = vmatprep.subr.mxu0 0.0
  %2418 = vmatpush2.msra.mxu0 0.0
  %2419 = vmatprep.subr.mxu0 0.0
  %2420 = vmatpush2.msra.mxu0 0.0
  %2421 = vmatprep.subr.mxu0 0.0
  %2422 = vmatpush2.msra.mxu0 0.0
  %2423 = vmatprep.mubr.f32.mxu0 0.0
  %2424 = vmatmul.mubr.f32.gmra.mxu0 %v2357
  %v2425 = vpop.f32.mrf.mxu0
  %v2426 = vadd.f32 %v46, %v2425
  %v2427 = vpop.f32.mrf.mxu0
  %2428 = vdwg.mxu0
  %v2429 = vadd.f32 %v2356, %v2426
  %v2430 = vxor.u32 %v2429, 2147483648
  %v2431 = vmul.f32 %v2430, 1.442695
  %v2432 = vpow.pop %v2431
  %v2433 = vadd.f32 %v2432, 1.0
  %v2434 = vrcp.pop %v2433
  %v2435 = vmul.f32 1.0, %v2434
  %2437 = vrot.lane.b32.xlu0 %v2426, 64
  %v2438 = vpop.permute.xlu0 %2437
  %v2440 = vmul.f32 %v2435, %v2438
  %2442 = vrot.lane.b32.xlu0 %v2440, 64
  %v2443 = vpop.permute.xlu0 %2442
  %v2445 = vadd.f32 %v2356, %v2443
  %v2446 = vtanh.pop %v2445
  %v2447 = vsub.f32 1.0, %v2435
  %2449 = vrot.lane.b32.xlu0 %v2446, 96
  %v2450 = vpop.permute.xlu0 %2449
  %v2452 = vmul.f32 %v2447, %v2450
  %v2453 = vmul.f32 %v2435, %v1920
  %v2454 = vadd.f32 %v2452, %v2453
  %v2457 = vunpack.c.l.s4 1966171168
  %v2458 = vunpack.c.0.s8 %v2457
  %v2459 = vlaneseq
  %v2460 = vshrl.u32 %v2459, 7
  %v2461 = vsub.s32 %v2458, %v2460
  %v2462 = vrot.slane %v2454, %v2461
  %v2463 = vcombine.high %v2462, %v2462
  %v2465 = vunpack.c.l.s4 1966171168
  %v2466 = vunpack.c.0.s8 %v2465
  %v2467 = vlaneseq
  %v2468 = vshrl.u32 %v2467, 7
  %v2469 = vsub.s32 %v2466, %v2468
  %v2470 = vrot.slane %v2462, %v2469
  %v2472 = vunpack.c.l.s4 1966171168
  %v2473 = vunpack.c.0.s8 %v2472
  %v2474 = vlaneseq
  %v2475 = vshrl.u32 %v2474, 7
  %v2476 = vsub.s32 %v2473, %v2475
  %v2477 = vrot.slane %v2463, %v2476
  %v2478 = vlaneseq
  %v2479 = vshrl.u32 %v2478, 7
  %v2480 = vsub.s32 0, %v2479
  %v2481 = vrot.slane %v2470, %v2480
  %2482 = vrot.lane.b32.xlu0 %v2481, 96
  %v2483 = vpop.permute.xlu0 %2482
  %v2484 = vsel %vm60, %v2483, 0
  %2486 = vmatprep.subr.mxu0 0.0
  %2487 = vmatpush1.xpose.msra.mxu0 0.0
  %2488 = vmatprep.subr.mxu0 0.0
  %2489 = vmatpush1.xpose.msra.mxu0 0.0
  %2490 = vmatprep.subr.mxu0 0.0
  %2491 = vmatpush1.xpose.msra.mxu0 0.0
  %2492 = vmatprep.subr.mxu0 0.0
  %2493 = vmatpush1.xpose.msra.mxu0 0.0
  %2494 = vmatprep.subr.mxu0 0.0
  %2495 = vmatpush1.xpose.msra.mxu0 0.0
  %2496 = vmatprep.subr.mxu0 0.0
  %2497 = vmatpush1.xpose.msra.mxu0 0.0
  %2498 = vmatprep.subr.mxu0 0.0
  %2499 = vmatpush1.xpose.msra.mxu0 0.0
  %2500 = vmatprep.subr.mxu0 0.0
  %2501 = vmatpush1.xpose.msra.mxu0 0.0
  %2502 = vmatprep.subr.mxu0 0.0
  %2503 = vmatpush1.xpose.msra.mxu0 0.0
  %2504 = vmatprep.subr.mxu0 0.0
  %2505 = vmatpush1.xpose.msra.mxu0 0.0
  %2506 = vmatprep.subr.mxu0 0.0
  %2507 = vmatpush1.xpose.msra.mxu0 0.0
  %2508 = vmatprep.subr.mxu0 0.0
  %2509 = vmatpush1.xpose.msra.mxu0 0.0
  %2510 = vmatprep.subr.mxu0 0.0
  %2511 = vmatpush1.xpose.msra.mxu0 0.0
  %2512 = vmatprep.subr.mxu0 0.0
  %2513 = vmatpush1.xpose.msra.mxu0 0.0
  %2514 = vmatprep.subr.mxu0 0.0
  %2515 = vmatpush1.xpose.msra.mxu0 0.0
  %2516 = vmatprep.subr.mxu0 0.0
  %2517 = vmatpush1.xpose.msra.mxu0 %v343
  %2518 = vmatprep.subr.mxu0 0.0
  %2519 = vmatpush2.xpose.msra.mxu0 0.0
  %2520 = vmatprep.subr.mxu0 0.0
  %2521 = vmatpush2.xpose.msra.mxu0 0.0
  %2522 = vmatprep.subr.mxu0 0.0
  %2523 = vmatpush2.xpose.msra.mxu0 0.0
  %2524 = vmatprep.subr.mxu0 0.0
  %2525 = vmatpush2.xpose.msra.mxu0 0.0
  %2526 = vmatprep.subr.mxu0 0.0
  %2527 = vmatpush2.xpose.msra.mxu0 0.0
  %2528 = vmatprep.subr.mxu0 0.0
  %2529 = vmatpush2.xpose.msra.mxu0 0.0
  %2530 = vmatprep.subr.mxu0 0.0
  %2531 = vmatpush2.xpose.msra.mxu0 0.0
  %2532 = vmatprep.subr.mxu0 0.0
  %2533 = vmatpush2.xpose.msra.mxu0 0.0
  %2534 = vmatprep.subr.mxu0 0.0
  %2535 = vmatpush2.xpose.msra.mxu0 0.0
  %2536 = vmatprep.subr.mxu0 0.0
  %2537 = vmatpush2.xpose.msra.mxu0 0.0
  %2538 = vmatprep.subr.mxu0 0.0
  %2539 = vmatpush2.xpose.msra.mxu0 0.0
  %2540 = vmatprep.subr.mxu0 0.0
  %2541 = vmatpush2.xpose.msra.mxu0 0.0
  %2542 = vmatprep.subr.mxu0 0.0
  %2543 = vmatpush2.xpose.msra.mxu0 0.0
  %2544 = vmatprep.subr.mxu0 0.0
  %2545 = vmatpush2.xpose.msra.mxu0 0.0
  %2546 = vmatprep.subr.mxu0 0.0
  %2547 = vmatpush2.xpose.msra.mxu0 0.0
  %2548 = vmatprep.subr.mxu0 0.0
  %2549 = vmatpush2.xpose.msra.mxu0 0.0
  %2550 = vmatprep.mubr.f32.mxu0 0.0
  %2551 = vmatmul.mubr.f32.gmra.mxu0 %v2484
  %v2552 = vpop.f32.mrf.mxu0
  %v2553 = vadd.f32 0.0, %v2552
  %v2554 = vpop.f32.mrf.mxu0
  %2555 = vdwg.mxu0
  %v2556 = vlaneseq
  %v2557 = vshrl.u32 %v2556, 7
  %v2558 = vsub.s32 0, %v2557
  %v2559 = vrot.slane %v2477, %v2558
  %2560 = vrot.lane.b32.xlu0 %v2559, 96
  %v2561 = vpop.permute.xlu0 %2560
  %v2562 = vsel %vm60, %v2561, 0
  %2564 = vmatprep.subr.mxu0 0.0
  %2565 = vmatpush1.xpose.msra.mxu0 0.0
  %2566 = vmatprep.subr.mxu0 0.0
  %2567 = vmatpush1.xpose.msra.mxu0 0.0
  %2568 = vmatprep.subr.mxu0 0.0
  %2569 = vmatpush1.xpose.msra.mxu0 0.0
  %2570 = vmatprep.subr.mxu0 0.0
  %2571 = vmatpush1.xpose.msra.mxu0 0.0
  %2572 = vmatprep.subr.mxu0 0.0
  %2573 = vmatpush1.xpose.msra.mxu0 0.0
  %2574 = vmatprep.subr.mxu0 0.0
  %2575 = vmatpush1.xpose.msra.mxu0 0.0
  %2576 = vmatprep.subr.mxu0 0.0
  %2577 = vmatpush1.xpose.msra.mxu0 0.0
  %2578 = vmatprep.subr.mxu0 0.0
  %2579 = vmatpush1.xpose.msra.mxu0 0.0
  %2580 = vmatprep.subr.mxu0 0.0
  %2581 = vmatpush1.xpose.msra.mxu0 0.0
  %2582 = vmatprep.subr.mxu0 0.0
  %2583 = vmatpush1.xpose.msra.mxu0 0.0
  %2584 = vmatprep.subr.mxu0 0.0
  %2585 = vmatpush1.xpose.msra.mxu0 0.0
  %2586 = vmatprep.subr.mxu0 0.0
  %2587 = vmatpush1.xpose.msra.mxu0 0.0
  %2588 = vmatprep.subr.mxu0 0.0
  %2589 = vmatpush1.xpose.msra.mxu0 0.0
  %2590 = vmatprep.subr.mxu0 0.0
  %2591 = vmatpush1.xpose.msra.mxu0 0.0
  %2592 = vmatprep.subr.mxu0 0.0
  %2593 = vmatpush1.xpose.msra.mxu0 0.0
  %2594 = vmatprep.subr.mxu0 0.0
  %2595 = vmatpush1.xpose.msra.mxu0 %v424
  %2596 = vmatprep.subr.mxu0 0.0
  %2597 = vmatpush2.xpose.msra.mxu0 0.0
  %2598 = vmatprep.subr.mxu0 0.0
  %2599 = vmatpush2.xpose.msra.mxu0 0.0
  %2600 = vmatprep.subr.mxu0 0.0
  %2601 = vmatpush2.xpose.msra.mxu0 0.0
  %2602 = vmatprep.subr.mxu0 0.0
  %2603 = vmatpush2.xpose.msra.mxu0 0.0
  %2604 = vmatprep.subr.mxu0 0.0
  %2605 = vmatpush2.xpose.msra.mxu0 0.0
  %2606 = vmatprep.subr.mxu0 0.0
  %2607 = vmatpush2.xpose.msra.mxu0 0.0
  %2608 = vmatprep.subr.mxu0 0.0
  %2609 = vmatpush2.xpose.msra.mxu0 0.0
  %2610 = vmatprep.subr.mxu0 0.0
  %2611 = vmatpush2.xpose.msra.mxu0 0.0
  %2612 = vmatprep.subr.mxu0 0.0
  %2613 = vmatpush2.xpose.msra.mxu0 0.0
  %2614 = vmatprep.subr.mxu0 0.0
  %2615 = vmatpush2.xpose.msra.mxu0 0.0
  %2616 = vmatprep.subr.mxu0 0.0
  %2617 = vmatpush2.xpose.msra.mxu0 0.0
  %2618 = vmatprep.subr.mxu0 0.0
  %2619 = vmatpush2.xpose.msra.mxu0 0.0
  %2620 = vmatprep.subr.mxu0 0.0
  %2621 = vmatpush2.xpose.msra.mxu0 0.0
  %2622 = vmatprep.subr.mxu0 0.0
  %2623 = vmatpush2.xpose.msra.mxu0 0.0
  %2624 = vmatprep.subr.mxu0 0.0
  %2625 = vmatpush2.xpose.msra.mxu0 0.0
  %2626 = vmatprep.subr.mxu0 0.0
  %2627 = vmatpush2.xpose.msra.mxu0 0.0
  %2628 = vmatprep.mubr.f32.mxu0 0.0
  %2629 = vmatmul.mubr.f32.gmra.mxu0 %v2562
  %v2630 = vpop.f32.mrf.mxu0
  %v2631 = vadd.f32 0.0, %v2630
  %v2632 = vpop.f32.mrf.mxu0
  %2633 = vdwg.mxu0
  %v2634 = vsel %vm496, %v2553, -inf
  %2635 = vmax.xlane.f32.xlu0 %v2634
  %v2636 = vpop.xlane.xlu0 %2635
  %v2637 = vsel %vm496, %v2631, -inf
  %2638 = vmax.xlane.f32.xlu0 %v2637
  %v2639 = vpop.xlane.xlu0 %2638
  %v2640 = vsub.f32 %v2553, %v2636
  %v2641 = vsub.f32 %v2631, %v2639
  %v2642 = vmul.f32 %v2640, 1.442695
  %v2643 = vpow.pop %v2642
  %v2644 = vmul.f32 %v2641, 1.442695
  %v2645 = vpow.pop %v2644
  %v2646 = vsel %vm496, %v2643, 0.0
  %2647 = vadd.xlane.f32.xlu0 %v2646
  %v2648 = vpop.xlane.xlu0 %2647
  %v2649 = vsel %vm496, %v2645, 0.0
  %2650 = vadd.xlane.f32.xlu0 %v2649
  %v2651 = vpop.xlane.xlu0 %2650
  %v2652 = vrcp.pop %v2648
  %v2653 = vrcp.pop %v2651
  %v2654 = vmul.f32 %v2643, %v2652
  %v2655 = vmul.f32 %v2645, %v2653
  %v2657 = vsel %vm519, %v2654, 0
  %2659 = vmatprep.subr.mxu0 0.0
  %2660 = vmatpush1.msra.mxu0 0.0
  %2661 = vmatprep.subr.mxu0 0.0
  %2662 = vmatpush1.msra.mxu0 0.0
  %2663 = vmatprep.subr.mxu0 0.0
  %2664 = vmatpush1.msra.mxu0 0.0
  %2665 = vmatprep.subr.mxu0 0.0
  %2666 = vmatpush1.msra.mxu0 0.0
  %2667 = vmatprep.subr.mxu0 0.0
  %2668 = vmatpush1.msra.mxu0 0.0
  %2669 = vmatprep.subr.mxu0 0.0
  %2670 = vmatpush1.msra.mxu0 0.0
  %2671 = vmatprep.subr.mxu0 0.0
  %2672 = vmatpush1.msra.mxu0 0.0
  %2673 = vmatprep.subr.mxu0 0.0
  %2674 = vmatpush1.msra.mxu0 0.0
  %2675 = vmatprep.subr.mxu0 0.0
  %2676 = vmatpush1.msra.mxu0 0.0
  %2677 = vmatprep.subr.mxu0 0.0
  %2678 = vmatpush1.msra.mxu0 0.0
  %2679 = vmatprep.subr.mxu0 0.0
  %2680 = vmatpush1.msra.mxu0 0.0
  %2681 = vmatprep.subr.mxu0 0.0
  %2682 = vmatpush1.msra.mxu0 0.0
  %2683 = vmatprep.subr.mxu0 0.0
  %2684 = vmatpush1.msra.mxu0 0.0
  %2685 = vmatprep.subr.mxu0 0.0
  %2686 = vmatpush1.msra.mxu0 0.0
  %2687 = vmatprep.subr.mxu0 0.0
  %2688 = vmatpush1.msra.mxu0 0.0
  %2689 = vmatprep.subr.mxu0 0.0
  %2690 = vmatpush1.msra.mxu0 %v31
  %2691 = vmatprep.subr.mxu0 0.0
  %2692 = vmatpush2.msra.mxu0 0.0
  %2693 = vmatprep.subr.mxu0 0.0
  %2694 = vmatpush2.msra.mxu0 0.0
  %2695 = vmatprep.subr.mxu0 0.0
  %2696 = vmatpush2.msra.mxu0 0.0
  %2697 = vmatprep.subr.mxu0 0.0
  %2698 = vmatpush2.msra.mxu0 0.0
  %2699 = vmatprep.subr.mxu0 0.0
  %2700 = vmatpush2.msra.mxu0 0.0
  %2701 = vmatprep.subr.mxu0 0.0
  %2702 = vmatpush2.msra.mxu0 0.0
  %2703 = vmatprep.subr.mxu0 0.0
  %2704 = vmatpush2.msra.mxu0 0.0
  %2705 = vmatprep.subr.mxu0 0.0
  %2706 = vmatpush2.msra.mxu0 0.0
  %2707 = vmatprep.subr.mxu0 0.0
  %2708 = vmatpush2.msra.mxu0 0.0
  %2709 = vmatprep.subr.mxu0 0.0
  %2710 = vmatpush2.msra.mxu0 0.0
  %2711 = vmatprep.subr.mxu0 0.0
  %2712 = vmatpush2.msra.mxu0 0.0
  %2713 = vmatprep.subr.mxu0 0.0
  %2714 = vmatpush2.msra.mxu0 0.0
  %2715 = vmatprep.subr.mxu0 0.0
  %2716 = vmatpush2.msra.mxu0 0.0
  %2717 = vmatprep.subr.mxu0 0.0
  %2718 = vmatpush2.msra.mxu0 0.0
  %2719 = vmatprep.subr.mxu0 0.0
  %2720 = vmatpush2.msra.mxu0 0.0
  %2721 = vmatprep.subr.mxu0 0.0
  %2722 = vmatpush2.msra.mxu0 0.0
  %2723 = vmatprep.mubr.f32.mxu0 0.0
  %2724 = vmatmul.mubr.f32.gmra.mxu0 %v2657
  %v2725 = vpop.f32.mrf.mxu0
  %v2726 = vadd.f32 0.0, %v2725
  %v2727 = vpop.f32.mrf.mxu0
  %2728 = vdwg.mxu0
  %v2730 = vsel %vm519, %v2655, 0
  %2732 = vmatprep.subr.mxu0 0.0
  %2733 = vmatpush1.msra.mxu0 0.0
  %2734 = vmatprep.subr.mxu0 0.0
  %2735 = vmatpush1.msra.mxu0 0.0
  %2736 = vmatprep.subr.mxu0 0.0
  %2737 = vmatpush1.msra.mxu0 0.0
  %2738 = vmatprep.subr.mxu0 0.0
  %2739 = vmatpush1.msra.mxu0 0.0
  %2740 = vmatprep.subr.mxu0 0.0
  %2741 = vmatpush1.msra.mxu0 0.0
  %2742 = vmatprep.subr.mxu0 0.0
  %2743 = vmatpush1.msra.mxu0 0.0
  %2744 = vmatprep.subr.mxu0 0.0
  %2745 = vmatpush1.msra.mxu0 0.0
  %2746 = vmatprep.subr.mxu0 0.0
  %2747 = vmatpush1.msra.mxu0 0.0
  %2748 = vmatprep.subr.mxu0 0.0
  %2749 = vmatpush1.msra.mxu0 0.0
  %2750 = vmatprep.subr.mxu0 0.0
  %2751 = vmatpush1.msra.mxu0 0.0
  %2752 = vmatprep.subr.mxu0 0.0
  %2753 = vmatpush1.msra.mxu0 0.0
  %2754 = vmatprep.subr.mxu0 0.0
  %2755 = vmatpush1.msra.mxu0 0.0
  %2756 = vmatprep.subr.mxu0 0.0
  %2757 = vmatpush1.msra.mxu0 0.0
  %2758 = vmatprep.subr.mxu0 0.0
  %2759 = vmatpush1.msra.mxu0 0.0
  %2760 = vmatprep.subr.mxu0 0.0
  %2761 = vmatpush1.msra.mxu0 0.0
  %2762 = vmatprep.subr.mxu0 0.0
  %2763 = vmatpush1.msra.mxu0 %v32
  %2764 = vmatprep.subr.mxu0 0.0
  %2765 = vmatpush2.msra.mxu0 0.0
  %2766 = vmatprep.subr.mxu0 0.0
  %2767 = vmatpush2.msra.mxu0 0.0
  %2768 = vmatprep.subr.mxu0 0.0
  %2769 = vmatpush2.msra.mxu0 0.0
  %2770 = vmatprep.subr.mxu0 0.0
  %2771 = vmatpush2.msra.mxu0 0.0
  %2772 = vmatprep.subr.mxu0 0.0
  %2773 = vmatpush2.msra.mxu0 0.0
  %2774 = vmatprep.subr.mxu0 0.0
  %2775 = vmatpush2.msra.mxu0 0.0
  %2776 = vmatprep.subr.mxu0 0.0
  %2777 = vmatpush2.msra.mxu0 0.0
  %2778 = vmatprep.subr.mxu0 0.0
  %2779 = vmatpush2.msra.mxu0 0.0
  %2780 = vmatprep.subr.mxu0 0.0
  %2781 = vmatpush2.msra.mxu0 0.0
  %2782 = vmatprep.subr.mxu0 0.0
  %2783 = vmatpush2.msra.mxu0 0.0
  %2784 = vmatprep.subr.mxu0 0.0
  %2785 = vmatpush2.msra.mxu0 0.0
  %2786 = vmatprep.subr.mxu0 0.0
  %2787 = vmatpush2.msra.mxu0 0.0
  %2788 = vmatprep.subr.mxu0 0.0
  %2789 = vmatpush2.msra.mxu0 0.0
  %2790 = vmatprep.subr.mxu0 0.0
  %2791 = vmatpush2.msra.mxu0 0.0
  %2792 = vmatprep.subr.mxu0 0.0
  %2793 = vmatpush2.msra.mxu0 0.0
  %2794 = vmatprep.subr.mxu0 0.0
  %2795 = vmatpush2.msra.mxu0 0.0
  %2796 = vmatprep.mubr.f32.mxu0 0.0
  %2797 = vmatmul.mubr.f32.gmra.mxu0 %v2730
  %v2798 = vpop.f32.mrf.mxu0
  %v2799 = vadd.f32 0.0, %v2798
  %v2800 = vpop.f32.mrf.mxu0
  %2801 = vdwg.mxu0
  %v2802 = vadd.f32 %v2726, 0.0
  %v2803 = vadd.f32 %v2799, 0.0
  %2804 = vrot.lane.b32.xlu0 %v2454, 96
  %v2805 = vpop.permute.xlu0 %2804
  %s2807 = scalar_lea.vmem %s8, 8
  %2808 = vst.msk [vmem:[%s2807] sm:$0x3] %vm671, %v2805
  %v2811 = vrot.slane %v2803, 7
  %v2812 = vsel %vm676, %v2811, %v2802
  %s2814 = scalar_lea.vmem %s9, 8
  %2815 = vst.msk [vmem:[%s2814] sm:$0x3] %vm671, %v2812
  %s2816 = scalar_lea.vmem %s0, 10
  %v2817 = vld [vmem:[%s2816] sm:$0x3]
  %v2818 = vsel %vm60, %v2812, 0
  %2820 = vmatprep.subr.mxu0 0.0
  %2821 = vmatpush1.msra.mxu0 0.0
  %2822 = vmatprep.subr.mxu0 0.0
  %2823 = vmatpush1.msra.mxu0 0.0
  %2824 = vmatprep.subr.mxu0 0.0
  %2825 = vmatpush1.msra.mxu0 0.0
  %2826 = vmatprep.subr.mxu0 0.0
  %2827 = vmatpush1.msra.mxu0 0.0
  %2828 = vmatprep.subr.mxu0 0.0
  %2829 = vmatpush1.msra.mxu0 0.0
  %2830 = vmatprep.subr.mxu0 0.0
  %2831 = vmatpush1.msra.mxu0 0.0
  %2832 = vmatprep.subr.mxu0 0.0
  %2833 = vmatpush1.msra.mxu0 0.0
  %2834 = vmatprep.subr.mxu0 0.0
  %2835 = vmatpush1.msra.mxu0 0.0
  %2836 = vmatprep.subr.mxu0 0.0
  %2837 = vmatpush1.msra.mxu0 0.0
  %2838 = vmatprep.subr.mxu0 0.0
  %2839 = vmatpush1.msra.mxu0 0.0
  %2840 = vmatprep.subr.mxu0 0.0
  %2841 = vmatpush1.msra.mxu0 0.0
  %2842 = vmatprep.subr.mxu0 0.0
  %2843 = vmatpush1.msra.mxu0 0.0
  %2844 = vmatprep.subr.mxu0 0.0
  %2845 = vmatpush1.msra.mxu0 %v36
  %2846 = vmatprep.subr.mxu0 0.0
  %2847 = vmatpush1.msra.mxu0 %v35
  %2848 = vmatprep.subr.mxu0 0.0
  %2849 = vmatpush1.msra.mxu0 %v34
  %2850 = vmatprep.subr.mxu0 0.0
  %2851 = vmatpush1.msra.mxu0 %v33
  %2852 = vmatprep.subr.mxu0 0.0
  %2853 = vmatpush2.msra.mxu0 0.0
  %2854 = vmatprep.subr.mxu0 0.0
  %2855 = vmatpush2.msra.mxu0 0.0
  %2856 = vmatprep.subr.mxu0 0.0
  %2857 = vmatpush2.msra.mxu0 0.0
  %2858 = vmatprep.subr.mxu0 0.0
  %2859 = vmatpush2.msra.mxu0 0.0
  %2860 = vmatprep.subr.mxu0 0.0
  %2861 = vmatpush2.msra.mxu0 0.0
  %2862 = vmatprep.subr.mxu0 0.0
  %2863 = vmatpush2.msra.mxu0 0.0
  %2864 = vmatprep.subr.mxu0 0.0
  %2865 = vmatpush2.msra.mxu0 0.0
  %2866 = vmatprep.subr.mxu0 0.0
  %2867 = vmatpush2.msra.mxu0 0.0
  %2868 = vmatprep.subr.mxu0 0.0
  %2869 = vmatpush2.msra.mxu0 0.0
  %2870 = vmatprep.subr.mxu0 0.0
  %2871 = vmatpush2.msra.mxu0 0.0
  %2872 = vmatprep.subr.mxu0 0.0
  %2873 = vmatpush2.msra.mxu0 0.0
  %2874 = vmatprep.subr.mxu0 0.0
  %2875 = vmatpush2.msra.mxu0 0.0
  %2876 = vmatprep.subr.mxu0 0.0
  %2877 = vmatpush2.msra.mxu0 0.0
  %2878 = vmatprep.subr.mxu0 0.0
  %2879 = vmatpush2.msra.mxu0 0.0
  %2880 = vmatprep.subr.mxu0 0.0
  %2881 = vmatpush2.msra.mxu0 0.0
  %2882 = vmatprep.subr.mxu0 0.0
  %2883 = vmatpush2.msra.mxu0 0.0
  %2884 = vmatprep.mubr.f32.mxu0 0.0
  %2885 = vmatmul.mubr.f32.gmra.mxu0 %v2818
  %v2886 = vpop.f32.mrf.mxu0
  %v2887 = vadd.f32 0.0, %v2886
  %v2888 = vpop.f32.mrf.mxu0
  %2889 = vdwg.mxu0
  %v2890 = vadd.f32 %v2817, %v2887
  %v2891 = vsel %vm60, %v2805, 0
  %2893 = vmatprep.subr.mxu0 0.0
  %2894 = vmatpush1.msra.mxu0 0.0
  %2895 = vmatprep.subr.mxu0 0.0
  %2896 = vmatpush1.msra.mxu0 0.0
  %2897 = vmatprep.subr.mxu0 0.0
  %2898 = vmatpush1.msra.mxu0 0.0
  %2899 = vmatprep.subr.mxu0 0.0
  %2900 = vmatpush1.msra.mxu0 0.0
  %2901 = vmatprep.subr.mxu0 0.0
  %2902 = vmatpush1.msra.mxu0 0.0
  %2903 = vmatprep.subr.mxu0 0.0
  %2904 = vmatpush1.msra.mxu0 0.0
  %2905 = vmatprep.subr.mxu0 0.0
  %2906 = vmatpush1.msra.mxu0 0.0
  %2907 = vmatprep.subr.mxu0 0.0
  %2908 = vmatpush1.msra.mxu0 0.0
  %2909 = vmatprep.subr.mxu0 0.0
  %2910 = vmatpush1.msra.mxu0 0.0
  %2911 = vmatprep.subr.mxu0 0.0
  %2912 = vmatpush1.msra.mxu0 0.0
  %2913 = vmatprep.subr.mxu0 0.0
  %2914 = vmatpush1.msra.mxu0 0.0
  %2915 = vmatprep.subr.mxu0 0.0
  %2916 = vmatpush1.msra.mxu0 0.0
  %2917 = vmatprep.subr.mxu0 0.0
  %2918 = vmatpush1.msra.mxu0 %v40
  %2919 = vmatprep.subr.mxu0 0.0
  %2920 = vmatpush1.msra.mxu0 %v39
  %2921 = vmatprep.subr.mxu0 0.0
  %2922 = vmatpush1.msra.mxu0 %v38
  %2923 = vmatprep.subr.mxu0 0.0
  %2924 = vmatpush1.msra.mxu0 %v37
  %2925 = vmatprep.subr.mxu0 0.0
  %2926 = vmatpush2.msra.mxu0 0.0
  %2927 = vmatprep.subr.mxu0 0.0
  %2928 = vmatpush2.msra.mxu0 0.0
  %2929 = vmatprep.subr.mxu0 0.0
  %2930 = vmatpush2.msra.mxu0 0.0
  %2931 = vmatprep.subr.mxu0 0.0
  %2932 = vmatpush2.msra.mxu0 0.0
  %2933 = vmatprep.subr.mxu0 0.0
  %2934 = vmatpush2.msra.mxu0 0.0
  %2935 = vmatprep.subr.mxu0 0.0
  %2936 = vmatpush2.msra.mxu0 0.0
  %2937 = vmatprep.subr.mxu0 0.0
  %2938 = vmatpush2.msra.mxu0 0.0
  %2939 = vmatprep.subr.mxu0 0.0
  %2940 = vmatpush2.msra.mxu0 0.0
  %2941 = vmatprep.subr.mxu0 0.0
  %2942 = vmatpush2.msra.mxu0 0.0
  %2943 = vmatprep.subr.mxu0 0.0
  %2944 = vmatpush2.msra.mxu0 0.0
  %2945 = vmatprep.subr.mxu0 0.0
  %2946 = vmatpush2.msra.mxu0 0.0
  %2947 = vmatprep.subr.mxu0 0.0
  %2948 = vmatpush2.msra.mxu0 0.0
  %2949 = vmatprep.subr.mxu0 0.0
  %2950 = vmatpush2.msra.mxu0 0.0
  %2951 = vmatprep.subr.mxu0 0.0
  %2952 = vmatpush2.msra.mxu0 0.0
  %2953 = vmatprep.subr.mxu0 0.0
  %2954 = vmatpush2.msra.mxu0 0.0
  %2955 = vmatprep.subr.mxu0 0.0
  %2956 = vmatpush2.msra.mxu0 0.0
  %2957 = vmatprep.mubr.f32.mxu0 0.0
  %2958 = vmatmul.mubr.f32.gmra.mxu0 %v2891
  %v2959 = vpop.f32.mrf.mxu0
  %v2960 = vadd.f32 %v46, %v2959
  %v2961 = vpop.f32.mrf.mxu0
  %2962 = vdwg.mxu0
  %v2963 = vadd.f32 %v2890, %v2960
  %v2964 = vxor.u32 %v2963, 2147483648
  %v2965 = vmul.f32 %v2964, 1.442695
  %v2966 = vpow.pop %v2965
  %v2967 = vadd.f32 %v2966, 1.0
  %v2968 = vrcp.pop %v2967
  %v2969 = vmul.f32 1.0, %v2968
  %2971 = vrot.lane.b32.xlu0 %v2960, 64
  %v2972 = vpop.permute.xlu0 %2971
  %v2974 = vmul.f32 %v2969, %v2972
  %2976 = vrot.lane.b32.xlu0 %v2974, 64
  %v2977 = vpop.permute.xlu0 %2976
  %v2979 = vadd.f32 %v2890, %v2977
  %v2980 = vtanh.pop %v2979
  %v2981 = vsub.f32 1.0, %v2969
  %2983 = vrot.lane.b32.xlu0 %v2980, 96
  %v2984 = vpop.permute.xlu0 %2983
  %v2986 = vmul.f32 %v2981, %v2984
  %v2987 = vmul.f32 %v2969, %v2454
  %v2988 = vadd.f32 %v2986, %v2987
  %v2991 = vunpack.c.l.s4 1966171168
  %v2992 = vunpack.c.0.s8 %v2991
  %v2993 = vlaneseq
  %v2994 = vshrl.u32 %v2993, 7
  %v2995 = vsub.s32 %v2992, %v2994
  %v2996 = vrot.slane %v2988, %v2995
  %v2997 = vcombine.high %v2996, %v2996
  %v2999 = vunpack.c.l.s4 1966171168
  %v3000 = vunpack.c.0.s8 %v2999
  %v3001 = vlaneseq
  %v3002 = vshrl.u32 %v3001, 7
  %v3003 = vsub.s32 %v3000, %v3002
  %v3004 = vrot.slane %v2996, %v3003
  %v3006 = vunpack.c.l.s4 1966171168
  %v3007 = vunpack.c.0.s8 %v3006
  %v3008 = vlaneseq
  %v3009 = vshrl.u32 %v3008, 7
  %v3010 = vsub.s32 %v3007, %v3009
  %v3011 = vrot.slane %v2997, %v3010
  %v3012 = vlaneseq
  %v3013 = vshrl.u32 %v3012, 7
  %v3014 = vsub.s32 0, %v3013
  %v3015 = vrot.slane %v3004, %v3014
  %3016 = vrot.lane.b32.xlu0 %v3015, 96
  %v3017 = vpop.permute.xlu0 %3016
  %v3018 = vsel %vm60, %v3017, 0
  %3020 = vmatprep.subr.mxu0 0.0
  %3021 = vmatpush1.xpose.msra.mxu0 0.0
  %3022 = vmatprep.subr.mxu0 0.0
  %3023 = vmatpush1.xpose.msra.mxu0 0.0
  %3024 = vmatprep.subr.mxu0 0.0
  %3025 = vmatpush1.xpose.msra.mxu0 0.0
  %3026 = vmatprep.subr.mxu0 0.0
  %3027 = vmatpush1.xpose.msra.mxu0 0.0
  %3028 = vmatprep.subr.mxu0 0.0
  %3029 = vmatpush1.xpose.msra.mxu0 0.0
  %3030 = vmatprep.subr.mxu0 0.0
  %3031 = vmatpush1.xpose.msra.mxu0 0.0
  %3032 = vmatprep.subr.mxu0 0.0
  %3033 = vmatpush1.xpose.msra.mxu0 0.0
  %3034 = vmatprep.subr.mxu0 0.0
  %3035 = vmatpush1.xpose.msra.mxu0 0.0
  %3036 = vmatprep.subr.mxu0 0.0
  %3037 = vmatpush1.xpose.msra.mxu0 0.0
  %3038 = vmatprep.subr.mxu0 0.0
  %3039 = vmatpush1.xpose.msra.mxu0 0.0
  %3040 = vmatprep.subr.mxu0 0.0
  %3041 = vmatpush1.xpose.msra.mxu0 0.0
  %3042 = vmatprep.subr.mxu0 0.0
  %3043 = vmatpush1.xpose.msra.mxu0 0.0
  %3044 = vmatprep.subr.mxu0 0.0
  %3045 = vmatpush1.xpose.msra.mxu0 0.0
  %3046 = vmatprep.subr.mxu0 0.0
  %3047 = vmatpush1.xpose.msra.mxu0 0.0
  %3048 = vmatprep.subr.mxu0 0.0
  %3049 = vmatpush1.xpose.msra.mxu0 0.0
  %3050 = vmatprep.subr.mxu0 0.0
  %3051 = vmatpush1.xpose.msra.mxu0 %v343
  %3052 = vmatprep.subr.mxu0 0.0
  %3053 = vmatpush2.xpose.msra.mxu0 0.0
  %3054 = vmatprep.subr.mxu0 0.0
  %3055 = vmatpush2.xpose.msra.mxu0 0.0
  %3056 = vmatprep.subr.mxu0 0.0
  %3057 = vmatpush2.xpose.msra.mxu0 0.0
  %3058 = vmatprep.subr.mxu0 0.0
  %3059 = vmatpush2.xpose.msra.mxu0 0.0
  %3060 = vmatprep.subr.mxu0 0.0
  %3061 = vmatpush2.xpose.msra.mxu0 0.0
  %3062 = vmatprep.subr.mxu0 0.0
  %3063 = vmatpush2.xpose.msra.mxu0 0.0
  %3064 = vmatprep.subr.mxu0 0.0
  %3065 = vmatpush2.xpose.msra.mxu0 0.0
  %3066 = vmatprep.subr.mxu0 0.0
  %3067 = vmatpush2.xpose.msra.mxu0 0.0
  %3068 = vmatprep.subr.mxu0 0.0
  %3069 = vmatpush2.xpose.msra.mxu0 0.0
  %3070 = vmatprep.subr.mxu0 0.0
  %3071 = vmatpush2.xpose.msra.mxu0 0.0
  %3072 = vmatprep.subr.mxu0 0.0
  %3073 = vmatpush2.xpose.msra.mxu0 0.0
  %3074 = vmatprep.subr.mxu0 0.0
  %3075 = vmatpush2.xpose.msra.mxu0 0.0
  %3076 = vmatprep.subr.mxu0 0.0
  %3077 = vmatpush2.xpose.msra.mxu0 0.0
  %3078 = vmatprep.subr.mxu0 0.0
  %3079 = vmatpush2.xpose.msra.mxu0 0.0
  %3080 = vmatprep.subr.mxu0 0.0
  %3081 = vmatpush2.xpose.msra.mxu0 0.0
  %3082 = vmatprep.subr.mxu0 0.0
  %3083 = vmatpush2.xpose.msra.mxu0 0.0
  %3084 = vmatprep.mubr.f32.mxu0 0.0
  %3085 = vmatmul.mubr.f32.gmra.mxu0 %v3018
  %v3086 = vpop.f32.mrf.mxu0
  %v3087 = vadd.f32 0.0, %v3086
  %v3088 = vpop.f32.mrf.mxu0
  %3089 = vdwg.mxu0
  %v3090 = vlaneseq
  %v3091 = vshrl.u32 %v3090, 7
  %v3092 = vsub.s32 0, %v3091
  %v3093 = vrot.slane %v3011, %v3092
  %3094 = vrot.lane.b32.xlu0 %v3093, 96
  %v3095 = vpop.permute.xlu0 %3094
  %v3096 = vsel %vm60, %v3095, 0
  %3098 = vmatprep.subr.mxu0 0.0
  %3099 = vmatpush1.xpose.msra.mxu0 0.0
  %3100 = vmatprep.subr.mxu0 0.0
  %3101 = vmatpush1.xpose.msra.mxu0 0.0
  %3102 = vmatprep.subr.mxu0 0.0
  %3103 = vmatpush1.xpose.msra.mxu0 0.0
  %3104 = vmatprep.subr.mxu0 0.0
  %3105 = vmatpush1.xpose.msra.mxu0 0.0
  %3106 = vmatprep.subr.mxu0 0.0
  %3107 = vmatpush1.xpose.msra.mxu0 0.0
  %3108 = vmatprep.subr.mxu0 0.0
  %3109 = vmatpush1.xpose.msra.mxu0 0.0
  %3110 = vmatprep.subr.mxu0 0.0
  %3111 = vmatpush1.xpose.msra.mxu0 0.0
  %3112 = vmatprep.subr.mxu0 0.0
  %3113 = vmatpush1.xpose.msra.mxu0 0.0
  %3114 = vmatprep.subr.mxu0 0.0
  %3115 = vmatpush1.xpose.msra.mxu0 0.0
  %3116 = vmatprep.subr.mxu0 0.0
  %3117 = vmatpush1.xpose.msra.mxu0 0.0
  %3118 = vmatprep.subr.mxu0 0.0
  %3119 = vmatpush1.xpose.msra.mxu0 0.0
  %3120 = vmatprep.subr.mxu0 0.0
  %3121 = vmatpush1.xpose.msra.mxu0 0.0
  %3122 = vmatprep.subr.mxu0 0.0
  %3123 = vmatpush1.xpose.msra.mxu0 0.0
  %3124 = vmatprep.subr.mxu0 0.0
  %3125 = vmatpush1.xpose.msra.mxu0 0.0
  %3126 = vmatprep.subr.mxu0 0.0
  %3127 = vmatpush1.xpose.msra.mxu0 0.0
  %3128 = vmatprep.subr.mxu0 0.0
  %3129 = vmatpush1.xpose.msra.mxu0 %v424
  %3130 = vmatprep.subr.mxu0 0.0
  %3131 = vmatpush2.xpose.msra.mxu0 0.0
  %3132 = vmatprep.subr.mxu0 0.0
  %3133 = vmatpush2.xpose.msra.mxu0 0.0
  %3134 = vmatprep.subr.mxu0 0.0
  %3135 = vmatpush2.xpose.msra.mxu0 0.0
  %3136 = vmatprep.subr.mxu0 0.0
  %3137 = vmatpush2.xpose.msra.mxu0 0.0
  %3138 = vmatprep.subr.mxu0 0.0
  %3139 = vmatpush2.xpose.msra.mxu0 0.0
  %3140 = vmatprep.subr.mxu0 0.0
  %3141 = vmatpush2.xpose.msra.mxu0 0.0
  %3142 = vmatprep.subr.mxu0 0.0
  %3143 = vmatpush2.xpose.msra.mxu0 0.0
  %3144 = vmatprep.subr.mxu0 0.0
  %3145 = vmatpush2.xpose.msra.mxu0 0.0
  %3146 = vmatprep.subr.mxu0 0.0
  %3147 = vmatpush2.xpose.msra.mxu0 0.0
  %3148 = vmatprep.subr.mxu0 0.0
  %3149 = vmatpush2.xpose.msra.mxu0 0.0
  %3150 = vmatprep.subr.mxu0 0.0
  %3151 = vmatpush2.xpose.msra.mxu0 0.0
  %3152 = vmatprep.subr.mxu0 0.0
  %3153 = vmatpush2.xpose.msra.mxu0 0.0
  %3154 = vmatprep.subr.mxu0 0.0
  %3155 = vmatpush2.xpose.msra.mxu0 0.0
  %3156 = vmatprep.subr.mxu0 0.0
  %3157 = vmatpush2.xpose.msra.mxu0 0.0
  %3158 = vmatprep.subr.mxu0 0.0
  %3159 = vmatpush2.xpose.msra.mxu0 0.0
  %3160 = vmatprep.subr.mxu0 0.0
  %3161 = vmatpush2.xpose.msra.mxu0 0.0
  %3162 = vmatprep.mubr.f32.mxu0 0.0
  %3163 = vmatmul.mubr.f32.gmra.mxu0 %v3096
  %v3164 = vpop.f32.mrf.mxu0
  %v3165 = vadd.f32 0.0, %v3164
  %v3166 = vpop.f32.mrf.mxu0
  %3167 = vdwg.mxu0
  %v3168 = vsel %vm496, %v3087, -inf
  %3169 = vmax.xlane.f32.xlu0 %v3168
  %v3170 = vpop.xlane.xlu0 %3169
  %v3171 = vsel %vm496, %v3165, -inf
  %3172 = vmax.xlane.f32.xlu0 %v3171
  %v3173 = vpop.xlane.xlu0 %3172
  %v3174 = vsub.f32 %v3087, %v3170
  %v3175 = vsub.f32 %v3165, %v3173
  %v3176 = vmul.f32 %v3174, 1.442695
  %v3177 = vpow.pop %v3176
  %v3178 = vmul.f32 %v3175, 1.442695
  %v3179 = vpow.pop %v3178
  %v3180 = vsel %vm496, %v3177, 0.0
  %3181 = vadd.xlane.f32.xlu0 %v3180
  %v3182 = vpop.xlane.xlu0 %3181
  %v3183 = vsel %vm496, %v3179, 0.0
  %3184 = vadd.xlane.f32.xlu0 %v3183
  %v3185 = vpop.xlane.xlu0 %3184
  %v3186 = vrcp.pop %v3182
  %v3187 = vrcp.pop %v3185
  %v3188 = vmul.f32 %v3177, %v3186
  %v3189 = vmul.f32 %v3179, %v3187
  %v3191 = vsel %vm519, %v3188, 0
  %3193 = vmatprep.subr.mxu0 0.0
  %3194 = vmatpush1.msra.mxu0 0.0
  %3195 = vmatprep.subr.mxu0 0.0
  %3196 = vmatpush1.msra.mxu0 0.0
  %3197 = vmatprep.subr.mxu0 0.0
  %3198 = vmatpush1.msra.mxu0 0.0
  %3199 = vmatprep.subr.mxu0 0.0
  %3200 = vmatpush1.msra.mxu0 0.0
  %3201 = vmatprep.subr.mxu0 0.0
  %3202 = vmatpush1.msra.mxu0 0.0
  %3203 = vmatprep.subr.mxu0 0.0
  %3204 = vmatpush1.msra.mxu0 0.0
  %3205 = vmatprep.subr.mxu0 0.0
  %3206 = vmatpush1.msra.mxu0 0.0
  %3207 = vmatprep.subr.mxu0 0.0
  %3208 = vmatpush1.msra.mxu0 0.0
  %3209 = vmatprep.subr.mxu0 0.0
  %3210 = vmatpush1.msra.mxu0 0.0
  %3211 = vmatprep.subr.mxu0 0.0
  %3212 = vmatpush1.msra.mxu0 0.0
  %3213 = vmatprep.subr.mxu0 0.0
  %3214 = vmatpush1.msra.mxu0 0.0
  %3215 = vmatprep.subr.mxu0 0.0
  %3216 = vmatpush1.msra.mxu0 0.0
  %3217 = vmatprep.subr.mxu0 0.0
  %3218 = vmatpush1.msra.mxu0 0.0
  %3219 = vmatprep.subr.mxu0 0.0
  %3220 = vmatpush1.msra.mxu0 0.0
  %3221 = vmatprep.subr.mxu0 0.0
  %3222 = vmatpush1.msra.mxu0 0.0
  %3223 = vmatprep.subr.mxu0 0.0
  %3224 = vmatpush1.msra.mxu0 %v31
  %3225 = vmatprep.subr.mxu0 0.0
  %3226 = vmatpush2.msra.mxu0 0.0
  %3227 = vmatprep.subr.mxu0 0.0
  %3228 = vmatpush2.msra.mxu0 0.0
  %3229 = vmatprep.subr.mxu0 0.0
  %3230 = vmatpush2.msra.mxu0 0.0
  %3231 = vmatprep.subr.mxu0 0.0
  %3232 = vmatpush2.msra.mxu0 0.0
  %3233 = vmatprep.subr.mxu0 0.0
  %3234 = vmatpush2.msra.mxu0 0.0
  %3235 = vmatprep.subr.mxu0 0.0
  %3236 = vmatpush2.msra.mxu0 0.0
  %3237 = vmatprep.subr.mxu0 0.0
  %3238 = vmatpush2.msra.mxu0 0.0
  %3239 = vmatprep.subr.mxu0 0.0
  %3240 = vmatpush2.msra.mxu0 0.0
  %3241 = vmatprep.subr.mxu0 0.0
  %3242 = vmatpush2.msra.mxu0 0.0
  %3243 = vmatprep.subr.mxu0 0.0
  %3244 = vmatpush2.msra.mxu0 0.0
  %3245 = vmatprep.subr.mxu0 0.0
  %3246 = vmatpush2.msra.mxu0 0.0
  %3247 = vmatprep.subr.mxu0 0.0
  %3248 = vmatpush2.msra.mxu0 0.0
  %3249 = vmatprep.subr.mxu0 0.0
  %3250 = vmatpush2.msra.mxu0 0.0
  %3251 = vmatprep.subr.mxu0 0.0
  %3252 = vmatpush2.msra.mxu0 0.0
  %3253 = vmatprep.subr.mxu0 0.0
  %3254 = vmatpush2.msra.mxu0 0.0
  %3255 = vmatprep.subr.mxu0 0.0
  %3256 = vmatpush2.msra.mxu0 0.0
  %3257 = vmatprep.mubr.f32.mxu0 0.0
  %3258 = vmatmul.mubr.f32.gmra.mxu0 %v3191
  %v3259 = vpop.f32.mrf.mxu0
  %v3260 = vadd.f32 0.0, %v3259
  %v3261 = vpop.f32.mrf.mxu0
  %3262 = vdwg.mxu0
  %v3264 = vsel %vm519, %v3189, 0
  %3266 = vmatprep.subr.mxu0 0.0
  %3267 = vmatpush1.msra.mxu0 0.0
  %3268 = vmatprep.subr.mxu0 0.0
  %3269 = vmatpush1.msra.mxu0 0.0
  %3270 = vmatprep.subr.mxu0 0.0
  %3271 = vmatpush1.msra.mxu0 0.0
  %3272 = vmatprep.subr.mxu0 0.0
  %3273 = vmatpush1.msra.mxu0 0.0
  %3274 = vmatprep.subr.mxu0 0.0
  %3275 = vmatpush1.msra.mxu0 0.0
  %3276 = vmatprep.subr.mxu0 0.0
  %3277 = vmatpush1.msra.mxu0 0.0
  %3278 = vmatprep.subr.mxu0 0.0
  %3279 = vmatpush1.msra.mxu0 0.0
  %3280 = vmatprep.subr.mxu0 0.0
  %3281 = vmatpush1.msra.mxu0 0.0
  %3282 = vmatprep.subr.mxu0 0.0
  %3283 = vmatpush1.msra.mxu0 0.0
  %3284 = vmatprep.subr.mxu0 0.0
  %3285 = vmatpush1.msra.mxu0 0.0
  %3286 = vmatprep.subr.mxu0 0.0
  %3287 = vmatpush1.msra.mxu0 0.0
  %3288 = vmatprep.subr.mxu0 0.0
  %3289 = vmatpush1.msra.mxu0 0.0
  %3290 = vmatprep.subr.mxu0 0.0
  %3291 = vmatpush1.msra.mxu0 0.0
  %3292 = vmatprep.subr.mxu0 0.0
  %3293 = vmatpush1.msra.mxu0 0.0
  %3294 = vmatprep.subr.mxu0 0.0
  %3295 = vmatpush1.msra.mxu0 0.0
  %3296 = vmatprep.subr.mxu0 0.0
  %3297 = vmatpush1.msra.mxu0 %v32
  %3298 = vmatprep.subr.mxu0 0.0
  %3299 = vmatpush2.msra.mxu0 0.0
  %3300 = vmatprep.subr.mxu0 0.0
  %3301 = vmatpush2.msra.mxu0 0.0
  %3302 = vmatprep.subr.mxu0 0.0
  %3303 = vmatpush2.msra.mxu0 0.0
  %3304 = vmatprep.subr.mxu0 0.0
  %3305 = vmatpush2.msra.mxu0 0.0
  %3306 = vmatprep.subr.mxu0 0.0
  %3307 = vmatpush2.msra.mxu0 0.0
  %3308 = vmatprep.subr.mxu0 0.0
  %3309 = vmatpush2.msra.mxu0 0.0
  %3310 = vmatprep.subr.mxu0 0.0
  %3311 = vmatpush2.msra.mxu0 0.0
  %3312 = vmatprep.subr.mxu0 0.0
  %3313 = vmatpush2.msra.mxu0 0.0
  %3314 = vmatprep.subr.mxu0 0.0
  %3315 = vmatpush2.msra.mxu0 0.0
  %3316 = vmatprep.subr.mxu0 0.0
  %3317 = vmatpush2.msra.mxu0 0.0
  %3318 = vmatprep.subr.mxu0 0.0
  %3319 = vmatpush2.msra.mxu0 0.0
  %3320 = vmatprep.subr.mxu0 0.0
  %3321 = vmatpush2.msra.mxu0 0.0
  %3322 = vmatprep.subr.mxu0 0.0
  %3323 = vmatpush2.msra.mxu0 0.0
  %3324 = vmatprep.subr.mxu0 0.0
  %3325 = vmatpush2.msra.mxu0 0.0
  %3326 = vmatprep.subr.mxu0 0.0
  %3327 = vmatpush2.msra.mxu0 0.0
  %3328 = vmatprep.subr.mxu0 0.0
  %3329 = vmatpush2.msra.mxu0 0.0
  %3330 = vmatprep.mubr.f32.mxu0 0.0
  %3331 = vmatmul.mubr.f32.gmra.mxu0 %v3264
  %v3332 = vpop.f32.mrf.mxu0
  %v3333 = vadd.f32 0.0, %v3332
  %v3334 = vpop.f32.mrf.mxu0
  %3335 = vdwg.mxu0
  %v3336 = vadd.f32 %v3260, 0.0
  %v3337 = vadd.f32 %v3333, 0.0
  %3338 = vrot.lane.b32.xlu0 %v2988, 96
  %v3339 = vpop.permute.xlu0 %3338
  %s3341 = scalar_lea.vmem %s8, 10
  %3342 = vst.msk [vmem:[%s3341] sm:$0x3] %vm671, %v3339
  %v3345 = vrot.slane %v3337, 7
  %v3346 = vsel %vm676, %v3345, %v3336
  %s3348 = scalar_lea.vmem %s9, 10
  %3349 = vst.msk [vmem:[%s3348] sm:$0x3] %vm671, %v3346
  // Predicated region
  $region34: #{attention_model_forward.8} parent=0 // pred_check
    _
  $region35: #{attention_model_forward.8} parent=0 // pred_check_branch
    %3351 = sbr.rel (0) target = $region37
  $region36: #{attention_model_forward.8} parent=0 // pred_region
    _
  $region37: #{attention_model_forward.8} parent=0 // pred_fallthru
    _
  // Predicated region
  $region38: #{attention_model_forward.8} parent=0 // pred_check
    _
  $region39: #{attention_model_forward.8} parent=0 // pred_check_branch
    %3353 = sbr.rel (0) target = $region41
  $region40: #{attention_model_forward.8} parent=0 // pred_region
    _
  $region41: #{attention_model_forward.8} parent=0 // pred_fallthru
    _
  // Predicated region
  $region42: #{attention_model_forward.8} parent=0 // pred_check
    _
  $region43: #{attention_model_forward.8} parent=0 // pred_check_branch
    %3355 = sbr.rel (0) target = $region45
  $region44: #{attention_model_forward.8} parent=0 // pred_region
    _
  $region45: #{attention_model_forward.8} parent=0 // pred_fallthru
    _
  // Predicated region
  $region46: #{attention_model_forward.8} parent=0 // pred_check
    _
  $region47: #{attention_model_forward.8} parent=0 // pred_check_branch
    %3357 = sbr.rel (0) target = $region49
  $region48: #{attention_model_forward.8} parent=0 // pred_region
    _
  $region49: #{attention_model_forward.8} parent=0 // pred_fallthru
    _

</llo_original>
